<compile_context>
chip_gen: v7x
topology: tpu7x:2x2x1
jax: 0.10.0
libtpu: 0.0.40
codegen_flags: <defaults>
</compile_context>

<pallas_src>
import jax
import jax.numpy as jnp
from jax.experimental import pallas as pl
from jax.experimental.pallas import tpu as pltpu

D = 3                       # spatial dimension (d in the PyTorch code)
_VMEM_LIMIT = 64 * 1024 * 1024


# ----------------------------------------------------------------------------
# small helpers
# ----------------------------------------------------------------------------
def _round_up(x, m):
    return ((x + m - 1) // m) * m


def _pad_rows(x, n):
    if x.shape[0] == n:
        return x
    pad = jnp.zeros((n - x.shape[0],) + x.shape[1:], x.dtype)
    return jnp.concatenate([x, pad], axis=0)


# ----------------------------------------------------------------------------
# SA / SA_end Pointnet kernel (B centers per grid step)
#   out[c] = max_{p : ||x_p - c|| < r} MLP([x_p - c, f_p])
#   layer 1 is hoisted:  relu([x_p - c, f_p] @ W1 + b1) == relu(P_p - c @ W1[:3])
# ----------------------------------------------------------------------------
def _make_sa_kernel(r2, B, npts):
    finite_r = (r2 != float("inf"))

    def kernel(centers_ref, coords_ref, valid_ref, p_ref, c1_ref,
               w2_ref, b2_ref, w3_ref, b3_ref, out_ref):
        i = pl.program_id(0)
        P = p_ref[...]                                          # (npts, l1)

        # ---- layer 1 (hoisted affine) for the B centers of this step ----
        parts = []
        for b in range(B):
            c1_row = c1_ref[pl.ds(b, 1), :]                     # (1, l1)
            parts.append(jnp.maximum(P - c1_row, 0.0))          # (npts, l1)
        h1 = jnp.concatenate(parts, axis=0)                     # (B*npts, l1)

        # ---- layers 2/3 as big batched MXU matmuls ----
        h2 = jnp.maximum(
            jnp.dot(h1, w2_ref[...], preferred_element_type=jnp.float32)
            + b2_ref[...], 0.0)
        h3 = jnp.maximum(
            jnp.dot(h2, w3_ref[...], preferred_element_type=jnp.float32)
            + b3_ref[...], 0.0)                                 # (B*npts, l3)

        # ---- per-center ball mask + max-pool ----
        valid = valid_ref[...] > 0.5                            # (npts, 1)
        rows = []
        for b in range(B):
            if finite_r:
                c = centers_ref[pl.ds(i * B + b, 1), :]         # (1, 3)
                rel = coords_ref[...] - c                       # (npts, 3)
                d2 = (rel[:, 0:1] * rel[:, 0:1]
                      + rel[:, 1:2] * rel[:, 1:2]
                      + rel[:, 2:3] * rel[:, 2:3])              # (npts, 1)
                keep = (d2 < r2) & valid
            else:
                keep = valid                                    # SA_end: all points
            hb = h3[b * npts:(b + 1) * npts, :]                 # (npts, l3)
            # each center is itself a member point (dist2 == 0), so the
            # masked set is never empty and the max is always finite.
            masked = jnp.where(keep, hb, -jnp.inf)
            rows.append(jnp.max(masked, axis=0, keepdims=True))
        out_ref[...] = jnp.concatenate(rows, axis=0)            # (B, l3)

    return kernel


def sa_pointnet(centers, coords, feats, pn, radius, block_c=8):
    """One SA (or SA_end with radius=inf) layer: returns (K, l3) features."""
    K = centers.shape[0]
    N = coords.shape[0]
    l3 = pn["w3"].shape[1]
    B = block_c
    K_pad = _round_up(K, B)
    N_pad = _round_up(N, 8)

    coords_p = _pad_rows(coords, N_pad)
    feats_p = _pad_rows(feats, N_pad)
    valid = (jnp.arange(N_pad) < N).astype(jnp.float32)[:, None]
    if K_pad > K:
        centers_p = jnp.concatenate(
            [centers, jnp.broadcast_to(centers[:1], (K_pad - K, D))], axis=0)
    else:
        centers_p = centers

    # Hoisted, center-invariant layer-1 affine: computed ONCE (plain JAX glue,
    # fused by XLA), instead of once per center inside the kernel.
    P = jnp.concatenate([coords_p, feats_p], axis=1) @ pn["w1"] + pn["b1"]
    c1 = centers_p @ pn["w1"][:D]                               # (K_pad, l1)

    args = (centers_p, coords_p, valid, P, c1,
            pn["w2"], pn["b2"], pn["w3"], pn["b3"])
    r2 = float(radius) * float(radius)

    def resident(a):
        return pl.BlockSpec(a.shape, lambda i: (0, 0))

    out = pl.pallas_call(
        _make_sa_kernel(r2, B, N_pad),
        out_shape=jax.ShapeDtypeStruct((K_pad, l3), jnp.float32),
        grid=(K_pad // B,),
        in_specs=[resident(centers_p), resident(coords_p), resident(valid),
                  resident(P),
                  pl.BlockSpec((B, c1.shape[1]), lambda i: (i, 0)),
                  resident(pn["w2"]), resident(pn["b2"]),
                  resident(pn["w3"]), resident(pn["b3"])],
        out_specs=pl.BlockSpec((B, l3), lambda i: (i, 0)),
        compiler_params=pltpu.CompilerParams(
            dimension_semantics=("parallel",),
            vmem_limit_bytes=_VMEM_LIMIT),
    )(*args)
    return out[:K]


# ----------------------------------------------------------------------------
# FP (feature propagation / segmentation) kernel, row-tiled over to-points
#   interp = Wmat @ from_feats        (dense k-NN interpolation weights)
#   x      = [to_feats, interp]       (via split first-layer weights)
#   x      = Linear(+folded-BN eval)(+ReLU) stack
# ----------------------------------------------------------------------------
def _make_fp_kernel(relu_flags):
    n_layers = len(relu_flags)

    def kernel(*refs):
        to_ref, wmat_ref, from_ref = refs[0], refs[1], refs[2]
        p = refs[3:-1]
        out_ref = refs[-1]

        interp = jnp.dot(wmat_ref[...], from_ref[...],
                         preferred_element_type=jnp.float32)
        # layer 0: Linear over concat([to_feats, interp]) via split weights
        x = (jnp.dot(to_ref[...], p[0][...], preferred_element_type=jnp.float32)
             + jnp.dot(interp, p[1][...], preferred_element_type=jnp.float32)
             + p[2][...])
        if relu_flags[0]:
            x = jnp.maximum(x, 0.0)
        idx = 3
        for li in range(1, n_layers):
            x = (jnp.dot(x, p[idx][...], preferred_element_type=jnp.float32)
                 + p[idx + 1][...])
            idx += 2
            if relu_flags[li]:
                x = jnp.maximum(x, 0.0)
        # TODO(synk): Dropout(0.5) after non-last FP stacks uses eval
        #             (identity) semantics; BatchNorm is folded into weights.
        out_ref[...] = x

    return kernel


def fp_forward(to_feats, wmat, from_feats, seg_params, tile_n=256):
    n, c_to = to_feats.shape
    m = from_feats.shape[0]
    out_dim = seg_params["out_dim"]

    tn = min(tile_n, _round_up(n, 8))
    n_pad = _round_up(n, tn)
    to_p = _pad_rows(to_feats, n_pad)
    w_p = _pad_rows(wmat, n_pad)
    flat = list(seg_params["flat"])

    in_specs = [pl.BlockSpec((tn, c_to), lambda i: (i, 0)),
                pl.BlockSpec((tn, m), lambda i: (i, 0)),
                pl.BlockSpec(from_feats.shape, lambda i: (0, 0))]
    in_specs += [pl.BlockSpec(a.shape, lambda i: (0, 0)) for a in flat]

    out = pl.pallas_call(
        _make_fp_kernel(seg_params["relu"]),
        out_shape=jax.ShapeDtypeStruct((n_pad, out_dim), jnp.float32),
        grid=(n_pad // tn,),
        in_specs=in_specs,
        out_specs=pl.BlockSpec((tn, out_dim), lambda i: (i, 0)),
        compiler_params=pltpu.CompilerParams(
            dimension_semantics=("parallel",),
            vmem_limit_bytes=_VMEM_LIMIT),
    )(to_p, w_p, from_feats, *flat)
    return out[:n]


# ----------------------------------------------------------------------------
# plain-JAX glue (sequential / data-dependent index selection)
# ----------------------------------------------------------------------------
def farthest_point_sampling(coords, k):
    # TODO(synk): FPS is a sequential data-dependent argmax chain; kept in JAX.
    n = coords.shape[0]
    k = min(k, n)

    def body(i, state):
        sel, min_d = state
        last = coords[sel[i - 1]]
        d = jnp.sum((coords - last) ** 2, axis=1)
        min_d = jnp.minimum(min_d, d)
        sel = sel.at[i].set(jnp.argmax(min_d).astype(jnp.int32))
        return sel, min_d

    sel0 = jnp.zeros((k,), jnp.int32)            # start at index 0
    min_d0 = jnp.full((n,), jnp.inf, jnp.float32)
    sel, _ = jax.lax.fori_loop(1, k, body, (sel0, min_d0))
    return coords[sel]


def knn_weight_matrix(from_coords, to_coords, k, p):
    """Dense (N_to, M_from) interpolation weights replicating k_means()."""
    m = from_coords.shape[0]
    n = to_coords.shape[0]
    k = min(k, m)
    dists = jnp.sqrt(
        jnp.sum((to_coords[:, None, :] - from_coords[None, :, :]) ** 2, axis=2))
    neg_vals, idx = jax.lax.top_k(-dists, k)      # k smallest distances
    vals = -neg_vals
    w_raw = jnp.power(vals, -float(p))
    w_sum = jnp.sum(w_raw, axis=1, keepdims=True)
    w = w_raw / w_sum
    w = jnp.where(jnp.isnan(w), jnp.float32(1.0), w)   # torch.where(isnan, 1, .)
    rows = jnp.arange(n)[:, None]
    return jnp.zeros((n, m), jnp.float32).at[rows, idx].add(w)


# ----------------------------------------------------------------------------
# parameter construction (deterministic, synthetic)
# ----------------------------------------------------------------------------
def _linear(key, fan_in, fan_out, scale=0.1):
    kw, kb = jax.random.split(key)
    w = scale * jax.random.normal(kw, (fan_in, fan_out), jnp.float32)
    b = scale * jax.random.normal(kb, (1, fan_out), jnp.float32)
    return w, b


def build_pointnet_params(key, feat_dim, L):
    l1, l2, l3 = L
    k1, k2, k3 = jax.random.split(key, 3)
    w1, b1 = _linear(k1, D + feat_dim, l1)   # torch input order: [coords, feats]
    w2, b2 = _linear(k2, l1, l2)
    w3, b3 = _linear(k3, l2, l3)
    return {"w1": w1, "b1": b1, "w2": w2, "b2": b2, "w3": w3, "b3": b3}


def build_fp_params(key, c_to, c_from, L, last, eps=1e-5):
    """Linear(+BatchNorm eval folded into weights)(+ReLU) stack parameters."""
    flat, relu_flags = [], []
    inp = c_to + c_from
    keys = jax.random.split(key, len(L))
    for i, l in enumerate(L):
        w, b = _linear(keys[i], inp, l)
        bn = not (last and i == len(L) - 1)
        if bn:
            kg, kb = jax.random.split(jax.random.fold_in(keys[i], 7))
            gamma = 1.0 + 0.05 * jax.random.normal(kg, (1, l), jnp.float32)
            beta = 0.05 * jax.random.normal(kb, (1, l), jnp.float32)
            rm = jnp.zeros((1, l), jnp.float32)       # running_mean
            rv = jnp.ones((1, l), jnp.float32)        # running_var
            s = gamma * jax.lax.rsqrt(rv + eps)
            w = w * s                                  # fold eval-BN into Linear
            b = (b - rm) * s + beta
        relu_flags.append(bn)
        if i == 0:
            flat += [w[:c_to], w[c_to:], b]   # split: [to_feats, interp] order
        else:
            flat += [w, b]
        inp = l
    return {"flat": flat, "relu": tuple(relu_flags), "out_dim": L[-1]}


def build_params(key, ifd, sa_configs, sa_end_config, seg_inp_dims, fp_configs):
    params = {"sa": [], "seg": []}
    feat_dim = ifd
    for _, _, L in sa_configs:
        key, sub = jax.random.split(key)
        params["sa"].append(build_pointnet_params(sub, feat_dim, L))
        feat_dim = L[-1]
    key, sub = jax.random.split(key)
    params["sa_end"] = build_pointnet_params(sub, feat_dim, sa_end_config)

    feat_dims = [ifd] + [cfg[2][-1] for cfg in sa_configs] + [sa_end_config[-1]]
    for i, fp_cfg in enumerate(fp_configs):
        c_from = feat_dims[-1 - i]
        c_to = feat_dims[-2 - i]
        assert c_to + c_from == seg_inp_dims[i]
        key, sub = jax.random.split(key)
        params["seg"].append(
            build_fp_params(sub, c_to, c_from, fp_cfg,
                            last=(i == len(fp_configs) - 1)))
        feat_dims[-2 - i] = fp_cfg[-1]
    return params


# ----------------------------------------------------------------------------
# full PointNet++ forward (mirrors PointNetpp.forward)
# ----------------------------------------------------------------------------
def pointnetpp_forward(coords, feats, params, sa_configs, k_seg, p_seg):
    sdp = []
    cur_c, cur_f = coords, feats

    # Abstract_net: SA layers
    for pn, (K_, r_, _L) in zip(params["sa"], sa_configs):
        sdp.append((cur_c, cur_f))
        centers = farthest_point_sampling(cur_c, K_)
        cur_f = sa_pointnet(centers, cur_c, cur_f, pn, r_)
        cur_c = centers
    sdp.append((cur_c, cur_f))                       # sdp[-2]

    # SA_end: single group centered at the first point, all points included
    center0 = cur_c[0:1, :]
    end_f = sa_pointnet(center0, cur_c, cur_f, params["sa_end"], float("inf"))
    sdp.append((center0, end_f))                     # sdp[-1]

    # Seg_net: feature propagation back to the input points
    for i, seg in enumerate(params["seg"]):
        from_c, from_f = sdp[-1 - i]
        to_c, to_f = sdp[-2 - i]
        wmat = knn_weight_matrix(from_c, to_c, k_seg, p_seg)
        new_f = fp_forward(to_f, wmat, from_f, seg)
        sdp[-2 - i] = (to_c, new_f)

    return sdp[0]                                    # per-point scores


# ----------------------------------------------------------------------------
if __name__ == "__main__":
    key = jax.random.PRNGKey(0)

    N, IFD = 64, 4
    SA_configs = [[16, 0.45, [16, 16, 32]], [8, 0.90, [32, 32, 64]]]
    SA_end_config = [64, 64, 64]
    FP_configs = [[64, 32], [32, 32], [32, 8]]
    seg_inp_dims = [64 + 64, 32 + 32, 4 + 32]
    k_seg, p_seg = 3, 2.0

    kc, kf, kp = jax.random.split(key, 3)
    coords = jax.random.uniform(kc, (N, D), dtype=jnp.float32)
    feats = 0.5 * jax.random.normal(kf, (N, IFD), dtype=jnp.float32)

    params = build_params(kp, IFD, SA_configs, SA_end_config,
                          seg_inp_dims, FP_configs)

    fwd = jax.jit(lambda c, f: pointnetpp_forward(
        c, f, params, SA_configs, k_seg, p_seg))

    out_coords, out_scores = fwd(coords, feats)
    out_scores = jax.block_until_ready(out_scores)

    assert out_coords.shape == (N, D)
    assert out_scores.shape == (N, FP_configs[-1][-1])
    assert bool(jnp.all(jnp.isfinite(out_scores)))
    print("KERNEL_OK")
</pallas_src>

<mosaic_0001>
module attributes {stable_mosaic.version = 11 : i64} {
  func.func private @main(%arg0: i32) attributes {dimension_semantics = [#tpu.dimension_semantics<core_parallel>], iteration_bounds = array<i64: 2>, tpu.core_type = #tpu.core_type<sc_scalar_subcore>, window_params = []} {
    return
  }
}

module attributes {stable_mosaic.version = 11 : i64} {
  func.func private @main(%arg0: i32) attributes {dimension_semantics = [#tpu.dimension_semantics<core_parallel>], iteration_bounds = array<i64: 2>, tpu.core_type = #tpu.core_type<sc_scalar_subcore>, window_params = []} {
    return
  }
}

module attributes {stable_mosaic.version = 11 : i64} {
  func.func @kernel(%arg0: i32, %arg1: memref<8x3xf32, #tpu.memory_space<vmem>>, %arg2: memref<8x3xf32, #tpu.memory_space<vmem>>, %arg3: memref<8x1xf32, #tpu.memory_space<vmem>>, %arg4: memref<8x64xf32, #tpu.memory_space<vmem>>, %arg5: memref<8x64xf32, #tpu.memory_space<vmem>>, %arg6: memref<64x64xf32, #tpu.memory_space<vmem>>, %arg7: memref<1x64xf32, #tpu.memory_space<vmem>>, %arg8: memref<64x64xf32, #tpu.memory_space<vmem>>, %arg9: memref<1x64xf32, #tpu.memory_space<vmem>>, %arg10: memref<8x64xf32, #tpu.memory_space<vmem>>) attributes {dimension_semantics = [#tpu.dimension_semantics<parallel>], iteration_bounds = array<i64: 1>, scalar_prefetch = 0 : i64, scratch_operands = 0 : i64, tpu.core_type = #tpu.core_type<tc>, window_params = [{pipeline_mode = #tpu.pipeline_mode<synchronous>, transform_indices = @transform_0, window_bounds = array<i64: 8, 3>}, {pipeline_mode = #tpu.pipeline_mode<synchronous>, transform_indices = @transform_1, window_bounds = array<i64: 8, 3>}, {pipeline_mode = #tpu.pipeline_mode<synchronous>, transform_indices = @transform_2, window_bounds = array<i64: 8, 1>}, {pipeline_mode = #tpu.pipeline_mode<synchronous>, transform_indices = @transform_3, window_bounds = array<i64: 8, 64>}, {transform_indices = @transform_4, window_bounds = array<i64: 8, 64>}, {pipeline_mode = #tpu.pipeline_mode<synchronous>, transform_indices = @transform_5, window_bounds = array<i64: 64, 64>}, {pipeline_mode = #tpu.pipeline_mode<synchronous>, transform_indices = @transform_6, window_bounds = array<i64: 1, 64>}, {pipeline_mode = #tpu.pipeline_mode<synchronous>, transform_indices = @transform_7, window_bounds = array<i64: 64, 64>}, {pipeline_mode = #tpu.pipeline_mode<synchronous>, transform_indices = @transform_8, window_bounds = array<i64: 1, 64>}, {transform_indices = @transform_9, window_bounds = array<i64: 8, 64>}]} {
    %c0 = arith.constant 0 : index
    %c0_0 = arith.constant 0 : index
    %0 = vector.load %arg4[%c0, %c0_0] : memref<8x64xf32, #tpu.memory_space<vmem>>, vector<8x64xf32>
    %c0_1 = arith.constant 0 : index
    %c0_2 = arith.constant 0 : index
    %1 = vector.load %arg5[%c0_1, %c0_2] : memref<8x64xf32, #tpu.memory_space<vmem>>, vector<1x64xf32>
    %2 = vector.broadcast %1 : vector<1x64xf32> to vector<8x64xf32>
    %3 = arith.subf %0, %2 : vector<8x64xf32>
    %cst = arith.constant 0.000000e+00 : f32
    %4 = vector.broadcast %cst : f32 to vector<8x64xf32>
    %5 = arith.maximumf %3, %4 : vector<8x64xf32>
    %c1 = arith.constant 1 : index
    %c0_3 = arith.constant 0 : index
    %6 = vector.load %arg5[%c1, %c0_3] : memref<8x64xf32, #tpu.memory_space<vmem>>, vector<1x64xf32>
    %7 = vector.broadcast %6 : vector<1x64xf32> to vector<8x64xf32>
    %8 = arith.subf %0, %7 : vector<8x64xf32>
    %cst_4 = arith.constant 0.000000e+00 : f32
    %9 = vector.broadcast %cst_4 : f32 to vector<8x64xf32>
    %10 = arith.maximumf %8, %9 : vector<8x64xf32>
    %c2 = arith.constant 2 : index
    %c0_5 = arith.constant 0 : index
    %11 = vector.load %arg5[%c2, %c0_5] : memref<8x64xf32, #tpu.memory_space<vmem>>, vector<1x64xf32>
    %12 = vector.broadcast %11 : vector<1x64xf32> to vector<8x64xf32>
    %13 = arith.subf %0, %12 : vector<8x64xf32>
    %cst_6 = arith.constant 0.000000e+00 : f32
    %14 = vector.broadcast %cst_6 : f32 to vector<8x64xf32>
    %15 = arith.maximumf %13, %14 : vector<8x64xf32>
    %c3 = arith.constant 3 : index
    %c0_7 = arith.constant 0 : index
    %16 = vector.load %arg5[%c3, %c0_7] : memref<8x64xf32, #tpu.memory_space<vmem>>, vector<1x64xf32>
    %17 = vector.broadcast %16 : vector<1x64xf32> to vector<8x64xf32>
    %18 = arith.subf %0, %17 : vector<8x64xf32>
    %cst_8 = arith.constant 0.000000e+00 : f32
    %19 = vector.broadcast %cst_8 : f32 to vector<8x64xf32>
    %20 = arith.maximumf %18, %19 : vector<8x64xf32>
    %c4 = arith.constant 4 : index
    %c0_9 = arith.constant 0 : index
    %21 = vector.load %arg5[%c4, %c0_9] : memref<8x64xf32, #tpu.memory_space<vmem>>, vector<1x64xf32>
    %22 = vector.broadcast %21 : vector<1x64xf32> to vector<8x64xf32>
    %23 = arith.subf %0, %22 : vector<8x64xf32>
    %cst_10 = arith.constant 0.000000e+00 : f32
    %24 = vector.broadcast %cst_10 : f32 to vector<8x64xf32>
    %25 = arith.maximumf %23, %24 : vector<8x64xf32>
    %c5 = arith.constant 5 : index
    %c0_11 = arith.constant 0 : index
    %26 = vector.load %arg5[%c5, %c0_11] : memref<8x64xf32, #tpu.memory_space<vmem>>, vector<1x64xf32>
    %27 = vector.broadcast %26 : vector<1x64xf32> to vector<8x64xf32>
    %28 = arith.subf %0, %27 : vector<8x64xf32>
    %cst_12 = arith.constant 0.000000e+00 : f32
    %29 = vector.broadcast %cst_12 : f32 to vector<8x64xf32>
    %30 = arith.maximumf %28, %29 : vector<8x64xf32>
    %c6 = arith.constant 6 : index
    %c0_13 = arith.constant 0 : index
    %31 = vector.load %arg5[%c6, %c0_13] : memref<8x64xf32, #tpu.memory_space<vmem>>, vector<1x64xf32>
    %32 = vector.broadcast %31 : vector<1x64xf32> to vector<8x64xf32>
    %33 = arith.subf %0, %32 : vector<8x64xf32>
    %cst_14 = arith.constant 0.000000e+00 : f32
    %34 = vector.broadcast %cst_14 : f32 to vector<8x64xf32>
    %35 = arith.maximumf %33, %34 : vector<8x64xf32>
    %c7 = arith.constant 7 : index
    %c0_15 = arith.constant 0 : index
    %36 = vector.load %arg5[%c7, %c0_15] : memref<8x64xf32, #tpu.memory_space<vmem>>, vector<1x64xf32>
    %37 = vector.broadcast %36 : vector<1x64xf32> to vector<8x64xf32>
    %38 = arith.subf %0, %37 : vector<8x64xf32>
    %cst_16 = arith.constant 0.000000e+00 : f32
    %39 = vector.broadcast %cst_16 : f32 to vector<8x64xf32>
    %40 = arith.maximumf %38, %39 : vector<8x64xf32>
    %41 = tpu.concatenate %5, %10, %15, %20, %25, %30, %35, %40 in 0 : vector<8x64xf32>, vector<8x64xf32>, vector<8x64xf32>, vector<8x64xf32>, vector<8x64xf32>, vector<8x64xf32>, vector<8x64xf32>, vector<8x64xf32> -> vector<64x64xf32>
    %c0_17 = arith.constant 0 : index
    %c0_18 = arith.constant 0 : index
    %42 = vector.load %arg6[%c0_17, %c0_18] : memref<64x64xf32, #tpu.memory_space<vmem>>, vector<64x64xf32>
    %cst_19 = arith.constant dense<0.000000e+00> : vector<64x64xf32>
    %43 = tpu.matmul %41, %42, %cst_19 {dimension_numbers = #tpu.dot_dimension_numbers<[1], [0], [0], [1], [0, 0, 1, 1], [], []>} : vector<64x64xf32>, vector<64x64xf32>, vector<64x64xf32> -> vector<64x64xf32>
    %c0_20 = arith.constant 0 : index
    %c0_21 = arith.constant 0 : index
    %44 = vector.load %arg7[%c0_20, %c0_21] : memref<1x64xf32, #tpu.memory_space<vmem>>, vector<1x64xf32>
    %45 = vector.broadcast %44 : vector<1x64xf32> to vector<64x64xf32>
    %46 = arith.addf %43, %45 : vector<64x64xf32>
    %cst_22 = arith.constant 0.000000e+00 : f32
    %47 = vector.broadcast %cst_22 : f32 to vector<64x64xf32>
    %48 = arith.maximumf %46, %47 : vector<64x64xf32>
    %c0_23 = arith.constant 0 : index
    %c0_24 = arith.constant 0 : index
    %49 = vector.load %arg8[%c0_23, %c0_24] : memref<64x64xf32, #tpu.memory_space<vmem>>, vector<64x64xf32>
    %cst_25 = arith.constant dense<0.000000e+00> : vector<64x64xf32>
    %50 = tpu.matmul %48, %49, %cst_25 {dimension_numbers = #tpu.dot_dimension_numbers<[1], [0], [0], [1], [0, 0, 1, 1], [], []>} : vector<64x64xf32>, vector<64x64xf32>, vector<64x64xf32> -> vector<64x64xf32>
    %c0_26 = arith.constant 0 : index
    %c0_27 = arith.constant 0 : index
    %51 = vector.load %arg9[%c0_26, %c0_27] : memref<1x64xf32, #tpu.memory_space<vmem>>, vector<1x64xf32>
    %52 = vector.broadcast %51 : vector<1x64xf32> to vector<64x64xf32>
    %53 = arith.addf %50, %52 : vector<64x64xf32>
    %cst_28 = arith.constant 0.000000e+00 : f32
    %54 = vector.broadcast %cst_28 : f32 to vector<64x64xf32>
    %55 = arith.maximumf %53, %54 : vector<64x64xf32>
    %c0_29 = arith.constant 0 : index
    %c0_30 = arith.constant 0 : index
    %56 = vector.load %arg3[%c0_29, %c0_30] : memref<8x1xf32, #tpu.memory_space<vmem>>, vector<8x1xf32>
    %cst_31 = arith.constant 5.000000e-01 : f32
    %57 = vector.broadcast %cst_31 : f32 to vector<8x1xf32>
    %58 = arith.cmpf ogt, %56, %57 : vector<8x1xf32>
    %59 = vector.extract_strided_slice %55 {offsets = [0, 0], sizes = [8, 64], strides = [1, 1]} : vector<64x64xf32> to vector<8x64xf32>
    %cst_32 = arith.constant 0xFF800000 : f32
    %60 = vector.shape_cast %58 : vector<8x1xi1> to vector<8x1xi1>
    %61 = vector.broadcast %60 : vector<8x1xi1> to vector<8x64xi1>
    %62 = vector.broadcast %cst_32 : f32 to vector<8x64xf32>
    %63 = arith.select %61, %59, %62 : vector<8x64xi1>, vector<8x64xf32>
    %cst_33 = arith.constant dense<0xFF800000> : vector<64xf32>
    %64 = vector.multi_reduction <maximumf>, %63, %cst_33 [0] : vector<8x64xf32> to vector<64xf32>
    %65 = vector.shape_cast %64 : vector<64xf32> to vector<1x64xf32>
    %66 = vector.extract_strided_slice %55 {offsets = [8, 0], sizes = [8, 64], strides = [1, 1]} : vector<64x64xf32> to vector<8x64xf32>
    %cst_34 = arith.constant 0xFF800000 : f32
    %67 = vector.shape_cast %58 : vector<8x1xi1> to vector<8x1xi1>
    %68 = vector.broadcast %67 : vector<8x1xi1> to vector<8x64xi1>
    %69 = vector.broadcast %cst_34 : f32 to vector<8x64xf32>
    %70 = arith.select %68, %66, %69 : vector<8x64xi1>, vector<8x64xf32>
    %cst_35 = arith.constant dense<0xFF800000> : vector<64xf32>
    %71 = vector.multi_reduction <maximumf>, %70, %cst_35 [0] : vector<8x64xf32> to vector<64xf32>
    %72 = vector.shape_cast %71 : vector<64xf32> to vector<1x64xf32>
    %73 = vector.extract_strided_slice %55 {offsets = [16, 0], sizes = [8, 64], strides = [1, 1]} : vector<64x64xf32> to vector<8x64xf32>
    %cst_36 = arith.constant 0xFF800000 : f32
    %74 = vector.shape_cast %58 : vector<8x1xi1> to vector<8x1xi1>
    %75 = vector.broadcast %74 : vector<8x1xi1> to vector<8x64xi1>
    %76 = vector.broadcast %cst_36 : f32 to vector<8x64xf32>
    %77 = arith.select %75, %73, %76 : vector<8x64xi1>, vector<8x64xf32>
    %cst_37 = arith.constant dense<0xFF800000> : vector<64xf32>
    %78 = vector.multi_reduction <maximumf>, %77, %cst_37 [0] : vector<8x64xf32> to vector<64xf32>
    %79 = vector.shape_cast %78 : vector<64xf32> to vector<1x64xf32>
    %80 = vector.extract_strided_slice %55 {offsets = [24, 0], sizes = [8, 64], strides = [1, 1]} : vector<64x64xf32> to vector<8x64xf32>
    %cst_38 = arith.constant 0xFF800000 : f32
    %81 = vector.shape_cast %58 : vector<8x1xi1> to vector<8x1xi1>
    %82 = vector.broadcast %81 : vector<8x1xi1> to vector<8x64xi1>
    %83 = vector.broadcast %cst_38 : f32 to vector<8x64xf32>
    %84 = arith.select %82, %80, %83 : vector<8x64xi1>, vector<8x64xf32>
    %cst_39 = arith.constant dense<0xFF800000> : vector<64xf32>
    %85 = vector.multi_reduction <maximumf>, %84, %cst_39 [0] : vector<8x64xf32> to vector<64xf32>
    %86 = vector.shape_cast %85 : vector<64xf32> to vector<1x64xf32>
    %87 = vector.extract_strided_slice %55 {offsets = [32, 0], sizes = [8, 64], strides = [1, 1]} : vector<64x64xf32> to vector<8x64xf32>
    %cst_40 = arith.constant 0xFF800000 : f32
    %88 = vector.shape_cast %58 : vector<8x1xi1> to vector<8x1xi1>
    %89 = vector.broadcast %88 : vector<8x1xi1> to vector<8x64xi1>
    %90 = vector.broadcast %cst_40 : f32 to vector<8x64xf32>
    %91 = arith.select %89, %87, %90 : vector<8x64xi1>, vector<8x64xf32>
    %cst_41 = arith.constant dense<0xFF800000> : vector<64xf32>
    %92 = vector.multi_reduction <maximumf>, %91, %cst_41 [0] : vector<8x64xf32> to vector<64xf32>
    %93 = vector.shape_cast %92 : vector<64xf32> to vector<1x64xf32>
    %94 = vector.extract_strided_slice %55 {offsets = [40, 0], sizes = [8, 64], strides = [1, 1]} : vector<64x64xf32> to vector<8x64xf32>
    %cst_42 = arith.constant 0xFF800000 : f32
    %95 = vector.shape_cast %58 : vector<8x1xi1> to vector<8x1xi1>
    %96 = vector.broadcast %95 : vector<8x1xi1> to vector<8x64xi1>
    %97 = vector.broadcast %cst_42 : f32 to vector<8x64xf32>
    %98 = arith.select %96, %94, %97 : vector<8x64xi1>, vector<8x64xf32>
    %cst_43 = arith.constant dense<0xFF800000> : vector<64xf32>
    %99 = vector.multi_reduction <maximumf>, %98, %cst_43 [0] : vector<8x64xf32> to vector<64xf32>
    %100 = vector.shape_cast %99 : vector<64xf32> to vector<1x64xf32>
    %101 = vector.extract_strided_slice %55 {offsets = [48, 0], sizes = [8, 64], strides = [1, 1]} : vector<64x64xf32> to vector<8x64xf32>
    %cst_44 = arith.constant 0xFF800000 : f32
    %102 = vector.shape_cast %58 : vector<8x1xi1> to vector<8x1xi1>
    %103 = vector.broadcast %102 : vector<8x1xi1> to vector<8x64xi1>
    %104 = vector.broadcast %cst_44 : f32 to vector<8x64xf32>
    %105 = arith.select %103, %101, %104 : vector<8x64xi1>, vector<8x64xf32>
    %cst_45 = arith.constant dense<0xFF800000> : vector<64xf32>
    %106 = vector.multi_reduction <maximumf>, %105, %cst_45 [0] : vector<8x64xf32> to vector<64xf32>
    %107 = vector.shape_cast %106 : vector<64xf32> to vector<1x64xf32>
    %108 = vector.extract_strided_slice %55 {offsets = [56, 0], sizes = [8, 64], strides = [1, 1]} : vector<64x64xf32> to vector<8x64xf32>
    %cst_46 = arith.constant 0xFF800000 : f32
    %109 = vector.shape_cast %58 : vector<8x1xi1> to vector<8x1xi1>
    %110 = vector.broadcast %109 : vector<8x1xi1> to vector<8x64xi1>
    %111 = vector.broadcast %cst_46 : f32 to vector<8x64xf32>
    %112 = arith.select %110, %108, %111 : vector<8x64xi1>, vector<8x64xf32>
    %cst_47 = arith.constant dense<0xFF800000> : vector<64xf32>
    %113 = vector.multi_reduction <maximumf>, %112, %cst_47 [0] : vector<8x64xf32> to vector<64xf32>
    %114 = vector.shape_cast %113 : vector<64xf32> to vector<1x64xf32>
    %115 = tpu.concatenate %65, %72, %79, %86, %93, %100, %107, %114 in 0 : vector<1x64xf32>, vector<1x64xf32>, vector<1x64xf32>, vector<1x64xf32>, vector<1x64xf32>, vector<1x64xf32>, vector<1x64xf32>, vector<1x64xf32> -> vector<8x64xf32>
    %c0_48 = arith.constant 0 : index
    %c0_49 = arith.constant 0 : index
    %116 = vector.load %arg10[%c0_48, %c0_49] : memref<8x64xf32, #tpu.memory_space<vmem>>, vector<8x64xf32>
    tpu.vector_store %arg10[%c0_48, %c0_49], %115 {strides = array<i32>} : memref<8x64xf32, #tpu.memory_space<vmem>>, vector<8x64xf32>,
    return
  }
  func.func @transform_0(%arg0: i32) -> (i32, i32) {
    %c0_i32 = arith.constant 0 : i32
    %c0_i32_0 = arith.constant 0 : i32
    %c0_i32_1 = arith.constant 0 : i32
    return %c0_i32, %c0_i32_0 : i32, i32
  }
  func.func @transform_1(%arg0: i32) -> (i32, i32) {
    %c0_i32 = arith.constant 0 : i32
    %c0_i32_0 = arith.constant 0 : i32
    %c0_i32_1 = arith.constant 0 : i32
    return %c0_i32, %c0_i32_0 : i32, i32
  }
  func.func @transform_2(%arg0: i32) -> (i32, i32) {
    %c0_i32 = arith.constant 0 : i32
    %c0_i32_0 = arith.constant 0 : i32
    %c0_i32_1 = arith.constant 0 : i32
    return %c0_i32, %c0_i32_0 : i32, i32
  }
  func.func @transform_3(%arg0: i32) -> (i32, i32) {
    %c0_i32 = arith.constant 0 : i32
    %c0_i32_0 = arith.constant 0 : i32
    %c0_i32_1 = arith.constant 0 : i32
    return %c0_i32, %c0_i32_0 : i32, i32
  }
  func.func @transform_4(%arg0: i32) -> (i32, i32) {
    %c0_i32 = arith.constant 0 : i32
    %c0_i32_0 = arith.constant 0 : i32
    return %arg0, %c0_i32 : i32, i32
  }
  func.func @transform_5(%arg0: i32) -> (i32, i32) {
    %c0_i32 = arith.constant 0 : i32
    %c0_i32_0 = arith.constant 0 : i32
    %c0_i32_1 = arith.constant 0 : i32
    return %c0_i32, %c0_i32_0 : i32, i32
  }
  func.func @transform_6(%arg0: i32) -> (i32, i32) {
    %c0_i32 = arith.constant 0 : i32
    %c0_i32_0 = arith.constant 0 : i32
    %c0_i32_1 = arith.constant 0 : i32
    return %c0_i32, %c0_i32_0 : i32, i32
  }
  func.func @transform_7(%arg0: i32) -> (i32, i32) {
    %c0_i32 = arith.constant 0 : i32
    %c0_i32_0 = arith.constant 0 : i32
    %c0_i32_1 = arith.constant 0 : i32
    return %c0_i32, %c0_i32_0 : i32, i32
  }
  func.func @transform_8(%arg0: i32) -> (i32, i32) {
    %c0_i32 = arith.constant 0 : i32
    %c0_i32_0 = arith.constant 0 : i32
    %c0_i32_1 = arith.constant 0 : i32
    return %c0_i32, %c0_i32_0 : i32, i32
  }
  func.func @transform_9(%arg0: i32) -> (i32, i32) {
    %c0_i32 = arith.constant 0 : i32
    %c0_i32_0 = arith.constant 0 : i32
    return %arg0, %c0_i32 : i32, i32
  }
}

module attributes {stable_mosaic.version = 11 : i64} {
  func.func @kernel(%arg0: i32, %arg1: memref<16x3xf32, #tpu.memory_space<vmem>>, %arg2: memref<64x3xf32, #tpu.memory_space<vmem>>, %arg3: memref<64x1xf32, #tpu.memory_space<vmem>>, %arg4: memref<64x16xf32, #tpu.memory_space<vmem>>, %arg5: memref<8x16xf32, #tpu.memory_space<vmem>>, %arg6: memref<16x16xf32, #tpu.memory_space<vmem>>, %arg7: memref<1x16xf32, #tpu.memory_space<vmem>>, %arg8: memref<16x32xf32, #tpu.memory_space<vmem>>, %arg9: memref<1x32xf32, #tpu.memory_space<vmem>>, %arg10: memref<8x32xf32, #tpu.memory_space<vmem>>) attributes {dimension_semantics = [#tpu.dimension_semantics<parallel>], iteration_bounds = array<i64: 2>, scalar_prefetch = 0 : i64, scratch_operands = 0 : i64, tpu.core_type = #tpu.core_type<tc>, window_params = [{pipeline_mode = #tpu.pipeline_mode<synchronous>, transform_indices = @transform_0, window_bounds = array<i64: 16, 3>}, {pipeline_mode = #tpu.pipeline_mode<synchronous>, transform_indices = @transform_1, window_bounds = array<i64: 64, 3>}, {pipeline_mode = #tpu.pipeline_mode<synchronous>, transform_indices = @transform_2, window_bounds = array<i64: 64, 1>}, {pipeline_mode = #tpu.pipeline_mode<synchronous>, transform_indices = @transform_3, window_bounds = array<i64: 64, 16>}, {transform_indices = @transform_4, window_bounds = array<i64: 8, 16>}, {pipeline_mode = #tpu.pipeline_mode<synchronous>, transform_indices = @transform_5, window_bounds = array<i64: 16, 16>}, {pipeline_mode = #tpu.pipeline_mode<synchronous>, transform_indices = @transform_6, window_bounds = array<i64: 1, 16>}, {pipeline_mode = #tpu.pipeline_mode<synchronous>, transform_indices = @transform_7, window_bounds = array<i64: 16, 32>}, {pipeline_mode = #tpu.pipeline_mode<synchronous>, transform_indices = @transform_8, window_bounds = array<i64: 1, 32>}, {transform_indices = @transform_9, window_bounds = array<i64: 8, 32>}]} {
    %c0 = arith.constant 0 : index
    %c0_0 = arith.constant 0 : index
    %0 = vector.load %arg4[%c0, %c0_0] : memref<64x16xf32, #tpu.memory_space<vmem>>, vector<64x16xf32>
    %c0_1 = arith.constant 0 : index
    %c0_2 = arith.constant 0 : index
    %1 = vector.load %arg5[%c0_1, %c0_2] : memref<8x16xf32, #tpu.memory_space<vmem>>, vector<1x16xf32>
    %2 = vector.broadcast %1 : vector<1x16xf32> to vector<64x16xf32>
    %3 = arith.subf %0, %2 : vector<64x16xf32>
    %cst = arith.constant 0.000000e+00 : f32
    %4 = vector.broadcast %cst : f32 to vector<64x16xf32>
    %5 = arith.maximumf %3, %4 : vector<64x16xf32>
    %c1 = arith.constant 1 : index
    %c0_3 = arith.constant 0 : index
    %6 = vector.load %arg5[%c1, %c0_3] : memref<8x16xf32, #tpu.memory_space<vmem>>, vector<1x16xf32>
    %7 = vector.broadcast %6 : vector<1x16xf32> to vector<64x16xf32>
    %8 = arith.subf %0, %7 : vector<64x16xf32>
    %cst_4 = arith.constant 0.000000e+00 : f32
    %9 = vector.broadcast %cst_4 : f32 to vector<64x16xf32>
    %10 = arith.maximumf %8, %9 : vector<64x16xf32>
    %c2 = arith.constant 2 : index
    %c0_5 = arith.constant 0 : index
    %11 = vector.load %arg5[%c2, %c0_5] : memref<8x16xf32, #tpu.memory_space<vmem>>, vector<1x16xf32>
    %12 = vector.broadcast %11 : vector<1x16xf32> to vector<64x16xf32>
    %13 = arith.subf %0, %12 : vector<64x16xf32>
    %cst_6 = arith.constant 0.000000e+00 : f32
    %14 = vector.broadcast %cst_6 : f32 to vector<64x16xf32>
    %15 = arith.maximumf %13, %14 : vector<64x16xf32>
    %c3 = arith.constant 3 : index
    %c0_7 = arith.constant 0 : index
    %16 = vector.load %arg5[%c3, %c0_7] : memref<8x16xf32, #tpu.memory_space<vmem>>, vector<1x16xf32>
    %17 = vector.broadcast %16 : vector<1x16xf32> to vector<64x16xf32>
    %18 = arith.subf %0, %17 : vector<64x16xf32>
    %cst_8 = arith.constant 0.000000e+00 : f32
    %19 = vector.broadcast %cst_8 : f32 to vector<64x16xf32>
    %20 = arith.maximumf %18, %19 : vector<64x16xf32>
    %c4 = arith.constant 4 : index
    %c0_9 = arith.constant 0 : index
    %21 = vector.load %arg5[%c4, %c0_9] : memref<8x16xf32, #tpu.memory_space<vmem>>, vector<1x16xf32>
    %22 = vector.broadcast %21 : vector<1x16xf32> to vector<64x16xf32>
    %23 = arith.subf %0, %22 : vector<64x16xf32>
    %cst_10 = arith.constant 0.000000e+00 : f32
    %24 = vector.broadcast %cst_10 : f32 to vector<64x16xf32>
    %25 = arith.maximumf %23, %24 : vector<64x16xf32>
    %c5 = arith.constant 5 : index
    %c0_11 = arith.constant 0 : index
    %26 = vector.load %arg5[%c5, %c0_11] : memref<8x16xf32, #tpu.memory_space<vmem>>, vector<1x16xf32>
    %27 = vector.broadcast %26 : vector<1x16xf32> to vector<64x16xf32>
    %28 = arith.subf %0, %27 : vector<64x16xf32>
    %cst_12 = arith.constant 0.000000e+00 : f32
    %29 = vector.broadcast %cst_12 : f32 to vector<64x16xf32>
    %30 = arith.maximumf %28, %29 : vector<64x16xf32>
    %c6 = arith.constant 6 : index
    %c0_13 = arith.constant 0 : index
    %31 = vector.load %arg5[%c6, %c0_13] : memref<8x16xf32, #tpu.memory_space<vmem>>, vector<1x16xf32>
    %32 = vector.broadcast %31 : vector<1x16xf32> to vector<64x16xf32>
    %33 = arith.subf %0, %32 : vector<64x16xf32>
    %cst_14 = arith.constant 0.000000e+00 : f32
    %34 = vector.broadcast %cst_14 : f32 to vector<64x16xf32>
    %35 = arith.maximumf %33, %34 : vector<64x16xf32>
    %c7 = arith.constant 7 : index
    %c0_15 = arith.constant 0 : index
    %36 = vector.load %arg5[%c7, %c0_15] : memref<8x16xf32, #tpu.memory_space<vmem>>, vector<1x16xf32>
    %37 = vector.broadcast %36 : vector<1x16xf32> to vector<64x16xf32>
    %38 = arith.subf %0, %37 : vector<64x16xf32>
    %cst_16 = arith.constant 0.000000e+00 : f32
    %39 = vector.broadcast %cst_16 : f32 to vector<64x16xf32>
    %40 = arith.maximumf %38, %39 : vector<64x16xf32>
    %41 = tpu.concatenate %5, %10, %15, %20, %25, %30, %35, %40 in 0 : vector<64x16xf32>, vector<64x16xf32>, vector<64x16xf32>, vector<64x16xf32>, vector<64x16xf32>, vector<64x16xf32>, vector<64x16xf32>, vector<64x16xf32> -> vector<512x16xf32>
    %c0_17 = arith.constant 0 : index
    %c0_18 = arith.constant 0 : index
    %42 = vector.load %arg6[%c0_17, %c0_18] : memref<16x16xf32, #tpu.memory_space<vmem>>, vector<16x16xf32>
    %cst_19 = arith.constant dense<0.000000e+00> : vector<512x16xf32>
    %43 = tpu.matmul %41, %42, %cst_19 {dimension_numbers = #tpu.dot_dimension_numbers<[1], [0], [0], [1], [0, 0, 1, 1], [], []>} : vector<512x16xf32>, vector<16x16xf32>, vector<512x16xf32> -> vector<512x16xf32>
    %c0_20 = arith.constant 0 : index
    %c0_21 = arith.constant 0 : index
    %44 = vector.load %arg7[%c0_20, %c0_21] : memref<1x16xf32, #tpu.memory_space<vmem>>, vector<1x16xf32>
    %45 = vector.broadcast %44 : vector<1x16xf32> to vector<512x16xf32>
    %46 = arith.addf %43, %45 : vector<512x16xf32>
    %cst_22 = arith.constant 0.000000e+00 : f32
    %47 = vector.broadcast %cst_22 : f32 to vector<512x16xf32>
    %48 = arith.maximumf %46, %47 : vector<512x16xf32>
    %c0_23 = arith.constant 0 : index
    %c0_24 = arith.constant 0 : index
    %49 = vector.load %arg8[%c0_23, %c0_24] : memref<16x32xf32, #tpu.memory_space<vmem>>, vector<16x32xf32>
    %cst_25 = arith.constant dense<0.000000e+00> : vector<512x32xf32>
    %50 = tpu.matmul %48, %49, %cst_25 {dimension_numbers = #tpu.dot_dimension_numbers<[1], [0], [0], [1], [0, 0, 1, 1], [], []>} : vector<512x16xf32>, vector<16x32xf32>, vector<512x32xf32> -> vector<512x32xf32>
    %c0_26 = arith.constant 0 : index
    %c0_27 = arith.constant 0 : index
    %51 = vector.load %arg9[%c0_26, %c0_27] : memref<1x32xf32, #tpu.memory_space<vmem>>, vector<1x32xf32>
    %52 = vector.broadcast %51 : vector<1x32xf32> to vector<512x32xf32>
    %53 = arith.addf %50, %52 : vector<512x32xf32>
    %cst_28 = arith.constant 0.000000e+00 : f32
    %54 = vector.broadcast %cst_28 : f32 to vector<512x32xf32>
    %55 = arith.maximumf %53, %54 : vector<512x32xf32>
    %c0_29 = arith.constant 0 : index
    %c0_30 = arith.constant 0 : index
    %56 = vector.load %arg3[%c0_29, %c0_30] : memref<64x1xf32, #tpu.memory_space<vmem>>, vector<64x1xf32>
    %cst_31 = arith.constant 5.000000e-01 : f32
    %57 = vector.broadcast %cst_31 : f32 to vector<64x1xf32>
    %58 = arith.cmpf ogt, %56, %57 : vector<64x1xf32>
    %c8_i32 = arith.constant 8 : i32
    %59 = arith.muli %arg0, %c8_i32 : i32
    %c0_i32 = arith.constant 0 : i32
    %60 = arith.addi %59, %c0_i32 : i32
    %61 = arith.index_cast %60 : i32 to index
    %c0_32 = arith.constant 0 : index
    %62 = vector.load %arg1[%61, %c0_32] : memref<16x3xf32, #tpu.memory_space<vmem>>, vector<1x3xf32>
    %c0_33 = arith.constant 0 : index
    %c0_34 = arith.constant 0 : index
    %63 = vector.load %arg2[%c0_33, %c0_34] : memref<64x3xf32, #tpu.memory_space<vmem>>, vector<64x3xf32>
    %64 = vector.broadcast %62 : vector<1x3xf32> to vector<64x3xf32>
    %65 = arith.subf %63, %64 : vector<64x3xf32>
    %66 = vector.extract_strided_slice %65 {offsets = [0, 0], sizes = [64, 1], strides = [1, 1]} : vector<64x3xf32> to vector<64x1xf32>
    %67 = vector.extract_strided_slice %65 {offsets = [0, 0], sizes = [64, 1], strides = [1, 1]} : vector<64x3xf32> to vector<64x1xf32>
    %68 = arith.mulf %66, %67 : vector<64x1xf32>
    %69 = vector.extract_strided_slice %65 {offsets = [0, 1], sizes = [64, 1], strides = [1, 1]} : vector<64x3xf32> to vector<64x1xf32>
    %70 = vector.extract_strided_slice %65 {offsets = [0, 1], sizes = [64, 1], strides = [1, 1]} : vector<64x3xf32> to vector<64x1xf32>
    %71 = arith.mulf %69, %70 : vector<64x1xf32>
    %72 = arith.addf %68, %71 : vector<64x1xf32>
    %73 = vector.extract_strided_slice %65 {offsets = [0, 2], sizes = [64, 1], strides = [1, 1]} : vector<64x3xf32> to vector<64x1xf32>
    %74 = vector.extract_strided_slice %65 {offsets = [0, 2], sizes = [64, 1], strides = [1, 1]} : vector<64x3xf32> to vector<64x1xf32>
    %75 = arith.mulf %73, %74 : vector<64x1xf32>
    %76 = arith.addf %72, %75 : vector<64x1xf32>
    %cst_35 = arith.constant 2.025000e-01 : f32
    %77 = vector.broadcast %cst_35 : f32 to vector<64x1xf32>
    %78 = arith.cmpf olt, %76, %77 : vector<64x1xf32>
    %79 = arith.andi %78, %58 : vector<64x1xi1>
    %80 = vector.extract_strided_slice %55 {offsets = [0, 0], sizes = [64, 32], strides = [1, 1]} : vector<512x32xf32> to vector<64x32xf32>
    %cst_36 = arith.constant 0xFF800000 : f32
    %81 = vector.shape_cast %79 : vector<64x1xi1> to vector<64x1xi1>
    %82 = vector.broadcast %81 : vector<64x1xi1> to vector<64x32xi1>
    %83 = vector.broadcast %cst_36 : f32 to vector<64x32xf32>
    %84 = arith.select %82, %80, %83 : vector<64x32xi1>, vector<64x32xf32>
    %cst_37 = arith.constant dense<0xFF800000> : vector<32xf32>
    %85 = vector.multi_reduction <maximumf>, %84, %cst_37 [0] : vector<64x32xf32> to vector<32xf32>
    %86 = vector.shape_cast %85 : vector<32xf32> to vector<1x32xf32>
    %c8_i32_38 = arith.constant 8 : i32
    %87 = arith.muli %arg0, %c8_i32_38 : i32
    %c1_i32 = arith.constant 1 : i32
    %88 = arith.addi %87, %c1_i32 : i32
    %89 = arith.index_cast %88 : i32 to index
    %c0_39 = arith.constant 0 : index
    %90 = vector.load %arg1[%89, %c0_39] : memref<16x3xf32, #tpu.memory_space<vmem>>, vector<1x3xf32>
    %c0_40 = arith.constant 0 : index
    %c0_41 = arith.constant 0 : index
    %91 = vector.load %arg2[%c0_40, %c0_41] : memref<64x3xf32, #tpu.memory_space<vmem>>, vector<64x3xf32>
    %92 = vector.broadcast %90 : vector<1x3xf32> to vector<64x3xf32>
    %93 = arith.subf %91, %92 : vector<64x3xf32>
    %94 = vector.extract_strided_slice %93 {offsets = [0, 0], sizes = [64, 1], strides = [1, 1]} : vector<64x3xf32> to vector<64x1xf32>
    %95 = vector.extract_strided_slice %93 {offsets = [0, 0], sizes = [64, 1], strides = [1, 1]} : vector<64x3xf32> to vector<64x1xf32>
    %96 = arith.mulf %94, %95 : vector<64x1xf32>
    %97 = vector.extract_strided_slice %93 {offsets = [0, 1], sizes = [64, 1], strides = [1, 1]} : vector<64x3xf32> to vector<64x1xf32>
    %98 = vector.extract_strided_slice %93 {offsets = [0, 1], sizes = [64, 1], strides = [1, 1]} : vector<64x3xf32> to vector<64x1xf32>
    %99 = arith.mulf %97, %98 : vector<64x1xf32>
    %100 = arith.addf %96, %99 : vector<64x1xf32>
    %101 = vector.extract_strided_slice %93 {offsets = [0, 2], sizes = [64, 1], strides = [1, 1]} : vector<64x3xf32> to vector<64x1xf32>
    %102 = vector.extract_strided_slice %93 {offsets = [0, 2], sizes = [64, 1], strides = [1, 1]} : vector<64x3xf32> to vector<64x1xf32>
    %103 = arith.mulf %101, %102 : vector<64x1xf32>
    %104 = arith.addf %100, %103 : vector<64x1xf32>
    %cst_42 = arith.constant 2.025000e-01 : f32
    %105 = vector.broadcast %cst_42 : f32 to vector<64x1xf32>
    %106 = arith.cmpf olt, %104, %105 : vector<64x1xf32>
    %107 = arith.andi %106, %58 : vector<64x1xi1>
    %108 = vector.extract_strided_slice %55 {offsets = [64, 0], sizes = [64, 32], strides = [1, 1]} : vector<512x32xf32> to vector<64x32xf32>
    %cst_43 = arith.constant 0xFF800000 : f32
    %109 = vector.shape_cast %107 : vector<64x1xi1> to vector<64x1xi1>
    %110 = vector.broadcast %109 : vector<64x1xi1> to vector<64x32xi1>
    %111 = vector.broadcast %cst_43 : f32 to vector<64x32xf32>
    %112 = arith.select %110, %108, %111 : vector<64x32xi1>, vector<64x32xf32>
    %cst_44 = arith.constant dense<0xFF800000> : vector<32xf32>
    %113 = vector.multi_reduction <maximumf>, %112, %cst_44 [0] : vector<64x32xf32> to vector<32xf32>
    %114 = vector.shape_cast %113 : vector<32xf32> to vector<1x32xf32>
    %c8_i32_45 = arith.constant 8 : i32
    %115 = arith.muli %arg0, %c8_i32_45 : i32
    %c2_i32 = arith.constant 2 : i32
    %116 = arith.addi %115, %c2_i32 : i32
    %117 = arith.index_cast %116 : i32 to index
    %c0_46 = arith.constant 0 : index
    %118 = vector.load %arg1[%117, %c0_46] : memref<16x3xf32, #tpu.memory_space<vmem>>, vector<1x3xf32>
    %c0_47 = arith.constant 0 : index
    %c0_48 = arith.constant 0 : index
    %119 = vector.load %arg2[%c0_47, %c0_48] : memref<64x3xf32, #tpu.memory_space<vmem>>, vector<64x3xf32>
    %120 = vector.broadcast %118 : vector<1x3xf32> to vector<64x3xf32>
    %121 = arith.subf %119, %120 : vector<64x3xf32>
    %122 = vector.extract_strided_slice %121 {offsets = [0, 0], sizes = [64, 1], strides = [1, 1]} : vector<64x3xf32> to vector<64x1xf32>
    %123 = vector.extract_strided_slice %121 {offsets = [0, 0], sizes = [64, 1], strides = [1, 1]} : vector<64x3xf32> to vector<64x1xf32>
    %124 = arith.mulf %122, %123 : vector<64x1xf32>
    %125 = vector.extract_strided_slice %121 {offsets = [0, 1], sizes = [64, 1], strides = [1, 1]} : vector<64x3xf32> to vector<64x1xf32>
    %126 = vector.extract_strided_slice %121 {offsets = [0, 1], sizes = [64, 1], strides = [1, 1]} : vector<64x3xf32> to vector<64x1xf32>
    %127 = arith.mulf %125, %126 : vector<64x1xf32>
    %128 = arith.addf %124, %127 : vector<64x1xf32>
    %129 = vector.extract_strided_slice %121 {offsets = [0, 2], sizes = [64, 1], strides = [1, 1]} : vector<64x3xf32> to vector<64x1xf32>
    %130 = vector.extract_strided_slice %121 {offsets = [0, 2], sizes = [64, 1], strides = [1, 1]} : vector<64x3xf32> to vector<64x1xf32>
    %131 = arith.mulf %129, %130 : vector<64x1xf32>
    %132 = arith.addf %128, %131 : vector<64x1xf32>
    %cst_49 = arith.constant 2.025000e-01 : f32
    %133 = vector.broadcast %cst_49 : f32 to vector<64x1xf32>
    %134 = arith.cmpf olt, %132, %133 : vector<64x1xf32>
    %135 = arith.andi %134, %58 : vector<64x1xi1>
    %136 = vector.extract_strided_slice %55 {offsets = [128, 0], sizes = [64, 32], strides = [1, 1]} : vector<512x32xf32> to vector<64x32xf32>
    %cst_50 = arith.constant 0xFF800000 : f32
    %137 = vector.shape_cast %135 : vector<64x1xi1> to vector<64x1xi1>
    %138 = vector.broadcast %137 : vector<64x1xi1> to vector<64x32xi1>
    %139 = vector.broadcast %cst_50 : f32 to vector<64x32xf32>
    %140 = arith.select %138, %136, %139 : vector<64x32xi1>, vector<64x32xf32>
    %cst_51 = arith.constant dense<0xFF800000> : vector<32xf32>
    %141 = vector.multi_reduction <maximumf>, %140, %cst_51 [0] : vector<64x32xf32> to vector<32xf32>
    %142 = vector.shape_cast %141 : vector<32xf32> to vector<1x32xf32>
    %c8_i32_52 = arith.constant 8 : i32
    %143 = arith.muli %arg0, %c8_i32_52 : i32
    %c3_i32 = arith.constant 3 : i32
    %144 = arith.addi %143, %c3_i32 : i32
    %145 = arith.index_cast %144 : i32 to index
    %c0_53 = arith.constant 0 : index
    %146 = vector.load %arg1[%145, %c0_53] : memref<16x3xf32, #tpu.memory_space<vmem>>, vector<1x3xf32>
    %c0_54 = arith.constant 0 : index
    %c0_55 = arith.constant 0 : index
    %147 = vector.load %arg2[%c0_54, %c0_55] : memref<64x3xf32, #tpu.memory_space<vmem>>, vector<64x3xf32>
    %148 = vector.broadcast %146 : vector<1x3xf32> to vector<64x3xf32>
    %149 = arith.subf %147, %148 : vector<64x3xf32>
    %150 = vector.extract_strided_slice %149 {offsets = [0, 0], sizes = [64, 1], strides = [1, 1]} : vector<64x3xf32> to vector<64x1xf32>
    %151 = vector.extract_strided_slice %149 {offsets = [0, 0], sizes = [64, 1], strides = [1, 1]} : vector<64x3xf32> to vector<64x1xf32>
    %152 = arith.mulf %150, %151 : vector<64x1xf32>
    %153 = vector.extract_strided_slice %149 {offsets = [0, 1], sizes = [64, 1], strides = [1, 1]} : vector<64x3xf32> to vector<64x1xf32>
    %154 = vector.extract_strided_slice %149 {offsets = [0, 1], sizes = [64, 1], strides = [1, 1]} : vector<64x3xf32> to vector<64x1xf32>
    %155 = arith.mulf %153, %154 : vector<64x1xf32>
    %156 = arith.addf %152, %155 : vector<64x1xf32>
    %157 = vector.extract_strided_slice %149 {offsets = [0, 2], sizes = [64, 1], strides = [1, 1]} : vector<64x3xf32> to vector<64x1xf32>
    %158 = vector.extract_strided_slice %149 {offsets = [0, 2], sizes = [64, 1], strides = [1, 1]} : vector<64x3xf32> to vector<64x1xf32>
    %159 = arith.mulf %157, %158 : vector<64x1xf32>
    %160 = arith.addf %156, %159 : vector<64x1xf32>
    %cst_56 = arith.constant 2.025000e-01 : f32
    %161 = vector.broadcast %cst_56 : f32 to vector<64x1xf32>
    %162 = arith.cmpf olt, %160, %161 : vector<64x1xf32>
    %163 = arith.andi %162, %58 : vector<64x1xi1>
    %164 = vector.extract_strided_slice %55 {offsets = [192, 0], sizes = [64, 32], strides = [1, 1]} : vector<512x32xf32> to vector<64x32xf32>
    %cst_57 = arith.constant 0xFF800000 : f32
    %165 = vector.shape_cast %163 : vector<64x1xi1> to vector<64x1xi1>
    %166 = vector.broadcast %165 : vector<64x1xi1> to vector<64x32xi1>
    %167 = vector.broadcast %cst_57 : f32 to vector<64x32xf32>
    %168 = arith.select %166, %164, %167 : vector<64x32xi1>, vector<64x32xf32>
    %cst_58 = arith.constant dense<0xFF800000> : vector<32xf32>
    %169 = vector.multi_reduction <maximumf>, %168, %cst_58 [0] : vector<64x32xf32> to vector<32xf32>
    %170 = vector.shape_cast %169 : vector<32xf32> to vector<1x32xf32>
    %c8_i32_59 = arith.constant 8 : i32
    %171 = arith.muli %arg0, %c8_i32_59 : i32
    %c4_i32 = arith.constant 4 : i32
    %172 = arith.addi %171, %c4_i32 : i32
    %173 = arith.index_cast %172 : i32 to index
    %c0_60 = arith.constant 0 : index
    %174 = vector.load %arg1[%173, %c0_60] : memref<16x3xf32, #tpu.memory_space<vmem>>, vector<1x3xf32>
    %c0_61 = arith.constant 0 : index
    %c0_62 = arith.constant 0 : index
    %175 = vector.load %arg2[%c0_61, %c0_62] : memref<64x3xf32, #tpu.memory_space<vmem>>, vector<64x3xf32>
    %176 = vector.broadcast %174 : vector<1x3xf32> to vector<64x3xf32>
    %177 = arith.subf %175, %176 : vector<64x3xf32>
    %178 = vector.extract_strided_slice %177 {offsets = [0, 0], sizes = [64, 1], strides = [1, 1]} : vector<64x3xf32> to vector<64x1xf32>
    %179 = vector.extract_strided_slice %177 {offsets = [0, 0], sizes = [64, 1], strides = [1, 1]} : vector<64x3xf32> to vector<64x1xf32>
    %180 = arith.mulf %178, %179 : vector<64x1xf32>
    %181 = vector.extract_strided_slice %177 {offsets = [0, 1], sizes = [64, 1], strides = [1, 1]} : vector<64x3xf32> to vector<64x1xf32>
    %182 = vector.extract_strided_slice %177 {offsets = [0, 1], sizes = [64, 1], strides = [1, 1]} : vector<64x3xf32> to vector<64x1xf32>
    %183 = arith.mulf %181, %182 : vector<64x1xf32>
    %184 = arith.addf %180, %183 : vector<64x1xf32>
    %185 = vector.extract_strided_slice %177 {offsets = [0, 2], sizes = [64, 1], strides = [1, 1]} : vector<64x3xf32> to vector<64x1xf32>
    %186 = vector.extract_strided_slice %177 {offsets = [0, 2], sizes = [64, 1], strides = [1, 1]} : vector<64x3xf32> to vector<64x1xf32>
    %187 = arith.mulf %185, %186 : vector<64x1xf32>
    %188 = arith.addf %184, %187 : vector<64x1xf32>
    %cst_63 = arith.constant 2.025000e-01 : f32
    %189 = vector.broadcast %cst_63 : f32 to vector<64x1xf32>
    %190 = arith.cmpf olt, %188, %189 : vector<64x1xf32>
    %191 = arith.andi %190, %58 : vector<64x1xi1>
    %192 = vector.extract_strided_slice %55 {offsets = [256, 0], sizes = [64, 32], strides = [1, 1]} : vector<512x32xf32> to vector<64x32xf32>
    %cst_64 = arith.constant 0xFF800000 : f32
    %193 = vector.shape_cast %191 : vector<64x1xi1> to vector<64x1xi1>
    %194 = vector.broadcast %193 : vector<64x1xi1> to vector<64x32xi1>
    %195 = vector.broadcast %cst_64 : f32 to vector<64x32xf32>
    %196 = arith.select %194, %192, %195 : vector<64x32xi1>, vector<64x32xf32>
    %cst_65 = arith.constant dense<0xFF800000> : vector<32xf32>
    %197 = vector.multi_reduction <maximumf>, %196, %cst_65 [0] : vector<64x32xf32> to vector<32xf32>
    %198 = vector.shape_cast %197 : vector<32xf32> to vector<1x32xf32>
    %c8_i32_66 = arith.constant 8 : i32
    %199 = arith.muli %arg0, %c8_i32_66 : i32
    %c5_i32 = arith.constant 5 : i32
    %200 = arith.addi %199, %c5_i32 : i32
    %201 = arith.index_cast %200 : i32 to index
    %c0_67 = arith.constant 0 : index
    %202 = vector.load %arg1[%201, %c0_67] : memref<16x3xf32, #tpu.memory_space<vmem>>, vector<1x3xf32>
    %c0_68 = arith.constant 0 : index
    %c0_69 = arith.constant 0 : index
    %203 = vector.load %arg2[%c0_68, %c0_69] : memref<64x3xf32, #tpu.memory_space<vmem>>, vector<64x3xf32>
    %204 = vector.broadcast %202 : vector<1x3xf32> to vector<64x3xf32>
    %205 = arith.subf %203, %204 : vector<64x3xf32>
    %206 = vector.extract_strided_slice %205 {offsets = [0, 0], sizes = [64, 1], strides = [1, 1]} : vector<64x3xf32> to vector<64x1xf32>
    %207 = vector.extract_strided_slice %205 {offsets = [0, 0], sizes = [64, 1], strides = [1, 1]} : vector<64x3xf32> to vector<64x1xf32>
    %208 = arith.mulf %206, %207 : vector<64x1xf32>
    %209 = vector.extract_strided_slice %205 {offsets = [0, 1], sizes = [64, 1], strides = [1, 1]} : vector<64x3xf32> to vector<64x1xf32>
    %210 = vector.extract_strided_slice %205 {offsets = [0, 1], sizes = [64, 1], strides = [1, 1]} : vector<64x3xf32> to vector<64x1xf32>
    %211 = arith.mulf %209, %210 : vector<64x1xf32>
    %212 = arith.addf %208, %211 : vector<64x1xf32>
    %213 = vector.extract_strided_slice %205 {offsets = [0, 2], sizes = [64, 1], strides = [1, 1]} : vector<64x3xf32> to vector<64x1xf32>
    %214 = vector.extract_strided_slice %205 {offsets = [0, 2], sizes = [64, 1], strides = [1, 1]} : vector<64x3xf32> to vector<64x1xf32>
    %215 = arith.mulf %213, %214 : vector<64x1xf32>
    %216 = arith.addf %212, %215 : vector<64x1xf32>
    %cst_70 = arith.constant 2.025000e-01 : f32
    %217 = vector.broadcast %cst_70 : f32 to vector<64x1xf32>
    %218 = arith.cmpf olt, %216, %217 : vector<64x1xf32>
    %219 = arith.andi %218, %58 : vector<64x1xi1>
    %220 = vector.extract_strided_slice %55 {offsets = [320, 0], sizes = [64, 32], strides = [1, 1]} : vector<512x32xf32> to vector<64x32xf32>
    %cst_71 = arith.constant 0xFF800000 : f32
    %221 = vector.shape_cast %219 : vector<64x1xi1> to vector<64x1xi1>
    %222 = vector.broadcast %221 : vector<64x1xi1> to vector<64x32xi1>
    %223 = vector.broadcast %cst_71 : f32 to vector<64x32xf32>
    %224 = arith.select %222, %220, %223 : vector<64x32xi1>, vector<64x32xf32>
    %cst_72 = arith.constant dense<0xFF800000> : vector<32xf32>
    %225 = vector.multi_reduction <maximumf>, %224, %cst_72 [0] : vector<64x32xf32> to vector<32xf32>
    %226 = vector.shape_cast %225 : vector<32xf32> to vector<1x32xf32>
    %c8_i32_73 = arith.constant 8 : i32
    %227 = arith.muli %arg0, %c8_i32_73 : i32
    %c6_i32 = arith.constant 6 : i32
    %228 = arith.addi %227, %c6_i32 : i32
    %229 = arith.index_cast %228 : i32 to index
    %c0_74 = arith.constant 0 : index
    %230 = vector.load %arg1[%229, %c0_74] : memref<16x3xf32, #tpu.memory_space<vmem>>, vector<1x3xf32>
    %c0_75 = arith.constant 0 : index
    %c0_76 = arith.constant 0 : index
    %231 = vector.load %arg2[%c0_75, %c0_76] : memref<64x3xf32, #tpu.memory_space<vmem>>, vector<64x3xf32>
    %232 = vector.broadcast %230 : vector<1x3xf32> to vector<64x3xf32>
    %233 = arith.subf %231, %232 : vector<64x3xf32>
    %234 = vector.extract_strided_slice %233 {offsets = [0, 0], sizes = [64, 1], strides = [1, 1]} : vector<64x3xf32> to vector<64x1xf32>
    %235 = vector.extract_strided_slice %233 {offsets = [0, 0], sizes = [64, 1], strides = [1, 1]} : vector<64x3xf32> to vector<64x1xf32>
    %236 = arith.mulf %234, %235 : vector<64x1xf32>
    %237 = vector.extract_strided_slice %233 {offsets = [0, 1], sizes = [64, 1], strides = [1, 1]} : vector<64x3xf32> to vector<64x1xf32>
    %238 = vector.extract_strided_slice %233 {offsets = [0, 1], sizes = [64, 1], strides = [1, 1]} : vector<64x3xf32> to vector<64x1xf32>
    %239 = arith.mulf %237, %238 : vector<64x1xf32>
    %240 = arith.addf %236, %239 : vector<64x1xf32>
    %241 = vector.extract_strided_slice %233 {offsets = [0, 2], sizes = [64, 1], strides = [1, 1]} : vector<64x3xf32> to vector<64x1xf32>
    %242 = vector.extract_strided_slice %233 {offsets = [0, 2], sizes = [64, 1], strides = [1, 1]} : vector<64x3xf32> to vector<64x1xf32>
    %243 = arith.mulf %241, %242 : vector<64x1xf32>
    %244 = arith.addf %240, %243 : vector<64x1xf32>
    %cst_77 = arith.constant 2.025000e-01 : f32
    %245 = vector.broadcast %cst_77 : f32 to vector<64x1xf32>
    %246 = arith.cmpf olt, %244, %245 : vector<64x1xf32>
    %247 = arith.andi %246, %58 : vector<64x1xi1>
    %248 = vector.extract_strided_slice %55 {offsets = [384, 0], sizes = [64, 32], strides = [1, 1]} : vector<512x32xf32> to vector<64x32xf32>
    %cst_78 = arith.constant 0xFF800000 : f32
    %249 = vector.shape_cast %247 : vector<64x1xi1> to vector<64x1xi1>
    %250 = vector.broadcast %249 : vector<64x1xi1> to vector<64x32xi1>
    %251 = vector.broadcast %cst_78 : f32 to vector<64x32xf32>
    %252 = arith.select %250, %248, %251 : vector<64x32xi1>, vector<64x32xf32>
    %cst_79 = arith.constant dense<0xFF800000> : vector<32xf32>
    %253 = vector.multi_reduction <maximumf>, %252, %cst_79 [0] : vector<64x32xf32> to vector<32xf32>
    %254 = vector.shape_cast %253 : vector<32xf32> to vector<1x32xf32>
    %c8_i32_80 = arith.constant 8 : i32
    %255 = arith.muli %arg0, %c8_i32_80 : i32
    %c7_i32 = arith.constant 7 : i32
    %256 = arith.addi %255, %c7_i32 : i32
    %257 = arith.index_cast %256 : i32 to index
    %c0_81 = arith.constant 0 : index
    %258 = vector.load %arg1[%257, %c0_81] : memref<16x3xf32, #tpu.memory_space<vmem>>, vector<1x3xf32>
    %c0_82 = arith.constant 0 : index
    %c0_83 = arith.constant 0 : index
    %259 = vector.load %arg2[%c0_82, %c0_83] : memref<64x3xf32, #tpu.memory_space<vmem>>, vector<64x3xf32>
    %260 = vector.broadcast %258 : vector<1x3xf32> to vector<64x3xf32>
    %261 = arith.subf %259, %260 : vector<64x3xf32>
    %262 = vector.extract_strided_slice %261 {offsets = [0, 0], sizes = [64, 1], strides = [1, 1]} : vector<64x3xf32> to vector<64x1xf32>
    %263 = vector.extract_strided_slice %261 {offsets = [0, 0], sizes = [64, 1], strides = [1, 1]} : vector<64x3xf32> to vector<64x1xf32>
    %264 = arith.mulf %262, %263 : vector<64x1xf32>
    %265 = vector.extract_strided_slice %261 {offsets = [0, 1], sizes = [64, 1], strides = [1, 1]} : vector<64x3xf32> to vector<64x1xf32>
    %266 = vector.extract_strided_slice %261 {offsets = [0, 1], sizes = [64, 1], strides = [1, 1]} : vector<64x3xf32> to vector<64x1xf32>
    %267 = arith.mulf %265, %266 : vector<64x1xf32>
    %268 = arith.addf %264, %267 : vector<64x1xf32>
    %269 = vector.extract_strided_slice %261 {offsets = [0, 2], sizes = [64, 1], strides = [1, 1]} : vector<64x3xf32> to vector<64x1xf32>
    %270 = vector.extract_strided_slice %261 {offsets = [0, 2], sizes = [64, 1], strides = [1, 1]} : vector<64x3xf32> to vector<64x1xf32>
    %271 = arith.mulf %269, %270 : vector<64x1xf32>
    %272 = arith.addf %268, %271 : vector<64x1xf32>
    %cst_84 = arith.constant 2.025000e-01 : f32
    %273 = vector.broadcast %cst_84 : f32 to vector<64x1xf32>
    %274 = arith.cmpf olt, %272, %273 : vector<64x1xf32>
    %275 = arith.andi %274, %58 : vector<64x1xi1>
    %276 = vector.extract_strided_slice %55 {offsets = [448, 0], sizes = [64, 32], strides = [1, 1]} : vector<512x32xf32> to vector<64x32xf32>
    %cst_85 = arith.constant 0xFF800000 : f32
    %277 = vector.shape_cast %275 : vector<64x1xi1> to vector<64x1xi1>
    %278 = vector.broadcast %277 : vector<64x1xi1> to vector<64x32xi1>
    %279 = vector.broadcast %cst_85 : f32 to vector<64x32xf32>
    %280 = arith.select %278, %276, %279 : vector<64x32xi1>, vector<64x32xf32>
    %cst_86 = arith.constant dense<0xFF800000> : vector<32xf32>
    %281 = vector.multi_reduction <maximumf>, %280, %cst_86 [0] : vector<64x32xf32> to vector<32xf32>
    %282 = vector.shape_cast %281 : vector<32xf32> to vector<1x32xf32>
    %283 = tpu.concatenate %86, %114, %142, %170, %198, %226, %254, %282 in 0 : vector<1x32xf32>, vector<1x32xf32>, vector<1x32xf32>, vector<1x32xf32>, vector<1x32xf32>, vector<1x32xf32>, vector<1x32xf32>, vector<1x32xf32> -> vector<8x32xf32>
    %c0_87 = arith.constant 0 : index
    %c0_88 = arith.constant 0 : index
    %284 = vector.load %arg10[%c0_87, %c0_88] : memref<8x32xf32, #tpu.memory_space<vmem>>, vector<8x32xf32>
    tpu.vector_store %arg10[%c0_87, %c0_88], %283 {strides = array<i32>} : memref<8x32xf32, #tpu.memory_space<vmem>>, vector<8x32xf32>,
    return
  }
  func.func @transform_0(%arg0: i32) -> (i32, i32) {
    %c0_i32 = arith.constant 0 : i32
    %c0_i32_0 = arith.constant 0 : i32
    %c0_i32_1 = arith.constant 0 : i32
    return %c0_i32, %c0_i32_0 : i32, i32
  }
  func.func @transform_1(%arg0: i32) -> (i32, i32) {
    %c0_i32 = arith.constant 0 : i32
    %c0_i32_0 = arith.constant 0 : i32
    %c0_i32_1 = arith.constant 0 : i32
    return %c0_i32, %c0_i32_0 : i32, i32
  }
  func.func @transform_2(%arg0: i32) -> (i32, i32) {
    %c0_i32 = arith.constant 0 : i32
    %c0_i32_0 = arith.constant 0 : i32
    %c0_i32_1 = arith.constant 0 : i32
    return %c0_i32, %c0_i32_0 : i32, i32
  }
  func.func @transform_3(%arg0: i32) -> (i32, i32) {
    %c0_i32 = arith.constant 0 : i32
    %c0_i32_0 = arith.constant 0 : i32
    %c0_i32_1 = arith.constant 0 : i32
    return %c0_i32, %c0_i32_0 : i32, i32
  }
  func.func @transform_4(%arg0: i32) -> (i32, i32) {
    %c0_i32 = arith.constant 0 : i32
    %c0_i32_0 = arith.constant 0 : i32
    return %arg0, %c0_i32 : i32, i32
  }
  func.func @transform_5(%arg0: i32) -> (i32, i32) {
    %c0_i32 = arith.constant 0 : i32
    %c0_i32_0 = arith.constant 0 : i32
    %c0_i32_1 = arith.constant 0 : i32
    return %c0_i32, %c0_i32_0 : i32, i32
  }
  func.func @transform_6(%arg0: i32) -> (i32, i32) {
    %c0_i32 = arith.constant 0 : i32
    %c0_i32_0 = arith.constant 0 : i32
    %c0_i32_1 = arith.constant 0 : i32
    return %c0_i32, %c0_i32_0 : i32, i32
  }
  func.func @transform_7(%arg0: i32) -> (i32, i32) {
    %c0_i32 = arith.constant 0 : i32
    %c0_i32_0 = arith.constant 0 : i32
    %c0_i32_1 = arith.constant 0 : i32
    return %c0_i32, %c0_i32_0 : i32, i32
  }
  func.func @transform_8(%arg0: i32) -> (i32, i32) {
    %c0_i32 = arith.constant 0 : i32
    %c0_i32_0 = arith.constant 0 : i32
    %c0_i32_1 = arith.constant 0 : i32
    return %c0_i32, %c0_i32_0 : i32, i32
  }
  func.func @transform_9(%arg0: i32) -> (i32, i32) {
    %c0_i32 = arith.constant 0 : i32
    %c0_i32_0 = arith.constant 0 : i32
    return %arg0, %c0_i32 : i32, i32
  }
}

module attributes {stable_mosaic.version = 11 : i64} {
  func.func @kernel(%arg0: i32, %arg1: memref<8x3xf32, #tpu.memory_space<vmem>>, %arg2: memref<16x3xf32, #tpu.memory_space<vmem>>, %arg3: memref<16x1xf32, #tpu.memory_space<vmem>>, %arg4: memref<16x32xf32, #tpu.memory_space<vmem>>, %arg5: memref<8x32xf32, #tpu.memory_space<vmem>>, %arg6: memref<32x32xf32, #tpu.memory_space<vmem>>, %arg7: memref<1x32xf32, #tpu.memory_space<vmem>>, %arg8: memref<32x64xf32, #tpu.memory_space<vmem>>, %arg9: memref<1x64xf32, #tpu.memory_space<vmem>>, %arg10: memref<8x64xf32, #tpu.memory_space<vmem>>) attributes {dimension_semantics = [#tpu.dimension_semantics<parallel>], iteration_bounds = array<i64: 1>, scalar_prefetch = 0 : i64, scratch_operands = 0 : i64, tpu.core_type = #tpu.core_type<tc>, window_params = [{pipeline_mode = #tpu.pipeline_mode<synchronous>, transform_indices = @transform_0, window_bounds = array<i64: 8, 3>}, {pipeline_mode = #tpu.pipeline_mode<synchronous>, transform_indices = @transform_1, window_bounds = array<i64: 16, 3>}, {pipeline_mode = #tpu.pipeline_mode<synchronous>, transform_indices = @transform_2, window_bounds = array<i64: 16, 1>}, {pipeline_mode = #tpu.pipeline_mode<synchronous>, transform_indices = @transform_3, window_bounds = array<i64: 16, 32>}, {transform_indices = @transform_4, window_bounds = array<i64: 8, 32>}, {pipeline_mode = #tpu.pipeline_mode<synchronous>, transform_indices = @transform_5, window_bounds = array<i64: 32, 32>}, {pipeline_mode = #tpu.pipeline_mode<synchronous>, transform_indices = @transform_6, window_bounds = array<i64: 1, 32>}, {pipeline_mode = #tpu.pipeline_mode<synchronous>, transform_indices = @transform_7, window_bounds = array<i64: 32, 64>}, {pipeline_mode = #tpu.pipeline_mode<synchronous>, transform_indices = @transform_8, window_bounds = array<i64: 1, 64>}, {transform_indices = @transform_9, window_bounds = array<i64: 8, 64>}]} {
    %c0 = arith.constant 0 : index
    %c0_0 = arith.constant 0 : index
    %0 = vector.load %arg4[%c0, %c0_0] : memref<16x32xf32, #tpu.memory_space<vmem>>, vector<16x32xf32>
    %c0_1 = arith.constant 0 : index
    %c0_2 = arith.constant 0 : index
    %1 = vector.load %arg5[%c0_1, %c0_2] : memref<8x32xf32, #tpu.memory_space<vmem>>, vector<1x32xf32>
    %2 = vector.broadcast %1 : vector<1x32xf32> to vector<16x32xf32>
    %3 = arith.subf %0, %2 : vector<16x32xf32>
    %cst = arith.constant 0.000000e+00 : f32
    %4 = vector.broadcast %cst : f32 to vector<16x32xf32>
    %5 = arith.maximumf %3, %4 : vector<16x32xf32>
    %c1 = arith.constant 1 : index
    %c0_3 = arith.constant 0 : index
    %6 = vector.load %arg5[%c1, %c0_3] : memref<8x32xf32, #tpu.memory_space<vmem>>, vector<1x32xf32>
    %7 = vector.broadcast %6 : vector<1x32xf32> to vector<16x32xf32>
    %8 = arith.subf %0, %7 : vector<16x32xf32>
    %cst_4 = arith.constant 0.000000e+00 : f32
    %9 = vector.broadcast %cst_4 : f32 to vector<16x32xf32>
    %10 = arith.maximumf %8, %9 : vector<16x32xf32>
    %c2 = arith.constant 2 : index
    %c0_5 = arith.constant 0 : index
    %11 = vector.load %arg5[%c2, %c0_5] : memref<8x32xf32, #tpu.memory_space<vmem>>, vector<1x32xf32>
    %12 = vector.broadcast %11 : vector<1x32xf32> to vector<16x32xf32>
    %13 = arith.subf %0, %12 : vector<16x32xf32>
    %cst_6 = arith.constant 0.000000e+00 : f32
    %14 = vector.broadcast %cst_6 : f32 to vector<16x32xf32>
    %15 = arith.maximumf %13, %14 : vector<16x32xf32>
    %c3 = arith.constant 3 : index
    %c0_7 = arith.constant 0 : index
    %16 = vector.load %arg5[%c3, %c0_7] : memref<8x32xf32, #tpu.memory_space<vmem>>, vector<1x32xf32>
    %17 = vector.broadcast %16 : vector<1x32xf32> to vector<16x32xf32>
    %18 = arith.subf %0, %17 : vector<16x32xf32>
    %cst_8 = arith.constant 0.000000e+00 : f32
    %19 = vector.broadcast %cst_8 : f32 to vector<16x32xf32>
    %20 = arith.maximumf %18, %19 : vector<16x32xf32>
    %c4 = arith.constant 4 : index
    %c0_9 = arith.constant 0 : index
    %21 = vector.load %arg5[%c4, %c0_9] : memref<8x32xf32, #tpu.memory_space<vmem>>, vector<1x32xf32>
    %22 = vector.broadcast %21 : vector<1x32xf32> to vector<16x32xf32>
    %23 = arith.subf %0, %22 : vector<16x32xf32>
    %cst_10 = arith.constant 0.000000e+00 : f32
    %24 = vector.broadcast %cst_10 : f32 to vector<16x32xf32>
    %25 = arith.maximumf %23, %24 : vector<16x32xf32>
    %c5 = arith.constant 5 : index
    %c0_11 = arith.constant 0 : index
    %26 = vector.load %arg5[%c5, %c0_11] : memref<8x32xf32, #tpu.memory_space<vmem>>, vector<1x32xf32>
    %27 = vector.broadcast %26 : vector<1x32xf32> to vector<16x32xf32>
    %28 = arith.subf %0, %27 : vector<16x32xf32>
    %cst_12 = arith.constant 0.000000e+00 : f32
    %29 = vector.broadcast %cst_12 : f32 to vector<16x32xf32>
    %30 = arith.maximumf %28, %29 : vector<16x32xf32>
    %c6 = arith.constant 6 : index
    %c0_13 = arith.constant 0 : index
    %31 = vector.load %arg5[%c6, %c0_13] : memref<8x32xf32, #tpu.memory_space<vmem>>, vector<1x32xf32>
    %32 = vector.broadcast %31 : vector<1x32xf32> to vector<16x32xf32>
    %33 = arith.subf %0, %32 : vector<16x32xf32>
    %cst_14 = arith.constant 0.000000e+00 : f32
    %34 = vector.broadcast %cst_14 : f32 to vector<16x32xf32>
    %35 = arith.maximumf %33, %34 : vector<16x32xf32>
    %c7 = arith.constant 7 : index
    %c0_15 = arith.constant 0 : index
    %36 = vector.load %arg5[%c7, %c0_15] : memref<8x32xf32, #tpu.memory_space<vmem>>, vector<1x32xf32>
    %37 = vector.broadcast %36 : vector<1x32xf32> to vector<16x32xf32>
    %38 = arith.subf %0, %37 : vector<16x32xf32>
    %cst_16 = arith.constant 0.000000e+00 : f32
    %39 = vector.broadcast %cst_16 : f32 to vector<16x32xf32>
    %40 = arith.maximumf %38, %39 : vector<16x32xf32>
    %41 = tpu.concatenate %5, %10, %15, %20, %25, %30, %35, %40 in 0 : vector<16x32xf32>, vector<16x32xf32>, vector<16x32xf32>, vector<16x32xf32>, vector<16x32xf32>, vector<16x32xf32>, vector<16x32xf32>, vector<16x32xf32> -> vector<128x32xf32>
    %c0_17 = arith.constant 0 : index
    %c0_18 = arith.constant 0 : index
    %42 = vector.load %arg6[%c0_17, %c0_18] : memref<32x32xf32, #tpu.memory_space<vmem>>, vector<32x32xf32>
    %cst_19 = arith.constant dense<0.000000e+00> : vector<128x32xf32>
    %43 = tpu.matmul %41, %42, %cst_19 {dimension_numbers = #tpu.dot_dimension_numbers<[1], [0], [0], [1], [0, 0, 1, 1], [], []>} : vector<128x32xf32>, vector<32x32xf32>, vector<128x32xf32> -> vector<128x32xf32>
    %c0_20 = arith.constant 0 : index
    %c0_21 = arith.constant 0 : index
    %44 = vector.load %arg7[%c0_20, %c0_21] : memref<1x32xf32, #tpu.memory_space<vmem>>, vector<1x32xf32>
    %45 = vector.broadcast %44 : vector<1x32xf32> to vector<128x32xf32>
    %46 = arith.addf %43, %45 : vector<128x32xf32>
    %cst_22 = arith.constant 0.000000e+00 : f32
    %47 = vector.broadcast %cst_22 : f32 to vector<128x32xf32>
    %48 = arith.maximumf %46, %47 : vector<128x32xf32>
    %c0_23 = arith.constant 0 : index
    %c0_24 = arith.constant 0 : index
    %49 = vector.load %arg8[%c0_23, %c0_24] : memref<32x64xf32, #tpu.memory_space<vmem>>, vector<32x64xf32>
    %cst_25 = arith.constant dense<0.000000e+00> : vector<128x64xf32>
    %50 = tpu.matmul %48, %49, %cst_25 {dimension_numbers = #tpu.dot_dimension_numbers<[1], [0], [0], [1], [0, 0, 1, 1], [], []>} : vector<128x32xf32>, vector<32x64xf32>, vector<128x64xf32> -> vector<128x64xf32>
    %c0_26 = arith.constant 0 : index
    %c0_27 = arith.constant 0 : index
    %51 = vector.load %arg9[%c0_26, %c0_27] : memref<1x64xf32, #tpu.memory_space<vmem>>, vector<1x64xf32>
    %52 = vector.broadcast %51 : vector<1x64xf32> to vector<128x64xf32>
    %53 = arith.addf %50, %52 : vector<128x64xf32>
    %cst_28 = arith.constant 0.000000e+00 : f32
    %54 = vector.broadcast %cst_28 : f32 to vector<128x64xf32>
    %55 = arith.maximumf %53, %54 : vector<128x64xf32>
    %c0_29 = arith.constant 0 : index
    %c0_30 = arith.constant 0 : index
    %56 = vector.load %arg3[%c0_29, %c0_30] : memref<16x1xf32, #tpu.memory_space<vmem>>, vector<16x1xf32>
    %cst_31 = arith.constant 5.000000e-01 : f32
    %57 = vector.broadcast %cst_31 : f32 to vector<16x1xf32>
    %58 = arith.cmpf ogt, %56, %57 : vector<16x1xf32>
    %c8_i32 = arith.constant 8 : i32
    %59 = arith.muli %arg0, %c8_i32 : i32
    %c0_i32 = arith.constant 0 : i32
    %60 = arith.addi %59, %c0_i32 : i32
    %61 = arith.index_cast %60 : i32 to index
    %c0_32 = arith.constant 0 : index
    %62 = vector.load %arg1[%61, %c0_32] : memref<8x3xf32, #tpu.memory_space<vmem>>, vector<1x3xf32>
    %c0_33 = arith.constant 0 : index
    %c0_34 = arith.constant 0 : index
    %63 = vector.load %arg2[%c0_33, %c0_34] : memref<16x3xf32, #tpu.memory_space<vmem>>, vector<16x3xf32>
    %64 = vector.broadcast %62 : vector<1x3xf32> to vector<16x3xf32>
    %65 = arith.subf %63, %64 : vector<16x3xf32>
    %66 = vector.extract_strided_slice %65 {offsets = [0, 0], sizes = [16, 1], strides = [1, 1]} : vector<16x3xf32> to vector<16x1xf32>
    %67 = vector.extract_strided_slice %65 {offsets = [0, 0], sizes = [16, 1], strides = [1, 1]} : vector<16x3xf32> to vector<16x1xf32>
    %68 = arith.mulf %66, %67 : vector<16x1xf32>
    %69 = vector.extract_strided_slice %65 {offsets = [0, 1], sizes = [16, 1], strides = [1, 1]} : vector<16x3xf32> to vector<16x1xf32>
    %70 = vector.extract_strided_slice %65 {offsets = [0, 1], sizes = [16, 1], strides = [1, 1]} : vector<16x3xf32> to vector<16x1xf32>
    %71 = arith.mulf %69, %70 : vector<16x1xf32>
    %72 = arith.addf %68, %71 : vector<16x1xf32>
    %73 = vector.extract_strided_slice %65 {offsets = [0, 2], sizes = [16, 1], strides = [1, 1]} : vector<16x3xf32> to vector<16x1xf32>
    %74 = vector.extract_strided_slice %65 {offsets = [0, 2], sizes = [16, 1], strides = [1, 1]} : vector<16x3xf32> to vector<16x1xf32>
    %75 = arith.mulf %73, %74 : vector<16x1xf32>
    %76 = arith.addf %72, %75 : vector<16x1xf32>
    %cst_35 = arith.constant 8.100000e-01 : f32
    %77 = vector.broadcast %cst_35 : f32 to vector<16x1xf32>
    %78 = arith.cmpf olt, %76, %77 : vector<16x1xf32>
    %79 = arith.andi %78, %58 : vector<16x1xi1>
    %80 = vector.extract_strided_slice %55 {offsets = [0, 0], sizes = [16, 64], strides = [1, 1]} : vector<128x64xf32> to vector<16x64xf32>
    %cst_36 = arith.constant 0xFF800000 : f32
    %81 = vector.shape_cast %79 : vector<16x1xi1> to vector<16x1xi1>
    %82 = vector.broadcast %81 : vector<16x1xi1> to vector<16x64xi1>
    %83 = vector.broadcast %cst_36 : f32 to vector<16x64xf32>
    %84 = arith.select %82, %80, %83 : vector<16x64xi1>, vector<16x64xf32>
    %cst_37 = arith.constant dense<0xFF800000> : vector<64xf32>
    %85 = vector.multi_reduction <maximumf>, %84, %cst_37 [0] : vector<16x64xf32> to vector<64xf32>
    %86 = vector.shape_cast %85 : vector<64xf32> to vector<1x64xf32>
    %c8_i32_38 = arith.constant 8 : i32
    %87 = arith.muli %arg0, %c8_i32_38 : i32
    %c1_i32 = arith.constant 1 : i32
    %88 = arith.addi %87, %c1_i32 : i32
    %89 = arith.index_cast %88 : i32 to index
    %c0_39 = arith.constant 0 : index
    %90 = vector.load %arg1[%89, %c0_39] : memref<8x3xf32, #tpu.memory_space<vmem>>, vector<1x3xf32>
    %c0_40 = arith.constant 0 : index
    %c0_41 = arith.constant 0 : index
    %91 = vector.load %arg2[%c0_40, %c0_41] : memref<16x3xf32, #tpu.memory_space<vmem>>, vector<16x3xf32>
    %92 = vector.broadcast %90 : vector<1x3xf32> to vector<16x3xf32>
    %93 = arith.subf %91, %92 : vector<16x3xf32>
    %94 = vector.extract_strided_slice %93 {offsets = [0, 0], sizes = [16, 1], strides = [1, 1]} : vector<16x3xf32> to vector<16x1xf32>
    %95 = vector.extract_strided_slice %93 {offsets = [0, 0], sizes = [16, 1], strides = [1, 1]} : vector<16x3xf32> to vector<16x1xf32>
    %96 = arith.mulf %94, %95 : vector<16x1xf32>
    %97 = vector.extract_strided_slice %93 {offsets = [0, 1], sizes = [16, 1], strides = [1, 1]} : vector<16x3xf32> to vector<16x1xf32>
    %98 = vector.extract_strided_slice %93 {offsets = [0, 1], sizes = [16, 1], strides = [1, 1]} : vector<16x3xf32> to vector<16x1xf32>
    %99 = arith.mulf %97, %98 : vector<16x1xf32>
    %100 = arith.addf %96, %99 : vector<16x1xf32>
    %101 = vector.extract_strided_slice %93 {offsets = [0, 2], sizes = [16, 1], strides = [1, 1]} : vector<16x3xf32> to vector<16x1xf32>
    %102 = vector.extract_strided_slice %93 {offsets = [0, 2], sizes = [16, 1], strides = [1, 1]} : vector<16x3xf32> to vector<16x1xf32>
    %103 = arith.mulf %101, %102 : vector<16x1xf32>
    %104 = arith.addf %100, %103 : vector<16x1xf32>
    %cst_42 = arith.constant 8.100000e-01 : f32
    %105 = vector.broadcast %cst_42 : f32 to vector<16x1xf32>
    %106 = arith.cmpf olt, %104, %105 : vector<16x1xf32>
    %107 = arith.andi %106, %58 : vector<16x1xi1>
    %108 = vector.extract_strided_slice %55 {offsets = [16, 0], sizes = [16, 64], strides = [1, 1]} : vector<128x64xf32> to vector<16x64xf32>
    %cst_43 = arith.constant 0xFF800000 : f32
    %109 = vector.shape_cast %107 : vector<16x1xi1> to vector<16x1xi1>
    %110 = vector.broadcast %109 : vector<16x1xi1> to vector<16x64xi1>
    %111 = vector.broadcast %cst_43 : f32 to vector<16x64xf32>
    %112 = arith.select %110, %108, %111 : vector<16x64xi1>, vector<16x64xf32>
    %cst_44 = arith.constant dense<0xFF800000> : vector<64xf32>
    %113 = vector.multi_reduction <maximumf>, %112, %cst_44 [0] : vector<16x64xf32> to vector<64xf32>
    %114 = vector.shape_cast %113 : vector<64xf32> to vector<1x64xf32>
    %c8_i32_45 = arith.constant 8 : i32
    %115 = arith.muli %arg0, %c8_i32_45 : i32
    %c2_i32 = arith.constant 2 : i32
    %116 = arith.addi %115, %c2_i32 : i32
    %117 = arith.index_cast %116 : i32 to index
    %c0_46 = arith.constant 0 : index
    %118 = vector.load %arg1[%117, %c0_46] : memref<8x3xf32, #tpu.memory_space<vmem>>, vector<1x3xf32>
    %c0_47 = arith.constant 0 : index
    %c0_48 = arith.constant 0 : index
    %119 = vector.load %arg2[%c0_47, %c0_48] : memref<16x3xf32, #tpu.memory_space<vmem>>, vector<16x3xf32>
    %120 = vector.broadcast %118 : vector<1x3xf32> to vector<16x3xf32>
    %121 = arith.subf %119, %120 : vector<16x3xf32>
    %122 = vector.extract_strided_slice %121 {offsets = [0, 0], sizes = [16, 1], strides = [1, 1]} : vector<16x3xf32> to vector<16x1xf32>
    %123 = vector.extract_strided_slice %121 {offsets = [0, 0], sizes = [16, 1], strides = [1, 1]} : vector<16x3xf32> to vector<16x1xf32>
    %124 = arith.mulf %122, %123 : vector<16x1xf32>
    %125 = vector.extract_strided_slice %121 {offsets = [0, 1], sizes = [16, 1], strides = [1, 1]} : vector<16x3xf32> to vector<16x1xf32>
    %126 = vector.extract_strided_slice %121 {offsets = [0, 1], sizes = [16, 1], strides = [1, 1]} : vector<16x3xf32> to vector<16x1xf32>
    %127 = arith.mulf %125, %126 : vector<16x1xf32>
    %128 = arith.addf %124, %127 : vector<16x1xf32>
    %129 = vector.extract_strided_slice %121 {offsets = [0, 2], sizes = [16, 1], strides = [1, 1]} : vector<16x3xf32> to vector<16x1xf32>
    %130 = vector.extract_strided_slice %121 {offsets = [0, 2], sizes = [16, 1], strides = [1, 1]} : vector<16x3xf32> to vector<16x1xf32>
    %131 = arith.mulf %129, %130 : vector<16x1xf32>
    %132 = arith.addf %128, %131 : vector<16x1xf32>
    %cst_49 = arith.constant 8.100000e-01 : f32
    %133 = vector.broadcast %cst_49 : f32 to vector<16x1xf32>
    %134 = arith.cmpf olt, %132, %133 : vector<16x1xf32>
    %135 = arith.andi %134, %58 : vector<16x1xi1>
    %136 = vector.extract_strided_slice %55 {offsets = [32, 0], sizes = [16, 64], strides = [1, 1]} : vector<128x64xf32> to vector<16x64xf32>
    %cst_50 = arith.constant 0xFF800000 : f32
    %137 = vector.shape_cast %135 : vector<16x1xi1> to vector<16x1xi1>
    %138 = vector.broadcast %137 : vector<16x1xi1> to vector<16x64xi1>
    %139 = vector.broadcast %cst_50 : f32 to vector<16x64xf32>
    %140 = arith.select %138, %136, %139 : vector<16x64xi1>, vector<16x64xf32>
    %cst_51 = arith.constant dense<0xFF800000> : vector<64xf32>
    %141 = vector.multi_reduction <maximumf>, %140, %cst_51 [0] : vector<16x64xf32> to vector<64xf32>
    %142 = vector.shape_cast %141 : vector<64xf32> to vector<1x64xf32>
    %c8_i32_52 = arith.constant 8 : i32
    %143 = arith.muli %arg0, %c8_i32_52 : i32
    %c3_i32 = arith.constant 3 : i32
    %144 = arith.addi %143, %c3_i32 : i32
    %145 = arith.index_cast %144 : i32 to index
    %c0_53 = arith.constant 0 : index
    %146 = vector.load %arg1[%145, %c0_53] : memref<8x3xf32, #tpu.memory_space<vmem>>, vector<1x3xf32>
    %c0_54 = arith.constant 0 : index
    %c0_55 = arith.constant 0 : index
    %147 = vector.load %arg2[%c0_54, %c0_55] : memref<16x3xf32, #tpu.memory_space<vmem>>, vector<16x3xf32>
    %148 = vector.broadcast %146 : vector<1x3xf32> to vector<16x3xf32>
    %149 = arith.subf %147, %148 : vector<16x3xf32>
    %150 = vector.extract_strided_slice %149 {offsets = [0, 0], sizes = [16, 1], strides = [1, 1]} : vector<16x3xf32> to vector<16x1xf32>
    %151 = vector.extract_strided_slice %149 {offsets = [0, 0], sizes = [16, 1], strides = [1, 1]} : vector<16x3xf32> to vector<16x1xf32>
    %152 = arith.mulf %150, %151 : vector<16x1xf32>
    %153 = vector.extract_strided_slice %149 {offsets = [0, 1], sizes = [16, 1], strides = [1, 1]} : vector<16x3xf32> to vector<16x1xf32>
    %154 = vector.extract_strided_slice %149 {offsets = [0, 1], sizes = [16, 1], strides = [1, 1]} : vector<16x3xf32> to vector<16x1xf32>
    %155 = arith.mulf %153, %154 : vector<16x1xf32>
    %156 = arith.addf %152, %155 : vector<16x1xf32>
    %157 = vector.extract_strided_slice %149 {offsets = [0, 2], sizes = [16, 1], strides = [1, 1]} : vector<16x3xf32> to vector<16x1xf32>
    %158 = vector.extract_strided_slice %149 {offsets = [0, 2], sizes = [16, 1], strides = [1, 1]} : vector<16x3xf32> to vector<16x1xf32>
    %159 = arith.mulf %157, %158 : vector<16x1xf32>
    %160 = arith.addf %156, %159 : vector<16x1xf32>
    %cst_56 = arith.constant 8.100000e-01 : f32
    %161 = vector.broadcast %cst_56 : f32 to vector<16x1xf32>
    %162 = arith.cmpf olt, %160, %161 : vector<16x1xf32>
    %163 = arith.andi %162, %58 : vector<16x1xi1>
    %164 = vector.extract_strided_slice %55 {offsets = [48, 0], sizes = [16, 64], strides = [1, 1]} : vector<128x64xf32> to vector<16x64xf32>
    %cst_57 = arith.constant 0xFF800000 : f32
    %165 = vector.shape_cast %163 : vector<16x1xi1> to vector<16x1xi1>
    %166 = vector.broadcast %165 : vector<16x1xi1> to vector<16x64xi1>
    %167 = vector.broadcast %cst_57 : f32 to vector<16x64xf32>
    %168 = arith.select %166, %164, %167 : vector<16x64xi1>, vector<16x64xf32>
    %cst_58 = arith.constant dense<0xFF800000> : vector<64xf32>
    %169 = vector.multi_reduction <maximumf>, %168, %cst_58 [0] : vector<16x64xf32> to vector<64xf32>
    %170 = vector.shape_cast %169 : vector<64xf32> to vector<1x64xf32>
    %c8_i32_59 = arith.constant 8 : i32
    %171 = arith.muli %arg0, %c8_i32_59 : i32
    %c4_i32 = arith.constant 4 : i32
    %172 = arith.addi %171, %c4_i32 : i32
    %173 = arith.index_cast %172 : i32 to index
    %c0_60 = arith.constant 0 : index
    %174 = vector.load %arg1[%173, %c0_60] : memref<8x3xf32, #tpu.memory_space<vmem>>, vector<1x3xf32>
    %c0_61 = arith.constant 0 : index
    %c0_62 = arith.constant 0 : index
    %175 = vector.load %arg2[%c0_61, %c0_62] : memref<16x3xf32, #tpu.memory_space<vmem>>, vector<16x3xf32>
    %176 = vector.broadcast %174 : vector<1x3xf32> to vector<16x3xf32>
    %177 = arith.subf %175, %176 : vector<16x3xf32>
    %178 = vector.extract_strided_slice %177 {offsets = [0, 0], sizes = [16, 1], strides = [1, 1]} : vector<16x3xf32> to vector<16x1xf32>
    %179 = vector.extract_strided_slice %177 {offsets = [0, 0], sizes = [16, 1], strides = [1, 1]} : vector<16x3xf32> to vector<16x1xf32>
    %180 = arith.mulf %178, %179 : vector<16x1xf32>
    %181 = vector.extract_strided_slice %177 {offsets = [0, 1], sizes = [16, 1], strides = [1, 1]} : vector<16x3xf32> to vector<16x1xf32>
    %182 = vector.extract_strided_slice %177 {offsets = [0, 1], sizes = [16, 1], strides = [1, 1]} : vector<16x3xf32> to vector<16x1xf32>
    %183 = arith.mulf %181, %182 : vector<16x1xf32>
    %184 = arith.addf %180, %183 : vector<16x1xf32>
    %185 = vector.extract_strided_slice %177 {offsets = [0, 2], sizes = [16, 1], strides = [1, 1]} : vector<16x3xf32> to vector<16x1xf32>
    %186 = vector.extract_strided_slice %177 {offsets = [0, 2], sizes = [16, 1], strides = [1, 1]} : vector<16x3xf32> to vector<16x1xf32>
    %187 = arith.mulf %185, %186 : vector<16x1xf32>
    %188 = arith.addf %184, %187 : vector<16x1xf32>
    %cst_63 = arith.constant 8.100000e-01 : f32
    %189 = vector.broadcast %cst_63 : f32 to vector<16x1xf32>
    %190 = arith.cmpf olt, %188, %189 : vector<16x1xf32>
    %191 = arith.andi %190, %58 : vector<16x1xi1>
    %192 = vector.extract_strided_slice %55 {offsets = [64, 0], sizes = [16, 64], strides = [1, 1]} : vector<128x64xf32> to vector<16x64xf32>
    %cst_64 = arith.constant 0xFF800000 : f32
    %193 = vector.shape_cast %191 : vector<16x1xi1> to vector<16x1xi1>
    %194 = vector.broadcast %193 : vector<16x1xi1> to vector<16x64xi1>
    %195 = vector.broadcast %cst_64 : f32 to vector<16x64xf32>
    %196 = arith.select %194, %192, %195 : vector<16x64xi1>, vector<16x64xf32>
    %cst_65 = arith.constant dense<0xFF800000> : vector<64xf32>
    %197 = vector.multi_reduction <maximumf>, %196, %cst_65 [0] : vector<16x64xf32> to vector<64xf32>
    %198 = vector.shape_cast %197 : vector<64xf32> to vector<1x64xf32>
    %c8_i32_66 = arith.constant 8 : i32
    %199 = arith.muli %arg0, %c8_i32_66 : i32
    %c5_i32 = arith.constant 5 : i32
    %200 = arith.addi %199, %c5_i32 : i32
    %201 = arith.index_cast %200 : i32 to index
    %c0_67 = arith.constant 0 : index
    %202 = vector.load %arg1[%201, %c0_67] : memref<8x3xf32, #tpu.memory_space<vmem>>, vector<1x3xf32>
    %c0_68 = arith.constant 0 : index
    %c0_69 = arith.constant 0 : index
    %203 = vector.load %arg2[%c0_68, %c0_69] : memref<16x3xf32, #tpu.memory_space<vmem>>, vector<16x3xf32>
    %204 = vector.broadcast %202 : vector<1x3xf32> to vector<16x3xf32>
    %205 = arith.subf %203, %204 : vector<16x3xf32>
    %206 = vector.extract_strided_slice %205 {offsets = [0, 0], sizes = [16, 1], strides = [1, 1]} : vector<16x3xf32> to vector<16x1xf32>
    %207 = vector.extract_strided_slice %205 {offsets = [0, 0], sizes = [16, 1], strides = [1, 1]} : vector<16x3xf32> to vector<16x1xf32>
    %208 = arith.mulf %206, %207 : vector<16x1xf32>
    %209 = vector.extract_strided_slice %205 {offsets = [0, 1], sizes = [16, 1], strides = [1, 1]} : vector<16x3xf32> to vector<16x1xf32>
    %210 = vector.extract_strided_slice %205 {offsets = [0, 1], sizes = [16, 1], strides = [1, 1]} : vector<16x3xf32> to vector<16x1xf32>
    %211 = arith.mulf %209, %210 : vector<16x1xf32>
    %212 = arith.addf %208, %211 : vector<16x1xf32>
    %213 = vector.extract_strided_slice %205 {offsets = [0, 2], sizes = [16, 1], strides = [1, 1]} : vector<16x3xf32> to vector<16x1xf32>
    %214 = vector.extract_strided_slice %205 {offsets = [0, 2], sizes = [16, 1], strides = [1, 1]} : vector<16x3xf32> to vector<16x1xf32>
    %215 = arith.mulf %213, %214 : vector<16x1xf32>
    %216 = arith.addf %212, %215 : vector<16x1xf32>
    %cst_70 = arith.constant 8.100000e-01 : f32
    %217 = vector.broadcast %cst_70 : f32 to vector<16x1xf32>
    %218 = arith.cmpf olt, %216, %217 : vector<16x1xf32>
    %219 = arith.andi %218, %58 : vector<16x1xi1>
    %220 = vector.extract_strided_slice %55 {offsets = [80, 0], sizes = [16, 64], strides = [1, 1]} : vector<128x64xf32> to vector<16x64xf32>
    %cst_71 = arith.constant 0xFF800000 : f32
    %221 = vector.shape_cast %219 : vector<16x1xi1> to vector<16x1xi1>
    %222 = vector.broadcast %221 : vector<16x1xi1> to vector<16x64xi1>
    %223 = vector.broadcast %cst_71 : f32 to vector<16x64xf32>
    %224 = arith.select %222, %220, %223 : vector<16x64xi1>, vector<16x64xf32>
    %cst_72 = arith.constant dense<0xFF800000> : vector<64xf32>
    %225 = vector.multi_reduction <maximumf>, %224, %cst_72 [0] : vector<16x64xf32> to vector<64xf32>
    %226 = vector.shape_cast %225 : vector<64xf32> to vector<1x64xf32>
    %c8_i32_73 = arith.constant 8 : i32
    %227 = arith.muli %arg0, %c8_i32_73 : i32
    %c6_i32 = arith.constant 6 : i32
    %228 = arith.addi %227, %c6_i32 : i32
    %229 = arith.index_cast %228 : i32 to index
    %c0_74 = arith.constant 0 : index
    %230 = vector.load %arg1[%229, %c0_74] : memref<8x3xf32, #tpu.memory_space<vmem>>, vector<1x3xf32>
    %c0_75 = arith.constant 0 : index
    %c0_76 = arith.constant 0 : index
    %231 = vector.load %arg2[%c0_75, %c0_76] : memref<16x3xf32, #tpu.memory_space<vmem>>, vector<16x3xf32>
    %232 = vector.broadcast %230 : vector<1x3xf32> to vector<16x3xf32>
    %233 = arith.subf %231, %232 : vector<16x3xf32>
    %234 = vector.extract_strided_slice %233 {offsets = [0, 0], sizes = [16, 1], strides = [1, 1]} : vector<16x3xf32> to vector<16x1xf32>
    %235 = vector.extract_strided_slice %233 {offsets = [0, 0], sizes = [16, 1], strides = [1, 1]} : vector<16x3xf32> to vector<16x1xf32>
    %236 = arith.mulf %234, %235 : vector<16x1xf32>
    %237 = vector.extract_strided_slice %233 {offsets = [0, 1], sizes = [16, 1], strides = [1, 1]} : vector<16x3xf32> to vector<16x1xf32>
    %238 = vector.extract_strided_slice %233 {offsets = [0, 1], sizes = [16, 1], strides = [1, 1]} : vector<16x3xf32> to vector<16x1xf32>
    %239 = arith.mulf %237, %238 : vector<16x1xf32>
    %240 = arith.addf %236, %239 : vector<16x1xf32>
    %241 = vector.extract_strided_slice %233 {offsets = [0, 2], sizes = [16, 1], strides = [1, 1]} : vector<16x3xf32> to vector<16x1xf32>
    %242 = vector.extract_strided_slice %233 {offsets = [0, 2], sizes = [16, 1], strides = [1, 1]} : vector<16x3xf32> to vector<16x1xf32>
    %243 = arith.mulf %241, %242 : vector<16x1xf32>
    %244 = arith.addf %240, %243 : vector<16x1xf32>
    %cst_77 = arith.constant 8.100000e-01 : f32
    %245 = vector.broadcast %cst_77 : f32 to vector<16x1xf32>
    %246 = arith.cmpf olt, %244, %245 : vector<16x1xf32>
    %247 = arith.andi %246, %58 : vector<16x1xi1>
    %248 = vector.extract_strided_slice %55 {offsets = [96, 0], sizes = [16, 64], strides = [1, 1]} : vector<128x64xf32> to vector<16x64xf32>
    %cst_78 = arith.constant 0xFF800000 : f32
    %249 = vector.shape_cast %247 : vector<16x1xi1> to vector<16x1xi1>
    %250 = vector.broadcast %249 : vector<16x1xi1> to vector<16x64xi1>
    %251 = vector.broadcast %cst_78 : f32 to vector<16x64xf32>
    %252 = arith.select %250, %248, %251 : vector<16x64xi1>, vector<16x64xf32>
    %cst_79 = arith.constant dense<0xFF800000> : vector<64xf32>
    %253 = vector.multi_reduction <maximumf>, %252, %cst_79 [0] : vector<16x64xf32> to vector<64xf32>
    %254 = vector.shape_cast %253 : vector<64xf32> to vector<1x64xf32>
    %c8_i32_80 = arith.constant 8 : i32
    %255 = arith.muli %arg0, %c8_i32_80 : i32
    %c7_i32 = arith.constant 7 : i32
    %256 = arith.addi %255, %c7_i32 : i32
    %257 = arith.index_cast %256 : i32 to index
    %c0_81 = arith.constant 0 : index
    %258 = vector.load %arg1[%257, %c0_81] : memref<8x3xf32, #tpu.memory_space<vmem>>, vector<1x3xf32>
    %c0_82 = arith.constant 0 : index
    %c0_83 = arith.constant 0 : index
    %259 = vector.load %arg2[%c0_82, %c0_83] : memref<16x3xf32, #tpu.memory_space<vmem>>, vector<16x3xf32>
    %260 = vector.broadcast %258 : vector<1x3xf32> to vector<16x3xf32>
    %261 = arith.subf %259, %260 : vector<16x3xf32>
    %262 = vector.extract_strided_slice %261 {offsets = [0, 0], sizes = [16, 1], strides = [1, 1]} : vector<16x3xf32> to vector<16x1xf32>
    %263 = vector.extract_strided_slice %261 {offsets = [0, 0], sizes = [16, 1], strides = [1, 1]} : vector<16x3xf32> to vector<16x1xf32>
    %264 = arith.mulf %262, %263 : vector<16x1xf32>
    %265 = vector.extract_strided_slice %261 {offsets = [0, 1], sizes = [16, 1], strides = [1, 1]} : vector<16x3xf32> to vector<16x1xf32>
    %266 = vector.extract_strided_slice %261 {offsets = [0, 1], sizes = [16, 1], strides = [1, 1]} : vector<16x3xf32> to vector<16x1xf32>
    %267 = arith.mulf %265, %266 : vector<16x1xf32>
    %268 = arith.addf %264, %267 : vector<16x1xf32>
    %269 = vector.extract_strided_slice %261 {offsets = [0, 2], sizes = [16, 1], strides = [1, 1]} : vector<16x3xf32> to vector<16x1xf32>
    %270 = vector.extract_strided_slice %261 {offsets = [0, 2], sizes = [16, 1], strides = [1, 1]} : vector<16x3xf32> to vector<16x1xf32>
    %271 = arith.mulf %269, %270 : vector<16x1xf32>
    %272 = arith.addf %268, %271 : vector<16x1xf32>
    %cst_84 = arith.constant 8.100000e-01 : f32
    %273 = vector.broadcast %cst_84 : f32 to vector<16x1xf32>
    %274 = arith.cmpf olt, %272, %273 : vector<16x1xf32>
    %275 = arith.andi %274, %58 : vector<16x1xi1>
    %276 = vector.extract_strided_slice %55 {offsets = [112, 0], sizes = [16, 64], strides = [1, 1]} : vector<128x64xf32> to vector<16x64xf32>
    %cst_85 = arith.constant 0xFF800000 : f32
    %277 = vector.shape_cast %275 : vector<16x1xi1> to vector<16x1xi1>
    %278 = vector.broadcast %277 : vector<16x1xi1> to vector<16x64xi1>
    %279 = vector.broadcast %cst_85 : f32 to vector<16x64xf32>
    %280 = arith.select %278, %276, %279 : vector<16x64xi1>, vector<16x64xf32>
    %cst_86 = arith.constant dense<0xFF800000> : vector<64xf32>
    %281 = vector.multi_reduction <maximumf>, %280, %cst_86 [0] : vector<16x64xf32> to vector<64xf32>
    %282 = vector.shape_cast %281 : vector<64xf32> to vector<1x64xf32>
    %283 = tpu.concatenate %86, %114, %142, %170, %198, %226, %254, %282 in 0 : vector<1x64xf32>, vector<1x64xf32>, vector<1x64xf32>, vector<1x64xf32>, vector<1x64xf32>, vector<1x64xf32>, vector<1x64xf32>, vector<1x64xf32> -> vector<8x64xf32>
    %c0_87 = arith.constant 0 : index
    %c0_88 = arith.constant 0 : index
    %284 = vector.load %arg10[%c0_87, %c0_88] : memref<8x64xf32, #tpu.memory_space<vmem>>, vector<8x64xf32>
    tpu.vector_store %arg10[%c0_87, %c0_88], %283 {strides = array<i32>} : memref<8x64xf32, #tpu.memory_space<vmem>>, vector<8x64xf32>,
    return
  }
  func.func @transform_0(%arg0: i32) -> (i32, i32) {
    %c0_i32 = arith.constant 0 : i32
    %c0_i32_0 = arith.constant 0 : i32
    %c0_i32_1 = arith.constant 0 : i32
    return %c0_i32, %c0_i32_0 : i32, i32
  }
  func.func @transform_1(%arg0: i32) -> (i32, i32) {
    %c0_i32 = arith.constant 0 : i32
    %c0_i32_0 = arith.constant 0 : i32
    %c0_i32_1 = arith.constant 0 : i32
    return %c0_i32, %c0_i32_0 : i32, i32
  }
  func.func @transform_2(%arg0: i32) -> (i32, i32) {
    %c0_i32 = arith.constant 0 : i32
    %c0_i32_0 = arith.constant 0 : i32
    %c0_i32_1 = arith.constant 0 : i32
    return %c0_i32, %c0_i32_0 : i32, i32
  }
  func.func @transform_3(%arg0: i32) -> (i32, i32) {
    %c0_i32 = arith.constant 0 : i32
    %c0_i32_0 = arith.constant 0 : i32
    %c0_i32_1 = arith.constant 0 : i32
    return %c0_i32, %c0_i32_0 : i32, i32
  }
  func.func @transform_4(%arg0: i32) -> (i32, i32) {
    %c0_i32 = arith.constant 0 : i32
    %c0_i32_0 = arith.constant 0 : i32
    return %arg0, %c0_i32 : i32, i32
  }
  func.func @transform_5(%arg0: i32) -> (i32, i32) {
    %c0_i32 = arith.constant 0 : i32
    %c0_i32_0 = arith.constant 0 : i32
    %c0_i32_1 = arith.constant 0 : i32
    return %c0_i32, %c0_i32_0 : i32, i32
  }
  func.func @transform_6(%arg0: i32) -> (i32, i32) {
    %c0_i32 = arith.constant 0 : i32
    %c0_i32_0 = arith.constant 0 : i32
    %c0_i32_1 = arith.constant 0 : i32
    return %c0_i32, %c0_i32_0 : i32, i32
  }
  func.func @transform_7(%arg0: i32) -> (i32, i32) {
    %c0_i32 = arith.constant 0 : i32
    %c0_i32_0 = arith.constant 0 : i32
    %c0_i32_1 = arith.constant 0 : i32
    return %c0_i32, %c0_i32_0 : i32, i32
  }
  func.func @transform_8(%arg0: i32) -> (i32, i32) {
    %c0_i32 = arith.constant 0 : i32
    %c0_i32_0 = arith.constant 0 : i32
    %c0_i32_1 = arith.constant 0 : i32
    return %c0_i32, %c0_i32_0 : i32, i32
  }
  func.func @transform_9(%arg0: i32) -> (i32, i32) {
    %c0_i32 = arith.constant 0 : i32
    %c0_i32_0 = arith.constant 0 : i32
    return %arg0, %c0_i32 : i32, i32
  }
}

module attributes {stable_mosaic.version = 11 : i64} {
  func.func @kernel(%arg0: i32, %arg1: memref<8x64xf32, #tpu.memory_space<vmem>>, %arg2: memref<8x1xf32, #tpu.memory_space<vmem>>, %arg3: memref<1x64xf32, #tpu.memory_space<vmem>>, %arg4: memref<64x64xf32, #tpu.memory_space<vmem>>, %arg5: memref<64x64xf32, #tpu.memory_space<vmem>>, %arg6: memref<1x64xf32, #tpu.memory_space<vmem>>, %arg7: memref<64x32xf32, #tpu.memory_space<vmem>>, %arg8: memref<1x32xf32, #tpu.memory_space<vmem>>, %arg9: memref<8x32xf32, #tpu.memory_space<vmem>>) attributes {dimension_semantics = [#tpu.dimension_semantics<parallel>], iteration_bounds = array<i64: 1>, scalar_prefetch = 0 : i64, scratch_operands = 0 : i64, tpu.core_type = #tpu.core_type<tc>, window_params = [{transform_indices = @transform_0, window_bounds = array<i64: 8, 64>}, {transform_indices = @transform_1, window_bounds = array<i64: 8, 1>}, {pipeline_mode = #tpu.pipeline_mode<synchronous>, transform_indices = @transform_2, window_bounds = array<i64: 1, 64>}, {pipeline_mode = #tpu.pipeline_mode<synchronous>, transform_indices = @transform_3, window_bounds = array<i64: 64, 64>}, {pipeline_mode = #tpu.pipeline_mode<synchronous>, transform_indices = @transform_4, window_bounds = array<i64: 64, 64>}, {pipeline_mode = #tpu.pipeline_mode<synchronous>, transform_indices = @transform_5, window_bounds = array<i64: 1, 64>}, {pipeline_mode = #tpu.pipeline_mode<synchronous>, transform_indices = @transform_6, window_bounds = array<i64: 64, 32>}, {pipeline_mode = #tpu.pipeline_mode<synchronous>, transform_indices = @transform_7, window_bounds = array<i64: 1, 32>}, {transform_indices = @transform_8, window_bounds = array<i64: 8, 32>}]} {
    %c0 = arith.constant 0 : index
    %c0_0 = arith.constant 0 : index
    %0 = vector.load %arg2[%c0, %c0_0] : memref<8x1xf32, #tpu.memory_space<vmem>>, vector<8x1xf32>
    %c0_1 = arith.constant 0 : index
    %c0_2 = arith.constant 0 : index
    %1 = vector.load %arg3[%c0_1, %c0_2] : memref<1x64xf32, #tpu.memory_space<vmem>>, vector<1x64xf32>
    %cst = arith.constant dense<0.000000e+00> : vector<8x64xf32>
    %2 = tpu.matmul %0, %1, %cst {dimension_numbers = #tpu.dot_dimension_numbers<[1], [0], [0], [1], [0, 0, 1, 1], [], []>} : vector<8x1xf32>, vector<1x64xf32>, vector<8x64xf32> -> vector<8x64xf32>
    %c0_3 = arith.constant 0 : index
    %c0_4 = arith.constant 0 : index
    %3 = vector.load %arg1[%c0_3, %c0_4] : memref<8x64xf32, #tpu.memory_space<vmem>>, vector<8x64xf32>
    %c0_5 = arith.constant 0 : index
    %c0_6 = arith.constant 0 : index
    %4 = vector.load %arg4[%c0_5, %c0_6] : memref<64x64xf32, #tpu.memory_space<vmem>>, vector<64x64xf32>
    %cst_7 = arith.constant dense<0.000000e+00> : vector<8x64xf32>
    %5 = tpu.matmul %3, %4, %cst_7 {dimension_numbers = #tpu.dot_dimension_numbers<[1], [0], [0], [1], [0, 0, 1, 1], [], []>} : vector<8x64xf32>, vector<64x64xf32>, vector<8x64xf32> -> vector<8x64xf32>
    %c0_8 = arith.constant 0 : index
    %c0_9 = arith.constant 0 : index
    %6 = vector.load %arg5[%c0_8, %c0_9] : memref<64x64xf32, #tpu.memory_space<vmem>>, vector<64x64xf32>
    %cst_10 = arith.constant dense<0.000000e+00> : vector<8x64xf32>
    %7 = tpu.matmul %2, %6, %cst_10 {dimension_numbers = #tpu.dot_dimension_numbers<[1], [0], [0], [1], [0, 0, 1, 1], [], []>} : vector<8x64xf32>, vector<64x64xf32>, vector<8x64xf32> -> vector<8x64xf32>
    %8 = arith.addf %5, %7 : vector<8x64xf32>
    %c0_11 = arith.constant 0 : index
    %c0_12 = arith.constant 0 : index
    %9 = vector.load %arg6[%c0_11, %c0_12] : memref<1x64xf32, #tpu.memory_space<vmem>>, vector<1x64xf32>
    %10 = vector.broadcast %9 : vector<1x64xf32> to vector<8x64xf32>
    %11 = arith.addf %8, %10 : vector<8x64xf32>
    %cst_13 = arith.constant 0.000000e+00 : f32
    %12 = vector.broadcast %cst_13 : f32 to vector<8x64xf32>
    %13 = arith.maximumf %11, %12 : vector<8x64xf32>
    %c0_14 = arith.constant 0 : index
    %c0_15 = arith.constant 0 : index
    %14 = vector.load %arg7[%c0_14, %c0_15] : memref<64x32xf32, #tpu.memory_space<vmem>>, vector<64x32xf32>
    %cst_16 = arith.constant dense<0.000000e+00> : vector<8x32xf32>
    %15 = tpu.matmul %13, %14, %cst_16 {dimension_numbers = #tpu.dot_dimension_numbers<[1], [0], [0], [1], [0, 0, 1, 1], [], []>} : vector<8x64xf32>, vector<64x32xf32>, vector<8x32xf32> -> vector<8x32xf32>
    %c0_17 = arith.constant 0 : index
    %c0_18 = arith.constant 0 : index
    %16 = vector.load %arg8[%c0_17, %c0_18] : memref<1x32xf32, #tpu.memory_space<vmem>>, vector<1x32xf32>
    %17 = vector.broadcast %16 : vector<1x32xf32> to vector<8x32xf32>
    %18 = arith.addf %15, %17 : vector<8x32xf32>
    %cst_19 = arith.constant 0.000000e+00 : f32
    %19 = vector.broadcast %cst_19 : f32 to vector<8x32xf32>
    %20 = arith.maximumf %18, %19 : vector<8x32xf32>
    %c0_20 = arith.constant 0 : index
    %c0_21 = arith.constant 0 : index
    %21 = vector.load %arg9[%c0_20, %c0_21] : memref<8x32xf32, #tpu.memory_space<vmem>>, vector<8x32xf32>
    tpu.vector_store %arg9[%c0_20, %c0_21], %20 {strides = array<i32>} : memref<8x32xf32, #tpu.memory_space<vmem>>, vector<8x32xf32>,
    return
  }
  func.func @transform_0(%arg0: i32) -> (i32, i32) {
    %c0_i32 = arith.constant 0 : i32
    %c0_i32_0 = arith.constant 0 : i32
    return %arg0, %c0_i32 : i32, i32
  }
  func.func @transform_1(%arg0: i32) -> (i32, i32) {
    %c0_i32 = arith.constant 0 : i32
    %c0_i32_0 = arith.constant 0 : i32
    return %arg0, %c0_i32 : i32, i32
  }
  func.func @transform_2(%arg0: i32) -> (i32, i32) {
    %c0_i32 = arith.constant 0 : i32
    %c0_i32_0 = arith.constant 0 : i32
    %c0_i32_1 = arith.constant 0 : i32
    return %c0_i32, %c0_i32_0 : i32, i32
  }
  func.func @transform_3(%arg0: i32) -> (i32, i32) {
    %c0_i32 = arith.constant 0 : i32
    %c0_i32_0 = arith.constant 0 : i32
    %c0_i32_1 = arith.constant 0 : i32
    return %c0_i32, %c0_i32_0 : i32, i32
  }
  func.func @transform_4(%arg0: i32) -> (i32, i32) {
    %c0_i32 = arith.constant 0 : i32
    %c0_i32_0 = arith.constant 0 : i32
    %c0_i32_1 = arith.constant 0 : i32
    return %c0_i32, %c0_i32_0 : i32, i32
  }
  func.func @transform_5(%arg0: i32) -> (i32, i32) {
    %c0_i32 = arith.constant 0 : i32
    %c0_i32_0 = arith.constant 0 : i32
    %c0_i32_1 = arith.constant 0 : i32
    return %c0_i32, %c0_i32_0 : i32, i32
  }
  func.func @transform_6(%arg0: i32) -> (i32, i32) {
    %c0_i32 = arith.constant 0 : i32
    %c0_i32_0 = arith.constant 0 : i32
    %c0_i32_1 = arith.constant 0 : i32
    return %c0_i32, %c0_i32_0 : i32, i32
  }
  func.func @transform_7(%arg0: i32) -> (i32, i32) {
    %c0_i32 = arith.constant 0 : i32
    %c0_i32_0 = arith.constant 0 : i32
    %c0_i32_1 = arith.constant 0 : i32
    return %c0_i32, %c0_i32_0 : i32, i32
  }
  func.func @transform_8(%arg0: i32) -> (i32, i32) {
    %c0_i32 = arith.constant 0 : i32
    %c0_i32_0 = arith.constant 0 : i32
    return %arg0, %c0_i32 : i32, i32
  }
}

module attributes {stable_mosaic.version = 11 : i64} {
  func.func @kernel(%arg0: i32, %arg1: memref<16x32xf32, #tpu.memory_space<vmem>>, %arg2: memref<16x8xf32, #tpu.memory_space<vmem>>, %arg3: memref<8x32xf32, #tpu.memory_space<vmem>>, %arg4: memref<32x32xf32, #tpu.memory_space<vmem>>, %arg5: memref<32x32xf32, #tpu.memory_space<vmem>>, %arg6: memref<1x32xf32, #tpu.memory_space<vmem>>, %arg7: memref<32x32xf32, #tpu.memory_space<vmem>>, %arg8: memref<1x32xf32, #tpu.memory_space<vmem>>, %arg9: memref<16x32xf32, #tpu.memory_space<vmem>>) attributes {dimension_semantics = [#tpu.dimension_semantics<parallel>], iteration_bounds = array<i64: 1>, scalar_prefetch = 0 : i64, scratch_operands = 0 : i64, tpu.core_type = #tpu.core_type<tc>, window_params = [{transform_indices = @transform_0, window_bounds = array<i64: 16, 32>}, {transform_indices = @transform_1, window_bounds = array<i64: 16, 8>}, {pipeline_mode = #tpu.pipeline_mode<synchronous>, transform_indices = @transform_2, window_bounds = array<i64: 8, 32>}, {pipeline_mode = #tpu.pipeline_mode<synchronous>, transform_indices = @transform_3, window_bounds = array<i64: 32, 32>}, {pipeline_mode = #tpu.pipeline_mode<synchronous>, transform_indices = @transform_4, window_bounds = array<i64: 32, 32>}, {pipeline_mode = #tpu.pipeline_mode<synchronous>, transform_indices = @transform_5, window_bounds = array<i64: 1, 32>}, {pipeline_mode = #tpu.pipeline_mode<synchronous>, transform_indices = @transform_6, window_bounds = array<i64: 32, 32>}, {pipeline_mode = #tpu.pipeline_mode<synchronous>, transform_indices = @transform_7, window_bounds = array<i64: 1, 32>}, {transform_indices = @transform_8, window_bounds = array<i64: 16, 32>}]} {
    %c0 = arith.constant 0 : index
    %c0_0 = arith.constant 0 : index
    %0 = vector.load %arg2[%c0, %c0_0] : memref<16x8xf32, #tpu.memory_space<vmem>>, vector<16x8xf32>
    %c0_1 = arith.constant 0 : index
    %c0_2 = arith.constant 0 : index
    %1 = vector.load %arg3[%c0_1, %c0_2] : memref<8x32xf32, #tpu.memory_space<vmem>>, vector<8x32xf32>
    %cst = arith.constant dense<0.000000e+00> : vector<16x32xf32>
    %2 = tpu.matmul %0, %1, %cst {dimension_numbers = #tpu.dot_dimension_numbers<[1], [0], [0], [1], [0, 0, 1, 1], [], []>} : vector<16x8xf32>, vector<8x32xf32>, vector<16x32xf32> -> vector<16x32xf32>
    %c0_3 = arith.constant 0 : index
    %c0_4 = arith.constant 0 : index
    %3 = vector.load %arg1[%c0_3, %c0_4] : memref<16x32xf32, #tpu.memory_space<vmem>>, vector<16x32xf32>
    %c0_5 = arith.constant 0 : index
    %c0_6 = arith.constant 0 : index
    %4 = vector.load %arg4[%c0_5, %c0_6] : memref<32x32xf32, #tpu.memory_space<vmem>>, vector<32x32xf32>
    %cst_7 = arith.constant dense<0.000000e+00> : vector<16x32xf32>
    %5 = tpu.matmul %3, %4, %cst_7 {dimension_numbers = #tpu.dot_dimension_numbers<[1], [0], [0], [1], [0, 0, 1, 1], [], []>} : vector<16x32xf32>, vector<32x32xf32>, vector<16x32xf32> -> vector<16x32xf32>
    %c0_8 = arith.constant 0 : index
    %c0_9 = arith.constant 0 : index
    %6 = vector.load %arg5[%c0_8, %c0_9] : memref<32x32xf32, #tpu.memory_space<vmem>>, vector<32x32xf32>
    %cst_10 = arith.constant dense<0.000000e+00> : vector<16x32xf32>
    %7 = tpu.matmul %2, %6, %cst_10 {dimension_numbers = #tpu.dot_dimension_numbers<[1], [0], [0], [1], [0, 0, 1, 1], [], []>} : vector<16x32xf32>, vector<32x32xf32>, vector<16x32xf32> -> vector<16x32xf32>
    %8 = arith.addf %5, %7 : vector<16x32xf32>
    %c0_11 = arith.constant 0 : index
    %c0_12 = arith.constant 0 : index
    %9 = vector.load %arg6[%c0_11, %c0_12] : memref<1x32xf32, #tpu.memory_space<vmem>>, vector<1x32xf32>
    %10 = vector.broadcast %9 : vector<1x32xf32> to vector<16x32xf32>
    %11 = arith.addf %8, %10 : vector<16x32xf32>
    %cst_13 = arith.constant 0.000000e+00 : f32
    %12 = vector.broadcast %cst_13 : f32 to vector<16x32xf32>
    %13 = arith.maximumf %11, %12 : vector<16x32xf32>
    %c0_14 = arith.constant 0 : index
    %c0_15 = arith.constant 0 : index
    %14 = vector.load %arg7[%c0_14, %c0_15] : memref<32x32xf32, #tpu.memory_space<vmem>>, vector<32x32xf32>
    %cst_16 = arith.constant dense<0.000000e+00> : vector<16x32xf32>
    %15 = tpu.matmul %13, %14, %cst_16 {dimension_numbers = #tpu.dot_dimension_numbers<[1], [0], [0], [1], [0, 0, 1, 1], [], []>} : vector<16x32xf32>, vector<32x32xf32>, vector<16x32xf32> -> vector<16x32xf32>
    %c0_17 = arith.constant 0 : index
    %c0_18 = arith.constant 0 : index
    %16 = vector.load %arg8[%c0_17, %c0_18] : memref<1x32xf32, #tpu.memory_space<vmem>>, vector<1x32xf32>
    %17 = vector.broadcast %16 : vector<1x32xf32> to vector<16x32xf32>
    %18 = arith.addf %15, %17 : vector<16x32xf32>
    %cst_19 = arith.constant 0.000000e+00 : f32
    %19 = vector.broadcast %cst_19 : f32 to vector<16x32xf32>
    %20 = arith.maximumf %18, %19 : vector<16x32xf32>
    %c0_20 = arith.constant 0 : index
    %c0_21 = arith.constant 0 : index
    %21 = vector.load %arg9[%c0_20, %c0_21] : memref<16x32xf32, #tpu.memory_space<vmem>>, vector<16x32xf32>
    tpu.vector_store %arg9[%c0_20, %c0_21], %20 {strides = array<i32>} : memref<16x32xf32, #tpu.memory_space<vmem>>, vector<16x32xf32>,
    return
  }
  func.func @transform_0(%arg0: i32) -> (i32, i32) {
    %c0_i32 = arith.constant 0 : i32
    %c0_i32_0 = arith.constant 0 : i32
    return %arg0, %c0_i32 : i32, i32
  }
  func.func @transform_1(%arg0: i32) -> (i32, i32) {
    %c0_i32 = arith.constant 0 : i32
    %c0_i32_0 = arith.constant 0 : i32
    return %arg0, %c0_i32 : i32, i32
  }
  func.func @transform_2(%arg0: i32) -> (i32, i32) {
    %c0_i32 = arith.constant 0 : i32
    %c0_i32_0 = arith.constant 0 : i32
    %c0_i32_1 = arith.constant 0 : i32
    return %c0_i32, %c0_i32_0 : i32, i32
  }
  func.func @transform_3(%arg0: i32) -> (i32, i32) {
    %c0_i32 = arith.constant 0 : i32
    %c0_i32_0 = arith.constant 0 : i32
    %c0_i32_1 = arith.constant 0 : i32
    return %c0_i32, %c0_i32_0 : i32, i32
  }
  func.func @transform_4(%arg0: i32) -> (i32, i32) {
    %c0_i32 = arith.constant 0 : i32
    %c0_i32_0 = arith.constant 0 : i32
    %c0_i32_1 = arith.constant 0 : i32
    return %c0_i32, %c0_i32_0 : i32, i32
  }
  func.func @transform_5(%arg0: i32) -> (i32, i32) {
    %c0_i32 = arith.constant 0 : i32
    %c0_i32_0 = arith.constant 0 : i32
    %c0_i32_1 = arith.constant 0 : i32
    return %c0_i32, %c0_i32_0 : i32, i32
  }
  func.func @transform_6(%arg0: i32) -> (i32, i32) {
    %c0_i32 = arith.constant 0 : i32
    %c0_i32_0 = arith.constant 0 : i32
    %c0_i32_1 = arith.constant 0 : i32
    return %c0_i32, %c0_i32_0 : i32, i32
  }
  func.func @transform_7(%arg0: i32) -> (i32, i32) {
    %c0_i32 = arith.constant 0 : i32
    %c0_i32_0 = arith.constant 0 : i32
    %c0_i32_1 = arith.constant 0 : i32
    return %c0_i32, %c0_i32_0 : i32, i32
  }
  func.func @transform_8(%arg0: i32) -> (i32, i32) {
    %c0_i32 = arith.constant 0 : i32
    %c0_i32_0 = arith.constant 0 : i32
    return %arg0, %c0_i32 : i32, i32
  }
}

module attributes {stable_mosaic.version = 11 : i64} {
  func.func @kernel(%arg0: i32, %arg1: memref<64x4xf32, #tpu.memory_space<vmem>>, %arg2: memref<64x16xf32, #tpu.memory_space<vmem>>, %arg3: memref<16x32xf32, #tpu.memory_space<vmem>>, %arg4: memref<4x32xf32, #tpu.memory_space<vmem>>, %arg5: memref<32x32xf32, #tpu.memory_space<vmem>>, %arg6: memref<1x32xf32, #tpu.memory_space<vmem>>, %arg7: memref<32x8xf32, #tpu.memory_space<vmem>>, %arg8: memref<1x8xf32, #tpu.memory_space<vmem>>, %arg9: memref<64x8xf32, #tpu.memory_space<vmem>>) attributes {dimension_semantics = [#tpu.dimension_semantics<parallel>], iteration_bounds = array<i64: 1>, scalar_prefetch = 0 : i64, scratch_operands = 0 : i64, tpu.core_type = #tpu.core_type<tc>, window_params = [{transform_indices = @transform_0, window_bounds = array<i64: 64, 4>}, {transform_indices = @transform_1, window_bounds = array<i64: 64, 16>}, {pipeline_mode = #tpu.pipeline_mode<synchronous>, transform_indices = @transform_2, window_bounds = array<i64: 16, 32>}, {pipeline_mode = #tpu.pipeline_mode<synchronous>, transform_indices = @transform_3, window_bounds = array<i64: 4, 32>}, {pipeline_mode = #tpu.pipeline_mode<synchronous>, transform_indices = @transform_4, window_bounds = array<i64: 32, 32>}, {pipeline_mode = #tpu.pipeline_mode<synchronous>, transform_indices = @transform_5, window_bounds = array<i64: 1, 32>}, {pipeline_mode = #tpu.pipeline_mode<synchronous>, transform_indices = @transform_6, window_bounds = array<i64: 32, 8>}, {pipeline_mode = #tpu.pipeline_mode<synchronous>, transform_indices = @transform_7, window_bounds = array<i64: 1, 8>}, {transform_indices = @transform_8, window_bounds = array<i64: 64, 8>}]} {
    %c0 = arith.constant 0 : index
    %c0_0 = arith.constant 0 : index
    %0 = vector.load %arg2[%c0, %c0_0] : memref<64x16xf32, #tpu.memory_space<vmem>>, vector<64x16xf32>
    %c0_1 = arith.constant 0 : index
    %c0_2 = arith.constant 0 : index
    %1 = vector.load %arg3[%c0_1, %c0_2] : memref<16x32xf32, #tpu.memory_space<vmem>>, vector<16x32xf32>
    %cst = arith.constant dense<0.000000e+00> : vector<64x32xf32>
    %2 = tpu.matmul %0, %1, %cst {dimension_numbers = #tpu.dot_dimension_numbers<[1], [0], [0], [1], [0, 0, 1, 1], [], []>} : vector<64x16xf32>, vector<16x32xf32>, vector<64x32xf32> -> vector<64x32xf32>
    %c0_3 = arith.constant 0 : index
    %c0_4 = arith.constant 0 : index
    %3 = vector.load %arg1[%c0_3, %c0_4] : memref<64x4xf32, #tpu.memory_space<vmem>>, vector<64x4xf32>
    %c0_5 = arith.constant 0 : index
    %c0_6 = arith.constant 0 : index
    %4 = vector.load %arg4[%c0_5, %c0_6] : memref<4x32xf32, #tpu.memory_space<vmem>>, vector<4x32xf32>
    %cst_7 = arith.constant dense<0.000000e+00> : vector<64x32xf32>
    %5 = tpu.matmul %3, %4, %cst_7 {dimension_numbers = #tpu.dot_dimension_numbers<[1], [0], [0], [1], [0, 0, 1, 1], [], []>} : vector<64x4xf32>, vector<4x32xf32>, vector<64x32xf32> -> vector<64x32xf32>
    %c0_8 = arith.constant 0 : index
    %c0_9 = arith.constant 0 : index
    %6 = vector.load %arg5[%c0_8, %c0_9] : memref<32x32xf32, #tpu.memory_space<vmem>>, vector<32x32xf32>
    %cst_10 = arith.constant dense<0.000000e+00> : vector<64x32xf32>
    %7 = tpu.matmul %2, %6, %cst_10 {dimension_numbers = #tpu.dot_dimension_numbers<[1], [0], [0], [1], [0, 0, 1, 1], [], []>} : vector<64x32xf32>, vector<32x32xf32>, vector<64x32xf32> -> vector<64x32xf32>
    %8 = arith.addf %5, %7 : vector<64x32xf32>
    %c0_11 = arith.constant 0 : index
    %c0_12 = arith.constant 0 : index
    %9 = vector.load %arg6[%c0_11, %c0_12] : memref<1x32xf32, #tpu.memory_space<vmem>>, vector<1x32xf32>
    %10 = vector.broadcast %9 : vector<1x32xf32> to vector<64x32xf32>
    %11 = arith.addf %8, %10 : vector<64x32xf32>
    %cst_13 = arith.constant 0.000000e+00 : f32
    %12 = vector.broadcast %cst_13 : f32 to vector<64x32xf32>
    %13 = arith.maximumf %11, %12 : vector<64x32xf32>
    %c0_14 = arith.constant 0 : index
    %c0_15 = arith.constant 0 : index
    %14 = vector.load %arg7[%c0_14, %c0_15] : memref<32x8xf32, #tpu.memory_space<vmem>>, vector<32x8xf32>
    %cst_16 = arith.constant dense<0.000000e+00> : vector<64x8xf32>
    %15 = tpu.matmul %13, %14, %cst_16 {dimension_numbers = #tpu.dot_dimension_numbers<[1], [0], [0], [1], [0, 0, 1, 1], [], []>} : vector<64x32xf32>, vector<32x8xf32>, vector<64x8xf32> -> vector<64x8xf32>
    %c0_17 = arith.constant 0 : index
    %c0_18 = arith.constant 0 : index
    %16 = vector.load %arg8[%c0_17, %c0_18] : memref<1x8xf32, #tpu.memory_space<vmem>>, vector<1x8xf32>
    %17 = vector.broadcast %16 : vector<1x8xf32> to vector<64x8xf32>
    %18 = arith.addf %15, %17 : vector<64x8xf32>
    %c0_19 = arith.constant 0 : index
    %c0_20 = arith.constant 0 : index
    %19 = vector.load %arg9[%c0_19, %c0_20] : memref<64x8xf32, #tpu.memory_space<vmem>>, vector<64x8xf32>
    tpu.vector_store %arg9[%c0_19, %c0_20], %18 {strides = array<i32>} : memref<64x8xf32, #tpu.memory_space<vmem>>, vector<64x8xf32>,
    return
  }
  func.func @transform_0(%arg0: i32) -> (i32, i32) {
    %c0_i32 = arith.constant 0 : i32
    %c0_i32_0 = arith.constant 0 : i32
    return %arg0, %c0_i32 : i32, i32
  }
  func.func @transform_1(%arg0: i32) -> (i32, i32) {
    %c0_i32 = arith.constant 0 : i32
    %c0_i32_0 = arith.constant 0 : i32
    return %arg0, %c0_i32 : i32, i32
  }
  func.func @transform_2(%arg0: i32) -> (i32, i32) {
    %c0_i32 = arith.constant 0 : i32
    %c0_i32_0 = arith.constant 0 : i32
    %c0_i32_1 = arith.constant 0 : i32
    return %c0_i32, %c0_i32_0 : i32, i32
  }
  func.func @transform_3(%arg0: i32) -> (i32, i32) {
    %c0_i32 = arith.constant 0 : i32
    %c0_i32_0 = arith.constant 0 : i32
    %c0_i32_1 = arith.constant 0 : i32
    return %c0_i32, %c0_i32_0 : i32, i32
  }
  func.func @transform_4(%arg0: i32) -> (i32, i32) {
    %c0_i32 = arith.constant 0 : i32
    %c0_i32_0 = arith.constant 0 : i32
    %c0_i32_1 = arith.constant 0 : i32
    return %c0_i32, %c0_i32_0 : i32, i32
  }
  func.func @transform_5(%arg0: i32) -> (i32, i32) {
    %c0_i32 = arith.constant 0 : i32
    %c0_i32_0 = arith.constant 0 : i32
    %c0_i32_1 = arith.constant 0 : i32
    return %c0_i32, %c0_i32_0 : i32, i32
  }
  func.func @transform_6(%arg0: i32) -> (i32, i32) {
    %c0_i32 = arith.constant 0 : i32
    %c0_i32_0 = arith.constant 0 : i32
    %c0_i32_1 = arith.constant 0 : i32
    return %c0_i32, %c0_i32_0 : i32, i32
  }
  func.func @transform_7(%arg0: i32) -> (i32, i32) {
    %c0_i32 = arith.constant 0 : i32
    %c0_i32_0 = arith.constant 0 : i32
    %c0_i32_1 = arith.constant 0 : i32
    return %c0_i32, %c0_i32_0 : i32, i32
  }
  func.func @transform_8(%arg0: i32) -> (i32, i32) {
    %c0_i32 = arith.constant 0 : i32
    %c0_i32_0 = arith.constant 0 : i32
    return %arg0, %c0_i32 : i32, i32
  }
}

</mosaic_0001>

<llo_original>
// kernel: custom-call.5
$region0: #{custom-call.5}
  %s0 = inlined_call_operand.vmem [shape: f32[16], index: 0, kind: output, shape index: {}]

// kernel: custom-call.4
$region0: #{custom-call.4}
  %s0 = inlined_call_operand.vmem [shape: f32[64], index: 0, kind: output, shape index: {}]

// kernel: _lambda_.8
$region0: #{_lambda_.8}
  #allocation0 [shape = 'u32[]', space=smem, size = 0x4, offset = 0x4, fixed_abs, tag = 'smem constant byte address 0x4 - core index']
  #allocation1 [shape = 'u32[144,128]{1,0:T(1,128)}', space=vmem, size = 0x12000, scoped, tag = 'internal scratch']
  %s0 = inlined_call_operand.hbm [shape: f32[8,3], index: 0, kind: input, shape index: {}]
  %s1 = inlined_call_operand.hbm [shape: f32[8,3], index: 1, kind: input, shape index: {}]
  %s2 = inlined_call_operand.hbm [shape: f32[8,1], index: 2, kind: input, shape index: {}]
  %s3 = inlined_call_operand.hbm [shape: f32[8,64], index: 3, kind: input, shape index: {}]
  %s4 = inlined_call_operand.hbm [shape: f32[8,64], index: 4, kind: input, shape index: {}]
  %s5 = inlined_call_operand.hbm [shape: f32[64,64], index: 5, kind: input, shape index: {}]
  %s6 = inlined_call_operand.hbm [shape: f32[1,64], index: 6, kind: input, shape index: {}]
  %s7 = inlined_call_operand.hbm [shape: f32[64,64], index: 7, kind: input, shape index: {}]
  %s8 = inlined_call_operand.hbm [shape: f32[1,64], index: 8, kind: input, shape index: {}]
  %s9 = inlined_call_operand.hbm [shape: f32[8,64], index: 9, kind: output, shape index: {}]
  %s10 = sld [smem:[#allocation0]]
  $region82: #{_lambda_.8} parent=0
    _
  %s12 = ssub.s32 1, %s10
  %s13 = scalar_select 0, %s12, %s10
  $region1: #{_lambda_.8} parent=0
    #allocation2 [shape = 'u8[4096]{0}', space=vmem, size = 0x1000, scoped, tag = 'input window, operand 0, single buffered']
    #allocation3 [shape = 's32[1]{0}', space=sflag, size = 0x4, scoped, tag = 'scoped memory for _lambda_.8']
    #allocation4 [shape = 's32[1]{0}', space=sflag, size = 0x4, scoped, tag = 'scoped memory for _lambda_.8']
    #allocation5 [shape = 'u8[4096]{0}', space=vmem, size = 0x1000, scoped, tag = 'input window, operand 1, single buffered']
    #allocation6 [shape = 's32[1]{0}', space=sflag, size = 0x4, scoped, tag = 'scoped memory for _lambda_.8']
    #allocation7 [shape = 'u8[4096]{0}', space=vmem, size = 0x1000, scoped, tag = 'input window, operand 2, single buffered']
    #allocation8 [shape = 'u8[4096]{0}', space=vmem, size = 0x1000, scoped, tag = 'input window, operand 3, single buffered']
    #allocation9 [shape = 's32[1]{0}', space=sflag, size = 0x4, scoped, tag = 'scoped memory for _lambda_.8']
    #allocation10 [shape = 'u8[4096]{0}', space=vmem, size = 0x1000, scoped, tag = 'input window, operand 4, single buffered']
    #allocation11 [shape = 'u8[32768]{0}', space=vmem, size = 0x8000, scoped, tag = 'input window, operand 5, single buffered']
    #allocation12 [shape = 's32[1]{0}', space=sflag, size = 0x4, scoped, tag = 'scoped memory for _lambda_.8']
    #allocation13 [shape = 'u8[512]{0}', space=vmem, size = 0x400, scoped, tag = 'input window, operand 6, single buffered']
    #allocation14 [shape = 'u8[32768]{0}', space=vmem, size = 0x8000, scoped, tag = 'input window, operand 7, single buffered']
    #allocation15 [shape = 's32[1]{0}', space=sflag, size = 0x4, scoped, tag = 'scoped memory for _lambda_.8']
    #allocation16 [shape = 'u8[512]{0}', space=vmem, size = 0x400, scoped, tag = 'input window, operand 8, single buffered']
    #allocation17 [shape = 'u8[4096]{0}', space=vmem, size = 0x1000, scoped, tag = 'output window, operand 0, single buffered']
    %14 = vsyncpa [#allocation3], 0
    %15 = vsyncpa [#allocation6], 0
    %16 = vsyncpa [#allocation9], 0
    %17 = vsyncpa [#allocation12], 0
    %18 = vsyncpa [#allocation15], 0
    %19 = vsyncpa [#allocation4], 0
    // Predicated region
    $region2: #{_lambda_.8} parent=1 // pred_check
      _
    $region3: #{_lambda_.8} parent=1 // pred_check_branch
      %21 = sbr.rel (0) target = $region5
    $region4: #{_lambda_.8} parent=1 // pred_region
      %s23 = ssub.s32 128, 128
      %24 = vsyncadd [#allocation3], %s23
      %s26 = sshll.u32 [#allocation2], 4
      %s27 = int_to_ptr.vmem [resolvable:$true] %s26
      %29 = dma.hbm_to_vmem [thread:$0]  %s0, 128, %s27, [#allocation3]
    $region5: #{_lambda_.8} parent=1 // pred_fallthru
      _
    // Predicated region
    $region6: #{_lambda_.8} parent=1 // pred_check
      _
    $region7: #{_lambda_.8} parent=1 // pred_check_branch
      %31 = sbr.rel (0) target = $region9
    $region8: #{_lambda_.8} parent=1 // pred_region
      %s33 = ssub.s32 128, 128
      %34 = vsyncadd [#allocation6], %s33
      %s36 = sshll.u32 [#allocation5], 4
      %s37 = int_to_ptr.vmem [resolvable:$true] %s36
      %39 = dma.hbm_to_vmem [thread:$0]  %s1, 128, %s37, [#allocation6]
    $region9: #{_lambda_.8} parent=1 // pred_fallthru
      _
    // Predicated region
    $region10: #{_lambda_.8} parent=1 // pred_check
      _
    $region11: #{_lambda_.8} parent=1 // pred_check_branch
      %41 = sbr.rel (0) target = $region13
    $region12: #{_lambda_.8} parent=1 // pred_region
      %s43 = ssub.s32 128, 128
      %44 = vsyncadd [#allocation6], %s43
      %s46 = sshll.u32 [#allocation7], 4
      %s47 = int_to_ptr.vmem [resolvable:$true] %s46
      %49 = dma.hbm_to_vmem [thread:$0]  %s2, 128, %s47, [#allocation6]
    $region13: #{_lambda_.8} parent=1 // pred_fallthru
      _
    // Predicated region
    $region14: #{_lambda_.8} parent=1 // pred_check
      _
    $region15: #{_lambda_.8} parent=1 // pred_check_branch
      %51 = sbr.rel (0) target = $region17
    $region16: #{_lambda_.8} parent=1 // pred_region
      %s53 = ssub.s32 128, 128
      %54 = vsyncadd [#allocation9], %s53
      %s56 = sshll.u32 [#allocation8], 4
      %s57 = int_to_ptr.vmem [resolvable:$true] %s56
      %59 = dma.hbm_to_vmem [thread:$0]  %s3, 128, %s57, [#allocation9]
    $region17: #{_lambda_.8} parent=1 // pred_fallthru
      _
    // Predicated region
    $region18: #{_lambda_.8} parent=1 // pred_check
      _
    $region19: #{_lambda_.8} parent=1 // pred_check_branch
      %61 = sbr.rel (0) target = $region21
    $region20: #{_lambda_.8} parent=1 // pred_region
      %s63 = ssub.s32 128, 128
      %64 = vsyncadd [#allocation9], %s63
      %s66 = sshll.u32 [#allocation10], 4
      %s67 = int_to_ptr.vmem [resolvable:$true] %s66
      %69 = dma.hbm_to_vmem [thread:$0]  %s4, 128, %s67, [#allocation9]
    $region21: #{_lambda_.8} parent=1 // pred_fallthru
      _
    // Predicated region
    $region22: #{_lambda_.8} parent=1 // pred_check
      _
    $region23: #{_lambda_.8} parent=1 // pred_check_branch
      %71 = sbr.rel (0) target = $region25
    $region24: #{_lambda_.8} parent=1 // pred_region
      %s73 = ssub.s32 1024, 1024
      %74 = vsyncadd [#allocation12], %s73
      %s75 = sshll.u32 [#allocation11], 4
      %s76 = int_to_ptr.vmem [resolvable:$true] %s75
      %81 = dma.hbm_to_vmem [thread:$0]  %s5, 1024, %s76, [#allocation12], 128, 128, 8
    $region25: #{_lambda_.8} parent=1 // pred_fallthru
      _
    // Predicated region
    $region26: #{_lambda_.8} parent=1 // pred_check
      _
    $region27: #{_lambda_.8} parent=1 // pred_check_branch
      %83 = sbr.rel (0) target = $region29
    $region28: #{_lambda_.8} parent=1 // pred_region
      %s85 = ssub.s32 16, 16
      %86 = vsyncadd [#allocation12], %s85
      %s88 = sshll.u32 [#allocation13], 4
      %s89 = int_to_ptr.vmem [resolvable:$true] %s88
      %91 = dma.hbm_to_vmem [thread:$0]  %s6, 16, %s89, [#allocation12]
    $region29: #{_lambda_.8} parent=1 // pred_fallthru
      _
    // Predicated region
    $region30: #{_lambda_.8} parent=1 // pred_check
      _
    $region31: #{_lambda_.8} parent=1 // pred_check_branch
      %93 = sbr.rel (0) target = $region33
    $region32: #{_lambda_.8} parent=1 // pred_region
      %s95 = ssub.s32 1024, 1024
      %96 = vsyncadd [#allocation15], %s95
      %s97 = sshll.u32 [#allocation14], 4
      %s98 = int_to_ptr.vmem [resolvable:$true] %s97
      %103 = dma.hbm_to_vmem [thread:$0]  %s7, 1024, %s98, [#allocation15], 128, 128, 8
    $region33: #{_lambda_.8} parent=1 // pred_fallthru
      _
    // Predicated region
    $region34: #{_lambda_.8} parent=1 // pred_check
      _
    $region35: #{_lambda_.8} parent=1 // pred_check_branch
      %105 = sbr.rel (0) target = $region37
    $region36: #{_lambda_.8} parent=1 // pred_region
      %s107 = ssub.s32 16, 16
      %108 = vsyncadd [#allocation15], %s107
      %s110 = sshll.u32 [#allocation16], 4
      %s111 = int_to_ptr.vmem [resolvable:$true] %s110
      %113 = dma.hbm_to_vmem [thread:$0]  %s8, 16, %s111, [#allocation15]
    $region37: #{_lambda_.8} parent=1 // pred_fallthru
      _
    // Predicated region
    $region38: #{_lambda_.8} parent=1 // pred_check
      _
    $region39: #{_lambda_.8} parent=1 // pred_check_branch
      %115 = sbr.rel (0) target = $region41
    $region40: #{_lambda_.8} parent=1 // pred_region
      %116 = dma.done [#allocation3], 128
    $region41: #{_lambda_.8} parent=1 // pred_fallthru
      _
    // Predicated region
    $region42: #{_lambda_.8} parent=1 // pred_check
      _
    $region43: #{_lambda_.8} parent=1 // pred_check_branch
      %118 = sbr.rel (0) target = $region45
    $region44: #{_lambda_.8} parent=1 // pred_region
      %119 = dma.done [#allocation6], 128
    $region45: #{_lambda_.8} parent=1 // pred_fallthru
      _
    // Predicated region
    $region46: #{_lambda_.8} parent=1 // pred_check
      _
    $region47: #{_lambda_.8} parent=1 // pred_check_branch
      %121 = sbr.rel (0) target = $region49
    $region48: #{_lambda_.8} parent=1 // pred_region
      %122 = dma.done [#allocation6], 128
    $region49: #{_lambda_.8} parent=1 // pred_fallthru
      _
    // Predicated region
    $region50: #{_lambda_.8} parent=1 // pred_check
      _
    $region51: #{_lambda_.8} parent=1 // pred_check_branch
      %124 = sbr.rel (0) target = $region53
    $region52: #{_lambda_.8} parent=1 // pred_region
      %125 = dma.done [#allocation9], 128
    $region53: #{_lambda_.8} parent=1 // pred_fallthru
      _
    // Predicated region
    $region54: #{_lambda_.8} parent=1 // pred_check
      _
    $region55: #{_lambda_.8} parent=1 // pred_check_branch
      %127 = sbr.rel (0) target = $region57
    $region56: #{_lambda_.8} parent=1 // pred_region
      %128 = dma.done [#allocation9], 128
    $region57: #{_lambda_.8} parent=1 // pred_fallthru
      _
    // Predicated region
    $region58: #{_lambda_.8} parent=1 // pred_check
      _
    $region59: #{_lambda_.8} parent=1 // pred_check_branch
      %130 = sbr.rel (0) target = $region61
    $region60: #{_lambda_.8} parent=1 // pred_region
      %131 = dma.done [#allocation12], 1024
    $region61: #{_lambda_.8} parent=1 // pred_fallthru
      _
    // Predicated region
    $region62: #{_lambda_.8} parent=1 // pred_check
      _
    $region63: #{_lambda_.8} parent=1 // pred_check_branch
      %133 = sbr.rel (0) target = $region65
    $region64: #{_lambda_.8} parent=1 // pred_region
      %134 = dma.done [#allocation12], 16
    $region65: #{_lambda_.8} parent=1 // pred_fallthru
      _
    // Predicated region
    $region66: #{_lambda_.8} parent=1 // pred_check
      _
    $region67: #{_lambda_.8} parent=1 // pred_check_branch
      %136 = sbr.rel (0) target = $region69
    $region68: #{_lambda_.8} parent=1 // pred_region
      %137 = dma.done [#allocation15], 1024
    $region69: #{_lambda_.8} parent=1 // pred_fallthru
      _
    // Predicated region
    $region70: #{_lambda_.8} parent=1 // pred_check
      _
    $region71: #{_lambda_.8} parent=1 // pred_check_branch
      %139 = sbr.rel (0) target = $region73
    $region72: #{_lambda_.8} parent=1 // pred_region
      %140 = dma.done [#allocation15], 16
    $region73: #{_lambda_.8} parent=1 // pred_fallthru
      _
    %v141 = vld [vmem:[#allocation8] sm:$0xff]
    %v142 = vld [vmem:[#allocation10] sm:$0x1]
    %v143 = vlaneseq
    %v144 = vshrl.u32 %v143, 7
    %v145 = vsub.s32 0, %v144
    %v146 = vrot.slane %v142, %v145
    %v147 = vsub.f32 %v141, %v146
    %v148 = vmax.f32 %v147, 0.0
    %v149 = vld [vmem:[#allocation10 + $0x1] sm:$0x1]
    %v150 = vlaneseq
    %v151 = vshrl.u32 %v150, 7
    %v152 = vsub.s32 0, %v151
    %v153 = vrot.slane %v149, %v152
    %v154 = vsub.f32 %v141, %v153
    %v155 = vmax.f32 %v154, 0.0
    %v156 = vld [vmem:[#allocation10 + $0x2] sm:$0x1]
    %v157 = vlaneseq
    %v158 = vshrl.u32 %v157, 7
    %v159 = vsub.s32 0, %v158
    %v160 = vrot.slane %v156, %v159
    %v161 = vsub.f32 %v141, %v160
    %v162 = vmax.f32 %v161, 0.0
    %v163 = vld [vmem:[#allocation10 + $0x3] sm:$0x1]
    %v164 = vlaneseq
    %v165 = vshrl.u32 %v164, 7
    %v166 = vsub.s32 0, %v165
    %v167 = vrot.slane %v163, %v166
    %v168 = vsub.f32 %v141, %v167
    %v169 = vmax.f32 %v168, 0.0
    %v170 = vld [vmem:[#allocation10 + $0x4] sm:$0x1]
    %v171 = vlaneseq
    %v172 = vshrl.u32 %v171, 7
    %v173 = vsub.s32 0, %v172
    %v174 = vrot.slane %v170, %v173
    %v175 = vsub.f32 %v141, %v174
    %v176 = vmax.f32 %v175, 0.0
    %v177 = vld [vmem:[#allocation10 + $0x5] sm:$0x1]
    %v178 = vlaneseq
    %v179 = vshrl.u32 %v178, 7
    %v180 = vsub.s32 0, %v179
    %v181 = vrot.slane %v177, %v180
    %v182 = vsub.f32 %v141, %v181
    %v183 = vmax.f32 %v182, 0.0
    %v184 = vld [vmem:[#allocation10 + $0x6] sm:$0x1]
    %v185 = vlaneseq
    %v186 = vshrl.u32 %v185, 7
    %v187 = vsub.s32 0, %v186
    %v188 = vrot.slane %v184, %v187
    %v189 = vsub.f32 %v141, %v188
    %v190 = vmax.f32 %v189, 0.0
    %v191 = vld [vmem:[#allocation10 + $0x7] sm:$0x1]
    %v192 = vlaneseq
    %v193 = vshrl.u32 %v192, 7
    %v194 = vsub.s32 0, %v193
    %v195 = vrot.slane %v191, %v194
    %v196 = vsub.f32 %v141, %v195
    %v197 = vmax.f32 %v196, 0.0
    %v198 = vld [vmem:[#allocation11] sm:$0xff]
    %v199 = vld [vmem:[#allocation11 + $0x8] sm:$0xff]
    %v200 = vld [vmem:[#allocation11 + $0x10] sm:$0xff]
    %v201 = vld [vmem:[#allocation11 + $0x18] sm:$0xff]
    %v202 = vld [vmem:[#allocation11 + $0x20] sm:$0xff]
    %v203 = vld [vmem:[#allocation11 + $0x28] sm:$0xff]
    %v204 = vld [vmem:[#allocation11 + $0x30] sm:$0xff]
    %v205 = vld [vmem:[#allocation11 + $0x38] sm:$0xff]
    %v206 = vld [vmem:[#allocation13] sm:$0x1]
    %v208 = vlaneseq
    %v209 = vshrl.u32 %v208, 7
    %v210 = vsub.s32 0, %v209
    %v211 = vrot.slane %v206, %v210
    %vm213 = vcmask 523264
    %v215 = vsel %vm213, %v148, 0
    %v218 = vsel %vm213, %v155, 0
    %v221 = vsel %vm213, %v162, 0
    %v224 = vsel %vm213, %v169, 0
    %v227 = vsel %vm213, %v176, 0
    %v230 = vsel %vm213, %v183, 0
    %v233 = vsel %vm213, %v190, 0
    %v236 = vsel %vm213, %v197, 0
    %238 = vmatprep.subr.mxu0 0.0
    %239 = vmatpush1.msra.mxu0 %v198
    %240 = vmatprep.subr.mxu0 0.0
    %241 = vmatpush1.msra.mxu0 %v199
    %242 = vmatprep.subr.mxu0 0.0
    %243 = vmatpush1.msra.mxu0 %v200
    %244 = vmatprep.subr.mxu0 0.0
    %245 = vmatpush1.msra.mxu0 %v201
    %246 = vmatprep.subr.mxu0 0.0
    %247 = vmatpush1.msra.mxu0 %v202
    %248 = vmatprep.subr.mxu0 0.0
    %249 = vmatpush1.msra.mxu0 %v203
    %250 = vmatprep.subr.mxu0 0.0
    %251 = vmatpush1.msra.mxu0 %v204
    %252 = vmatprep.subr.mxu0 0.0
    %253 = vmatpush1.msra.mxu0 %v205
    %254 = vmatprep.subr.mxu0 0.0
    %255 = vmatpush1.msra.mxu0 0.0
    %256 = vmatprep.subr.mxu0 0.0
    %257 = vmatpush1.msra.mxu0 0.0
    %258 = vmatprep.subr.mxu0 0.0
    %259 = vmatpush1.msra.mxu0 0.0
    %260 = vmatprep.subr.mxu0 0.0
    %261 = vmatpush1.msra.mxu0 0.0
    %262 = vmatprep.subr.mxu0 0.0
    %263 = vmatpush1.msra.mxu0 0.0
    %264 = vmatprep.subr.mxu0 0.0
    %265 = vmatpush1.msra.mxu0 0.0
    %266 = vmatprep.subr.mxu0 0.0
    %267 = vmatpush1.msra.mxu0 0.0
    %268 = vmatprep.subr.mxu0 0.0
    %269 = vmatpush1.msra.mxu0 0.0
    %270 = vmatprep.subr.mxu0 0.0
    %271 = vmatpush1.msra.mxu0 0.0
    %272 = vmatprep.subr.mxu0 0.0
    %273 = vmatpush1.msra.mxu0 0.0
    %274 = vmatprep.subr.mxu0 0.0
    %275 = vmatpush1.msra.mxu0 0.0
    %276 = vmatprep.subr.mxu0 0.0
    %277 = vmatpush1.msra.mxu0 0.0
    %278 = vmatprep.subr.mxu0 0.0
    %279 = vmatpush1.msra.mxu0 0.0
    %280 = vmatprep.subr.mxu0 0.0
    %281 = vmatpush1.msra.mxu0 0.0
    %282 = vmatprep.subr.mxu0 0.0
    %283 = vmatpush1.msra.mxu0 0.0
    %284 = vmatprep.subr.mxu0 0.0
    %285 = vmatpush1.msra.mxu0 0.0
    %286 = vmatprep.subr.mxu0 0.0
    %287 = vmatpush1.msra.mxu0 0.0
    %288 = vmatprep.subr.mxu0 0.0
    %289 = vmatpush1.msra.mxu0 0.0
    %290 = vmatprep.subr.mxu0 0.0
    %291 = vmatpush1.msra.mxu0 0.0
    %292 = vmatprep.subr.mxu0 0.0
    %293 = vmatpush1.msra.mxu0 0.0
    %294 = vmatprep.subr.mxu0 0.0
    %295 = vmatpush1.msra.mxu0 0.0
    %296 = vmatprep.subr.mxu0 0.0
    %297 = vmatpush1.msra.mxu0 0.0
    %298 = vmatprep.subr.mxu0 0.0
    %299 = vmatpush1.msra.mxu0 0.0
    %300 = vmatprep.subr.mxu0 0.0
    %301 = vmatpush1.msra.mxu0 0.0
    %302 = vmatprep.mubr.f32.mxu0 0.0
    %303 = vmatmul.mubr.f32.gmra.mrb[0].mxu0 %v215
    %v304 = vpop.f32.mrb[0].mxu0
    %v305 = vadd.f32 %v211, %v304
    %v306 = vpop.f32.mrb[0].mxu0
    %307 = vmatprep.mubr.f32.mxu0 0.0
    %308 = vmatmul.mubr.f32.gmra.mrb[0].mxu0 %v218
    %v309 = vpop.f32.mrb[0].mxu0
    %v310 = vadd.f32 %v211, %v309
    %v311 = vpop.f32.mrb[0].mxu0
    %312 = vmatprep.mubr.f32.mxu0 0.0
    %313 = vmatmul.mubr.f32.gmra.mrb[0].mxu0 %v221
    %v314 = vpop.f32.mrb[0].mxu0
    %v315 = vadd.f32 %v211, %v314
    %v316 = vpop.f32.mrb[0].mxu0
    %317 = vmatprep.mubr.f32.mxu0 0.0
    %318 = vmatmul.mubr.f32.gmra.mrb[0].mxu0 %v224
    %v319 = vpop.f32.mrb[0].mxu0
    %v320 = vadd.f32 %v211, %v319
    %v321 = vpop.f32.mrb[0].mxu0
    %322 = vmatprep.mubr.f32.mxu0 0.0
    %323 = vmatmul.mubr.f32.gmra.mrb[0].mxu0 %v227
    %v324 = vpop.f32.mrb[0].mxu0
    %v325 = vadd.f32 %v211, %v324
    %v326 = vpop.f32.mrb[0].mxu0
    %327 = vmatprep.mubr.f32.mxu0 0.0
    %328 = vmatmul.mubr.f32.gmra.mrb[0].mxu0 %v230
    %v329 = vpop.f32.mrb[0].mxu0
    %v330 = vadd.f32 %v211, %v329
    %v331 = vpop.f32.mrb[0].mxu0
    %332 = vmatprep.mubr.f32.mxu0 0.0
    %333 = vmatmul.mubr.f32.gmra.mrb[0].mxu0 %v233
    %v334 = vpop.f32.mrb[0].mxu0
    %v335 = vadd.f32 %v211, %v334
    %v336 = vpop.f32.mrb[0].mxu0
    %337 = vmatprep.mubr.f32.mxu0 0.0
    %338 = vmatmul.mubr.f32.gmra.mrb[0].mxu0 %v236
    %v339 = vpop.f32.mrb[0].mxu0
    %v340 = vadd.f32 %v211, %v339
    %v341 = vpop.f32.mrb[0].mxu0
    %342 = vdwg.mxu0
    %v343 = vmax.f32 %v305, 0.0
    %v344 = vmax.f32 %v310, 0.0
    %v345 = vmax.f32 %v315, 0.0
    %v346 = vmax.f32 %v320, 0.0
    %v347 = vmax.f32 %v325, 0.0
    %v348 = vmax.f32 %v330, 0.0
    %v349 = vmax.f32 %v335, 0.0
    %v350 = vmax.f32 %v340, 0.0
    %v351 = vld [vmem:[#allocation14] sm:$0xff]
    %v352 = vld [vmem:[#allocation14 + $0x8] sm:$0xff]
    %v353 = vld [vmem:[#allocation14 + $0x10] sm:$0xff]
    %v354 = vld [vmem:[#allocation14 + $0x18] sm:$0xff]
    %v355 = vld [vmem:[#allocation14 + $0x20] sm:$0xff]
    %v356 = vld [vmem:[#allocation14 + $0x28] sm:$0xff]
    %v357 = vld [vmem:[#allocation14 + $0x30] sm:$0xff]
    %v358 = vld [vmem:[#allocation14 + $0x38] sm:$0xff]
    %v359 = vld [vmem:[#allocation16] sm:$0x1]
    %v361 = vlaneseq
    %v362 = vshrl.u32 %v361, 7
    %v363 = vsub.s32 0, %v362
    %v364 = vrot.slane %v359, %v363
    %v367 = vsel %vm213, %v343, 0
    %v370 = vsel %vm213, %v344, 0
    %v373 = vsel %vm213, %v345, 0
    %v376 = vsel %vm213, %v346, 0
    %v379 = vsel %vm213, %v347, 0
    %v382 = vsel %vm213, %v348, 0
    %v385 = vsel %vm213, %v349, 0
    %v388 = vsel %vm213, %v350, 0
    %390 = vmatprep.subr.mxu0 0.0
    %391 = vmatpush1.msra.mxu0 %v351
    %392 = vmatprep.subr.mxu0 0.0
    %393 = vmatpush1.msra.mxu0 %v352
    %394 = vmatprep.subr.mxu0 0.0
    %395 = vmatpush1.msra.mxu0 %v353
    %396 = vmatprep.subr.mxu0 0.0
    %397 = vmatpush1.msra.mxu0 %v354
    %398 = vmatprep.subr.mxu0 0.0
    %399 = vmatpush1.msra.mxu0 %v355
    %400 = vmatprep.subr.mxu0 0.0
    %401 = vmatpush1.msra.mxu0 %v356
    %402 = vmatprep.subr.mxu0 0.0
    %403 = vmatpush1.msra.mxu0 %v357
    %404 = vmatprep.subr.mxu0 0.0
    %405 = vmatpush1.msra.mxu0 %v358
    %406 = vmatprep.subr.mxu0 0.0
    %407 = vmatpush1.msra.mxu0 0.0
    %408 = vmatprep.subr.mxu0 0.0
    %409 = vmatpush1.msra.mxu0 0.0
    %410 = vmatprep.subr.mxu0 0.0
    %411 = vmatpush1.msra.mxu0 0.0
    %412 = vmatprep.subr.mxu0 0.0
    %413 = vmatpush1.msra.mxu0 0.0
    %414 = vmatprep.subr.mxu0 0.0
    %415 = vmatpush1.msra.mxu0 0.0
    %416 = vmatprep.subr.mxu0 0.0
    %417 = vmatpush1.msra.mxu0 0.0
    %418 = vmatprep.subr.mxu0 0.0
    %419 = vmatpush1.msra.mxu0 0.0
    %420 = vmatprep.subr.mxu0 0.0
    %421 = vmatpush1.msra.mxu0 0.0
    %422 = vmatprep.subr.mxu0 0.0
    %423 = vmatpush1.msra.mxu0 0.0
    %424 = vmatprep.subr.mxu0 0.0
    %425 = vmatpush1.msra.mxu0 0.0
    %426 = vmatprep.subr.mxu0 0.0
    %427 = vmatpush1.msra.mxu0 0.0
    %428 = vmatprep.subr.mxu0 0.0
    %429 = vmatpush1.msra.mxu0 0.0
    %430 = vmatprep.subr.mxu0 0.0
    %431 = vmatpush1.msra.mxu0 0.0
    %432 = vmatprep.subr.mxu0 0.0
    %433 = vmatpush1.msra.mxu0 0.0
    %434 = vmatprep.subr.mxu0 0.0
    %435 = vmatpush1.msra.mxu0 0.0
    %436 = vmatprep.subr.mxu0 0.0
    %437 = vmatpush1.msra.mxu0 0.0
    %438 = vmatprep.subr.mxu0 0.0
    %439 = vmatpush1.msra.mxu0 0.0
    %440 = vmatprep.subr.mxu0 0.0
    %441 = vmatpush1.msra.mxu0 0.0
    %442 = vmatprep.subr.mxu0 0.0
    %443 = vmatpush1.msra.mxu0 0.0
    %444 = vmatprep.subr.mxu0 0.0
    %445 = vmatpush1.msra.mxu0 0.0
    %446 = vmatprep.subr.mxu0 0.0
    %447 = vmatpush1.msra.mxu0 0.0
    %448 = vmatprep.subr.mxu0 0.0
    %449 = vmatpush1.msra.mxu0 0.0
    %450 = vmatprep.subr.mxu0 0.0
    %451 = vmatpush1.msra.mxu0 0.0
    %452 = vmatprep.subr.mxu0 0.0
    %453 = vmatpush1.msra.mxu0 0.0
    %454 = vmatprep.mubr.f32.mxu0 0.0
    %455 = vmatmul.mubr.f32.gmra.mrb[0].mxu0 %v367
    %v456 = vpop.f32.mrb[0].mxu0
    %v457 = vadd.f32 %v364, %v456
    %v458 = vpop.f32.mrb[0].mxu0
    %459 = vmatprep.mubr.f32.mxu0 0.0
    %460 = vmatmul.mubr.f32.gmra.mrb[0].mxu0 %v370
    %v461 = vpop.f32.mrb[0].mxu0
    %v462 = vadd.f32 %v364, %v461
    %v463 = vpop.f32.mrb[0].mxu0
    %464 = vmatprep.mubr.f32.mxu0 0.0
    %465 = vmatmul.mubr.f32.gmra.mrb[0].mxu0 %v373
    %v466 = vpop.f32.mrb[0].mxu0
    %v467 = vadd.f32 %v364, %v466
    %v468 = vpop.f32.mrb[0].mxu0
    %469 = vmatprep.mubr.f32.mxu0 0.0
    %470 = vmatmul.mubr.f32.gmra.mrb[0].mxu0 %v376
    %v471 = vpop.f32.mrb[0].mxu0
    %v472 = vadd.f32 %v364, %v471
    %v473 = vpop.f32.mrb[0].mxu0
    %474 = vmatprep.mubr.f32.mxu0 0.0
    %475 = vmatmul.mubr.f32.gmra.mrb[0].mxu0 %v379
    %v476 = vpop.f32.mrb[0].mxu0
    %v477 = vadd.f32 %v364, %v476
    %v478 = vpop.f32.mrb[0].mxu0
    %479 = vmatprep.mubr.f32.mxu0 0.0
    %480 = vmatmul.mubr.f32.gmra.mrb[0].mxu0 %v382
    %v481 = vpop.f32.mrb[0].mxu0
    %v482 = vadd.f32 %v364, %v481
    %v483 = vpop.f32.mrb[0].mxu0
    %484 = vmatprep.mubr.f32.mxu0 0.0
    %485 = vmatmul.mubr.f32.gmra.mrb[0].mxu0 %v385
    %v486 = vpop.f32.mrb[0].mxu0
    %v487 = vadd.f32 %v364, %v486
    %v488 = vpop.f32.mrb[0].mxu0
    %489 = vmatprep.mubr.f32.mxu0 0.0
    %490 = vmatmul.mubr.f32.gmra.mrb[0].mxu0 %v388
    %v491 = vpop.f32.mrb[0].mxu0
    %v492 = vadd.f32 %v364, %v491
    %v493 = vpop.f32.mrb[0].mxu0
    %494 = vdwg.mxu0
    %v495 = vmax.f32 %v457, 0.0
    %v496 = vmax.f32 %v462, 0.0
    %v497 = vmax.f32 %v467, 0.0
    %v498 = vmax.f32 %v472, 0.0
    %v499 = vmax.f32 %v477, 0.0
    %v500 = vmax.f32 %v482, 0.0
    %v501 = vmax.f32 %v487, 0.0
    %v502 = vmax.f32 %v492, 0.0
    %v503 = vld [vmem:[#allocation7] sm:$0xff]
    %vm504 = vcmp.gt.f32.partialorder %v503, 0.5
    %v505 = vsel %vm504, 1, 0
    %506 = vset.pattern.permute.xlu0 0
    %507 = vperm.xlu0 %506, %v505
    %v508 = vpop.permute.xlu0 %507
    %vm509 = vcmp.eq.s32.totalorder %v508, 1
    %v510 = vsel %vm509, %v495, -inf
    %v511 = vsel %vm213, %v510, -inf
    %v512 = vrot.slane %v511, 4
    %v513 = vmax.f32 %v511, %v512
    %v514 = vrot.slane %v513, 2
    %v515 = vmax.f32 %v513, %v514
    %v516 = vrot.slane %v515, 1
    %v517 = vmax.f32 %v515, %v516
    %v518 = vsel %vm509, %v496, -inf
    %v519 = vsel %vm213, %v518, -inf
    %v520 = vrot.slane %v519, 4
    %v521 = vmax.f32 %v519, %v520
    %v522 = vrot.slane %v521, 2
    %v523 = vmax.f32 %v521, %v522
    %v524 = vrot.slane %v523, 1
    %v525 = vmax.f32 %v523, %v524
    %v526 = vsel %vm509, %v497, -inf
    %v527 = vsel %vm213, %v526, -inf
    %v528 = vrot.slane %v527, 4
    %v529 = vmax.f32 %v527, %v528
    %v530 = vrot.slane %v529, 2
    %v531 = vmax.f32 %v529, %v530
    %v532 = vrot.slane %v531, 1
    %v533 = vmax.f32 %v531, %v532
    %v534 = vsel %vm509, %v498, -inf
    %v535 = vsel %vm213, %v534, -inf
    %v536 = vrot.slane %v535, 4
    %v537 = vmax.f32 %v535, %v536
    %v538 = vrot.slane %v537, 2
    %v539 = vmax.f32 %v537, %v538
    %v540 = vrot.slane %v539, 1
    %v541 = vmax.f32 %v539, %v540
    %v542 = vsel %vm509, %v499, -inf
    %v543 = vsel %vm213, %v542, -inf
    %v544 = vrot.slane %v543, 4
    %v545 = vmax.f32 %v543, %v544
    %v546 = vrot.slane %v545, 2
    %v547 = vmax.f32 %v545, %v546
    %v548 = vrot.slane %v547, 1
    %v549 = vmax.f32 %v547, %v548
    %v550 = vsel %vm509, %v500, -inf
    %v551 = vsel %vm213, %v550, -inf
    %v552 = vrot.slane %v551, 4
    %v553 = vmax.f32 %v551, %v552
    %v554 = vrot.slane %v553, 2
    %v555 = vmax.f32 %v553, %v554
    %v556 = vrot.slane %v555, 1
    %v557 = vmax.f32 %v555, %v556
    %v558 = vsel %vm509, %v501, -inf
    %v559 = vsel %vm213, %v558, -inf
    %v560 = vrot.slane %v559, 4
    %v561 = vmax.f32 %v559, %v560
    %v562 = vrot.slane %v561, 2
    %v563 = vmax.f32 %v561, %v562
    %v564 = vrot.slane %v563, 1
    %v565 = vmax.f32 %v563, %v564
    %v566 = vsel %vm509, %v502, -inf
    %v567 = vsel %vm213, %v566, -inf
    %v568 = vrot.slane %v567, 4
    %v569 = vmax.f32 %v567, %v568
    %v570 = vrot.slane %v569, 2
    %v571 = vmax.f32 %v569, %v570
    %v572 = vrot.slane %v571, 1
    %v573 = vmax.f32 %v571, %v572
    %vm574 = vcmask 1040384
    %v575 = vsel %vm574, %v517, %v525
    %vm576 = vcmask 1041408
    %v577 = vsel %vm576, %v575, %v533
    %vm578 = vcmask 1042432
    %v579 = vsel %vm578, %v577, %v541
    %vm580 = vcmask 1043456
    %v581 = vsel %vm580, %v579, %v549
    %vm582 = vcmask 1044480
    %v583 = vsel %vm582, %v581, %v557
    %vm584 = vcmask 1045504
    %v585 = vsel %vm584, %v583, %v565
    %vm586 = vcmask 1046528
    %v587 = vsel %vm586, %v585, %v573
    %588 = vst.msk [vmem:[#allocation17] sm:$0xff] %vm213, %v587
    // Predicated region
    $region74: #{_lambda_.8} parent=1 // pred_check
      _
    $region75: #{_lambda_.8} parent=1 // pred_check_branch
      %590 = sbr.rel (0) target = $region77
    $region76: #{_lambda_.8} parent=1 // pred_region
      %s592 = ssub.s32 128, 128
      %593 = vsyncadd [#allocation4], %s592
      %s595 = sshll.u32 [#allocation17], 4
      %s596 = int_to_ptr.vmem [resolvable:$true] %s595
      %598 = dma.vmem_to_hbm [thread:$0]  %s596, 128, %s9, [#allocation4]
    $region77: #{_lambda_.8} parent=1 // pred_fallthru
      _
    // Predicated region
    $region78: #{_lambda_.8} parent=1 // pred_check
      _
    $region79: #{_lambda_.8} parent=1 // pred_check_branch
      %600 = sbr.rel (0) target = $region81
    $region80: #{_lambda_.8} parent=1 // pred_region
      %601 = dma.done [#allocation4], 128
    $region81: #{_lambda_.8} parent=1 // pred_fallthru
      _
    %602 = vsyncpa [#allocation3], 1
    %603 = vsyncpa [#allocation6], 1
    %604 = vsyncpa [#allocation9], 1
    %605 = vsyncpa [#allocation12], 1
    %606 = vsyncpa [#allocation15], 1
    %607 = vsyncpa [#allocation4], 1

// kernel: _lambda_.7
$region0: #{_lambda_.7}
  #allocation0 [shape = 'u32[]', space=smem, size = 0x4, offset = 0x4, fixed_abs, tag = 'smem constant byte address 0x4 - core index']
  #allocation1 [shape = 'u32[144,128]{1,0:T(1,128)}', space=vmem, size = 0x12000, scoped, tag = 'internal scratch']
  %s0 = inlined_call_operand.hbm [shape: f32[8,3], index: 0, kind: input, shape index: {}]
  %s1 = inlined_call_operand.hbm [shape: f32[16,3], index: 1, kind: input, shape index: {}]
  %s2 = inlined_call_operand.hbm [shape: f32[16,1], index: 2, kind: input, shape index: {}]
  %s3 = inlined_call_operand.hbm [shape: f32[16,32], index: 3, kind: input, shape index: {}]
  %s4 = inlined_call_operand.hbm [shape: f32[8,32], index: 4, kind: input, shape index: {}]
  %s5 = inlined_call_operand.hbm [shape: f32[32,32], index: 5, kind: input, shape index: {}]
  %s6 = inlined_call_operand.hbm [shape: f32[1,32], index: 6, kind: input, shape index: {}]
  %s7 = inlined_call_operand.hbm [shape: f32[32,64], index: 7, kind: input, shape index: {}]
  %s8 = inlined_call_operand.hbm [shape: f32[1,64], index: 8, kind: input, shape index: {}]
  %s9 = inlined_call_operand.hbm [shape: f32[8,64], index: 9, kind: output, shape index: {}]
  %s10 = sld [smem:[#allocation0]]
  $region82: #{_lambda_.7} parent=0
    _
  %s12 = ssub.s32 1, %s10
  %s13 = scalar_select 0, %s12, %s10
  $region1: #{_lambda_.7} parent=0
    #allocation2 [shape = 'u8[4096]{0}', space=vmem, size = 0x1000, scoped, tag = 'input window, operand 0, single buffered']
    #allocation3 [shape = 's32[1]{0}', space=sflag, size = 0x4, scoped, tag = 'scoped memory for _lambda_.7']
    #allocation4 [shape = 's32[1]{0}', space=sflag, size = 0x4, scoped, tag = 'scoped memory for _lambda_.7']
    #allocation5 [shape = 'u8[8192]{0}', space=vmem, size = 0x2000, scoped, tag = 'input window, operand 1, single buffered']
    #allocation6 [shape = 's32[1]{0}', space=sflag, size = 0x4, scoped, tag = 'scoped memory for _lambda_.7']
    #allocation7 [shape = 'u8[8192]{0}', space=vmem, size = 0x2000, scoped, tag = 'input window, operand 2, single buffered']
    #allocation8 [shape = 'u8[8192]{0}', space=vmem, size = 0x2000, scoped, tag = 'input window, operand 3, single buffered']
    #allocation9 [shape = 's32[1]{0}', space=sflag, size = 0x4, scoped, tag = 'scoped memory for _lambda_.7']
    #allocation10 [shape = 'u8[4096]{0}', space=vmem, size = 0x1000, scoped, tag = 'input window, operand 4, single buffered']
    #allocation11 [shape = 'u8[16384]{0}', space=vmem, size = 0x4000, scoped, tag = 'input window, operand 5, single buffered']
    #allocation12 [shape = 's32[1]{0}', space=sflag, size = 0x4, scoped, tag = 'scoped memory for _lambda_.7']
    #allocation13 [shape = 'u8[512]{0}', space=vmem, size = 0x400, scoped, tag = 'input window, operand 6, single buffered']
    #allocation14 [shape = 'u8[16384]{0}', space=vmem, size = 0x4000, scoped, tag = 'input window, operand 7, single buffered']
    #allocation15 [shape = 's32[1]{0}', space=sflag, size = 0x4, scoped, tag = 'scoped memory for _lambda_.7']
    #allocation16 [shape = 'u8[512]{0}', space=vmem, size = 0x400, scoped, tag = 'input window, operand 8, single buffered']
    #allocation17 [shape = 'u8[4096]{0}', space=vmem, size = 0x1000, scoped, tag = 'output window, operand 0, single buffered']
    %14 = vsyncpa [#allocation3], 0
    %15 = vsyncpa [#allocation6], 0
    %16 = vsyncpa [#allocation9], 0
    %17 = vsyncpa [#allocation12], 0
    %18 = vsyncpa [#allocation15], 0
    %19 = vsyncpa [#allocation4], 0
    // Predicated region
    $region2: #{_lambda_.7} parent=1 // pred_check
      _
    $region3: #{_lambda_.7} parent=1 // pred_check_branch
      %21 = sbr.rel (0) target = $region5
    $region4: #{_lambda_.7} parent=1 // pred_region
      %s23 = ssub.s32 128, 128
      %24 = vsyncadd [#allocation3], %s23
      %s26 = sshll.u32 [#allocation2], 4
      %s27 = int_to_ptr.vmem [resolvable:$true] %s26
      %29 = dma.hbm_to_vmem [thread:$0]  %s0, 128, %s27, [#allocation3]
    $region5: #{_lambda_.7} parent=1 // pred_fallthru
      _
    // Predicated region
    $region6: #{_lambda_.7} parent=1 // pred_check
      _
    $region7: #{_lambda_.7} parent=1 // pred_check_branch
      %31 = sbr.rel (0) target = $region9
    $region8: #{_lambda_.7} parent=1 // pred_region
      %s33 = ssub.s32 256, 256
      %34 = vsyncadd [#allocation6], %s33
      %s35 = sshll.u32 [#allocation5], 4
      %s36 = int_to_ptr.vmem [resolvable:$true] %s35
      %41 = dma.hbm_to_vmem [thread:$0]  %s1, 256, %s36, [#allocation6], 128, 128, 8
    $region9: #{_lambda_.7} parent=1 // pred_fallthru
      _
    // Predicated region
    $region10: #{_lambda_.7} parent=1 // pred_check
      _
    $region11: #{_lambda_.7} parent=1 // pred_check_branch
      %43 = sbr.rel (0) target = $region13
    $region12: #{_lambda_.7} parent=1 // pred_region
      %s45 = ssub.s32 256, 256
      %46 = vsyncadd [#allocation6], %s45
      %s47 = sshll.u32 [#allocation7], 4
      %s48 = int_to_ptr.vmem [resolvable:$true] %s47
      %53 = dma.hbm_to_vmem [thread:$0]  %s2, 256, %s48, [#allocation6], 128, 128, 8
    $region13: #{_lambda_.7} parent=1 // pred_fallthru
      _
    // Predicated region
    $region14: #{_lambda_.7} parent=1 // pred_check
      _
    $region15: #{_lambda_.7} parent=1 // pred_check_branch
      %55 = sbr.rel (0) target = $region17
    $region16: #{_lambda_.7} parent=1 // pred_region
      %s57 = ssub.s32 256, 256
      %58 = vsyncadd [#allocation9], %s57
      %s59 = sshll.u32 [#allocation8], 4
      %s60 = int_to_ptr.vmem [resolvable:$true] %s59
      %65 = dma.hbm_to_vmem [thread:$0]  %s3, 256, %s60, [#allocation9], 128, 128, 8
    $region17: #{_lambda_.7} parent=1 // pred_fallthru
      _
    // Predicated region
    $region18: #{_lambda_.7} parent=1 // pred_check
      _
    $region19: #{_lambda_.7} parent=1 // pred_check_branch
      %67 = sbr.rel (0) target = $region21
    $region20: #{_lambda_.7} parent=1 // pred_region
      %s69 = ssub.s32 128, 128
      %70 = vsyncadd [#allocation9], %s69
      %s72 = sshll.u32 [#allocation10], 4
      %s73 = int_to_ptr.vmem [resolvable:$true] %s72
      %75 = dma.hbm_to_vmem [thread:$0]  %s4, 128, %s73, [#allocation9]
    $region21: #{_lambda_.7} parent=1 // pred_fallthru
      _
    // Predicated region
    $region22: #{_lambda_.7} parent=1 // pred_check
      _
    $region23: #{_lambda_.7} parent=1 // pred_check_branch
      %77 = sbr.rel (0) target = $region25
    $region24: #{_lambda_.7} parent=1 // pred_region
      %s79 = ssub.s32 512, 512
      %80 = vsyncadd [#allocation12], %s79
      %s81 = sshll.u32 [#allocation11], 4
      %s82 = int_to_ptr.vmem [resolvable:$true] %s81
      %87 = dma.hbm_to_vmem [thread:$0]  %s5, 512, %s82, [#allocation12], 128, 128, 8
    $region25: #{_lambda_.7} parent=1 // pred_fallthru
      _
    // Predicated region
    $region26: #{_lambda_.7} parent=1 // pred_check
      _
    $region27: #{_lambda_.7} parent=1 // pred_check_branch
      %89 = sbr.rel (0) target = $region29
    $region28: #{_lambda_.7} parent=1 // pred_region
      %s91 = ssub.s32 16, 16
      %92 = vsyncadd [#allocation12], %s91
      %s94 = sshll.u32 [#allocation13], 4
      %s95 = int_to_ptr.vmem [resolvable:$true] %s94
      %97 = dma.hbm_to_vmem [thread:$0]  %s6, 16, %s95, [#allocation12]
    $region29: #{_lambda_.7} parent=1 // pred_fallthru
      _
    // Predicated region
    $region30: #{_lambda_.7} parent=1 // pred_check
      _
    $region31: #{_lambda_.7} parent=1 // pred_check_branch
      %99 = sbr.rel (0) target = $region33
    $region32: #{_lambda_.7} parent=1 // pred_region
      %s101 = ssub.s32 512, 512
      %102 = vsyncadd [#allocation15], %s101
      %s103 = sshll.u32 [#allocation14], 4
      %s104 = int_to_ptr.vmem [resolvable:$true] %s103
      %109 = dma.hbm_to_vmem [thread:$0]  %s7, 512, %s104, [#allocation15], 128, 128, 8
    $region33: #{_lambda_.7} parent=1 // pred_fallthru
      _
    // Predicated region
    $region34: #{_lambda_.7} parent=1 // pred_check
      _
    $region35: #{_lambda_.7} parent=1 // pred_check_branch
      %111 = sbr.rel (0) target = $region37
    $region36: #{_lambda_.7} parent=1 // pred_region
      %s113 = ssub.s32 16, 16
      %114 = vsyncadd [#allocation15], %s113
      %s116 = sshll.u32 [#allocation16], 4
      %s117 = int_to_ptr.vmem [resolvable:$true] %s116
      %119 = dma.hbm_to_vmem [thread:$0]  %s8, 16, %s117, [#allocation15]
    $region37: #{_lambda_.7} parent=1 // pred_fallthru
      _
    // Predicated region
    $region38: #{_lambda_.7} parent=1 // pred_check
      _
    $region39: #{_lambda_.7} parent=1 // pred_check_branch
      %121 = sbr.rel (0) target = $region41
    $region40: #{_lambda_.7} parent=1 // pred_region
      %122 = dma.done [#allocation3], 128
    $region41: #{_lambda_.7} parent=1 // pred_fallthru
      _
    // Predicated region
    $region42: #{_lambda_.7} parent=1 // pred_check
      _
    $region43: #{_lambda_.7} parent=1 // pred_check_branch
      %124 = sbr.rel (0) target = $region45
    $region44: #{_lambda_.7} parent=1 // pred_region
      %125 = dma.done [#allocation6], 256
    $region45: #{_lambda_.7} parent=1 // pred_fallthru
      _
    // Predicated region
    $region46: #{_lambda_.7} parent=1 // pred_check
      _
    $region47: #{_lambda_.7} parent=1 // pred_check_branch
      %127 = sbr.rel (0) target = $region49
    $region48: #{_lambda_.7} parent=1 // pred_region
      %128 = dma.done [#allocation6], 256
    $region49: #{_lambda_.7} parent=1 // pred_fallthru
      _
    // Predicated region
    $region50: #{_lambda_.7} parent=1 // pred_check
      _
    $region51: #{_lambda_.7} parent=1 // pred_check_branch
      %130 = sbr.rel (0) target = $region53
    $region52: #{_lambda_.7} parent=1 // pred_region
      %131 = dma.done [#allocation9], 256
    $region53: #{_lambda_.7} parent=1 // pred_fallthru
      _
    // Predicated region
    $region54: #{_lambda_.7} parent=1 // pred_check
      _
    $region55: #{_lambda_.7} parent=1 // pred_check_branch
      %133 = sbr.rel (0) target = $region57
    $region56: #{_lambda_.7} parent=1 // pred_region
      %134 = dma.done [#allocation9], 128
    $region57: #{_lambda_.7} parent=1 // pred_fallthru
      _
    // Predicated region
    $region58: #{_lambda_.7} parent=1 // pred_check
      _
    $region59: #{_lambda_.7} parent=1 // pred_check_branch
      %136 = sbr.rel (0) target = $region61
    $region60: #{_lambda_.7} parent=1 // pred_region
      %137 = dma.done [#allocation12], 512
    $region61: #{_lambda_.7} parent=1 // pred_fallthru
      _
    // Predicated region
    $region62: #{_lambda_.7} parent=1 // pred_check
      _
    $region63: #{_lambda_.7} parent=1 // pred_check_branch
      %139 = sbr.rel (0) target = $region65
    $region64: #{_lambda_.7} parent=1 // pred_region
      %140 = dma.done [#allocation12], 16
    $region65: #{_lambda_.7} parent=1 // pred_fallthru
      _
    // Predicated region
    $region66: #{_lambda_.7} parent=1 // pred_check
      _
    $region67: #{_lambda_.7} parent=1 // pred_check_branch
      %142 = sbr.rel (0) target = $region69
    $region68: #{_lambda_.7} parent=1 // pred_region
      %143 = dma.done [#allocation15], 512
    $region69: #{_lambda_.7} parent=1 // pred_fallthru
      _
    // Predicated region
    $region70: #{_lambda_.7} parent=1 // pred_check
      _
    $region71: #{_lambda_.7} parent=1 // pred_check_branch
      %145 = sbr.rel (0) target = $region73
    $region72: #{_lambda_.7} parent=1 // pred_region
      %146 = dma.done [#allocation15], 16
    $region73: #{_lambda_.7} parent=1 // pred_fallthru
      _
    %v147 = vld [vmem:[#allocation8] sm:$0xff]
    %v148 = vld [vmem:[#allocation8 + $0x8] sm:$0xff]
    %v149 = vld [vmem:[#allocation10] sm:$0x1]
    %v150 = vlaneseq
    %v151 = vshrl.u32 %v150, 7
    %v152 = vsub.s32 0, %v151
    %v153 = vrot.slane %v149, %v152
    %v154 = vsub.f32 %v147, %v153
    %v155 = vsub.f32 %v148, %v153
    %v156 = vmax.f32 %v154, 0.0
    %v157 = vmax.f32 %v155, 0.0
    %v158 = vld [vmem:[#allocation10 + $0x1] sm:$0x1]
    %v159 = vlaneseq
    %v160 = vshrl.u32 %v159, 7
    %v161 = vsub.s32 0, %v160
    %v162 = vrot.slane %v158, %v161
    %v163 = vsub.f32 %v147, %v162
    %v164 = vsub.f32 %v148, %v162
    %v165 = vmax.f32 %v163, 0.0
    %v166 = vmax.f32 %v164, 0.0
    %v167 = vld [vmem:[#allocation10 + $0x2] sm:$0x1]
    %v168 = vlaneseq
    %v169 = vshrl.u32 %v168, 7
    %v170 = vsub.s32 0, %v169
    %v171 = vrot.slane %v167, %v170
    %v172 = vsub.f32 %v147, %v171
    %v173 = vsub.f32 %v148, %v171
    %v174 = vmax.f32 %v172, 0.0
    %v175 = vmax.f32 %v173, 0.0
    %v176 = vld [vmem:[#allocation10 + $0x3] sm:$0x1]
    %v177 = vlaneseq
    %v178 = vshrl.u32 %v177, 7
    %v179 = vsub.s32 0, %v178
    %v180 = vrot.slane %v176, %v179
    %v181 = vsub.f32 %v147, %v180
    %v182 = vsub.f32 %v148, %v180
    %v183 = vmax.f32 %v181, 0.0
    %v184 = vmax.f32 %v182, 0.0
    %v185 = vld [vmem:[#allocation10 + $0x4] sm:$0x1]
    %v186 = vlaneseq
    %v187 = vshrl.u32 %v186, 7
    %v188 = vsub.s32 0, %v187
    %v189 = vrot.slane %v185, %v188
    %v190 = vsub.f32 %v147, %v189
    %v191 = vsub.f32 %v148, %v189
    %v192 = vmax.f32 %v190, 0.0
    %v193 = vmax.f32 %v191, 0.0
    %v194 = vld [vmem:[#allocation10 + $0x5] sm:$0x1]
    %v195 = vlaneseq
    %v196 = vshrl.u32 %v195, 7
    %v197 = vsub.s32 0, %v196
    %v198 = vrot.slane %v194, %v197
    %v199 = vsub.f32 %v147, %v198
    %v200 = vsub.f32 %v148, %v198
    %v201 = vmax.f32 %v199, 0.0
    %v202 = vmax.f32 %v200, 0.0
    %v203 = vld [vmem:[#allocation10 + $0x6] sm:$0x1]
    %v204 = vlaneseq
    %v205 = vshrl.u32 %v204, 7
    %v206 = vsub.s32 0, %v205
    %v207 = vrot.slane %v203, %v206
    %v208 = vsub.f32 %v147, %v207
    %v209 = vsub.f32 %v148, %v207
    %v210 = vmax.f32 %v208, 0.0
    %v211 = vmax.f32 %v209, 0.0
    %v212 = vld [vmem:[#allocation10 + $0x7] sm:$0x1]
    %v213 = vlaneseq
    %v214 = vshrl.u32 %v213, 7
    %v215 = vsub.s32 0, %v214
    %v216 = vrot.slane %v212, %v215
    %v217 = vsub.f32 %v147, %v216
    %v218 = vsub.f32 %v148, %v216
    %v219 = vmax.f32 %v217, 0.0
    %v220 = vmax.f32 %v218, 0.0
    %v221 = vld [vmem:[#allocation11] sm:$0xff]
    %v222 = vld [vmem:[#allocation11 + $0x8] sm:$0xff]
    %v223 = vld [vmem:[#allocation11 + $0x10] sm:$0xff]
    %v224 = vld [vmem:[#allocation11 + $0x18] sm:$0xff]
    %v225 = vld [vmem:[#allocation13] sm:$0x1]
    %v227 = vlaneseq
    %v228 = vshrl.u32 %v227, 7
    %v229 = vsub.s32 0, %v228
    %v230 = vrot.slane %v225, %v229
    %vm232 = vcmask 261120
    %v234 = vsel %vm232, %v156, 0
    %v237 = vsel %vm232, %v157, 0
    %v240 = vsel %vm232, %v165, 0
    %v243 = vsel %vm232, %v166, 0
    %v246 = vsel %vm232, %v174, 0
    %v249 = vsel %vm232, %v175, 0
    %v252 = vsel %vm232, %v183, 0
    %v255 = vsel %vm232, %v184, 0
    %v258 = vsel %vm232, %v192, 0
    %v261 = vsel %vm232, %v193, 0
    %v264 = vsel %vm232, %v201, 0
    %v267 = vsel %vm232, %v202, 0
    %v270 = vsel %vm232, %v210, 0
    %v273 = vsel %vm232, %v211, 0
    %v276 = vsel %vm232, %v219, 0
    %v279 = vsel %vm232, %v220, 0
    %281 = vmatprep.subr.mxu0 0.0
    %282 = vmatpush1.msra.mxu0 %v221
    %283 = vmatprep.subr.mxu0 0.0
    %284 = vmatpush1.msra.mxu0 %v222
    %285 = vmatprep.subr.mxu0 0.0
    %286 = vmatpush1.msra.mxu0 %v223
    %287 = vmatprep.subr.mxu0 0.0
    %288 = vmatpush1.msra.mxu0 %v224
    %289 = vmatprep.subr.mxu0 0.0
    %290 = vmatpush1.msra.mxu0 0.0
    %291 = vmatprep.subr.mxu0 0.0
    %292 = vmatpush1.msra.mxu0 0.0
    %293 = vmatprep.subr.mxu0 0.0
    %294 = vmatpush1.msra.mxu0 0.0
    %295 = vmatprep.subr.mxu0 0.0
    %296 = vmatpush1.msra.mxu0 0.0
    %297 = vmatprep.subr.mxu0 0.0
    %298 = vmatpush1.msra.mxu0 0.0
    %299 = vmatprep.subr.mxu0 0.0
    %300 = vmatpush1.msra.mxu0 0.0
    %301 = vmatprep.subr.mxu0 0.0
    %302 = vmatpush1.msra.mxu0 0.0
    %303 = vmatprep.subr.mxu0 0.0
    %304 = vmatpush1.msra.mxu0 0.0
    %305 = vmatprep.subr.mxu0 0.0
    %306 = vmatpush1.msra.mxu0 0.0
    %307 = vmatprep.subr.mxu0 0.0
    %308 = vmatpush1.msra.mxu0 0.0
    %309 = vmatprep.subr.mxu0 0.0
    %310 = vmatpush1.msra.mxu0 0.0
    %311 = vmatprep.subr.mxu0 0.0
    %312 = vmatpush1.msra.mxu0 0.0
    %313 = vmatprep.subr.mxu0 0.0
    %314 = vmatpush1.msra.mxu0 0.0
    %315 = vmatprep.subr.mxu0 0.0
    %316 = vmatpush1.msra.mxu0 0.0
    %317 = vmatprep.subr.mxu0 0.0
    %318 = vmatpush1.msra.mxu0 0.0
    %319 = vmatprep.subr.mxu0 0.0
    %320 = vmatpush1.msra.mxu0 0.0
    %321 = vmatprep.subr.mxu0 0.0
    %322 = vmatpush1.msra.mxu0 0.0
    %323 = vmatprep.subr.mxu0 0.0
    %324 = vmatpush1.msra.mxu0 0.0
    %325 = vmatprep.subr.mxu0 0.0
    %326 = vmatpush1.msra.mxu0 0.0
    %327 = vmatprep.subr.mxu0 0.0
    %328 = vmatpush1.msra.mxu0 0.0
    %329 = vmatprep.subr.mxu0 0.0
    %330 = vmatpush1.msra.mxu0 0.0
    %331 = vmatprep.subr.mxu0 0.0
    %332 = vmatpush1.msra.mxu0 0.0
    %333 = vmatprep.subr.mxu0 0.0
    %334 = vmatpush1.msra.mxu0 0.0
    %335 = vmatprep.subr.mxu0 0.0
    %336 = vmatpush1.msra.mxu0 0.0
    %337 = vmatprep.subr.mxu0 0.0
    %338 = vmatpush1.msra.mxu0 0.0
    %339 = vmatprep.subr.mxu0 0.0
    %340 = vmatpush1.msra.mxu0 0.0
    %341 = vmatprep.subr.mxu0 0.0
    %342 = vmatpush1.msra.mxu0 0.0
    %343 = vmatprep.subr.mxu0 0.0
    %344 = vmatpush1.msra.mxu0 0.0
    %345 = vmatprep.mubr.f32.mxu0 0.0
    %346 = vmatmul.mubr.f32.gmra.mrb[0].mxu0 %v234
    %v347 = vpop.f32.mrb[0].mxu0
    %v348 = vadd.f32 %v230, %v347
    %v349 = vpop.f32.mrb[0].mxu0
    %350 = vmatprep.mubr.f32.mxu0 0.0
    %351 = vmatmul.mubr.f32.gmra.mrb[0].mxu0 %v237
    %v352 = vpop.f32.mrb[0].mxu0
    %v353 = vadd.f32 %v230, %v352
    %v354 = vpop.f32.mrb[0].mxu0
    %355 = vmatprep.mubr.f32.mxu0 0.0
    %356 = vmatmul.mubr.f32.gmra.mrb[0].mxu0 %v240
    %v357 = vpop.f32.mrb[0].mxu0
    %v358 = vadd.f32 %v230, %v357
    %v359 = vpop.f32.mrb[0].mxu0
    %360 = vmatprep.mubr.f32.mxu0 0.0
    %361 = vmatmul.mubr.f32.gmra.mrb[0].mxu0 %v243
    %v362 = vpop.f32.mrb[0].mxu0
    %v363 = vadd.f32 %v230, %v362
    %v364 = vpop.f32.mrb[0].mxu0
    %365 = vmatprep.mubr.f32.mxu0 0.0
    %366 = vmatmul.mubr.f32.gmra.mrb[0].mxu0 %v246
    %v367 = vpop.f32.mrb[0].mxu0
    %v368 = vadd.f32 %v230, %v367
    %v369 = vpop.f32.mrb[0].mxu0
    %370 = vmatprep.mubr.f32.mxu0 0.0
    %371 = vmatmul.mubr.f32.gmra.mrb[0].mxu0 %v249
    %v372 = vpop.f32.mrb[0].mxu0
    %v373 = vadd.f32 %v230, %v372
    %v374 = vpop.f32.mrb[0].mxu0
    %375 = vmatprep.mubr.f32.mxu0 0.0
    %376 = vmatmul.mubr.f32.gmra.mrb[0].mxu0 %v252
    %v377 = vpop.f32.mrb[0].mxu0
    %v378 = vadd.f32 %v230, %v377
    %v379 = vpop.f32.mrb[0].mxu0
    %380 = vmatprep.mubr.f32.mxu0 0.0
    %381 = vmatmul.mubr.f32.gmra.mrb[0].mxu0 %v255
    %v382 = vpop.f32.mrb[0].mxu0
    %v383 = vadd.f32 %v230, %v382
    %v384 = vpop.f32.mrb[0].mxu0
    %385 = vmatprep.mubr.f32.mxu0 0.0
    %386 = vmatmul.mubr.f32.gmra.mrb[0].mxu0 %v258
    %v387 = vpop.f32.mrb[0].mxu0
    %v388 = vadd.f32 %v230, %v387
    %v389 = vpop.f32.mrb[0].mxu0
    %390 = vmatprep.mubr.f32.mxu0 0.0
    %391 = vmatmul.mubr.f32.gmra.mrb[0].mxu0 %v261
    %v392 = vpop.f32.mrb[0].mxu0
    %v393 = vadd.f32 %v230, %v392
    %v394 = vpop.f32.mrb[0].mxu0
    %395 = vmatprep.mubr.f32.mxu0 0.0
    %396 = vmatmul.mubr.f32.gmra.mrb[0].mxu0 %v264
    %v397 = vpop.f32.mrb[0].mxu0
    %v398 = vadd.f32 %v230, %v397
    %v399 = vpop.f32.mrb[0].mxu0
    %400 = vmatprep.mubr.f32.mxu0 0.0
    %401 = vmatmul.mubr.f32.gmra.mrb[0].mxu0 %v267
    %v402 = vpop.f32.mrb[0].mxu0
    %v403 = vadd.f32 %v230, %v402
    %v404 = vpop.f32.mrb[0].mxu0
    %405 = vmatprep.mubr.f32.mxu0 0.0
    %406 = vmatmul.mubr.f32.gmra.mrb[0].mxu0 %v270
    %v407 = vpop.f32.mrb[0].mxu0
    %v408 = vadd.f32 %v230, %v407
    %v409 = vpop.f32.mrb[0].mxu0
    %410 = vmatprep.mubr.f32.mxu0 0.0
    %411 = vmatmul.mubr.f32.gmra.mrb[0].mxu0 %v273
    %v412 = vpop.f32.mrb[0].mxu0
    %v413 = vadd.f32 %v230, %v412
    %v414 = vpop.f32.mrb[0].mxu0
    %415 = vmatprep.mubr.f32.mxu0 0.0
    %416 = vmatmul.mubr.f32.gmra.mrb[0].mxu0 %v276
    %v417 = vpop.f32.mrb[0].mxu0
    %v418 = vadd.f32 %v230, %v417
    %v419 = vpop.f32.mrb[0].mxu0
    %420 = vmatprep.mubr.f32.mxu0 0.0
    %421 = vmatmul.mubr.f32.gmra.mrb[0].mxu0 %v279
    %v422 = vpop.f32.mrb[0].mxu0
    %v423 = vadd.f32 %v230, %v422
    %v424 = vpop.f32.mrb[0].mxu0
    %425 = vdwg.mxu0
    %v426 = vmax.f32 %v348, 0.0
    %v427 = vmax.f32 %v353, 0.0
    %v428 = vmax.f32 %v358, 0.0
    %v429 = vmax.f32 %v363, 0.0
    %v430 = vmax.f32 %v368, 0.0
    %v431 = vmax.f32 %v373, 0.0
    %v432 = vmax.f32 %v378, 0.0
    %v433 = vmax.f32 %v383, 0.0
    %v434 = vmax.f32 %v388, 0.0
    %v435 = vmax.f32 %v393, 0.0
    %v436 = vmax.f32 %v398, 0.0
    %v437 = vmax.f32 %v403, 0.0
    %v438 = vmax.f32 %v408, 0.0
    %v439 = vmax.f32 %v413, 0.0
    %v440 = vmax.f32 %v418, 0.0
    %v441 = vmax.f32 %v423, 0.0
    %v442 = vld [vmem:[#allocation14] sm:$0xff]
    %v443 = vld [vmem:[#allocation14 + $0x8] sm:$0xff]
    %v444 = vld [vmem:[#allocation14 + $0x10] sm:$0xff]
    %v445 = vld [vmem:[#allocation14 + $0x18] sm:$0xff]
    %v446 = vld [vmem:[#allocation16] sm:$0x1]
    %v448 = vlaneseq
    %v449 = vshrl.u32 %v448, 7
    %v450 = vsub.s32 0, %v449
    %v451 = vrot.slane %v446, %v450
    %v454 = vsel %vm232, %v426, 0
    %v457 = vsel %vm232, %v427, 0
    %v460 = vsel %vm232, %v428, 0
    %v463 = vsel %vm232, %v429, 0
    %v466 = vsel %vm232, %v430, 0
    %v469 = vsel %vm232, %v431, 0
    %v472 = vsel %vm232, %v432, 0
    %v475 = vsel %vm232, %v433, 0
    %v478 = vsel %vm232, %v434, 0
    %v481 = vsel %vm232, %v435, 0
    %v484 = vsel %vm232, %v436, 0
    %v487 = vsel %vm232, %v437, 0
    %v490 = vsel %vm232, %v438, 0
    %v493 = vsel %vm232, %v439, 0
    %v496 = vsel %vm232, %v440, 0
    %v499 = vsel %vm232, %v441, 0
    %501 = vmatprep.subr.mxu0 0.0
    %502 = vmatpush1.msra.mxu0 %v442
    %503 = vmatprep.subr.mxu0 0.0
    %504 = vmatpush1.msra.mxu0 %v443
    %505 = vmatprep.subr.mxu0 0.0
    %506 = vmatpush1.msra.mxu0 %v444
    %507 = vmatprep.subr.mxu0 0.0
    %508 = vmatpush1.msra.mxu0 %v445
    %509 = vmatprep.subr.mxu0 0.0
    %510 = vmatpush1.msra.mxu0 0.0
    %511 = vmatprep.subr.mxu0 0.0
    %512 = vmatpush1.msra.mxu0 0.0
    %513 = vmatprep.subr.mxu0 0.0
    %514 = vmatpush1.msra.mxu0 0.0
    %515 = vmatprep.subr.mxu0 0.0
    %516 = vmatpush1.msra.mxu0 0.0
    %517 = vmatprep.subr.mxu0 0.0
    %518 = vmatpush1.msra.mxu0 0.0
    %519 = vmatprep.subr.mxu0 0.0
    %520 = vmatpush1.msra.mxu0 0.0
    %521 = vmatprep.subr.mxu0 0.0
    %522 = vmatpush1.msra.mxu0 0.0
    %523 = vmatprep.subr.mxu0 0.0
    %524 = vmatpush1.msra.mxu0 0.0
    %525 = vmatprep.subr.mxu0 0.0
    %526 = vmatpush1.msra.mxu0 0.0
    %527 = vmatprep.subr.mxu0 0.0
    %528 = vmatpush1.msra.mxu0 0.0
    %529 = vmatprep.subr.mxu0 0.0
    %530 = vmatpush1.msra.mxu0 0.0
    %531 = vmatprep.subr.mxu0 0.0
    %532 = vmatpush1.msra.mxu0 0.0
    %533 = vmatprep.subr.mxu0 0.0
    %534 = vmatpush1.msra.mxu0 0.0
    %535 = vmatprep.subr.mxu0 0.0
    %536 = vmatpush1.msra.mxu0 0.0
    %537 = vmatprep.subr.mxu0 0.0
    %538 = vmatpush1.msra.mxu0 0.0
    %539 = vmatprep.subr.mxu0 0.0
    %540 = vmatpush1.msra.mxu0 0.0
    %541 = vmatprep.subr.mxu0 0.0
    %542 = vmatpush1.msra.mxu0 0.0
    %543 = vmatprep.subr.mxu0 0.0
    %544 = vmatpush1.msra.mxu0 0.0
    %545 = vmatprep.subr.mxu0 0.0
    %546 = vmatpush1.msra.mxu0 0.0
    %547 = vmatprep.subr.mxu0 0.0
    %548 = vmatpush1.msra.mxu0 0.0
    %549 = vmatprep.subr.mxu0 0.0
    %550 = vmatpush1.msra.mxu0 0.0
    %551 = vmatprep.subr.mxu0 0.0
    %552 = vmatpush1.msra.mxu0 0.0
    %553 = vmatprep.subr.mxu0 0.0
    %554 = vmatpush1.msra.mxu0 0.0
    %555 = vmatprep.subr.mxu0 0.0
    %556 = vmatpush1.msra.mxu0 0.0
    %557 = vmatprep.subr.mxu0 0.0
    %558 = vmatpush1.msra.mxu0 0.0
    %559 = vmatprep.subr.mxu0 0.0
    %560 = vmatpush1.msra.mxu0 0.0
    %561 = vmatprep.subr.mxu0 0.0
    %562 = vmatpush1.msra.mxu0 0.0
    %563 = vmatprep.subr.mxu0 0.0
    %564 = vmatpush1.msra.mxu0 0.0
    %565 = vmatprep.mubr.f32.mxu0 0.0
    %566 = vmatmul.mubr.f32.gmra.mrb[0].mxu0 %v454
    %v567 = vpop.f32.mrb[0].mxu0
    %v568 = vadd.f32 %v451, %v567
    %v569 = vpop.f32.mrb[0].mxu0
    %570 = vmatprep.mubr.f32.mxu0 0.0
    %571 = vmatmul.mubr.f32.gmra.mrb[0].mxu0 %v457
    %v572 = vpop.f32.mrb[0].mxu0
    %v573 = vadd.f32 %v451, %v572
    %v574 = vpop.f32.mrb[0].mxu0
    %575 = vmatprep.mubr.f32.mxu0 0.0
    %576 = vmatmul.mubr.f32.gmra.mrb[0].mxu0 %v460
    %v577 = vpop.f32.mrb[0].mxu0
    %v578 = vadd.f32 %v451, %v577
    %v579 = vpop.f32.mrb[0].mxu0
    %580 = vmatprep.mubr.f32.mxu0 0.0
    %581 = vmatmul.mubr.f32.gmra.mrb[0].mxu0 %v463
    %v582 = vpop.f32.mrb[0].mxu0
    %v583 = vadd.f32 %v451, %v582
    %v584 = vpop.f32.mrb[0].mxu0
    %585 = vmatprep.mubr.f32.mxu0 0.0
    %586 = vmatmul.mubr.f32.gmra.mrb[0].mxu0 %v466
    %v587 = vpop.f32.mrb[0].mxu0
    %v588 = vadd.f32 %v451, %v587
    %v589 = vpop.f32.mrb[0].mxu0
    %590 = vmatprep.mubr.f32.mxu0 0.0
    %591 = vmatmul.mubr.f32.gmra.mrb[0].mxu0 %v469
    %v592 = vpop.f32.mrb[0].mxu0
    %v593 = vadd.f32 %v451, %v592
    %v594 = vpop.f32.mrb[0].mxu0
    %595 = vmatprep.mubr.f32.mxu0 0.0
    %596 = vmatmul.mubr.f32.gmra.mrb[0].mxu0 %v472
    %v597 = vpop.f32.mrb[0].mxu0
    %v598 = vadd.f32 %v451, %v597
    %v599 = vpop.f32.mrb[0].mxu0
    %600 = vmatprep.mubr.f32.mxu0 0.0
    %601 = vmatmul.mubr.f32.gmra.mrb[0].mxu0 %v475
    %v602 = vpop.f32.mrb[0].mxu0
    %v603 = vadd.f32 %v451, %v602
    %v604 = vpop.f32.mrb[0].mxu0
    %605 = vmatprep.mubr.f32.mxu0 0.0
    %606 = vmatmul.mubr.f32.gmra.mrb[0].mxu0 %v478
    %v607 = vpop.f32.mrb[0].mxu0
    %v608 = vadd.f32 %v451, %v607
    %v609 = vpop.f32.mrb[0].mxu0
    %610 = vmatprep.mubr.f32.mxu0 0.0
    %611 = vmatmul.mubr.f32.gmra.mrb[0].mxu0 %v481
    %v612 = vpop.f32.mrb[0].mxu0
    %v613 = vadd.f32 %v451, %v612
    %v614 = vpop.f32.mrb[0].mxu0
    %615 = vmatprep.mubr.f32.mxu0 0.0
    %616 = vmatmul.mubr.f32.gmra.mrb[0].mxu0 %v484
    %v617 = vpop.f32.mrb[0].mxu0
    %v618 = vadd.f32 %v451, %v617
    %v619 = vpop.f32.mrb[0].mxu0
    %620 = vmatprep.mubr.f32.mxu0 0.0
    %621 = vmatmul.mubr.f32.gmra.mrb[0].mxu0 %v487
    %v622 = vpop.f32.mrb[0].mxu0
    %v623 = vadd.f32 %v451, %v622
    %v624 = vpop.f32.mrb[0].mxu0
    %625 = vmatprep.mubr.f32.mxu0 0.0
    %626 = vmatmul.mubr.f32.gmra.mrb[0].mxu0 %v490
    %v627 = vpop.f32.mrb[0].mxu0
    %v628 = vadd.f32 %v451, %v627
    %v629 = vpop.f32.mrb[0].mxu0
    %630 = vmatprep.mubr.f32.mxu0 0.0
    %631 = vmatmul.mubr.f32.gmra.mrb[0].mxu0 %v493
    %v632 = vpop.f32.mrb[0].mxu0
    %v633 = vadd.f32 %v451, %v632
    %v634 = vpop.f32.mrb[0].mxu0
    %635 = vmatprep.mubr.f32.mxu0 0.0
    %636 = vmatmul.mubr.f32.gmra.mrb[0].mxu0 %v496
    %v637 = vpop.f32.mrb[0].mxu0
    %v638 = vadd.f32 %v451, %v637
    %v639 = vpop.f32.mrb[0].mxu0
    %640 = vmatprep.mubr.f32.mxu0 0.0
    %641 = vmatmul.mubr.f32.gmra.mrb[0].mxu0 %v499
    %v642 = vpop.f32.mrb[0].mxu0
    %v643 = vadd.f32 %v451, %v642
    %v644 = vpop.f32.mrb[0].mxu0
    %645 = vdwg.mxu0
    %v646 = vmax.f32 %v568, 0.0
    %v647 = vmax.f32 %v573, 0.0
    %v648 = vmax.f32 %v578, 0.0
    %v649 = vmax.f32 %v583, 0.0
    %v650 = vmax.f32 %v588, 0.0
    %v651 = vmax.f32 %v593, 0.0
    %v652 = vmax.f32 %v598, 0.0
    %v653 = vmax.f32 %v603, 0.0
    %v654 = vmax.f32 %v608, 0.0
    %v655 = vmax.f32 %v613, 0.0
    %v656 = vmax.f32 %v618, 0.0
    %v657 = vmax.f32 %v623, 0.0
    %v658 = vmax.f32 %v628, 0.0
    %v659 = vmax.f32 %v633, 0.0
    %v660 = vmax.f32 %v638, 0.0
    %v661 = vmax.f32 %v643, 0.0
    %v662 = vld [vmem:[#allocation7] sm:$0xff]
    %v663 = vld [vmem:[#allocation7 + $0x8] sm:$0xff]
    %vm664 = vcmp.gt.f32.partialorder %v662, 0.5
    %vm665 = vcmp.gt.f32.partialorder %v663, 0.5
    %s666 = smul.u32 0, 8
    %s667 = scalar_lea.vmem [#allocation2], %s666
    %v668 = vld [vmem:[%s667] sm:$0x1]
    %v669 = vld [vmem:[#allocation5] sm:$0xff]
    %v670 = vld [vmem:[#allocation5 + $0x8] sm:$0xff]
    %v671 = vlaneseq
    %v672 = vshrl.u32 %v671, 7
    %v673 = vsub.s32 0, %v672
    %v674 = vrot.slane %v668, %v673
    %v675 = vsub.f32 %v669, %v674
    %v676 = vsub.f32 %v670, %v674
    %v677 = vmul.f32 %v675, %v675
    %v678 = vmul.f32 %v676, %v676
    %681 = vrot.lane.b32.xlu0 %v677, 127
    %v682 = vpop.permute.xlu0 %681
    %683 = vrot.lane.b32.xlu0 %v678, 127
    %v684 = vpop.permute.xlu0 %683
    %v687 = vadd.f32 %v677, %v682
    %v688 = vadd.f32 %v678, %v684
    %689 = vrot.lane.b32.xlu0 %v677, 126
    %v690 = vpop.permute.xlu0 %689
    %691 = vrot.lane.b32.xlu0 %v678, 126
    %v692 = vpop.permute.xlu0 %691
    %v695 = vadd.f32 %v687, %v690
    %v696 = vadd.f32 %v688, %v692
    %vm697 = vcmp.lt.f32.partialorder %v695, 0.81
    %vm698 = vcmp.lt.f32.partialorder %v696, 0.81
    %vm699 = vmand %vm697, %vm664
    %vm700 = vmand %vm698, %vm665
    %v701 = vsel %vm699, 1, 0
    %v702 = vsel %vm700, 1, 0
    %703 = vset.pattern.permute.xlu0 0
    %704 = vperm.xlu0 %703, %v701
    %v705 = vpop.permute.xlu0 %704
    %706 = vset.pattern.permute.xlu0 0
    %707 = vperm.xlu0 %706, %v702
    %v708 = vpop.permute.xlu0 %707
    %vm709 = vcmp.eq.s32.totalorder %v705, 1
    %vm710 = vcmp.eq.s32.totalorder %v708, 1
    %v711 = vsel %vm709, %v646, -inf
    %v712 = vsel %vm710, %v647, -inf
    %vm713 = vcmask 523264
    %v714 = vsel %vm713, %v711, -inf
    %v715 = vsel %vm713, %v712, -inf
    %v716 = vmax.f32 %v714, %v715
    %v717 = vrot.slane %v716, 4
    %v718 = vmax.f32 %v716, %v717
    %v719 = vrot.slane %v718, 2
    %v720 = vmax.f32 %v718, %v719
    %v721 = vrot.slane %v720, 1
    %v722 = vmax.f32 %v720, %v721
    %s723 = sadd.s32 %s666, 1
    %s724 = scalar_lea.vmem [#allocation2], %s723
    %v725 = vld [vmem:[%s724] sm:$0x1]
    %v726 = vlaneseq
    %v727 = vshrl.u32 %v726, 7
    %v728 = vsub.s32 0, %v727
    %v729 = vrot.slane %v725, %v728
    %v730 = vsub.f32 %v669, %v729
    %v731 = vsub.f32 %v670, %v729
    %v732 = vmul.f32 %v730, %v730
    %v733 = vmul.f32 %v731, %v731
    %736 = vrot.lane.b32.xlu0 %v732, 127
    %v737 = vpop.permute.xlu0 %736
    %738 = vrot.lane.b32.xlu0 %v733, 127
    %v739 = vpop.permute.xlu0 %738
    %v742 = vadd.f32 %v732, %v737
    %v743 = vadd.f32 %v733, %v739
    %744 = vrot.lane.b32.xlu0 %v732, 126
    %v745 = vpop.permute.xlu0 %744
    %746 = vrot.lane.b32.xlu0 %v733, 126
    %v747 = vpop.permute.xlu0 %746
    %v750 = vadd.f32 %v742, %v745
    %v751 = vadd.f32 %v743, %v747
    %vm752 = vcmp.lt.f32.partialorder %v750, 0.81
    %vm753 = vcmp.lt.f32.partialorder %v751, 0.81
    %vm754 = vmand %vm752, %vm664
    %vm755 = vmand %vm753, %vm665
    %v756 = vsel %vm754, 1, 0
    %v757 = vsel %vm755, 1, 0
    %758 = vset.pattern.permute.xlu0 0
    %759 = vperm.xlu0 %758, %v756
    %v760 = vpop.permute.xlu0 %759
    %761 = vset.pattern.permute.xlu0 0
    %762 = vperm.xlu0 %761, %v757
    %v763 = vpop.permute.xlu0 %762
    %vm764 = vcmp.eq.s32.totalorder %v760, 1
    %vm765 = vcmp.eq.s32.totalorder %v763, 1
    %v766 = vsel %vm764, %v648, -inf
    %v767 = vsel %vm765, %v649, -inf
    %v768 = vsel %vm713, %v766, -inf
    %v769 = vsel %vm713, %v767, -inf
    %v770 = vmax.f32 %v768, %v769
    %v771 = vrot.slane %v770, 4
    %v772 = vmax.f32 %v770, %v771
    %v773 = vrot.slane %v772, 2
    %v774 = vmax.f32 %v772, %v773
    %v775 = vrot.slane %v774, 1
    %v776 = vmax.f32 %v774, %v775
    %s777 = sadd.s32 %s666, 2
    %s778 = scalar_lea.vmem [#allocation2], %s777
    %v779 = vld [vmem:[%s778] sm:$0x1]
    %v780 = vlaneseq
    %v781 = vshrl.u32 %v780, 7
    %v782 = vsub.s32 0, %v781
    %v783 = vrot.slane %v779, %v782
    %v784 = vsub.f32 %v669, %v783
    %v785 = vsub.f32 %v670, %v783
    %v786 = vmul.f32 %v784, %v784
    %v787 = vmul.f32 %v785, %v785
    %790 = vrot.lane.b32.xlu0 %v786, 127
    %v791 = vpop.permute.xlu0 %790
    %792 = vrot.lane.b32.xlu0 %v787, 127
    %v793 = vpop.permute.xlu0 %792
    %v796 = vadd.f32 %v786, %v791
    %v797 = vadd.f32 %v787, %v793
    %798 = vrot.lane.b32.xlu0 %v786, 126
    %v799 = vpop.permute.xlu0 %798
    %800 = vrot.lane.b32.xlu0 %v787, 126
    %v801 = vpop.permute.xlu0 %800
    %v804 = vadd.f32 %v796, %v799
    %v805 = vadd.f32 %v797, %v801
    %vm806 = vcmp.lt.f32.partialorder %v804, 0.81
    %vm807 = vcmp.lt.f32.partialorder %v805, 0.81
    %vm808 = vmand %vm806, %vm664
    %vm809 = vmand %vm807, %vm665
    %v810 = vsel %vm808, 1, 0
    %v811 = vsel %vm809, 1, 0
    %812 = vset.pattern.permute.xlu0 0
    %813 = vperm.xlu0 %812, %v810
    %v814 = vpop.permute.xlu0 %813
    %815 = vset.pattern.permute.xlu0 0
    %816 = vperm.xlu0 %815, %v811
    %v817 = vpop.permute.xlu0 %816
    %vm818 = vcmp.eq.s32.totalorder %v814, 1
    %vm819 = vcmp.eq.s32.totalorder %v817, 1
    %v820 = vsel %vm818, %v650, -inf
    %v821 = vsel %vm819, %v651, -inf
    %v822 = vsel %vm713, %v820, -inf
    %v823 = vsel %vm713, %v821, -inf
    %v824 = vmax.f32 %v822, %v823
    %v825 = vrot.slane %v824, 4
    %v826 = vmax.f32 %v824, %v825
    %v827 = vrot.slane %v826, 2
    %v828 = vmax.f32 %v826, %v827
    %v829 = vrot.slane %v828, 1
    %v830 = vmax.f32 %v828, %v829
    %s831 = sadd.s32 %s666, 3
    %s832 = scalar_lea.vmem [#allocation2], %s831
    %v833 = vld [vmem:[%s832] sm:$0x1]
    %v834 = vlaneseq
    %v835 = vshrl.u32 %v834, 7
    %v836 = vsub.s32 0, %v835
    %v837 = vrot.slane %v833, %v836
    %v838 = vsub.f32 %v669, %v837
    %v839 = vsub.f32 %v670, %v837
    %v840 = vmul.f32 %v838, %v838
    %v841 = vmul.f32 %v839, %v839
    %844 = vrot.lane.b32.xlu0 %v840, 127
    %v845 = vpop.permute.xlu0 %844
    %846 = vrot.lane.b32.xlu0 %v841, 127
    %v847 = vpop.permute.xlu0 %846
    %v850 = vadd.f32 %v840, %v845
    %v851 = vadd.f32 %v841, %v847
    %852 = vrot.lane.b32.xlu0 %v840, 126
    %v853 = vpop.permute.xlu0 %852
    %854 = vrot.lane.b32.xlu0 %v841, 126
    %v855 = vpop.permute.xlu0 %854
    %v858 = vadd.f32 %v850, %v853
    %v859 = vadd.f32 %v851, %v855
    %vm860 = vcmp.lt.f32.partialorder %v858, 0.81
    %vm861 = vcmp.lt.f32.partialorder %v859, 0.81
    %vm862 = vmand %vm860, %vm664
    %vm863 = vmand %vm861, %vm665
    %v864 = vsel %vm862, 1, 0
    %v865 = vsel %vm863, 1, 0
    %866 = vset.pattern.permute.xlu0 0
    %867 = vperm.xlu0 %866, %v864
    %v868 = vpop.permute.xlu0 %867
    %869 = vset.pattern.permute.xlu0 0
    %870 = vperm.xlu0 %869, %v865
    %v871 = vpop.permute.xlu0 %870
    %vm872 = vcmp.eq.s32.totalorder %v868, 1
    %vm873 = vcmp.eq.s32.totalorder %v871, 1
    %v874 = vsel %vm872, %v652, -inf
    %v875 = vsel %vm873, %v653, -inf
    %v876 = vsel %vm713, %v874, -inf
    %v877 = vsel %vm713, %v875, -inf
    %v878 = vmax.f32 %v876, %v877
    %v879 = vrot.slane %v878, 4
    %v880 = vmax.f32 %v878, %v879
    %v881 = vrot.slane %v880, 2
    %v882 = vmax.f32 %v880, %v881
    %v883 = vrot.slane %v882, 1
    %v884 = vmax.f32 %v882, %v883
    %s885 = sadd.s32 %s666, 4
    %s886 = scalar_lea.vmem [#allocation2], %s885
    %v887 = vld [vmem:[%s886] sm:$0x1]
    %v888 = vlaneseq
    %v889 = vshrl.u32 %v888, 7
    %v890 = vsub.s32 0, %v889
    %v891 = vrot.slane %v887, %v890
    %v892 = vsub.f32 %v669, %v891
    %v893 = vsub.f32 %v670, %v891
    %v894 = vmul.f32 %v892, %v892
    %v895 = vmul.f32 %v893, %v893
    %898 = vrot.lane.b32.xlu0 %v894, 127
    %v899 = vpop.permute.xlu0 %898
    %900 = vrot.lane.b32.xlu0 %v895, 127
    %v901 = vpop.permute.xlu0 %900
    %v904 = vadd.f32 %v894, %v899
    %v905 = vadd.f32 %v895, %v901
    %906 = vrot.lane.b32.xlu0 %v894, 126
    %v907 = vpop.permute.xlu0 %906
    %908 = vrot.lane.b32.xlu0 %v895, 126
    %v909 = vpop.permute.xlu0 %908
    %v912 = vadd.f32 %v904, %v907
    %v913 = vadd.f32 %v905, %v909
    %vm914 = vcmp.lt.f32.partialorder %v912, 0.81
    %vm915 = vcmp.lt.f32.partialorder %v913, 0.81
    %vm916 = vmand %vm914, %vm664
    %vm917 = vmand %vm915, %vm665
    %v918 = vsel %vm916, 1, 0
    %v919 = vsel %vm917, 1, 0
    %920 = vset.pattern.permute.xlu0 0
    %921 = vperm.xlu0 %920, %v918
    %v922 = vpop.permute.xlu0 %921
    %923 = vset.pattern.permute.xlu0 0
    %924 = vperm.xlu0 %923, %v919
    %v925 = vpop.permute.xlu0 %924
    %vm926 = vcmp.eq.s32.totalorder %v922, 1
    %vm927 = vcmp.eq.s32.totalorder %v925, 1
    %v928 = vsel %vm926, %v654, -inf
    %v929 = vsel %vm927, %v655, -inf
    %v930 = vsel %vm713, %v928, -inf
    %v931 = vsel %vm713, %v929, -inf
    %v932 = vmax.f32 %v930, %v931
    %v933 = vrot.slane %v932, 4
    %v934 = vmax.f32 %v932, %v933
    %v935 = vrot.slane %v934, 2
    %v936 = vmax.f32 %v934, %v935
    %v937 = vrot.slane %v936, 1
    %v938 = vmax.f32 %v936, %v937
    %s939 = sadd.s32 %s666, 5
    %s940 = scalar_lea.vmem [#allocation2], %s939
    %v941 = vld [vmem:[%s940] sm:$0x1]
    %v942 = vlaneseq
    %v943 = vshrl.u32 %v942, 7
    %v944 = vsub.s32 0, %v943
    %v945 = vrot.slane %v941, %v944
    %v946 = vsub.f32 %v669, %v945
    %v947 = vsub.f32 %v670, %v945
    %v948 = vmul.f32 %v946, %v946
    %v949 = vmul.f32 %v947, %v947
    %952 = vrot.lane.b32.xlu0 %v948, 127
    %v953 = vpop.permute.xlu0 %952
    %954 = vrot.lane.b32.xlu0 %v949, 127
    %v955 = vpop.permute.xlu0 %954
    %v958 = vadd.f32 %v948, %v953
    %v959 = vadd.f32 %v949, %v955
    %960 = vrot.lane.b32.xlu0 %v948, 126
    %v961 = vpop.permute.xlu0 %960
    %962 = vrot.lane.b32.xlu0 %v949, 126
    %v963 = vpop.permute.xlu0 %962
    %v966 = vadd.f32 %v958, %v961
    %v967 = vadd.f32 %v959, %v963
    %vm968 = vcmp.lt.f32.partialorder %v966, 0.81
    %vm969 = vcmp.lt.f32.partialorder %v967, 0.81
    %vm970 = vmand %vm968, %vm664
    %vm971 = vmand %vm969, %vm665
    %v972 = vsel %vm970, 1, 0
    %v973 = vsel %vm971, 1, 0
    %974 = vset.pattern.permute.xlu0 0
    %975 = vperm.xlu0 %974, %v972
    %v976 = vpop.permute.xlu0 %975
    %977 = vset.pattern.permute.xlu0 0
    %978 = vperm.xlu0 %977, %v973
    %v979 = vpop.permute.xlu0 %978
    %vm980 = vcmp.eq.s32.totalorder %v976, 1
    %vm981 = vcmp.eq.s32.totalorder %v979, 1
    %v982 = vsel %vm980, %v656, -inf
    %v983 = vsel %vm981, %v657, -inf
    %v984 = vsel %vm713, %v982, -inf
    %v985 = vsel %vm713, %v983, -inf
    %v986 = vmax.f32 %v984, %v985
    %v987 = vrot.slane %v986, 4
    %v988 = vmax.f32 %v986, %v987
    %v989 = vrot.slane %v988, 2
    %v990 = vmax.f32 %v988, %v989
    %v991 = vrot.slane %v990, 1
    %v992 = vmax.f32 %v990, %v991
    %s993 = sadd.s32 %s666, 6
    %s994 = scalar_lea.vmem [#allocation2], %s993
    %v995 = vld [vmem:[%s994] sm:$0x1]
    %v996 = vlaneseq
    %v997 = vshrl.u32 %v996, 7
    %v998 = vsub.s32 0, %v997
    %v999 = vrot.slane %v995, %v998
    %v1000 = vsub.f32 %v669, %v999
    %v1001 = vsub.f32 %v670, %v999
    %v1002 = vmul.f32 %v1000, %v1000
    %v1003 = vmul.f32 %v1001, %v1001
    %1006 = vrot.lane.b32.xlu0 %v1002, 127
    %v1007 = vpop.permute.xlu0 %1006
    %1008 = vrot.lane.b32.xlu0 %v1003, 127
    %v1009 = vpop.permute.xlu0 %1008
    %v1012 = vadd.f32 %v1002, %v1007
    %v1013 = vadd.f32 %v1003, %v1009
    %1014 = vrot.lane.b32.xlu0 %v1002, 126
    %v1015 = vpop.permute.xlu0 %1014
    %1016 = vrot.lane.b32.xlu0 %v1003, 126
    %v1017 = vpop.permute.xlu0 %1016
    %v1020 = vadd.f32 %v1012, %v1015
    %v1021 = vadd.f32 %v1013, %v1017
    %vm1022 = vcmp.lt.f32.partialorder %v1020, 0.81
    %vm1023 = vcmp.lt.f32.partialorder %v1021, 0.81
    %vm1024 = vmand %vm1022, %vm664
    %vm1025 = vmand %vm1023, %vm665
    %v1026 = vsel %vm1024, 1, 0
    %v1027 = vsel %vm1025, 1, 0
    %1028 = vset.pattern.permute.xlu0 0
    %1029 = vperm.xlu0 %1028, %v1026
    %v1030 = vpop.permute.xlu0 %1029
    %1031 = vset.pattern.permute.xlu0 0
    %1032 = vperm.xlu0 %1031, %v1027
    %v1033 = vpop.permute.xlu0 %1032
    %vm1034 = vcmp.eq.s32.totalorder %v1030, 1
    %vm1035 = vcmp.eq.s32.totalorder %v1033, 1
    %v1036 = vsel %vm1034, %v658, -inf
    %v1037 = vsel %vm1035, %v659, -inf
    %v1038 = vsel %vm713, %v1036, -inf
    %v1039 = vsel %vm713, %v1037, -inf
    %v1040 = vmax.f32 %v1038, %v1039
    %v1041 = vrot.slane %v1040, 4
    %v1042 = vmax.f32 %v1040, %v1041
    %v1043 = vrot.slane %v1042, 2
    %v1044 = vmax.f32 %v1042, %v1043
    %v1045 = vrot.slane %v1044, 1
    %v1046 = vmax.f32 %v1044, %v1045
    %s1047 = sadd.s32 %s666, 7
    %s1048 = scalar_lea.vmem [#allocation2], %s1047
    %v1049 = vld [vmem:[%s1048] sm:$0x1]
    %v1050 = vlaneseq
    %v1051 = vshrl.u32 %v1050, 7
    %v1052 = vsub.s32 0, %v1051
    %v1053 = vrot.slane %v1049, %v1052
    %v1054 = vsub.f32 %v669, %v1053
    %v1055 = vsub.f32 %v670, %v1053
    %v1056 = vmul.f32 %v1054, %v1054
    %v1057 = vmul.f32 %v1055, %v1055
    %1060 = vrot.lane.b32.xlu0 %v1056, 127
    %v1061 = vpop.permute.xlu0 %1060
    %1062 = vrot.lane.b32.xlu0 %v1057, 127
    %v1063 = vpop.permute.xlu0 %1062
    %v1066 = vadd.f32 %v1056, %v1061
    %v1067 = vadd.f32 %v1057, %v1063
    %1068 = vrot.lane.b32.xlu0 %v1056, 126
    %v1069 = vpop.permute.xlu0 %1068
    %1070 = vrot.lane.b32.xlu0 %v1057, 126
    %v1071 = vpop.permute.xlu0 %1070
    %v1074 = vadd.f32 %v1066, %v1069
    %v1075 = vadd.f32 %v1067, %v1071
    %vm1076 = vcmp.lt.f32.partialorder %v1074, 0.81
    %vm1077 = vcmp.lt.f32.partialorder %v1075, 0.81
    %vm1078 = vmand %vm1076, %vm664
    %vm1079 = vmand %vm1077, %vm665
    %v1080 = vsel %vm1078, 1, 0
    %v1081 = vsel %vm1079, 1, 0
    %1082 = vset.pattern.permute.xlu0 0
    %1083 = vperm.xlu0 %1082, %v1080
    %v1084 = vpop.permute.xlu0 %1083
    %1085 = vset.pattern.permute.xlu0 0
    %1086 = vperm.xlu0 %1085, %v1081
    %v1087 = vpop.permute.xlu0 %1086
    %vm1088 = vcmp.eq.s32.totalorder %v1084, 1
    %vm1089 = vcmp.eq.s32.totalorder %v1087, 1
    %v1090 = vsel %vm1088, %v660, -inf
    %v1091 = vsel %vm1089, %v661, -inf
    %v1092 = vsel %vm713, %v1090, -inf
    %v1093 = vsel %vm713, %v1091, -inf
    %v1094 = vmax.f32 %v1092, %v1093
    %v1095 = vrot.slane %v1094, 4
    %v1096 = vmax.f32 %v1094, %v1095
    %v1097 = vrot.slane %v1096, 2
    %v1098 = vmax.f32 %v1096, %v1097
    %v1099 = vrot.slane %v1098, 1
    %v1100 = vmax.f32 %v1098, %v1099
    %vm1101 = vcmask 1040384
    %v1102 = vsel %vm1101, %v722, %v776
    %vm1103 = vcmask 1041408
    %v1104 = vsel %vm1103, %v1102, %v830
    %vm1105 = vcmask 1042432
    %v1106 = vsel %vm1105, %v1104, %v884
    %vm1107 = vcmask 1043456
    %v1108 = vsel %vm1107, %v1106, %v938
    %vm1109 = vcmask 1044480
    %v1110 = vsel %vm1109, %v1108, %v992
    %vm1111 = vcmask 1045504
    %v1112 = vsel %vm1111, %v1110, %v1046
    %vm1113 = vcmask 1046528
    %v1114 = vsel %vm1113, %v1112, %v1100
    %1115 = vst.msk [vmem:[#allocation17] sm:$0xff] %vm713, %v1114
    // Predicated region
    $region74: #{_lambda_.7} parent=1 // pred_check
      _
    $region75: #{_lambda_.7} parent=1 // pred_check_branch
      %1117 = sbr.rel (0) target = $region77
    $region76: #{_lambda_.7} parent=1 // pred_region
      %s1119 = ssub.s32 128, 128
      %1120 = vsyncadd [#allocation4], %s1119
      %s1122 = sshll.u32 [#allocation17], 4
      %s1123 = int_to_ptr.vmem [resolvable:$true] %s1122
      %1125 = dma.vmem_to_hbm [thread:$0]  %s1123, 128, %s9, [#allocation4]
    $region77: #{_lambda_.7} parent=1 // pred_fallthru
      _
    // Predicated region
    $region78: #{_lambda_.7} parent=1 // pred_check
      _
    $region79: #{_lambda_.7} parent=1 // pred_check_branch
      %1127 = sbr.rel (0) target = $region81
    $region80: #{_lambda_.7} parent=1 // pred_region
      %1128 = dma.done [#allocation4], 128
    $region81: #{_lambda_.7} parent=1 // pred_fallthru
      _
    %1129 = vsyncpa [#allocation3], 1
    %1130 = vsyncpa [#allocation6], 1
    %1131 = vsyncpa [#allocation9], 1
    %1132 = vsyncpa [#allocation12], 1
    %1133 = vsyncpa [#allocation15], 1
    %1134 = vsyncpa [#allocation4], 1

// kernel: _lambda_.6
$region0: #{_lambda_.6}
  #allocation0 [shape = 'u32[]', space=smem, size = 0x4, offset = 0x4, fixed_abs, tag = 'smem constant byte address 0x4 - core index']
  #allocation1 [shape = 'u32[144,128]{1,0:T(1,128)}', space=vmem, size = 0x12000, scoped, tag = 'internal scratch']
  %s0 = inlined_call_operand.hbm [shape: f32[16,3], index: 0, kind: input, shape index: {}]
  %s1 = inlined_call_operand.hbm [shape: f32[64,3], index: 1, kind: input, shape index: {}]
  %s2 = inlined_call_operand.hbm [shape: f32[64,1], index: 2, kind: input, shape index: {}]
  %s3 = inlined_call_operand.hbm [shape: f32[64,16], index: 3, kind: input, shape index: {}]
  %s4 = inlined_call_operand.hbm [shape: f32[16,16], index: 4, kind: input, shape index: {}]
  %s5 = inlined_call_operand.hbm [shape: f32[16,16], index: 5, kind: input, shape index: {}]
  %s6 = inlined_call_operand.hbm [shape: f32[1,16], index: 6, kind: input, shape index: {}]
  %s7 = inlined_call_operand.hbm [shape: f32[16,32], index: 7, kind: input, shape index: {}]
  %s8 = inlined_call_operand.hbm [shape: f32[1,32], index: 8, kind: input, shape index: {}]
  %s9 = inlined_call_operand.hbm [shape: f32[16,32], index: 9, kind: output, shape index: {}]
  %s10 = sld [smem:[#allocation0]]
  $region105: #{_lambda_.6} parent=0
    _
  %s12 = ssub.s32 1, %s10
  %s13 = scalar_select 0, %s12, %s10
  $region1: #{_lambda_.6} parent=0
    #allocation2 [shape = 'u8[8192]{0}', space=vmem, size = 0x2000, scoped, tag = 'input window, operand 0, single buffered']
    #allocation3 [shape = 's32[2]{0}', space=sflag, size = 0x8, scoped, tag = 'scoped memory for _lambda_.6']
    #allocation4 [shape = 's32[2]{0}', space=sflag, size = 0x8, scoped, tag = 'scoped memory for _lambda_.6']
    #allocation5 [shape = 'u8[32768]{0}', space=vmem, size = 0x8000, scoped, tag = 'input window, operand 1, single buffered']
    #allocation6 [shape = 's32[1]{0}', space=sflag, size = 0x4, scoped, tag = 'scoped memory for _lambda_.6']
    #allocation7 [shape = 'u8[32768]{0}', space=vmem, size = 0x8000, scoped, tag = 'input window, operand 2, single buffered']
    #allocation8 [shape = 'u8[32768]{0}', space=vmem, size = 0x8000, scoped, tag = 'input window, operand 3, single buffered']
    #allocation9 [shape = 's32[1]{0}', space=sflag, size = 0x4, scoped, tag = 'scoped memory for _lambda_.6']
    #allocation10 [shape = 'u8[8192]{0}', space=vmem, size = 0x2000, scoped, tag = 'input window, operand 4']
    #allocation11 [shape = 'u8[8192]{0}', space=vmem, size = 0x2000, scoped, tag = 'input window, operand 5, single buffered']
    #allocation12 [shape = 'u8[512]{0}', space=vmem, size = 0x400, scoped, tag = 'input window, operand 6, single buffered']
    #allocation13 [shape = 'u8[8192]{0}', space=vmem, size = 0x2000, scoped, tag = 'input window, operand 7, single buffered']
    #allocation14 [shape = 's32[1]{0}', space=sflag, size = 0x4, scoped, tag = 'scoped memory for _lambda_.6']
    #allocation15 [shape = 'u8[512]{0}', space=vmem, size = 0x400, scoped, tag = 'input window, operand 8, single buffered']
    #allocation16 [shape = 'u8[8192]{0}', space=vmem, size = 0x2000, scoped, tag = 'output window, operand 0']
    %14 = vsyncpa [#allocation3], 0
    %15 = vsyncpa [#allocation6], 0
    %16 = vsyncpa [#allocation9], 0
    %17 = vsyncpa [#allocation14], 0
    %18 = vsyncpa [#allocation4], 0
    %s19 = scalar_lea.sflag [#allocation4], 1
    %20 = vsyncpa %s19, 0
    loop: start=0, step=1, limit=4
    $region2: #{_lambda_.6} parent=1 // loop_pre_header
      _
    $region3: #{_lambda_.6} parent=1 // loop_header
      %s22 = sphi 0, %s26
      %p23 = scmp.ge.s32.totalorder %s22, 4
      %s30 = sphi 0, %s30
      %s32 = sphi 0, %s30
      %s33 = sphi 0, %s32
      %s47 = sphi 0, %s33
      %s51 = sphi 0, %s51
      %s53 = sphi 0, %s51
      %s54 = sphi 0, %s53
      %s68 = sphi 0, %s54
      %s72 = sphi 0, %s72
      %s74 = sphi 0, %s72
      %s75 = sphi 0, %s74
      %s89 = sphi 0, %s75
      %s93 = sphi 0, %s93
      %s95 = sphi 0, %s93
      %s96 = sphi 0, %s95
      %s110 = sphi 0, %s96
      %s116 = sphi 0, %s118
      %s119 = sphi 0, %s116
      %s120 = sphi 0, %s119
      %s136 = sphi 0, %s120
      %s140 = sphi 0, %s140
      %s142 = sphi 0, %s140
      %s143 = sphi 0, %s142
      %s157 = sphi 0, %s143
      %s161 = sphi 0, %s161
      %s163 = sphi 0, %s161
      %s164 = sphi 0, %s163
      %s178 = sphi 0, %s164
      %s182 = sphi 0, %s182
      %s184 = sphi 0, %s182
      %s185 = sphi 0, %s184
      %s199 = sphi 0, %s185
      %s203 = sphi 0, %s203
      %s205 = sphi 0, %s203
      %s206 = sphi 0, %s205
      %s220 = sphi 0, %s206
      %s226 = sphi 0, %s228
      %s229 = sphi 0, %s226
      %s230 = sphi 0, %s229
      %s246 = sphi 0, %s230
    $region4: #{_lambda_.6} parent=1 // loop_header_branch
      %25 = sbr.rel (%p23) target = $region8
    $region5: #{_lambda_.6} parent=1 // loop_body
      %s27 = ssub.s32 %s22, 1
      %s28 = ssub.s32 %s22, 2
      %s29 = sadd.s32 %s22, 1
      %s31 = sadd.s32 %s30, 1
      %p34 = scmp.eq.s32.totalorder %s22, 1
      %p35 = scmp.ne.s32.totalorder %s30, %s32
      %p36 = scmp.eq.s32.totalorder %s22, 0
      %p37 = por %p35, %p36
      %p38 = scmp.ne.s32.totalorder %s30, %s32
      %p39 = scmp.eq.s32.totalorder %s27, 1
      %p40 = por %p38, %p39
      %p41 = scmp.ne.s32.totalorder %s32, %s33
      %p42 = scmp.eq.s32.totalorder %s27, 0
      %p43 = por %p41, %p42
      %p44 = scmp.ne.s32.totalorder %s32, %s33
      %p45 = scmp.eq.s32.totalorder %s28, 1
      %p46 = por %p44, %p45
      %p48 = scmp.ne.s32.totalorder %s33, %s47
      %p49 = scmp.eq.s32.totalorder %s28, 0
      %p50 = por %p48, %p49
      %s52 = sadd.s32 %s51, 1
      %p55 = scmp.eq.s32.totalorder %s22, 1
      %p56 = scmp.ne.s32.totalorder %s51, %s53
      %p57 = scmp.eq.s32.totalorder %s22, 0
      %p58 = por %p56, %p57
      %p59 = scmp.ne.s32.totalorder %s51, %s53
      %p60 = scmp.eq.s32.totalorder %s27, 1
      %p61 = por %p59, %p60
      %p62 = scmp.ne.s32.totalorder %s53, %s54
      %p63 = scmp.eq.s32.totalorder %s27, 0
      %p64 = por %p62, %p63
      %p65 = scmp.ne.s32.totalorder %s53, %s54
      %p66 = scmp.eq.s32.totalorder %s28, 1
      %p67 = por %p65, %p66
      %p69 = scmp.ne.s32.totalorder %s54, %s68
      %p70 = scmp.eq.s32.totalorder %s28, 0
      %p71 = por %p69, %p70
      %s73 = sadd.s32 %s72, 1
      %p76 = scmp.eq.s32.totalorder %s22, 1
      %p77 = scmp.ne.s32.totalorder %s72, %s74
      %p78 = scmp.eq.s32.totalorder %s22, 0
      %p79 = por %p77, %p78
      %p80 = scmp.ne.s32.totalorder %s72, %s74
      %p81 = scmp.eq.s32.totalorder %s27, 1
      %p82 = por %p80, %p81
      %p83 = scmp.ne.s32.totalorder %s74, %s75
      %p84 = scmp.eq.s32.totalorder %s27, 0
      %p85 = por %p83, %p84
      %p86 = scmp.ne.s32.totalorder %s74, %s75
      %p87 = scmp.eq.s32.totalorder %s28, 1
      %p88 = por %p86, %p87
      %p90 = scmp.ne.s32.totalorder %s75, %s89
      %p91 = scmp.eq.s32.totalorder %s28, 0
      %p92 = por %p90, %p91
      %s94 = sadd.s32 %s93, 1
      %p97 = scmp.eq.s32.totalorder %s22, 1
      %p98 = scmp.ne.s32.totalorder %s93, %s95
      %p99 = scmp.eq.s32.totalorder %s22, 0
      %p100 = por %p98, %p99
      %p101 = scmp.ne.s32.totalorder %s93, %s95
      %p102 = scmp.eq.s32.totalorder %s27, 1
      %p103 = por %p101, %p102
      %p104 = scmp.ne.s32.totalorder %s95, %s96
      %p105 = scmp.eq.s32.totalorder %s27, 0
      %p106 = por %p104, %p105
      %p107 = scmp.ne.s32.totalorder %s95, %s96
      %p108 = scmp.eq.s32.totalorder %s28, 1
      %p109 = por %p107, %p108
      %p111 = scmp.ne.s32.totalorder %s96, %s110
      %p112 = scmp.eq.s32.totalorder %s28, 0
      %p113 = por %p111, %p112
      %s114 = ssub.s32 %s22, %s29
      %p115 = scmp.eq.s32.totalorder %s114, 0
      %s117 = sadd.s32 %s116, 1
      %s118 = scalar_select %p115, %s116, %s117
      %p121 = pneg %p115
      %p122 = scmp.eq.s32.totalorder %s22, 1
      %p123 = por %p121, %p122
      %p124 = scmp.ne.s32.totalorder %s116, %s119
      %p125 = scmp.eq.s32.totalorder %s22, 0
      %p126 = por %p124, %p125
      %p127 = scmp.ne.s32.totalorder %s116, %s119
      %p128 = scmp.eq.s32.totalorder %s27, 1
      %p129 = por %p127, %p128
      %p130 = scmp.ne.s32.totalorder %s119, %s120
      %p131 = scmp.eq.s32.totalorder %s27, 0
      %p132 = por %p130, %p131
      %p133 = scmp.ne.s32.totalorder %s119, %s120
      %p134 = scmp.eq.s32.totalorder %s28, 1
      %p135 = por %p133, %p134
      %p137 = scmp.ne.s32.totalorder %s120, %s136
      %p138 = scmp.eq.s32.totalorder %s28, 0
      %p139 = por %p137, %p138
      %s141 = sadd.s32 %s140, 1
      %p144 = scmp.eq.s32.totalorder %s22, 1
      %p145 = scmp.ne.s32.totalorder %s140, %s142
      %p146 = scmp.eq.s32.totalorder %s22, 0
      %p147 = por %p145, %p146
      %p148 = scmp.ne.s32.totalorder %s140, %s142
      %p149 = scmp.eq.s32.totalorder %s27, 1
      %p150 = por %p148, %p149
      %p151 = scmp.ne.s32.totalorder %s142, %s143
      %p152 = scmp.eq.s32.totalorder %s27, 0
      %p153 = por %p151, %p152
      %p154 = scmp.ne.s32.totalorder %s142, %s143
      %p155 = scmp.eq.s32.totalorder %s28, 1
      %p156 = por %p154, %p155
      %p158 = scmp.ne.s32.totalorder %s143, %s157
      %p159 = scmp.eq.s32.totalorder %s28, 0
      %p160 = por %p158, %p159
      %s162 = sadd.s32 %s161, 1
      %p165 = scmp.eq.s32.totalorder %s22, 1
      %p166 = scmp.ne.s32.totalorder %s161, %s163
      %p167 = scmp.eq.s32.totalorder %s22, 0
      %p168 = por %p166, %p167
      %p169 = scmp.ne.s32.totalorder %s161, %s163
      %p170 = scmp.eq.s32.totalorder %s27, 1
      %p171 = por %p169, %p170
      %p172 = scmp.ne.s32.totalorder %s163, %s164
      %p173 = scmp.eq.s32.totalorder %s27, 0
      %p174 = por %p172, %p173
      %p175 = scmp.ne.s32.totalorder %s163, %s164
      %p176 = scmp.eq.s32.totalorder %s28, 1
      %p177 = por %p175, %p176
      %p179 = scmp.ne.s32.totalorder %s164, %s178
      %p180 = scmp.eq.s32.totalorder %s28, 0
      %p181 = por %p179, %p180
      %s183 = sadd.s32 %s182, 1
      %p186 = scmp.eq.s32.totalorder %s22, 1
      %p187 = scmp.ne.s32.totalorder %s182, %s184
      %p188 = scmp.eq.s32.totalorder %s22, 0
      %p189 = por %p187, %p188
      %p190 = scmp.ne.s32.totalorder %s182, %s184
      %p191 = scmp.eq.s32.totalorder %s27, 1
      %p192 = por %p190, %p191
      %p193 = scmp.ne.s32.totalorder %s184, %s185
      %p194 = scmp.eq.s32.totalorder %s27, 0
      %p195 = por %p193, %p194
      %p196 = scmp.ne.s32.totalorder %s184, %s185
      %p197 = scmp.eq.s32.totalorder %s28, 1
      %p198 = por %p196, %p197
      %p200 = scmp.ne.s32.totalorder %s185, %s199
      %p201 = scmp.eq.s32.totalorder %s28, 0
      %p202 = por %p200, %p201
      %s204 = sadd.s32 %s203, 1
      %p207 = scmp.eq.s32.totalorder %s22, 1
      %p208 = scmp.ne.s32.totalorder %s203, %s205
      %p209 = scmp.eq.s32.totalorder %s22, 0
      %p210 = por %p208, %p209
      %p211 = scmp.ne.s32.totalorder %s203, %s205
      %p212 = scmp.eq.s32.totalorder %s27, 1
      %p213 = por %p211, %p212
      %p214 = scmp.ne.s32.totalorder %s205, %s206
      %p215 = scmp.eq.s32.totalorder %s27, 0
      %p216 = por %p214, %p215
      %p217 = scmp.ne.s32.totalorder %s205, %s206
      %p218 = scmp.eq.s32.totalorder %s28, 1
      %p219 = por %p217, %p218
      %p221 = scmp.ne.s32.totalorder %s206, %s220
      %p222 = scmp.eq.s32.totalorder %s28, 0
      %p223 = por %p221, %p222
      %s224 = ssub.s32 %s22, %s29
      %p225 = scmp.eq.s32.totalorder %s224, 0
      %s227 = sadd.s32 %s226, 1
      %s228 = scalar_select %p225, %s226, %s227
      %p231 = pneg %p225
      %p232 = scmp.eq.s32.totalorder %s22, 1
      %p233 = por %p231, %p232
      %p234 = scmp.ne.s32.totalorder %s226, %s229
      %p235 = scmp.eq.s32.totalorder %s22, 0
      %p236 = por %p234, %p235
      %p237 = scmp.ne.s32.totalorder %s226, %s229
      %p238 = scmp.eq.s32.totalorder %s27, 1
      %p239 = por %p237, %p238
      %p240 = scmp.ne.s32.totalorder %s229, %s230
      %p241 = scmp.eq.s32.totalorder %s27, 0
      %p242 = por %p240, %p241
      %p243 = scmp.ne.s32.totalorder %s229, %s230
      %p244 = scmp.eq.s32.totalorder %s28, 1
      %p245 = por %p243, %p244
      %p247 = scmp.ne.s32.totalorder %s230, %s246
      %p248 = scmp.eq.s32.totalorder %s28, 0
      %p249 = por %p247, %p248
      %p250 = scmp.le.s32.totalorder 1, %s22
      %p251 = scmp.lt.s32.totalorder %s22, 3
      %p252 = pnand %p250, %p251
      %p253 = pneg %p252
      // Predicated region
      $region9: #{_lambda_.6} parent=5 // pred_check
        _
      $region10: #{_lambda_.6} parent=5 // pred_check_branch
        %255 = sbr.rel (%p252) target = $region12
      $region11: #{_lambda_.6} parent=5 // pred_region
        %s256 = ssub.s32 %s22, 1
        // Predicated region
        $region13: #{_lambda_.6} parent=11 // pred_check
          %p257 = pneg %p43
        $region14: #{_lambda_.6} parent=11 // pred_check_branch
          %259 = sbr.rel (%p257) target = $region16
        $region15: #{_lambda_.6} parent=11 // pred_region
          %s261 = ssub.s32 256, 256
          %262 = vsyncadd [#allocation3], %s261
          %s263 = sshll.u32 [#allocation2], 4
          %s264 = int_to_ptr.vmem [resolvable:$true] %s263
          %269 = dma.hbm_to_vmem [thread:$0]  %s0, 256, %s264, [#allocation3], 128, 128, 8
        $region16: #{_lambda_.6} parent=11 // pred_fallthru
          _
        // Predicated region
        $region17: #{_lambda_.6} parent=11 // pred_check
          %p270 = pneg %p64
        $region18: #{_lambda_.6} parent=11 // pred_check_branch
          %272 = sbr.rel (%p270) target = $region20
        $region19: #{_lambda_.6} parent=11 // pred_region
          %s274 = ssub.s32 1024, 1024
          %275 = vsyncadd [#allocation6], %s274
          %s276 = sshll.u32 [#allocation5], 4
          %s277 = int_to_ptr.vmem [resolvable:$true] %s276
          %282 = dma.hbm_to_vmem [thread:$0]  %s1, 1024, %s277, [#allocation6], 128, 128, 8
        $region20: #{_lambda_.6} parent=11 // pred_fallthru
          _
        // Predicated region
        $region21: #{_lambda_.6} parent=11 // pred_check
          %p283 = pneg %p85
        $region22: #{_lambda_.6} parent=11 // pred_check_branch
          %285 = sbr.rel (%p283) target = $region24
        $region23: #{_lambda_.6} parent=11 // pred_region
          %s287 = ssub.s32 1024, 1024
          %288 = vsyncadd [#allocation6], %s287
          %s289 = sshll.u32 [#allocation7], 4
          %s290 = int_to_ptr.vmem [resolvable:$true] %s289
          %295 = dma.hbm_to_vmem [thread:$0]  %s2, 1024, %s290, [#allocation6], 128, 128, 8
        $region24: #{_lambda_.6} parent=11 // pred_fallthru
          _
        // Predicated region
        $region25: #{_lambda_.6} parent=11 // pred_check
          %p296 = pneg %p106
        $region26: #{_lambda_.6} parent=11 // pred_check_branch
          %298 = sbr.rel (%p296) target = $region28
        $region27: #{_lambda_.6} parent=11 // pred_region
          %s300 = ssub.s32 1024, 1024
          %301 = vsyncadd [#allocation9], %s300
          %s302 = sshll.u32 [#allocation8], 4
          %s303 = int_to_ptr.vmem [resolvable:$true] %s302
          %308 = dma.hbm_to_vmem [thread:$0]  %s3, 1024, %s303, [#allocation9], 128, 128, 8
        $region28: #{_lambda_.6} parent=11 // pred_fallthru
          _
        // Predicated region
        $region29: #{_lambda_.6} parent=11 // pred_check
          %p309 = pneg %p153
        $region30: #{_lambda_.6} parent=11 // pred_check_branch
          %311 = sbr.rel (%p309) target = $region32
        $region31: #{_lambda_.6} parent=11 // pred_region
          %s313 = ssub.s32 256, 256
          %314 = vsyncadd [#allocation6], %s313
          %s315 = sshll.u32 [#allocation11], 4
          %s316 = int_to_ptr.vmem [resolvable:$true] %s315
          %321 = dma.hbm_to_vmem [thread:$0]  %s5, 256, %s316, [#allocation6], 128, 128, 8
        $region32: #{_lambda_.6} parent=11 // pred_fallthru
          _
        // Predicated region
        $region33: #{_lambda_.6} parent=11 // pred_check
          %p322 = pneg %p174
        $region34: #{_lambda_.6} parent=11 // pred_check_branch
          %324 = sbr.rel (%p322) target = $region36
        $region35: #{_lambda_.6} parent=11 // pred_region
          %s326 = ssub.s32 16, 16
          %327 = vsyncadd [#allocation9], %s326
          %s329 = sshll.u32 [#allocation12], 4
          %s330 = int_to_ptr.vmem [resolvable:$true] %s329
          %332 = dma.hbm_to_vmem [thread:$0]  %s6, 16, %s330, [#allocation9]
        $region36: #{_lambda_.6} parent=11 // pred_fallthru
          _
        // Predicated region
        $region37: #{_lambda_.6} parent=11 // pred_check
          %p333 = pneg %p195
        $region38: #{_lambda_.6} parent=11 // pred_check_branch
          %335 = sbr.rel (%p333) target = $region40
        $region39: #{_lambda_.6} parent=11 // pred_region
          %s337 = ssub.s32 256, 256
          %338 = vsyncadd [#allocation14], %s337
          %s339 = sshll.u32 [#allocation13], 4
          %s340 = int_to_ptr.vmem [resolvable:$true] %s339
          %345 = dma.hbm_to_vmem [thread:$0]  %s7, 256, %s340, [#allocation14], 128, 128, 8
        $region40: #{_lambda_.6} parent=11 // pred_fallthru
          _
        // Predicated region
        $region41: #{_lambda_.6} parent=11 // pred_check
          %p346 = pneg %p216
        $region42: #{_lambda_.6} parent=11 // pred_check_branch
          %348 = sbr.rel (%p346) target = $region44
        $region43: #{_lambda_.6} parent=11 // pred_region
          %s350 = ssub.s32 16, 16
          %351 = vsyncadd [#allocation14], %s350
          %s353 = sshll.u32 [#allocation15], 4
          %s354 = int_to_ptr.vmem [resolvable:$true] %s353
          %356 = dma.hbm_to_vmem [thread:$0]  %s8, 16, %s354, [#allocation14]
        $region44: #{_lambda_.6} parent=11 // pred_fallthru
          _
      $region12: #{_lambda_.6} parent=5 // pred_fallthru
        _
      %p357 = scmp.lt.s32.totalorder %s22, 2
      // Predicated region
      $region45: #{_lambda_.6} parent=5 // pred_check
        %p358 = pneg %p357
      $region46: #{_lambda_.6} parent=5 // pred_check_branch
        %360 = sbr.rel (%p358) target = $region48
      $region47: #{_lambda_.6} parent=5 // pred_region
        // Predicated region
        $region49: #{_lambda_.6} parent=47 // pred_check
          %p361 = pneg %p126
        $region50: #{_lambda_.6} parent=47 // pred_check_branch
          %363 = sbr.rel (%p361) target = $region52
        $region51: #{_lambda_.6} parent=47 // pred_region
          %s364 = sand.u32 %s22, 1
          %s365 = scalar_lea.sflag [#allocation3], %s364
          %s366 = sand.u32 %s116, 1
          %s367 = smul.addr %s366, 8
          %s368 = scalar_lea.vmem [#allocation10], %s367
          %s370 = ssub.s32 128, 128
          %371 = vsyncadd %s365, %s370
          %s372 = smul.addr %s22, 128
          %s373 = scalar_lea.hbm %s4, %s372
          %s375 = sshll.u32 %s368, 4
          %s376 = int_to_ptr.vmem [resolvable:$true] %s375
          %378 = dma.hbm_to_vmem [thread:$0]  %s373, 128, %s376, %s365
        $region52: #{_lambda_.6} parent=47 // pred_fallthru
          _
      $region48: #{_lambda_.6} parent=5 // pred_fallthru
        _
      %p379 = scmp.le.s32.totalorder 1, %s22
      %p380 = scmp.lt.s32.totalorder %s22, 3
      %p381 = pnand %p379, %p380
      %p382 = pneg %p381
      // Predicated region
      $region53: #{_lambda_.6} parent=5 // pred_check
        _
      $region54: #{_lambda_.6} parent=5 // pred_check_branch
        %384 = sbr.rel (%p381) target = $region56
      $region55: #{_lambda_.6} parent=5 // pred_region
        %s385 = ssub.s32 %s22, 1
        // Predicated region
        $region57: #{_lambda_.6} parent=55 // pred_check
          %p386 = pneg %p43
        $region58: #{_lambda_.6} parent=55 // pred_check_branch
          %388 = sbr.rel (%p386) target = $region60
        $region59: #{_lambda_.6} parent=55 // pred_region
          %389 = dma.done [#allocation3], 256
        $region60: #{_lambda_.6} parent=55 // pred_fallthru
          _
        // Predicated region
        $region61: #{_lambda_.6} parent=55 // pred_check
          %p390 = pneg %p64
        $region62: #{_lambda_.6} parent=55 // pred_check_branch
          %392 = sbr.rel (%p390) target = $region64
        $region63: #{_lambda_.6} parent=55 // pred_region
          %393 = dma.done [#allocation6], 1024
        $region64: #{_lambda_.6} parent=55 // pred_fallthru
          _
        // Predicated region
        $region65: #{_lambda_.6} parent=55 // pred_check
          %p394 = pneg %p85
        $region66: #{_lambda_.6} parent=55 // pred_check_branch
          %396 = sbr.rel (%p394) target = $region68
        $region67: #{_lambda_.6} parent=55 // pred_region
          %397 = dma.done [#allocation6], 1024
        $region68: #{_lambda_.6} parent=55 // pred_fallthru
          _
        // Predicated region
        $region69: #{_lambda_.6} parent=55 // pred_check
          %p398 = pneg %p106
        $region70: #{_lambda_.6} parent=55 // pred_check_branch
          %400 = sbr.rel (%p398) target = $region72
        $region71: #{_lambda_.6} parent=55 // pred_region
          %401 = dma.done [#allocation9], 1024
        $region72: #{_lambda_.6} parent=55 // pred_fallthru
          _
        %s402 = sand.u32 %s27, 1
        %s403 = scalar_lea.sflag [#allocation3], %s402
        %s404 = sand.u32 %s119, 1
        %s405 = smul.addr %s404, 8
        %s406 = scalar_lea.vmem [#allocation10], %s405
        // Predicated region
        $region73: #{_lambda_.6} parent=55 // pred_check
          %p407 = pneg %p132
        $region74: #{_lambda_.6} parent=55 // pred_check_branch
          %409 = sbr.rel (%p407) target = $region76
        $region75: #{_lambda_.6} parent=55 // pred_region
          %410 = dma.done %s403, 128
        $region76: #{_lambda_.6} parent=55 // pred_fallthru
          _
        // Predicated region
        $region77: #{_lambda_.6} parent=55 // pred_check
          %p411 = pneg %p153
        $region78: #{_lambda_.6} parent=55 // pred_check_branch
          %413 = sbr.rel (%p411) target = $region80
        $region79: #{_lambda_.6} parent=55 // pred_region
          %414 = dma.done [#allocation6], 256
        $region80: #{_lambda_.6} parent=55 // pred_fallthru
          _
        // Predicated region
        $region81: #{_lambda_.6} parent=55 // pred_check
          %p415 = pneg %p174
        $region82: #{_lambda_.6} parent=55 // pred_check_branch
          %417 = sbr.rel (%p415) target = $region84
        $region83: #{_lambda_.6} parent=55 // pred_region
          %418 = dma.done [#allocation9], 16
        $region84: #{_lambda_.6} parent=55 // pred_fallthru
          _
        // Predicated region
        $region85: #{_lambda_.6} parent=55 // pred_check
          %p419 = pneg %p195
        $region86: #{_lambda_.6} parent=55 // pred_check_branch
          %421 = sbr.rel (%p419) target = $region88
        $region87: #{_lambda_.6} parent=55 // pred_region
          %422 = dma.done [#allocation14], 256
        $region88: #{_lambda_.6} parent=55 // pred_fallthru
          _
        // Predicated region
        $region89: #{_lambda_.6} parent=55 // pred_check
          %p423 = pneg %p216
        $region90: #{_lambda_.6} parent=55 // pred_check_branch
          %425 = sbr.rel (%p423) target = $region92
        $region91: #{_lambda_.6} parent=55 // pred_region
          %426 = dma.done [#allocation14], 16
        $region92: #{_lambda_.6} parent=55 // pred_fallthru
          _
        %p427 = pneg %p43
        %p428 = pneg %p40
        %p429 = pneg %p64
        %p430 = pneg %p61
        %p431 = pneg %p85
        %p432 = pneg %p82
        %p433 = pneg %p106
        %p434 = pneg %p103
        %s435 = sand.u32 %s27, 1
        %s436 = scalar_lea.sflag [#allocation3], %s435
        %s437 = sand.u32 %s119, 1
        %s438 = smul.addr %s437, 8
        %s439 = scalar_lea.vmem [#allocation10], %s438
        %p440 = pneg %p132
        %p441 = pneg %p129
        %p442 = pneg %p153
        %p443 = pneg %p150
        %p444 = pneg %p174
        %p445 = pneg %p171
        %p446 = pneg %p195
        %p447 = pneg %p192
        %p448 = pneg %p216
        %p449 = pneg %p213
        %p450 = pneg %p242
        %p451 = pneg %p239
        %s452 = sand.u32 %s229, 1
        %s453 = scalar_lea.sflag [#allocation4], %s452
        %s454 = sand.u32 %s229, 1
        %s455 = smul.addr %s454, 8
        %s456 = scalar_lea.vmem [#allocation16], %s455
        %v457 = vld [vmem:[#allocation8] sm:$0xff]
        %v458 = vld [vmem:[#allocation8 + $0x8] sm:$0xff]
        %v459 = vld [vmem:[#allocation8 + $0x10] sm:$0xff]
        %v460 = vld [vmem:[#allocation8 + $0x18] sm:$0xff]
        %v461 = vld [vmem:[#allocation8 + $0x20] sm:$0xff]
        %v462 = vld [vmem:[#allocation8 + $0x28] sm:$0xff]
        %v463 = vld [vmem:[#allocation8 + $0x30] sm:$0xff]
        %v464 = vld [vmem:[#allocation8 + $0x38] sm:$0xff]
        %v465 = vld [vmem:[%s406] sm:$0x1]
        %v466 = vlaneseq
        %v467 = vshrl.u32 %v466, 7
        %v468 = vsub.s32 0, %v467
        %v469 = vrot.slane %v465, %v468
        %v470 = vsub.f32 %v457, %v469
        %v471 = vsub.f32 %v458, %v469
        %v472 = vsub.f32 %v459, %v469
        %v473 = vsub.f32 %v460, %v469
        %v474 = vsub.f32 %v461, %v469
        %v475 = vsub.f32 %v462, %v469
        %v476 = vsub.f32 %v463, %v469
        %v477 = vsub.f32 %v464, %v469
        %v478 = vmax.f32 %v470, 0.0
        %v479 = vmax.f32 %v471, 0.0
        %v480 = vmax.f32 %v472, 0.0
        %v481 = vmax.f32 %v473, 0.0
        %v482 = vmax.f32 %v474, 0.0
        %v483 = vmax.f32 %v475, 0.0
        %v484 = vmax.f32 %v476, 0.0
        %v485 = vmax.f32 %v477, 0.0
        %v486 = vld [vmem:[%s406 + $0x1] sm:$0x1]
        %v487 = vlaneseq
        %v488 = vshrl.u32 %v487, 7
        %v489 = vsub.s32 0, %v488
        %v490 = vrot.slane %v486, %v489
        %v491 = vsub.f32 %v457, %v490
        %v492 = vsub.f32 %v458, %v490
        %v493 = vsub.f32 %v459, %v490
        %v494 = vsub.f32 %v460, %v490
        %v495 = vsub.f32 %v461, %v490
        %v496 = vsub.f32 %v462, %v490
        %v497 = vsub.f32 %v463, %v490
        %v498 = vsub.f32 %v464, %v490
        %v499 = vmax.f32 %v491, 0.0
        %v500 = vmax.f32 %v492, 0.0
        %v501 = vmax.f32 %v493, 0.0
        %v502 = vmax.f32 %v494, 0.0
        %v503 = vmax.f32 %v495, 0.0
        %v504 = vmax.f32 %v496, 0.0
        %v505 = vmax.f32 %v497, 0.0
        %v506 = vmax.f32 %v498, 0.0
        %v507 = vld [vmem:[%s406 + $0x2] sm:$0x1]
        %v508 = vlaneseq
        %v509 = vshrl.u32 %v508, 7
        %v510 = vsub.s32 0, %v509
        %v511 = vrot.slane %v507, %v510
        %v512 = vsub.f32 %v457, %v511
        %v513 = vsub.f32 %v458, %v511
        %v514 = vsub.f32 %v459, %v511
        %v515 = vsub.f32 %v460, %v511
        %v516 = vsub.f32 %v461, %v511
        %v517 = vsub.f32 %v462, %v511
        %v518 = vsub.f32 %v463, %v511
        %v519 = vsub.f32 %v464, %v511
        %v520 = vmax.f32 %v512, 0.0
        %v521 = vmax.f32 %v513, 0.0
        %v522 = vmax.f32 %v514, 0.0
        %v523 = vmax.f32 %v515, 0.0
        %v524 = vmax.f32 %v516, 0.0
        %v525 = vmax.f32 %v517, 0.0
        %v526 = vmax.f32 %v518, 0.0
        %v527 = vmax.f32 %v519, 0.0
        %v528 = vld [vmem:[%s406 + $0x3] sm:$0x1]
        %v529 = vlaneseq
        %v530 = vshrl.u32 %v529, 7
        %v531 = vsub.s32 0, %v530
        %v532 = vrot.slane %v528, %v531
        %v533 = vsub.f32 %v457, %v532
        %v534 = vsub.f32 %v458, %v532
        %v535 = vsub.f32 %v459, %v532
        %v536 = vsub.f32 %v460, %v532
        %v537 = vsub.f32 %v461, %v532
        %v538 = vsub.f32 %v462, %v532
        %v539 = vsub.f32 %v463, %v532
        %v540 = vsub.f32 %v464, %v532
        %v541 = vmax.f32 %v533, 0.0
        %v542 = vmax.f32 %v534, 0.0
        %v543 = vmax.f32 %v535, 0.0
        %v544 = vmax.f32 %v536, 0.0
        %v545 = vmax.f32 %v537, 0.0
        %v546 = vmax.f32 %v538, 0.0
        %v547 = vmax.f32 %v539, 0.0
        %v548 = vmax.f32 %v540, 0.0
        %v549 = vld [vmem:[%s406 + $0x4] sm:$0x1]
        %v550 = vlaneseq
        %v551 = vshrl.u32 %v550, 7
        %v552 = vsub.s32 0, %v551
        %v553 = vrot.slane %v549, %v552
        %v554 = vsub.f32 %v457, %v553
        %v555 = vsub.f32 %v458, %v553
        %v556 = vsub.f32 %v459, %v553
        %v557 = vsub.f32 %v460, %v553
        %v558 = vsub.f32 %v461, %v553
        %v559 = vsub.f32 %v462, %v553
        %v560 = vsub.f32 %v463, %v553
        %v561 = vsub.f32 %v464, %v553
        %v562 = vmax.f32 %v554, 0.0
        %v563 = vmax.f32 %v555, 0.0
        %v564 = vmax.f32 %v556, 0.0
        %v565 = vmax.f32 %v557, 0.0
        %v566 = vmax.f32 %v558, 0.0
        %v567 = vmax.f32 %v559, 0.0
        %v568 = vmax.f32 %v560, 0.0
        %v569 = vmax.f32 %v561, 0.0
        %v570 = vld [vmem:[%s406 + $0x5] sm:$0x1]
        %v571 = vlaneseq
        %v572 = vshrl.u32 %v571, 7
        %v573 = vsub.s32 0, %v572
        %v574 = vrot.slane %v570, %v573
        %v575 = vsub.f32 %v457, %v574
        %v576 = vsub.f32 %v458, %v574
        %v577 = vsub.f32 %v459, %v574
        %v578 = vsub.f32 %v460, %v574
        %v579 = vsub.f32 %v461, %v574
        %v580 = vsub.f32 %v462, %v574
        %v581 = vsub.f32 %v463, %v574
        %v582 = vsub.f32 %v464, %v574
        %v583 = vmax.f32 %v575, 0.0
        %v584 = vmax.f32 %v576, 0.0
        %v585 = vmax.f32 %v577, 0.0
        %v586 = vmax.f32 %v578, 0.0
        %v587 = vmax.f32 %v579, 0.0
        %v588 = vmax.f32 %v580, 0.0
        %v589 = vmax.f32 %v581, 0.0
        %v590 = vmax.f32 %v582, 0.0
        %v591 = vld [vmem:[%s406 + $0x6] sm:$0x1]
        %v592 = vlaneseq
        %v593 = vshrl.u32 %v592, 7
        %v594 = vsub.s32 0, %v593
        %v595 = vrot.slane %v591, %v594
        %v596 = vsub.f32 %v457, %v595
        %v597 = vsub.f32 %v458, %v595
        %v598 = vsub.f32 %v459, %v595
        %v599 = vsub.f32 %v460, %v595
        %v600 = vsub.f32 %v461, %v595
        %v601 = vsub.f32 %v462, %v595
        %v602 = vsub.f32 %v463, %v595
        %v603 = vsub.f32 %v464, %v595
        %v604 = vmax.f32 %v596, 0.0
        %v605 = vmax.f32 %v597, 0.0
        %v606 = vmax.f32 %v598, 0.0
        %v607 = vmax.f32 %v599, 0.0
        %v608 = vmax.f32 %v600, 0.0
        %v609 = vmax.f32 %v601, 0.0
        %v610 = vmax.f32 %v602, 0.0
        %v611 = vmax.f32 %v603, 0.0
        %v612 = vld [vmem:[%s406 + $0x7] sm:$0x1]
        %v613 = vlaneseq
        %v614 = vshrl.u32 %v613, 7
        %v615 = vsub.s32 0, %v614
        %v616 = vrot.slane %v612, %v615
        %v617 = vsub.f32 %v457, %v616
        %v618 = vsub.f32 %v458, %v616
        %v619 = vsub.f32 %v459, %v616
        %v620 = vsub.f32 %v460, %v616
        %v621 = vsub.f32 %v461, %v616
        %v622 = vsub.f32 %v462, %v616
        %v623 = vsub.f32 %v463, %v616
        %v624 = vsub.f32 %v464, %v616
        %v625 = vmax.f32 %v617, 0.0
        %v626 = vmax.f32 %v618, 0.0
        %v627 = vmax.f32 %v619, 0.0
        %v628 = vmax.f32 %v620, 0.0
        %v629 = vmax.f32 %v621, 0.0
        %v630 = vmax.f32 %v622, 0.0
        %v631 = vmax.f32 %v623, 0.0
        %v632 = vmax.f32 %v624, 0.0
        %v633 = vld [vmem:[#allocation11] sm:$0xff]
        %v634 = vld [vmem:[#allocation11 + $0x8] sm:$0xff]
        %v635 = vld [vmem:[#allocation12] sm:$0x1]
        %v637 = vlaneseq
        %v638 = vshrl.u32 %v637, 7
        %v639 = vsub.s32 0, %v638
        %v640 = vrot.slane %v635, %v639
        %vm642 = vcmask 130048
        %v644 = vsel %vm642, %v478, 0
        %v647 = vsel %vm642, %v479, 0
        %v650 = vsel %vm642, %v480, 0
        %v653 = vsel %vm642, %v481, 0
        %v656 = vsel %vm642, %v482, 0
        %v659 = vsel %vm642, %v483, 0
        %v662 = vsel %vm642, %v484, 0
        %v665 = vsel %vm642, %v485, 0
        %v668 = vsel %vm642, %v499, 0
        %v671 = vsel %vm642, %v500, 0
        %v674 = vsel %vm642, %v501, 0
        %v677 = vsel %vm642, %v502, 0
        %v680 = vsel %vm642, %v503, 0
        %v683 = vsel %vm642, %v504, 0
        %v686 = vsel %vm642, %v505, 0
        %v689 = vsel %vm642, %v506, 0
        %v692 = vsel %vm642, %v520, 0
        %v695 = vsel %vm642, %v521, 0
        %v698 = vsel %vm642, %v522, 0
        %v701 = vsel %vm642, %v523, 0
        %v704 = vsel %vm642, %v524, 0
        %v707 = vsel %vm642, %v525, 0
        %v710 = vsel %vm642, %v526, 0
        %v713 = vsel %vm642, %v527, 0
        %v716 = vsel %vm642, %v541, 0
        %v719 = vsel %vm642, %v542, 0
        %v722 = vsel %vm642, %v543, 0
        %v725 = vsel %vm642, %v544, 0
        %v728 = vsel %vm642, %v545, 0
        %v731 = vsel %vm642, %v546, 0
        %v734 = vsel %vm642, %v547, 0
        %v737 = vsel %vm642, %v548, 0
        %v740 = vsel %vm642, %v562, 0
        %v743 = vsel %vm642, %v563, 0
        %v746 = vsel %vm642, %v564, 0
        %v749 = vsel %vm642, %v565, 0
        %v752 = vsel %vm642, %v566, 0
        %v755 = vsel %vm642, %v567, 0
        %v758 = vsel %vm642, %v568, 0
        %v761 = vsel %vm642, %v569, 0
        %v764 = vsel %vm642, %v583, 0
        %v767 = vsel %vm642, %v584, 0
        %v770 = vsel %vm642, %v585, 0
        %v773 = vsel %vm642, %v586, 0
        %v776 = vsel %vm642, %v587, 0
        %v779 = vsel %vm642, %v588, 0
        %v782 = vsel %vm642, %v589, 0
        %v785 = vsel %vm642, %v590, 0
        %v788 = vsel %vm642, %v604, 0
        %v791 = vsel %vm642, %v605, 0
        %v794 = vsel %vm642, %v606, 0
        %v797 = vsel %vm642, %v607, 0
        %v800 = vsel %vm642, %v608, 0
        %v803 = vsel %vm642, %v609, 0
        %v806 = vsel %vm642, %v610, 0
        %v809 = vsel %vm642, %v611, 0
        %v812 = vsel %vm642, %v625, 0
        %v815 = vsel %vm642, %v626, 0
        %v818 = vsel %vm642, %v627, 0
        %v821 = vsel %vm642, %v628, 0
        %v824 = vsel %vm642, %v629, 0
        %v827 = vsel %vm642, %v630, 0
        %v830 = vsel %vm642, %v631, 0
        %v833 = vsel %vm642, %v632, 0
        %835 = vmatprep.subr.mxu0 0.0
        %836 = vmatpush1.msra.mxu0 %v633
        %837 = vmatprep.subr.mxu0 0.0
        %838 = vmatpush1.msra.mxu0 %v634
        %839 = vmatprep.subr.mxu0 0.0
        %840 = vmatpush1.msra.mxu0 0.0
        %841 = vmatprep.subr.mxu0 0.0
        %842 = vmatpush1.msra.mxu0 0.0
        %843 = vmatprep.subr.mxu0 0.0
        %844 = vmatpush1.msra.mxu0 0.0
        %845 = vmatprep.subr.mxu0 0.0
        %846 = vmatpush1.msra.mxu0 0.0
        %847 = vmatprep.subr.mxu0 0.0
        %848 = vmatpush1.msra.mxu0 0.0
        %849 = vmatprep.subr.mxu0 0.0
        %850 = vmatpush1.msra.mxu0 0.0
        %851 = vmatprep.subr.mxu0 0.0
        %852 = vmatpush1.msra.mxu0 0.0
        %853 = vmatprep.subr.mxu0 0.0
        %854 = vmatpush1.msra.mxu0 0.0
        %855 = vmatprep.subr.mxu0 0.0
        %856 = vmatpush1.msra.mxu0 0.0
        %857 = vmatprep.subr.mxu0 0.0
        %858 = vmatpush1.msra.mxu0 0.0
        %859 = vmatprep.subr.mxu0 0.0
        %860 = vmatpush1.msra.mxu0 0.0
        %861 = vmatprep.subr.mxu0 0.0
        %862 = vmatpush1.msra.mxu0 0.0
        %863 = vmatprep.subr.mxu0 0.0
        %864 = vmatpush1.msra.mxu0 0.0
        %865 = vmatprep.subr.mxu0 0.0
        %866 = vmatpush1.msra.mxu0 0.0
        %867 = vmatprep.subr.mxu0 0.0
        %868 = vmatpush1.msra.mxu0 0.0
        %869 = vmatprep.subr.mxu0 0.0
        %870 = vmatpush1.msra.mxu0 0.0
        %871 = vmatprep.subr.mxu0 0.0
        %872 = vmatpush1.msra.mxu0 0.0
        %873 = vmatprep.subr.mxu0 0.0
        %874 = vmatpush1.msra.mxu0 0.0
        %875 = vmatprep.subr.mxu0 0.0
        %876 = vmatpush1.msra.mxu0 0.0
        %877 = vmatprep.subr.mxu0 0.0
        %878 = vmatpush1.msra.mxu0 0.0
        %879 = vmatprep.subr.mxu0 0.0
        %880 = vmatpush1.msra.mxu0 0.0
        %881 = vmatprep.subr.mxu0 0.0
        %882 = vmatpush1.msra.mxu0 0.0
        %883 = vmatprep.subr.mxu0 0.0
        %884 = vmatpush1.msra.mxu0 0.0
        %885 = vmatprep.subr.mxu0 0.0
        %886 = vmatpush1.msra.mxu0 0.0
        %887 = vmatprep.subr.mxu0 0.0
        %888 = vmatpush1.msra.mxu0 0.0
        %889 = vmatprep.subr.mxu0 0.0
        %890 = vmatpush1.msra.mxu0 0.0
        %891 = vmatprep.subr.mxu0 0.0
        %892 = vmatpush1.msra.mxu0 0.0
        %893 = vmatprep.subr.mxu0 0.0
        %894 = vmatpush1.msra.mxu0 0.0
        %895 = vmatprep.subr.mxu0 0.0
        %896 = vmatpush1.msra.mxu0 0.0
        %897 = vmatprep.subr.mxu0 0.0
        %898 = vmatpush1.msra.mxu0 0.0
        %899 = vmatprep.mubr.f32.mxu0 0.0
        %900 = vmatmul.mubr.f32.gmra.mrb[0].mxu0 %v644
        %v901 = vpop.f32.mrb[0].mxu0
        %v902 = vadd.f32 %v640, %v901
        %v903 = vpop.f32.mrb[0].mxu0
        %904 = vmatprep.mubr.f32.mxu0 0.0
        %905 = vmatmul.mubr.f32.gmra.mrb[0].mxu0 %v647
        %v906 = vpop.f32.mrb[0].mxu0
        %v907 = vadd.f32 %v640, %v906
        %v908 = vpop.f32.mrb[0].mxu0
        %909 = vmatprep.mubr.f32.mxu0 0.0
        %910 = vmatmul.mubr.f32.gmra.mrb[0].mxu0 %v650
        %v911 = vpop.f32.mrb[0].mxu0
        %v912 = vadd.f32 %v640, %v911
        %v913 = vpop.f32.mrb[0].mxu0
        %914 = vmatprep.mubr.f32.mxu0 0.0
        %915 = vmatmul.mubr.f32.gmra.mrb[0].mxu0 %v653
        %v916 = vpop.f32.mrb[0].mxu0
        %v917 = vadd.f32 %v640, %v916
        %v918 = vpop.f32.mrb[0].mxu0
        %919 = vmatprep.mubr.f32.mxu0 0.0
        %920 = vmatmul.mubr.f32.gmra.mrb[0].mxu0 %v656
        %v921 = vpop.f32.mrb[0].mxu0
        %v922 = vadd.f32 %v640, %v921
        %v923 = vpop.f32.mrb[0].mxu0
        %924 = vmatprep.mubr.f32.mxu0 0.0
        %925 = vmatmul.mubr.f32.gmra.mrb[0].mxu0 %v659
        %v926 = vpop.f32.mrb[0].mxu0
        %v927 = vadd.f32 %v640, %v926
        %v928 = vpop.f32.mrb[0].mxu0
        %929 = vmatprep.mubr.f32.mxu0 0.0
        %930 = vmatmul.mubr.f32.gmra.mrb[0].mxu0 %v662
        %v931 = vpop.f32.mrb[0].mxu0
        %v932 = vadd.f32 %v640, %v931
        %v933 = vpop.f32.mrb[0].mxu0
        %934 = vmatprep.mubr.f32.mxu0 0.0
        %935 = vmatmul.mubr.f32.gmra.mrb[0].mxu0 %v665
        %v936 = vpop.f32.mrb[0].mxu0
        %v937 = vadd.f32 %v640, %v936
        %v938 = vpop.f32.mrb[0].mxu0
        %939 = vmatprep.mubr.f32.mxu0 0.0
        %940 = vmatmul.mubr.f32.gmra.mrb[0].mxu0 %v668
        %v941 = vpop.f32.mrb[0].mxu0
        %v942 = vadd.f32 %v640, %v941
        %v943 = vpop.f32.mrb[0].mxu0
        %944 = vmatprep.mubr.f32.mxu0 0.0
        %945 = vmatmul.mubr.f32.gmra.mrb[0].mxu0 %v671
        %v946 = vpop.f32.mrb[0].mxu0
        %v947 = vadd.f32 %v640, %v946
        %v948 = vpop.f32.mrb[0].mxu0
        %949 = vmatprep.mubr.f32.mxu0 0.0
        %950 = vmatmul.mubr.f32.gmra.mrb[0].mxu0 %v674
        %v951 = vpop.f32.mrb[0].mxu0
        %v952 = vadd.f32 %v640, %v951
        %v953 = vpop.f32.mrb[0].mxu0
        %954 = vmatprep.mubr.f32.mxu0 0.0
        %955 = vmatmul.mubr.f32.gmra.mrb[0].mxu0 %v677
        %v956 = vpop.f32.mrb[0].mxu0
        %v957 = vadd.f32 %v640, %v956
        %v958 = vpop.f32.mrb[0].mxu0
        %959 = vmatprep.mubr.f32.mxu0 0.0
        %960 = vmatmul.mubr.f32.gmra.mrb[0].mxu0 %v680
        %v961 = vpop.f32.mrb[0].mxu0
        %v962 = vadd.f32 %v640, %v961
        %v963 = vpop.f32.mrb[0].mxu0
        %964 = vmatprep.mubr.f32.mxu0 0.0
        %965 = vmatmul.mubr.f32.gmra.mrb[0].mxu0 %v683
        %v966 = vpop.f32.mrb[0].mxu0
        %v967 = vadd.f32 %v640, %v966
        %v968 = vpop.f32.mrb[0].mxu0
        %969 = vmatprep.mubr.f32.mxu0 0.0
        %970 = vmatmul.mubr.f32.gmra.mrb[0].mxu0 %v686
        %v971 = vpop.f32.mrb[0].mxu0
        %v972 = vadd.f32 %v640, %v971
        %v973 = vpop.f32.mrb[0].mxu0
        %974 = vmatprep.mubr.f32.mxu0 0.0
        %975 = vmatmul.mubr.f32.gmra.mrb[0].mxu0 %v689
        %v976 = vpop.f32.mrb[0].mxu0
        %v977 = vadd.f32 %v640, %v976
        %v978 = vpop.f32.mrb[0].mxu0
        %979 = vmatprep.mubr.f32.mxu0 0.0
        %980 = vmatmul.mubr.f32.gmra.mrb[0].mxu0 %v692
        %v981 = vpop.f32.mrb[0].mxu0
        %v982 = vadd.f32 %v640, %v981
        %v983 = vpop.f32.mrb[0].mxu0
        %984 = vmatprep.mubr.f32.mxu0 0.0
        %985 = vmatmul.mubr.f32.gmra.mrb[0].mxu0 %v695
        %v986 = vpop.f32.mrb[0].mxu0
        %v987 = vadd.f32 %v640, %v986
        %v988 = vpop.f32.mrb[0].mxu0
        %989 = vmatprep.mubr.f32.mxu0 0.0
        %990 = vmatmul.mubr.f32.gmra.mrb[0].mxu0 %v698
        %v991 = vpop.f32.mrb[0].mxu0
        %v992 = vadd.f32 %v640, %v991
        %v993 = vpop.f32.mrb[0].mxu0
        %994 = vmatprep.mubr.f32.mxu0 0.0
        %995 = vmatmul.mubr.f32.gmra.mrb[0].mxu0 %v701
        %v996 = vpop.f32.mrb[0].mxu0
        %v997 = vadd.f32 %v640, %v996
        %v998 = vpop.f32.mrb[0].mxu0
        %999 = vmatprep.mubr.f32.mxu0 0.0
        %1000 = vmatmul.mubr.f32.gmra.mrb[0].mxu0 %v704
        %v1001 = vpop.f32.mrb[0].mxu0
        %v1002 = vadd.f32 %v640, %v1001
        %v1003 = vpop.f32.mrb[0].mxu0
        %1004 = vmatprep.mubr.f32.mxu0 0.0
        %1005 = vmatmul.mubr.f32.gmra.mrb[0].mxu0 %v707
        %v1006 = vpop.f32.mrb[0].mxu0
        %v1007 = vadd.f32 %v640, %v1006
        %v1008 = vpop.f32.mrb[0].mxu0
        %1009 = vmatprep.mubr.f32.mxu0 0.0
        %1010 = vmatmul.mubr.f32.gmra.mrb[0].mxu0 %v710
        %v1011 = vpop.f32.mrb[0].mxu0
        %v1012 = vadd.f32 %v640, %v1011
        %v1013 = vpop.f32.mrb[0].mxu0
        %1014 = vmatprep.mubr.f32.mxu0 0.0
        %1015 = vmatmul.mubr.f32.gmra.mrb[0].mxu0 %v713
        %v1016 = vpop.f32.mrb[0].mxu0
        %v1017 = vadd.f32 %v640, %v1016
        %v1018 = vpop.f32.mrb[0].mxu0
        %1019 = vmatprep.mubr.f32.mxu0 0.0
        %1020 = vmatmul.mubr.f32.gmra.mrb[0].mxu0 %v716
        %v1021 = vpop.f32.mrb[0].mxu0
        %v1022 = vadd.f32 %v640, %v1021
        %v1023 = vpop.f32.mrb[0].mxu0
        %1024 = vmatprep.mubr.f32.mxu0 0.0
        %1025 = vmatmul.mubr.f32.gmra.mrb[0].mxu0 %v719
        %v1026 = vpop.f32.mrb[0].mxu0
        %v1027 = vadd.f32 %v640, %v1026
        %v1028 = vpop.f32.mrb[0].mxu0
        %1029 = vmatprep.mubr.f32.mxu0 0.0
        %1030 = vmatmul.mubr.f32.gmra.mrb[0].mxu0 %v722
        %v1031 = vpop.f32.mrb[0].mxu0
        %v1032 = vadd.f32 %v640, %v1031
        %v1033 = vpop.f32.mrb[0].mxu0
        %1034 = vmatprep.mubr.f32.mxu0 0.0
        %1035 = vmatmul.mubr.f32.gmra.mrb[0].mxu0 %v725
        %v1036 = vpop.f32.mrb[0].mxu0
        %v1037 = vadd.f32 %v640, %v1036
        %v1038 = vpop.f32.mrb[0].mxu0
        %1039 = vmatprep.mubr.f32.mxu0 0.0
        %1040 = vmatmul.mubr.f32.gmra.mrb[0].mxu0 %v728
        %v1041 = vpop.f32.mrb[0].mxu0
        %v1042 = vadd.f32 %v640, %v1041
        %v1043 = vpop.f32.mrb[0].mxu0
        %1044 = vmatprep.mubr.f32.mxu0 0.0
        %1045 = vmatmul.mubr.f32.gmra.mrb[0].mxu0 %v731
        %v1046 = vpop.f32.mrb[0].mxu0
        %v1047 = vadd.f32 %v640, %v1046
        %v1048 = vpop.f32.mrb[0].mxu0
        %1049 = vmatprep.mubr.f32.mxu0 0.0
        %1050 = vmatmul.mubr.f32.gmra.mrb[0].mxu0 %v734
        %v1051 = vpop.f32.mrb[0].mxu0
        %v1052 = vadd.f32 %v640, %v1051
        %v1053 = vpop.f32.mrb[0].mxu0
        %1054 = vmatprep.mubr.f32.mxu0 0.0
        %1055 = vmatmul.mubr.f32.gmra.mrb[0].mxu0 %v737
        %v1056 = vpop.f32.mrb[0].mxu0
        %v1057 = vadd.f32 %v640, %v1056
        %v1058 = vpop.f32.mrb[0].mxu0
        %1059 = vmatprep.mubr.f32.mxu0 0.0
        %1060 = vmatmul.mubr.f32.gmra.mrb[0].mxu0 %v740
        %v1061 = vpop.f32.mrb[0].mxu0
        %v1062 = vadd.f32 %v640, %v1061
        %v1063 = vpop.f32.mrb[0].mxu0
        %1064 = vmatprep.mubr.f32.mxu0 0.0
        %1065 = vmatmul.mubr.f32.gmra.mrb[0].mxu0 %v743
        %v1066 = vpop.f32.mrb[0].mxu0
        %v1067 = vadd.f32 %v640, %v1066
        %v1068 = vpop.f32.mrb[0].mxu0
        %1069 = vmatprep.mubr.f32.mxu0 0.0
        %1070 = vmatmul.mubr.f32.gmra.mrb[0].mxu0 %v746
        %v1071 = vpop.f32.mrb[0].mxu0
        %v1072 = vadd.f32 %v640, %v1071
        %v1073 = vpop.f32.mrb[0].mxu0
        %1074 = vmatprep.mubr.f32.mxu0 0.0
        %1075 = vmatmul.mubr.f32.gmra.mrb[0].mxu0 %v749
        %v1076 = vpop.f32.mrb[0].mxu0
        %v1077 = vadd.f32 %v640, %v1076
        %v1078 = vpop.f32.mrb[0].mxu0
        %1079 = vmatprep.mubr.f32.mxu0 0.0
        %1080 = vmatmul.mubr.f32.gmra.mrb[0].mxu0 %v752
        %v1081 = vpop.f32.mrb[0].mxu0
        %v1082 = vadd.f32 %v640, %v1081
        %v1083 = vpop.f32.mrb[0].mxu0
        %1084 = vmatprep.mubr.f32.mxu0 0.0
        %1085 = vmatmul.mubr.f32.gmra.mrb[0].mxu0 %v755
        %v1086 = vpop.f32.mrb[0].mxu0
        %v1087 = vadd.f32 %v640, %v1086
        %v1088 = vpop.f32.mrb[0].mxu0
        %1089 = vmatprep.mubr.f32.mxu0 0.0
        %1090 = vmatmul.mubr.f32.gmra.mrb[0].mxu0 %v758
        %v1091 = vpop.f32.mrb[0].mxu0
        %v1092 = vadd.f32 %v640, %v1091
        %v1093 = vpop.f32.mrb[0].mxu0
        %1094 = vmatprep.mubr.f32.mxu0 0.0
        %1095 = vmatmul.mubr.f32.gmra.mrb[0].mxu0 %v761
        %v1096 = vpop.f32.mrb[0].mxu0
        %v1097 = vadd.f32 %v640, %v1096
        %v1098 = vpop.f32.mrb[0].mxu0
        %1099 = vmatprep.mubr.f32.mxu0 0.0
        %1100 = vmatmul.mubr.f32.gmra.mrb[0].mxu0 %v764
        %v1101 = vpop.f32.mrb[0].mxu0
        %v1102 = vadd.f32 %v640, %v1101
        %v1103 = vpop.f32.mrb[0].mxu0
        %1104 = vmatprep.mubr.f32.mxu0 0.0
        %1105 = vmatmul.mubr.f32.gmra.mrb[0].mxu0 %v767
        %v1106 = vpop.f32.mrb[0].mxu0
        %v1107 = vadd.f32 %v640, %v1106
        %v1108 = vpop.f32.mrb[0].mxu0
        %1109 = vmatprep.mubr.f32.mxu0 0.0
        %1110 = vmatmul.mubr.f32.gmra.mrb[0].mxu0 %v770
        %v1111 = vpop.f32.mrb[0].mxu0
        %v1112 = vadd.f32 %v640, %v1111
        %v1113 = vpop.f32.mrb[0].mxu0
        %1114 = vmatprep.mubr.f32.mxu0 0.0
        %1115 = vmatmul.mubr.f32.gmra.mrb[0].mxu0 %v773
        %v1116 = vpop.f32.mrb[0].mxu0
        %v1117 = vadd.f32 %v640, %v1116
        %v1118 = vpop.f32.mrb[0].mxu0
        %1119 = vmatprep.mubr.f32.mxu0 0.0
        %1120 = vmatmul.mubr.f32.gmra.mrb[0].mxu0 %v776
        %v1121 = vpop.f32.mrb[0].mxu0
        %v1122 = vadd.f32 %v640, %v1121
        %v1123 = vpop.f32.mrb[0].mxu0
        %1124 = vmatprep.mubr.f32.mxu0 0.0
        %1125 = vmatmul.mubr.f32.gmra.mrb[0].mxu0 %v779
        %v1126 = vpop.f32.mrb[0].mxu0
        %v1127 = vadd.f32 %v640, %v1126
        %v1128 = vpop.f32.mrb[0].mxu0
        %1129 = vmatprep.mubr.f32.mxu0 0.0
        %1130 = vmatmul.mubr.f32.gmra.mrb[0].mxu0 %v782
        %v1131 = vpop.f32.mrb[0].mxu0
        %v1132 = vadd.f32 %v640, %v1131
        %v1133 = vpop.f32.mrb[0].mxu0
        %1134 = vmatprep.mubr.f32.mxu0 0.0
        %1135 = vmatmul.mubr.f32.gmra.mrb[0].mxu0 %v785
        %v1136 = vpop.f32.mrb[0].mxu0
        %v1137 = vadd.f32 %v640, %v1136
        %v1138 = vpop.f32.mrb[0].mxu0
        %1139 = vmatprep.mubr.f32.mxu0 0.0
        %1140 = vmatmul.mubr.f32.gmra.mrb[0].mxu0 %v788
        %v1141 = vpop.f32.mrb[0].mxu0
        %v1142 = vadd.f32 %v640, %v1141
        %v1143 = vpop.f32.mrb[0].mxu0
        %1144 = vmatprep.mubr.f32.mxu0 0.0
        %1145 = vmatmul.mubr.f32.gmra.mrb[0].mxu0 %v791
        %v1146 = vpop.f32.mrb[0].mxu0
        %v1147 = vadd.f32 %v640, %v1146
        %v1148 = vpop.f32.mrb[0].mxu0
        %1149 = vmatprep.mubr.f32.mxu0 0.0
        %1150 = vmatmul.mubr.f32.gmra.mrb[0].mxu0 %v794
        %v1151 = vpop.f32.mrb[0].mxu0
        %v1152 = vadd.f32 %v640, %v1151
        %v1153 = vpop.f32.mrb[0].mxu0
        %1154 = vmatprep.mubr.f32.mxu0 0.0
        %1155 = vmatmul.mubr.f32.gmra.mrb[0].mxu0 %v797
        %v1156 = vpop.f32.mrb[0].mxu0
        %v1157 = vadd.f32 %v640, %v1156
        %v1158 = vpop.f32.mrb[0].mxu0
        %1159 = vmatprep.mubr.f32.mxu0 0.0
        %1160 = vmatmul.mubr.f32.gmra.mrb[0].mxu0 %v800
        %v1161 = vpop.f32.mrb[0].mxu0
        %v1162 = vadd.f32 %v640, %v1161
        %v1163 = vpop.f32.mrb[0].mxu0
        %1164 = vmatprep.mubr.f32.mxu0 0.0
        %1165 = vmatmul.mubr.f32.gmra.mrb[0].mxu0 %v803
        %v1166 = vpop.f32.mrb[0].mxu0
        %v1167 = vadd.f32 %v640, %v1166
        %v1168 = vpop.f32.mrb[0].mxu0
        %1169 = vmatprep.mubr.f32.mxu0 0.0
        %1170 = vmatmul.mubr.f32.gmra.mrb[0].mxu0 %v806
        %v1171 = vpop.f32.mrb[0].mxu0
        %v1172 = vadd.f32 %v640, %v1171
        %v1173 = vpop.f32.mrb[0].mxu0
        %1174 = vmatprep.mubr.f32.mxu0 0.0
        %1175 = vmatmul.mubr.f32.gmra.mrb[0].mxu0 %v809
        %v1176 = vpop.f32.mrb[0].mxu0
        %v1177 = vadd.f32 %v640, %v1176
        %v1178 = vpop.f32.mrb[0].mxu0
        %1179 = vmatprep.mubr.f32.mxu0 0.0
        %1180 = vmatmul.mubr.f32.gmra.mrb[0].mxu0 %v812
        %v1181 = vpop.f32.mrb[0].mxu0
        %v1182 = vadd.f32 %v640, %v1181
        %v1183 = vpop.f32.mrb[0].mxu0
        %1184 = vmatprep.mubr.f32.mxu0 0.0
        %1185 = vmatmul.mubr.f32.gmra.mrb[0].mxu0 %v815
        %v1186 = vpop.f32.mrb[0].mxu0
        %v1187 = vadd.f32 %v640, %v1186
        %v1188 = vpop.f32.mrb[0].mxu0
        %1189 = vmatprep.mubr.f32.mxu0 0.0
        %1190 = vmatmul.mubr.f32.gmra.mrb[0].mxu0 %v818
        %v1191 = vpop.f32.mrb[0].mxu0
        %v1192 = vadd.f32 %v640, %v1191
        %v1193 = vpop.f32.mrb[0].mxu0
        %1194 = vmatprep.mubr.f32.mxu0 0.0
        %1195 = vmatmul.mubr.f32.gmra.mrb[0].mxu0 %v821
        %v1196 = vpop.f32.mrb[0].mxu0
        %v1197 = vadd.f32 %v640, %v1196
        %v1198 = vpop.f32.mrb[0].mxu0
        %1199 = vmatprep.mubr.f32.mxu0 0.0
        %1200 = vmatmul.mubr.f32.gmra.mrb[0].mxu0 %v824
        %v1201 = vpop.f32.mrb[0].mxu0
        %v1202 = vadd.f32 %v640, %v1201
        %v1203 = vpop.f32.mrb[0].mxu0
        %1204 = vmatprep.mubr.f32.mxu0 0.0
        %1205 = vmatmul.mubr.f32.gmra.mrb[0].mxu0 %v827
        %v1206 = vpop.f32.mrb[0].mxu0
        %v1207 = vadd.f32 %v640, %v1206
        %v1208 = vpop.f32.mrb[0].mxu0
        %1209 = vmatprep.mubr.f32.mxu0 0.0
        %1210 = vmatmul.mubr.f32.gmra.mrb[0].mxu0 %v830
        %v1211 = vpop.f32.mrb[0].mxu0
        %v1212 = vadd.f32 %v640, %v1211
        %v1213 = vpop.f32.mrb[0].mxu0
        %1214 = vmatprep.mubr.f32.mxu0 0.0
        %1215 = vmatmul.mubr.f32.gmra.mrb[0].mxu0 %v833
        %v1216 = vpop.f32.mrb[0].mxu0
        %v1217 = vadd.f32 %v640, %v1216
        %v1218 = vpop.f32.mrb[0].mxu0
        %1219 = vdwg.mxu0
        %v1220 = vmax.f32 %v902, 0.0
        %v1221 = vmax.f32 %v907, 0.0
        %v1222 = vmax.f32 %v912, 0.0
        %v1223 = vmax.f32 %v917, 0.0
        %v1224 = vmax.f32 %v922, 0.0
        %v1225 = vmax.f32 %v927, 0.0
        %v1226 = vmax.f32 %v932, 0.0
        %v1227 = vmax.f32 %v937, 0.0
        %v1228 = vmax.f32 %v942, 0.0
        %v1229 = vmax.f32 %v947, 0.0
        %v1230 = vmax.f32 %v952, 0.0
        %v1231 = vmax.f32 %v957, 0.0
        %v1232 = vmax.f32 %v962, 0.0
        %v1233 = vmax.f32 %v967, 0.0
        %v1234 = vmax.f32 %v972, 0.0
        %v1235 = vmax.f32 %v977, 0.0
        %v1236 = vmax.f32 %v982, 0.0
        %v1237 = vmax.f32 %v987, 0.0
        %v1238 = vmax.f32 %v992, 0.0
        %v1239 = vmax.f32 %v997, 0.0
        %v1240 = vmax.f32 %v1002, 0.0
        %v1241 = vmax.f32 %v1007, 0.0
        %v1242 = vmax.f32 %v1012, 0.0
        %v1243 = vmax.f32 %v1017, 0.0
        %v1244 = vmax.f32 %v1022, 0.0
        %v1245 = vmax.f32 %v1027, 0.0
        %v1246 = vmax.f32 %v1032, 0.0
        %v1247 = vmax.f32 %v1037, 0.0
        %v1248 = vmax.f32 %v1042, 0.0
        %v1249 = vmax.f32 %v1047, 0.0
        %v1250 = vmax.f32 %v1052, 0.0
        %v1251 = vmax.f32 %v1057, 0.0
        %v1252 = vmax.f32 %v1062, 0.0
        %v1253 = vmax.f32 %v1067, 0.0
        %v1254 = vmax.f32 %v1072, 0.0
        %v1255 = vmax.f32 %v1077, 0.0
        %v1256 = vmax.f32 %v1082, 0.0
        %v1257 = vmax.f32 %v1087, 0.0
        %v1258 = vmax.f32 %v1092, 0.0
        %v1259 = vmax.f32 %v1097, 0.0
        %v1260 = vmax.f32 %v1102, 0.0
        %v1261 = vmax.f32 %v1107, 0.0
        %v1262 = vmax.f32 %v1112, 0.0
        %v1263 = vmax.f32 %v1117, 0.0
        %v1264 = vmax.f32 %v1122, 0.0
        %v1265 = vmax.f32 %v1127, 0.0
        %v1266 = vmax.f32 %v1132, 0.0
        %v1267 = vmax.f32 %v1137, 0.0
        %v1268 = vmax.f32 %v1142, 0.0
        %v1269 = vmax.f32 %v1147, 0.0
        %v1270 = vmax.f32 %v1152, 0.0
        %v1271 = vmax.f32 %v1157, 0.0
        %v1272 = vmax.f32 %v1162, 0.0
        %v1273 = vmax.f32 %v1167, 0.0
        %v1274 = vmax.f32 %v1172, 0.0
        %v1275 = vmax.f32 %v1177, 0.0
        %v1276 = vmax.f32 %v1182, 0.0
        %v1277 = vmax.f32 %v1187, 0.0
        %v1278 = vmax.f32 %v1192, 0.0
        %v1279 = vmax.f32 %v1197, 0.0
        %v1280 = vmax.f32 %v1202, 0.0
        %v1281 = vmax.f32 %v1207, 0.0
        %v1282 = vmax.f32 %v1212, 0.0
        %v1283 = vmax.f32 %v1217, 0.0
        %v1284 = vld [vmem:[#allocation13] sm:$0xff]
        %v1285 = vld [vmem:[#allocation13 + $0x8] sm:$0xff]
        %v1286 = vld [vmem:[#allocation15] sm:$0x1]
        %v1288 = vlaneseq
        %v1289 = vshrl.u32 %v1288, 7
        %v1290 = vsub.s32 0, %v1289
        %v1291 = vrot.slane %v1286, %v1290
        %v1294 = vsel %vm642, %v1220, 0
        %v1297 = vsel %vm642, %v1221, 0
        %v1300 = vsel %vm642, %v1222, 0
        %v1303 = vsel %vm642, %v1223, 0
        %v1306 = vsel %vm642, %v1224, 0
        %v1309 = vsel %vm642, %v1225, 0
        %v1312 = vsel %vm642, %v1226, 0
        %v1315 = vsel %vm642, %v1227, 0
        %v1318 = vsel %vm642, %v1228, 0
        %v1321 = vsel %vm642, %v1229, 0
        %v1324 = vsel %vm642, %v1230, 0
        %v1327 = vsel %vm642, %v1231, 0
        %v1330 = vsel %vm642, %v1232, 0
        %v1333 = vsel %vm642, %v1233, 0
        %v1336 = vsel %vm642, %v1234, 0
        %v1339 = vsel %vm642, %v1235, 0
        %v1342 = vsel %vm642, %v1236, 0
        %v1345 = vsel %vm642, %v1237, 0
        %v1348 = vsel %vm642, %v1238, 0
        %v1351 = vsel %vm642, %v1239, 0
        %v1354 = vsel %vm642, %v1240, 0
        %v1357 = vsel %vm642, %v1241, 0
        %v1360 = vsel %vm642, %v1242, 0
        %v1363 = vsel %vm642, %v1243, 0
        %v1366 = vsel %vm642, %v1244, 0
        %v1369 = vsel %vm642, %v1245, 0
        %v1372 = vsel %vm642, %v1246, 0
        %v1375 = vsel %vm642, %v1247, 0
        %v1378 = vsel %vm642, %v1248, 0
        %v1381 = vsel %vm642, %v1249, 0
        %v1384 = vsel %vm642, %v1250, 0
        %v1387 = vsel %vm642, %v1251, 0
        %v1390 = vsel %vm642, %v1252, 0
        %v1393 = vsel %vm642, %v1253, 0
        %v1396 = vsel %vm642, %v1254, 0
        %v1399 = vsel %vm642, %v1255, 0
        %v1402 = vsel %vm642, %v1256, 0
        %v1405 = vsel %vm642, %v1257, 0
        %v1408 = vsel %vm642, %v1258, 0
        %v1411 = vsel %vm642, %v1259, 0
        %v1414 = vsel %vm642, %v1260, 0
        %v1417 = vsel %vm642, %v1261, 0
        %v1420 = vsel %vm642, %v1262, 0
        %v1423 = vsel %vm642, %v1263, 0
        %v1426 = vsel %vm642, %v1264, 0
        %v1429 = vsel %vm642, %v1265, 0
        %v1432 = vsel %vm642, %v1266, 0
        %v1435 = vsel %vm642, %v1267, 0
        %v1438 = vsel %vm642, %v1268, 0
        %v1441 = vsel %vm642, %v1269, 0
        %v1444 = vsel %vm642, %v1270, 0
        %v1447 = vsel %vm642, %v1271, 0
        %v1450 = vsel %vm642, %v1272, 0
        %v1453 = vsel %vm642, %v1273, 0
        %v1456 = vsel %vm642, %v1274, 0
        %v1459 = vsel %vm642, %v1275, 0
        %v1462 = vsel %vm642, %v1276, 0
        %v1465 = vsel %vm642, %v1277, 0
        %v1468 = vsel %vm642, %v1278, 0
        %v1471 = vsel %vm642, %v1279, 0
        %v1474 = vsel %vm642, %v1280, 0
        %v1477 = vsel %vm642, %v1281, 0
        %v1480 = vsel %vm642, %v1282, 0
        %v1483 = vsel %vm642, %v1283, 0
        %1485 = vmatprep.subr.mxu0 0.0
        %1486 = vmatpush1.msra.mxu0 %v1284
        %1487 = vmatprep.subr.mxu0 0.0
        %1488 = vmatpush1.msra.mxu0 %v1285
        %1489 = vmatprep.subr.mxu0 0.0
        %1490 = vmatpush1.msra.mxu0 0.0
        %1491 = vmatprep.subr.mxu0 0.0
        %1492 = vmatpush1.msra.mxu0 0.0
        %1493 = vmatprep.subr.mxu0 0.0
        %1494 = vmatpush1.msra.mxu0 0.0
        %1495 = vmatprep.subr.mxu0 0.0
        %1496 = vmatpush1.msra.mxu0 0.0
        %1497 = vmatprep.subr.mxu0 0.0
        %1498 = vmatpush1.msra.mxu0 0.0
        %1499 = vmatprep.subr.mxu0 0.0
        %1500 = vmatpush1.msra.mxu0 0.0
        %1501 = vmatprep.subr.mxu0 0.0
        %1502 = vmatpush1.msra.mxu0 0.0
        %1503 = vmatprep.subr.mxu0 0.0
        %1504 = vmatpush1.msra.mxu0 0.0
        %1505 = vmatprep.subr.mxu0 0.0
        %1506 = vmatpush1.msra.mxu0 0.0
        %1507 = vmatprep.subr.mxu0 0.0
        %1508 = vmatpush1.msra.mxu0 0.0
        %1509 = vmatprep.subr.mxu0 0.0
        %1510 = vmatpush1.msra.mxu0 0.0
        %1511 = vmatprep.subr.mxu0 0.0
        %1512 = vmatpush1.msra.mxu0 0.0
        %1513 = vmatprep.subr.mxu0 0.0
        %1514 = vmatpush1.msra.mxu0 0.0
        %1515 = vmatprep.subr.mxu0 0.0
        %1516 = vmatpush1.msra.mxu0 0.0
        %1517 = vmatprep.subr.mxu0 0.0
        %1518 = vmatpush1.msra.mxu0 0.0
        %1519 = vmatprep.subr.mxu0 0.0
        %1520 = vmatpush1.msra.mxu0 0.0
        %1521 = vmatprep.subr.mxu0 0.0
        %1522 = vmatpush1.msra.mxu0 0.0
        %1523 = vmatprep.subr.mxu0 0.0
        %1524 = vmatpush1.msra.mxu0 0.0
        %1525 = vmatprep.subr.mxu0 0.0
        %1526 = vmatpush1.msra.mxu0 0.0
        %1527 = vmatprep.subr.mxu0 0.0
        %1528 = vmatpush1.msra.mxu0 0.0
        %1529 = vmatprep.subr.mxu0 0.0
        %1530 = vmatpush1.msra.mxu0 0.0
        %1531 = vmatprep.subr.mxu0 0.0
        %1532 = vmatpush1.msra.mxu0 0.0
        %1533 = vmatprep.subr.mxu0 0.0
        %1534 = vmatpush1.msra.mxu0 0.0
        %1535 = vmatprep.subr.mxu0 0.0
        %1536 = vmatpush1.msra.mxu0 0.0
        %1537 = vmatprep.subr.mxu0 0.0
        %1538 = vmatpush1.msra.mxu0 0.0
        %1539 = vmatprep.subr.mxu0 0.0
        %1540 = vmatpush1.msra.mxu0 0.0
        %1541 = vmatprep.subr.mxu0 0.0
        %1542 = vmatpush1.msra.mxu0 0.0
        %1543 = vmatprep.subr.mxu0 0.0
        %1544 = vmatpush1.msra.mxu0 0.0
        %1545 = vmatprep.subr.mxu0 0.0
        %1546 = vmatpush1.msra.mxu0 0.0
        %1547 = vmatprep.subr.mxu0 0.0
        %1548 = vmatpush1.msra.mxu0 0.0
        %1549 = vmatprep.mubr.f32.mxu0 0.0
        %1550 = vmatmul.mubr.f32.gmra.mrb[0].mxu0 %v1294
        %v1551 = vpop.f32.mrb[0].mxu0
        %v1552 = vadd.f32 %v1291, %v1551
        %v1553 = vpop.f32.mrb[0].mxu0
        %1554 = vmatprep.mubr.f32.mxu0 0.0
        %1555 = vmatmul.mubr.f32.gmra.mrb[0].mxu0 %v1297
        %v1556 = vpop.f32.mrb[0].mxu0
        %v1557 = vadd.f32 %v1291, %v1556
        %v1558 = vpop.f32.mrb[0].mxu0
        %1559 = vmatprep.mubr.f32.mxu0 0.0
        %1560 = vmatmul.mubr.f32.gmra.mrb[0].mxu0 %v1300
        %v1561 = vpop.f32.mrb[0].mxu0
        %v1562 = vadd.f32 %v1291, %v1561
        %v1563 = vpop.f32.mrb[0].mxu0
        %1564 = vmatprep.mubr.f32.mxu0 0.0
        %1565 = vmatmul.mubr.f32.gmra.mrb[0].mxu0 %v1303
        %v1566 = vpop.f32.mrb[0].mxu0
        %v1567 = vadd.f32 %v1291, %v1566
        %v1568 = vpop.f32.mrb[0].mxu0
        %1569 = vmatprep.mubr.f32.mxu0 0.0
        %1570 = vmatmul.mubr.f32.gmra.mrb[0].mxu0 %v1306
        %v1571 = vpop.f32.mrb[0].mxu0
        %v1572 = vadd.f32 %v1291, %v1571
        %v1573 = vpop.f32.mrb[0].mxu0
        %1574 = vmatprep.mubr.f32.mxu0 0.0
        %1575 = vmatmul.mubr.f32.gmra.mrb[0].mxu0 %v1309
        %v1576 = vpop.f32.mrb[0].mxu0
        %v1577 = vadd.f32 %v1291, %v1576
        %v1578 = vpop.f32.mrb[0].mxu0
        %1579 = vmatprep.mubr.f32.mxu0 0.0
        %1580 = vmatmul.mubr.f32.gmra.mrb[0].mxu0 %v1312
        %v1581 = vpop.f32.mrb[0].mxu0
        %v1582 = vadd.f32 %v1291, %v1581
        %v1583 = vpop.f32.mrb[0].mxu0
        %1584 = vmatprep.mubr.f32.mxu0 0.0
        %1585 = vmatmul.mubr.f32.gmra.mrb[0].mxu0 %v1315
        %v1586 = vpop.f32.mrb[0].mxu0
        %v1587 = vadd.f32 %v1291, %v1586
        %v1588 = vpop.f32.mrb[0].mxu0
        %1589 = vmatprep.mubr.f32.mxu0 0.0
        %1590 = vmatmul.mubr.f32.gmra.mrb[0].mxu0 %v1318
        %v1591 = vpop.f32.mrb[0].mxu0
        %v1592 = vadd.f32 %v1291, %v1591
        %v1593 = vpop.f32.mrb[0].mxu0
        %1594 = vmatprep.mubr.f32.mxu0 0.0
        %1595 = vmatmul.mubr.f32.gmra.mrb[0].mxu0 %v1321
        %v1596 = vpop.f32.mrb[0].mxu0
        %v1597 = vadd.f32 %v1291, %v1596
        %v1598 = vpop.f32.mrb[0].mxu0
        %1599 = vmatprep.mubr.f32.mxu0 0.0
        %1600 = vmatmul.mubr.f32.gmra.mrb[0].mxu0 %v1324
        %v1601 = vpop.f32.mrb[0].mxu0
        %v1602 = vadd.f32 %v1291, %v1601
        %v1603 = vpop.f32.mrb[0].mxu0
        %1604 = vmatprep.mubr.f32.mxu0 0.0
        %1605 = vmatmul.mubr.f32.gmra.mrb[0].mxu0 %v1327
        %v1606 = vpop.f32.mrb[0].mxu0
        %v1607 = vadd.f32 %v1291, %v1606
        %v1608 = vpop.f32.mrb[0].mxu0
        %1609 = vmatprep.mubr.f32.mxu0 0.0
        %1610 = vmatmul.mubr.f32.gmra.mrb[0].mxu0 %v1330
        %v1611 = vpop.f32.mrb[0].mxu0
        %v1612 = vadd.f32 %v1291, %v1611
        %v1613 = vpop.f32.mrb[0].mxu0
        %1614 = vmatprep.mubr.f32.mxu0 0.0
        %1615 = vmatmul.mubr.f32.gmra.mrb[0].mxu0 %v1333
        %v1616 = vpop.f32.mrb[0].mxu0
        %v1617 = vadd.f32 %v1291, %v1616
        %v1618 = vpop.f32.mrb[0].mxu0
        %1619 = vmatprep.mubr.f32.mxu0 0.0
        %1620 = vmatmul.mubr.f32.gmra.mrb[0].mxu0 %v1336
        %v1621 = vpop.f32.mrb[0].mxu0
        %v1622 = vadd.f32 %v1291, %v1621
        %v1623 = vpop.f32.mrb[0].mxu0
        %1624 = vmatprep.mubr.f32.mxu0 0.0
        %1625 = vmatmul.mubr.f32.gmra.mrb[0].mxu0 %v1339
        %v1626 = vpop.f32.mrb[0].mxu0
        %v1627 = vadd.f32 %v1291, %v1626
        %v1628 = vpop.f32.mrb[0].mxu0
        %1629 = vmatprep.mubr.f32.mxu0 0.0
        %1630 = vmatmul.mubr.f32.gmra.mrb[0].mxu0 %v1342
        %v1631 = vpop.f32.mrb[0].mxu0
        %v1632 = vadd.f32 %v1291, %v1631
        %v1633 = vpop.f32.mrb[0].mxu0
        %1634 = vmatprep.mubr.f32.mxu0 0.0
        %1635 = vmatmul.mubr.f32.gmra.mrb[0].mxu0 %v1345
        %v1636 = vpop.f32.mrb[0].mxu0
        %v1637 = vadd.f32 %v1291, %v1636
        %v1638 = vpop.f32.mrb[0].mxu0
        %1639 = vmatprep.mubr.f32.mxu0 0.0
        %1640 = vmatmul.mubr.f32.gmra.mrb[0].mxu0 %v1348
        %v1641 = vpop.f32.mrb[0].mxu0
        %v1642 = vadd.f32 %v1291, %v1641
        %v1643 = vpop.f32.mrb[0].mxu0
        %1644 = vmatprep.mubr.f32.mxu0 0.0
        %1645 = vmatmul.mubr.f32.gmra.mrb[0].mxu0 %v1351
        %v1646 = vpop.f32.mrb[0].mxu0
        %v1647 = vadd.f32 %v1291, %v1646
        %v1648 = vpop.f32.mrb[0].mxu0
        %1649 = vmatprep.mubr.f32.mxu0 0.0
        %1650 = vmatmul.mubr.f32.gmra.mrb[0].mxu0 %v1354
        %v1651 = vpop.f32.mrb[0].mxu0
        %v1652 = vadd.f32 %v1291, %v1651
        %v1653 = vpop.f32.mrb[0].mxu0
        %1654 = vmatprep.mubr.f32.mxu0 0.0
        %1655 = vmatmul.mubr.f32.gmra.mrb[0].mxu0 %v1357
        %v1656 = vpop.f32.mrb[0].mxu0
        %v1657 = vadd.f32 %v1291, %v1656
        %v1658 = vpop.f32.mrb[0].mxu0
        %1659 = vmatprep.mubr.f32.mxu0 0.0
        %1660 = vmatmul.mubr.f32.gmra.mrb[0].mxu0 %v1360
        %v1661 = vpop.f32.mrb[0].mxu0
        %v1662 = vadd.f32 %v1291, %v1661
        %v1663 = vpop.f32.mrb[0].mxu0
        %1664 = vmatprep.mubr.f32.mxu0 0.0
        %1665 = vmatmul.mubr.f32.gmra.mrb[0].mxu0 %v1363
        %v1666 = vpop.f32.mrb[0].mxu0
        %v1667 = vadd.f32 %v1291, %v1666
        %v1668 = vpop.f32.mrb[0].mxu0
        %1669 = vmatprep.mubr.f32.mxu0 0.0
        %1670 = vmatmul.mubr.f32.gmra.mrb[0].mxu0 %v1366
        %v1671 = vpop.f32.mrb[0].mxu0
        %v1672 = vadd.f32 %v1291, %v1671
        %v1673 = vpop.f32.mrb[0].mxu0
        %1674 = vmatprep.mubr.f32.mxu0 0.0
        %1675 = vmatmul.mubr.f32.gmra.mrb[0].mxu0 %v1369
        %v1676 = vpop.f32.mrb[0].mxu0
        %v1677 = vadd.f32 %v1291, %v1676
        %v1678 = vpop.f32.mrb[0].mxu0
        %1679 = vmatprep.mubr.f32.mxu0 0.0
        %1680 = vmatmul.mubr.f32.gmra.mrb[0].mxu0 %v1372
        %v1681 = vpop.f32.mrb[0].mxu0
        %v1682 = vadd.f32 %v1291, %v1681
        %v1683 = vpop.f32.mrb[0].mxu0
        %1684 = vmatprep.mubr.f32.mxu0 0.0
        %1685 = vmatmul.mubr.f32.gmra.mrb[0].mxu0 %v1375
        %v1686 = vpop.f32.mrb[0].mxu0
        %v1687 = vadd.f32 %v1291, %v1686
        %v1688 = vpop.f32.mrb[0].mxu0
        %1689 = vmatprep.mubr.f32.mxu0 0.0
        %1690 = vmatmul.mubr.f32.gmra.mrb[0].mxu0 %v1378
        %v1691 = vpop.f32.mrb[0].mxu0
        %v1692 = vadd.f32 %v1291, %v1691
        %v1693 = vpop.f32.mrb[0].mxu0
        %1694 = vmatprep.mubr.f32.mxu0 0.0
        %1695 = vmatmul.mubr.f32.gmra.mrb[0].mxu0 %v1381
        %v1696 = vpop.f32.mrb[0].mxu0
        %v1697 = vadd.f32 %v1291, %v1696
        %v1698 = vpop.f32.mrb[0].mxu0
        %1699 = vmatprep.mubr.f32.mxu0 0.0
        %1700 = vmatmul.mubr.f32.gmra.mrb[0].mxu0 %v1384
        %v1701 = vpop.f32.mrb[0].mxu0
        %v1702 = vadd.f32 %v1291, %v1701
        %v1703 = vpop.f32.mrb[0].mxu0
        %1704 = vmatprep.mubr.f32.mxu0 0.0
        %1705 = vmatmul.mubr.f32.gmra.mrb[0].mxu0 %v1387
        %v1706 = vpop.f32.mrb[0].mxu0
        %v1707 = vadd.f32 %v1291, %v1706
        %v1708 = vpop.f32.mrb[0].mxu0
        %1709 = vmatprep.mubr.f32.mxu0 0.0
        %1710 = vmatmul.mubr.f32.gmra.mrb[0].mxu0 %v1390
        %v1711 = vpop.f32.mrb[0].mxu0
        %v1712 = vadd.f32 %v1291, %v1711
        %v1713 = vpop.f32.mrb[0].mxu0
        %1714 = vmatprep.mubr.f32.mxu0 0.0
        %1715 = vmatmul.mubr.f32.gmra.mrb[0].mxu0 %v1393
        %v1716 = vpop.f32.mrb[0].mxu0
        %v1717 = vadd.f32 %v1291, %v1716
        %v1718 = vpop.f32.mrb[0].mxu0
        %1719 = vmatprep.mubr.f32.mxu0 0.0
        %1720 = vmatmul.mubr.f32.gmra.mrb[0].mxu0 %v1396
        %v1721 = vpop.f32.mrb[0].mxu0
        %v1722 = vadd.f32 %v1291, %v1721
        %v1723 = vpop.f32.mrb[0].mxu0
        %1724 = vmatprep.mubr.f32.mxu0 0.0
        %1725 = vmatmul.mubr.f32.gmra.mrb[0].mxu0 %v1399
        %v1726 = vpop.f32.mrb[0].mxu0
        %v1727 = vadd.f32 %v1291, %v1726
        %v1728 = vpop.f32.mrb[0].mxu0
        %1729 = vmatprep.mubr.f32.mxu0 0.0
        %1730 = vmatmul.mubr.f32.gmra.mrb[0].mxu0 %v1402
        %v1731 = vpop.f32.mrb[0].mxu0
        %v1732 = vadd.f32 %v1291, %v1731
        %v1733 = vpop.f32.mrb[0].mxu0
        %1734 = vmatprep.mubr.f32.mxu0 0.0
        %1735 = vmatmul.mubr.f32.gmra.mrb[0].mxu0 %v1405
        %v1736 = vpop.f32.mrb[0].mxu0
        %v1737 = vadd.f32 %v1291, %v1736
        %v1738 = vpop.f32.mrb[0].mxu0
        %1739 = vmatprep.mubr.f32.mxu0 0.0
        %1740 = vmatmul.mubr.f32.gmra.mrb[0].mxu0 %v1408
        %v1741 = vpop.f32.mrb[0].mxu0
        %v1742 = vadd.f32 %v1291, %v1741
        %v1743 = vpop.f32.mrb[0].mxu0
        %1744 = vmatprep.mubr.f32.mxu0 0.0
        %1745 = vmatmul.mubr.f32.gmra.mrb[0].mxu0 %v1411
        %v1746 = vpop.f32.mrb[0].mxu0
        %v1747 = vadd.f32 %v1291, %v1746
        %v1748 = vpop.f32.mrb[0].mxu0
        %1749 = vmatprep.mubr.f32.mxu0 0.0
        %1750 = vmatmul.mubr.f32.gmra.mrb[0].mxu0 %v1414
        %v1751 = vpop.f32.mrb[0].mxu0
        %v1752 = vadd.f32 %v1291, %v1751
        %v1753 = vpop.f32.mrb[0].mxu0
        %1754 = vmatprep.mubr.f32.mxu0 0.0
        %1755 = vmatmul.mubr.f32.gmra.mrb[0].mxu0 %v1417
        %v1756 = vpop.f32.mrb[0].mxu0
        %v1757 = vadd.f32 %v1291, %v1756
        %v1758 = vpop.f32.mrb[0].mxu0
        %1759 = vmatprep.mubr.f32.mxu0 0.0
        %1760 = vmatmul.mubr.f32.gmra.mrb[0].mxu0 %v1420
        %v1761 = vpop.f32.mrb[0].mxu0
        %v1762 = vadd.f32 %v1291, %v1761
        %v1763 = vpop.f32.mrb[0].mxu0
        %1764 = vmatprep.mubr.f32.mxu0 0.0
        %1765 = vmatmul.mubr.f32.gmra.mrb[0].mxu0 %v1423
        %v1766 = vpop.f32.mrb[0].mxu0
        %v1767 = vadd.f32 %v1291, %v1766
        %v1768 = vpop.f32.mrb[0].mxu0
        %1769 = vmatprep.mubr.f32.mxu0 0.0
        %1770 = vmatmul.mubr.f32.gmra.mrb[0].mxu0 %v1426
        %v1771 = vpop.f32.mrb[0].mxu0
        %v1772 = vadd.f32 %v1291, %v1771
        %v1773 = vpop.f32.mrb[0].mxu0
        %1774 = vmatprep.mubr.f32.mxu0 0.0
        %1775 = vmatmul.mubr.f32.gmra.mrb[0].mxu0 %v1429
        %v1776 = vpop.f32.mrb[0].mxu0
        %v1777 = vadd.f32 %v1291, %v1776
        %v1778 = vpop.f32.mrb[0].mxu0
        %1779 = vmatprep.mubr.f32.mxu0 0.0
        %1780 = vmatmul.mubr.f32.gmra.mrb[0].mxu0 %v1432
        %v1781 = vpop.f32.mrb[0].mxu0
        %v1782 = vadd.f32 %v1291, %v1781
        %v1783 = vpop.f32.mrb[0].mxu0
        %1784 = vmatprep.mubr.f32.mxu0 0.0
        %1785 = vmatmul.mubr.f32.gmra.mrb[0].mxu0 %v1435
        %v1786 = vpop.f32.mrb[0].mxu0
        %v1787 = vadd.f32 %v1291, %v1786
        %v1788 = vpop.f32.mrb[0].mxu0
        %1789 = vmatprep.mubr.f32.mxu0 0.0
        %1790 = vmatmul.mubr.f32.gmra.mrb[0].mxu0 %v1438
        %v1791 = vpop.f32.mrb[0].mxu0
        %v1792 = vadd.f32 %v1291, %v1791
        %v1793 = vpop.f32.mrb[0].mxu0
        %1794 = vmatprep.mubr.f32.mxu0 0.0
        %1795 = vmatmul.mubr.f32.gmra.mrb[0].mxu0 %v1441
        %v1796 = vpop.f32.mrb[0].mxu0
        %v1797 = vadd.f32 %v1291, %v1796
        %v1798 = vpop.f32.mrb[0].mxu0
        %1799 = vmatprep.mubr.f32.mxu0 0.0
        %1800 = vmatmul.mubr.f32.gmra.mrb[0].mxu0 %v1444
        %v1801 = vpop.f32.mrb[0].mxu0
        %v1802 = vadd.f32 %v1291, %v1801
        %v1803 = vpop.f32.mrb[0].mxu0
        %1804 = vmatprep.mubr.f32.mxu0 0.0
        %1805 = vmatmul.mubr.f32.gmra.mrb[0].mxu0 %v1447
        %v1806 = vpop.f32.mrb[0].mxu0
        %v1807 = vadd.f32 %v1291, %v1806
        %v1808 = vpop.f32.mrb[0].mxu0
        %1809 = vmatprep.mubr.f32.mxu0 0.0
        %1810 = vmatmul.mubr.f32.gmra.mrb[0].mxu0 %v1450
        %v1811 = vpop.f32.mrb[0].mxu0
        %v1812 = vadd.f32 %v1291, %v1811
        %v1813 = vpop.f32.mrb[0].mxu0
        %1814 = vmatprep.mubr.f32.mxu0 0.0
        %1815 = vmatmul.mubr.f32.gmra.mrb[0].mxu0 %v1453
        %v1816 = vpop.f32.mrb[0].mxu0
        %v1817 = vadd.f32 %v1291, %v1816
        %v1818 = vpop.f32.mrb[0].mxu0
        %1819 = vmatprep.mubr.f32.mxu0 0.0
        %1820 = vmatmul.mubr.f32.gmra.mrb[0].mxu0 %v1456
        %v1821 = vpop.f32.mrb[0].mxu0
        %v1822 = vadd.f32 %v1291, %v1821
        %v1823 = vpop.f32.mrb[0].mxu0
        %1824 = vmatprep.mubr.f32.mxu0 0.0
        %1825 = vmatmul.mubr.f32.gmra.mrb[0].mxu0 %v1459
        %v1826 = vpop.f32.mrb[0].mxu0
        %v1827 = vadd.f32 %v1291, %v1826
        %v1828 = vpop.f32.mrb[0].mxu0
        %1829 = vmatprep.mubr.f32.mxu0 0.0
        %1830 = vmatmul.mubr.f32.gmra.mrb[0].mxu0 %v1462
        %v1831 = vpop.f32.mrb[0].mxu0
        %v1832 = vadd.f32 %v1291, %v1831
        %v1833 = vpop.f32.mrb[0].mxu0
        %1834 = vmatprep.mubr.f32.mxu0 0.0
        %1835 = vmatmul.mubr.f32.gmra.mrb[0].mxu0 %v1465
        %v1836 = vpop.f32.mrb[0].mxu0
        %v1837 = vadd.f32 %v1291, %v1836
        %v1838 = vpop.f32.mrb[0].mxu0
        %1839 = vmatprep.mubr.f32.mxu0 0.0
        %1840 = vmatmul.mubr.f32.gmra.mrb[0].mxu0 %v1468
        %v1841 = vpop.f32.mrb[0].mxu0
        %v1842 = vadd.f32 %v1291, %v1841
        %v1843 = vpop.f32.mrb[0].mxu0
        %1844 = vmatprep.mubr.f32.mxu0 0.0
        %1845 = vmatmul.mubr.f32.gmra.mrb[0].mxu0 %v1471
        %v1846 = vpop.f32.mrb[0].mxu0
        %v1847 = vadd.f32 %v1291, %v1846
        %v1848 = vpop.f32.mrb[0].mxu0
        %1849 = vmatprep.mubr.f32.mxu0 0.0
        %1850 = vmatmul.mubr.f32.gmra.mrb[0].mxu0 %v1474
        %v1851 = vpop.f32.mrb[0].mxu0
        %v1852 = vadd.f32 %v1291, %v1851
        %v1853 = vpop.f32.mrb[0].mxu0
        %1854 = vmatprep.mubr.f32.mxu0 0.0
        %1855 = vmatmul.mubr.f32.gmra.mrb[0].mxu0 %v1477
        %v1856 = vpop.f32.mrb[0].mxu0
        %v1857 = vadd.f32 %v1291, %v1856
        %v1858 = vpop.f32.mrb[0].mxu0
        %1859 = vmatprep.mubr.f32.mxu0 0.0
        %1860 = vmatmul.mubr.f32.gmra.mrb[0].mxu0 %v1480
        %v1861 = vpop.f32.mrb[0].mxu0
        %v1862 = vadd.f32 %v1291, %v1861
        %v1863 = vpop.f32.mrb[0].mxu0
        %1864 = vmatprep.mubr.f32.mxu0 0.0
        %1865 = vmatmul.mubr.f32.gmra.mrb[0].mxu0 %v1483
        %v1866 = vpop.f32.mrb[0].mxu0
        %v1867 = vadd.f32 %v1291, %v1866
        %v1868 = vpop.f32.mrb[0].mxu0
        %1869 = vdwg.mxu0
        %v1870 = vmax.f32 %v1552, 0.0
        %v1871 = vmax.f32 %v1557, 0.0
        %v1872 = vmax.f32 %v1562, 0.0
        %v1873 = vmax.f32 %v1567, 0.0
        %v1874 = vmax.f32 %v1572, 0.0
        %v1875 = vmax.f32 %v1577, 0.0
        %v1876 = vmax.f32 %v1582, 0.0
        %v1877 = vmax.f32 %v1587, 0.0
        %v1878 = vmax.f32 %v1592, 0.0
        %v1879 = vmax.f32 %v1597, 0.0
        %v1880 = vmax.f32 %v1602, 0.0
        %v1881 = vmax.f32 %v1607, 0.0
        %v1882 = vmax.f32 %v1612, 0.0
        %v1883 = vmax.f32 %v1617, 0.0
        %v1884 = vmax.f32 %v1622, 0.0
        %v1885 = vmax.f32 %v1627, 0.0
        %v1886 = vmax.f32 %v1632, 0.0
        %v1887 = vmax.f32 %v1637, 0.0
        %v1888 = vmax.f32 %v1642, 0.0
        %v1889 = vmax.f32 %v1647, 0.0
        %v1890 = vmax.f32 %v1652, 0.0
        %v1891 = vmax.f32 %v1657, 0.0
        %v1892 = vmax.f32 %v1662, 0.0
        %v1893 = vmax.f32 %v1667, 0.0
        %v1894 = vmax.f32 %v1672, 0.0
        %v1895 = vmax.f32 %v1677, 0.0
        %v1896 = vmax.f32 %v1682, 0.0
        %v1897 = vmax.f32 %v1687, 0.0
        %v1898 = vmax.f32 %v1692, 0.0
        %v1899 = vmax.f32 %v1697, 0.0
        %v1900 = vmax.f32 %v1702, 0.0
        %v1901 = vmax.f32 %v1707, 0.0
        %v1902 = vmax.f32 %v1712, 0.0
        %v1903 = vmax.f32 %v1717, 0.0
        %v1904 = vmax.f32 %v1722, 0.0
        %v1905 = vmax.f32 %v1727, 0.0
        %v1906 = vmax.f32 %v1732, 0.0
        %v1907 = vmax.f32 %v1737, 0.0
        %v1908 = vmax.f32 %v1742, 0.0
        %v1909 = vmax.f32 %v1747, 0.0
        %v1910 = vmax.f32 %v1752, 0.0
        %v1911 = vmax.f32 %v1757, 0.0
        %v1912 = vmax.f32 %v1762, 0.0
        %v1913 = vmax.f32 %v1767, 0.0
        %v1914 = vmax.f32 %v1772, 0.0
        %v1915 = vmax.f32 %v1777, 0.0
        %v1916 = vmax.f32 %v1782, 0.0
        %v1917 = vmax.f32 %v1787, 0.0
        %v1918 = vmax.f32 %v1792, 0.0
        %v1919 = vmax.f32 %v1797, 0.0
        %v1920 = vmax.f32 %v1802, 0.0
        %v1921 = vmax.f32 %v1807, 0.0
        %v1922 = vmax.f32 %v1812, 0.0
        %v1923 = vmax.f32 %v1817, 0.0
        %v1924 = vmax.f32 %v1822, 0.0
        %v1925 = vmax.f32 %v1827, 0.0
        %v1926 = vmax.f32 %v1832, 0.0
        %v1927 = vmax.f32 %v1837, 0.0
        %v1928 = vmax.f32 %v1842, 0.0
        %v1929 = vmax.f32 %v1847, 0.0
        %v1930 = vmax.f32 %v1852, 0.0
        %v1931 = vmax.f32 %v1857, 0.0
        %v1932 = vmax.f32 %v1862, 0.0
        %v1933 = vmax.f32 %v1867, 0.0
        %v1934 = vld [vmem:[#allocation7] sm:$0xff]
        %v1935 = vld [vmem:[#allocation7 + $0x8] sm:$0xff]
        %v1936 = vld [vmem:[#allocation7 + $0x10] sm:$0xff]
        %v1937 = vld [vmem:[#allocation7 + $0x18] sm:$0xff]
        %v1938 = vld [vmem:[#allocation7 + $0x20] sm:$0xff]
        %v1939 = vld [vmem:[#allocation7 + $0x28] sm:$0xff]
        %v1940 = vld [vmem:[#allocation7 + $0x30] sm:$0xff]
        %v1941 = vld [vmem:[#allocation7 + $0x38] sm:$0xff]
        %vm1942 = vcmp.gt.f32.partialorder %v1934, 0.5
        %vm1943 = vcmp.gt.f32.partialorder %v1935, 0.5
        %vm1944 = vcmp.gt.f32.partialorder %v1936, 0.5
        %vm1945 = vcmp.gt.f32.partialorder %v1937, 0.5
        %vm1946 = vcmp.gt.f32.partialorder %v1938, 0.5
        %vm1947 = vcmp.gt.f32.partialorder %v1939, 0.5
        %vm1948 = vcmp.gt.f32.partialorder %v1940, 0.5
        %vm1949 = vcmp.gt.f32.partialorder %v1941, 0.5
        %s1950 = smul.u32 %s27, 8
        %s1951 = scalar_lea.vmem [#allocation2], %s1950
        %v1952 = vld [vmem:[%s1951] sm:$0x1]
        %v1953 = vld [vmem:[#allocation5] sm:$0xff]
        %v1954 = vld [vmem:[#allocation5 + $0x8] sm:$0xff]
        %v1955 = vld [vmem:[#allocation5 + $0x10] sm:$0xff]
        %v1956 = vld [vmem:[#allocation5 + $0x18] sm:$0xff]
        %v1957 = vld [vmem:[#allocation5 + $0x20] sm:$0xff]
        %v1958 = vld [vmem:[#allocation5 + $0x28] sm:$0xff]
        %v1959 = vld [vmem:[#allocation5 + $0x30] sm:$0xff]
        %v1960 = vld [vmem:[#allocation5 + $0x38] sm:$0xff]
        %v1961 = vlaneseq
        %v1962 = vshrl.u32 %v1961, 7
        %v1963 = vsub.s32 0, %v1962
        %v1964 = vrot.slane %v1952, %v1963
        %v1965 = vsub.f32 %v1953, %v1964
        %v1966 = vsub.f32 %v1954, %v1964
        %v1967 = vsub.f32 %v1955, %v1964
        %v1968 = vsub.f32 %v1956, %v1964
        %v1969 = vsub.f32 %v1957, %v1964
        %v1970 = vsub.f32 %v1958, %v1964
        %v1971 = vsub.f32 %v1959, %v1964
        %v1972 = vsub.f32 %v1960, %v1964
        %v1973 = vmul.f32 %v1965, %v1965
        %v1974 = vmul.f32 %v1966, %v1966
        %v1975 = vmul.f32 %v1967, %v1967
        %v1976 = vmul.f32 %v1968, %v1968
        %v1977 = vmul.f32 %v1969, %v1969
        %v1978 = vmul.f32 %v1970, %v1970
        %v1979 = vmul.f32 %v1971, %v1971
        %v1980 = vmul.f32 %v1972, %v1972
        %1989 = vrot.lane.b32.xlu0 %v1973, 127
        %v1990 = vpop.permute.xlu0 %1989
        %1991 = vrot.lane.b32.xlu0 %v1974, 127
        %v1992 = vpop.permute.xlu0 %1991
        %1993 = vrot.lane.b32.xlu0 %v1975, 127
        %v1994 = vpop.permute.xlu0 %1993
        %1995 = vrot.lane.b32.xlu0 %v1976, 127
        %v1996 = vpop.permute.xlu0 %1995
        %1997 = vrot.lane.b32.xlu0 %v1977, 127
        %v1998 = vpop.permute.xlu0 %1997
        %1999 = vrot.lane.b32.xlu0 %v1978, 127
        %v2000 = vpop.permute.xlu0 %1999
        %2001 = vrot.lane.b32.xlu0 %v1979, 127
        %v2002 = vpop.permute.xlu0 %2001
        %2003 = vrot.lane.b32.xlu0 %v1980, 127
        %v2004 = vpop.permute.xlu0 %2003
        %v2013 = vadd.f32 %v1973, %v1990
        %v2014 = vadd.f32 %v1974, %v1992
        %v2015 = vadd.f32 %v1975, %v1994
        %v2016 = vadd.f32 %v1976, %v1996
        %v2017 = vadd.f32 %v1977, %v1998
        %v2018 = vadd.f32 %v1978, %v2000
        %v2019 = vadd.f32 %v1979, %v2002
        %v2020 = vadd.f32 %v1980, %v2004
        %2021 = vrot.lane.b32.xlu0 %v1973, 126
        %v2022 = vpop.permute.xlu0 %2021
        %2023 = vrot.lane.b32.xlu0 %v1974, 126
        %v2024 = vpop.permute.xlu0 %2023
        %2025 = vrot.lane.b32.xlu0 %v1975, 126
        %v2026 = vpop.permute.xlu0 %2025
        %2027 = vrot.lane.b32.xlu0 %v1976, 126
        %v2028 = vpop.permute.xlu0 %2027
        %2029 = vrot.lane.b32.xlu0 %v1977, 126
        %v2030 = vpop.permute.xlu0 %2029
        %2031 = vrot.lane.b32.xlu0 %v1978, 126
        %v2032 = vpop.permute.xlu0 %2031
        %2033 = vrot.lane.b32.xlu0 %v1979, 126
        %v2034 = vpop.permute.xlu0 %2033
        %2035 = vrot.lane.b32.xlu0 %v1980, 126
        %v2036 = vpop.permute.xlu0 %2035
        %v2045 = vadd.f32 %v2013, %v2022
        %v2046 = vadd.f32 %v2014, %v2024
        %v2047 = vadd.f32 %v2015, %v2026
        %v2048 = vadd.f32 %v2016, %v2028
        %v2049 = vadd.f32 %v2017, %v2030
        %v2050 = vadd.f32 %v2018, %v2032
        %v2051 = vadd.f32 %v2019, %v2034
        %v2052 = vadd.f32 %v2020, %v2036
        %vm2053 = vcmp.lt.f32.partialorder %v2045, 0.2025
        %vm2054 = vcmp.lt.f32.partialorder %v2046, 0.2025
        %vm2055 = vcmp.lt.f32.partialorder %v2047, 0.2025
        %vm2056 = vcmp.lt.f32.partialorder %v2048, 0.2025
        %vm2057 = vcmp.lt.f32.partialorder %v2049, 0.2025
        %vm2058 = vcmp.lt.f32.partialorder %v2050, 0.2025
        %vm2059 = vcmp.lt.f32.partialorder %v2051, 0.2025
        %vm2060 = vcmp.lt.f32.partialorder %v2052, 0.2025
        %vm2061 = vmand %vm2053, %vm1942
        %vm2062 = vmand %vm2054, %vm1943
        %vm2063 = vmand %vm2055, %vm1944
        %vm2064 = vmand %vm2056, %vm1945
        %vm2065 = vmand %vm2057, %vm1946
        %vm2066 = vmand %vm2058, %vm1947
        %vm2067 = vmand %vm2059, %vm1948
        %vm2068 = vmand %vm2060, %vm1949
        %v2069 = vsel %vm2061, 1, 0
        %v2070 = vsel %vm2062, 1, 0
        %v2071 = vsel %vm2063, 1, 0
        %v2072 = vsel %vm2064, 1, 0
        %v2073 = vsel %vm2065, 1, 0
        %v2074 = vsel %vm2066, 1, 0
        %v2075 = vsel %vm2067, 1, 0
        %v2076 = vsel %vm2068, 1, 0
        %2077 = vset.pattern.permute.xlu0 0
        %2078 = vperm.xlu0 %2077, %v2069
        %v2079 = vpop.permute.xlu0 %2078
        %2080 = vset.pattern.permute.xlu0 0
        %2081 = vperm.xlu0 %2080, %v2070
        %v2082 = vpop.permute.xlu0 %2081
        %2083 = vset.pattern.permute.xlu0 0
        %2084 = vperm.xlu0 %2083, %v2071
        %v2085 = vpop.permute.xlu0 %2084
        %2086 = vset.pattern.permute.xlu0 0
        %2087 = vperm.xlu0 %2086, %v2072
        %v2088 = vpop.permute.xlu0 %2087
        %2089 = vset.pattern.permute.xlu0 0
        %2090 = vperm.xlu0 %2089, %v2073
        %v2091 = vpop.permute.xlu0 %2090
        %2092 = vset.pattern.permute.xlu0 0
        %2093 = vperm.xlu0 %2092, %v2074
        %v2094 = vpop.permute.xlu0 %2093
        %2095 = vset.pattern.permute.xlu0 0
        %2096 = vperm.xlu0 %2095, %v2075
        %v2097 = vpop.permute.xlu0 %2096
        %2098 = vset.pattern.permute.xlu0 0
        %2099 = vperm.xlu0 %2098, %v2076
        %v2100 = vpop.permute.xlu0 %2099
        %vm2101 = vcmp.eq.s32.totalorder %v2079, 1
        %vm2102 = vcmp.eq.s32.totalorder %v2082, 1
        %vm2103 = vcmp.eq.s32.totalorder %v2085, 1
        %vm2104 = vcmp.eq.s32.totalorder %v2088, 1
        %vm2105 = vcmp.eq.s32.totalorder %v2091, 1
        %vm2106 = vcmp.eq.s32.totalorder %v2094, 1
        %vm2107 = vcmp.eq.s32.totalorder %v2097, 1
        %vm2108 = vcmp.eq.s32.totalorder %v2100, 1
        %v2109 = vsel %vm2101, %v1870, -inf
        %v2110 = vsel %vm2102, %v1871, -inf
        %v2111 = vsel %vm2103, %v1872, -inf
        %v2112 = vsel %vm2104, %v1873, -inf
        %v2113 = vsel %vm2105, %v1874, -inf
        %v2114 = vsel %vm2106, %v1875, -inf
        %v2115 = vsel %vm2107, %v1876, -inf
        %v2116 = vsel %vm2108, %v1877, -inf
        %vm2117 = vcmask 261120
        %v2118 = vsel %vm2117, %v2109, -inf
        %v2119 = vsel %vm2117, %v2110, -inf
        %v2120 = vsel %vm2117, %v2111, -inf
        %v2121 = vsel %vm2117, %v2112, -inf
        %v2122 = vsel %vm2117, %v2113, -inf
        %v2123 = vmax.f32 %v2118, %v2122
        %v2124 = vsel %vm2117, %v2114, -inf
        %v2125 = vmax.f32 %v2119, %v2124
        %v2126 = vsel %vm2117, %v2115, -inf
        %v2127 = vmax.f32 %v2120, %v2126
        %v2128 = vsel %vm2117, %v2116, -inf
        %v2129 = vmax.f32 %v2121, %v2128
        %v2130 = vmax.f32 %v2123, %v2125
        %v2131 = vmax.f32 %v2127, %v2129
        %v2132 = vmax.f32 %v2130, %v2131
        %v2133 = vrot.slane %v2132, 4
        %v2134 = vmax.f32 %v2132, %v2133
        %v2135 = vrot.slane %v2134, 2
        %v2136 = vmax.f32 %v2134, %v2135
        %v2137 = vrot.slane %v2136, 1
        %v2138 = vmax.f32 %v2136, %v2137
        %s2139 = sadd.s32 %s1950, 1
        %s2140 = scalar_lea.vmem [#allocation2], %s2139
        %v2141 = vld [vmem:[%s2140] sm:$0x1]
        %v2142 = vlaneseq
        %v2143 = vshrl.u32 %v2142, 7
        %v2144 = vsub.s32 0, %v2143
        %v2145 = vrot.slane %v2141, %v2144
        %v2146 = vsub.f32 %v1953, %v2145
        %v2147 = vsub.f32 %v1954, %v2145
        %v2148 = vsub.f32 %v1955, %v2145
        %v2149 = vsub.f32 %v1956, %v2145
        %v2150 = vsub.f32 %v1957, %v2145
        %v2151 = vsub.f32 %v1958, %v2145
        %v2152 = vsub.f32 %v1959, %v2145
        %v2153 = vsub.f32 %v1960, %v2145
        %v2154 = vmul.f32 %v2146, %v2146
        %v2155 = vmul.f32 %v2147, %v2147
        %v2156 = vmul.f32 %v2148, %v2148
        %v2157 = vmul.f32 %v2149, %v2149
        %v2158 = vmul.f32 %v2150, %v2150
        %v2159 = vmul.f32 %v2151, %v2151
        %v2160 = vmul.f32 %v2152, %v2152
        %v2161 = vmul.f32 %v2153, %v2153
        %2170 = vrot.lane.b32.xlu0 %v2154, 127
        %v2171 = vpop.permute.xlu0 %2170
        %2172 = vrot.lane.b32.xlu0 %v2155, 127
        %v2173 = vpop.permute.xlu0 %2172
        %2174 = vrot.lane.b32.xlu0 %v2156, 127
        %v2175 = vpop.permute.xlu0 %2174
        %2176 = vrot.lane.b32.xlu0 %v2157, 127
        %v2177 = vpop.permute.xlu0 %2176
        %2178 = vrot.lane.b32.xlu0 %v2158, 127
        %v2179 = vpop.permute.xlu0 %2178
        %2180 = vrot.lane.b32.xlu0 %v2159, 127
        %v2181 = vpop.permute.xlu0 %2180
        %2182 = vrot.lane.b32.xlu0 %v2160, 127
        %v2183 = vpop.permute.xlu0 %2182
        %2184 = vrot.lane.b32.xlu0 %v2161, 127
        %v2185 = vpop.permute.xlu0 %2184
        %v2194 = vadd.f32 %v2154, %v2171
        %v2195 = vadd.f32 %v2155, %v2173
        %v2196 = vadd.f32 %v2156, %v2175
        %v2197 = vadd.f32 %v2157, %v2177
        %v2198 = vadd.f32 %v2158, %v2179
        %v2199 = vadd.f32 %v2159, %v2181
        %v2200 = vadd.f32 %v2160, %v2183
        %v2201 = vadd.f32 %v2161, %v2185
        %2202 = vrot.lane.b32.xlu0 %v2154, 126
        %v2203 = vpop.permute.xlu0 %2202
        %2204 = vrot.lane.b32.xlu0 %v2155, 126
        %v2205 = vpop.permute.xlu0 %2204
        %2206 = vrot.lane.b32.xlu0 %v2156, 126
        %v2207 = vpop.permute.xlu0 %2206
        %2208 = vrot.lane.b32.xlu0 %v2157, 126
        %v2209 = vpop.permute.xlu0 %2208
        %2210 = vrot.lane.b32.xlu0 %v2158, 126
        %v2211 = vpop.permute.xlu0 %2210
        %2212 = vrot.lane.b32.xlu0 %v2159, 126
        %v2213 = vpop.permute.xlu0 %2212
        %2214 = vrot.lane.b32.xlu0 %v2160, 126
        %v2215 = vpop.permute.xlu0 %2214
        %2216 = vrot.lane.b32.xlu0 %v2161, 126
        %v2217 = vpop.permute.xlu0 %2216
        %v2226 = vadd.f32 %v2194, %v2203
        %v2227 = vadd.f32 %v2195, %v2205
        %v2228 = vadd.f32 %v2196, %v2207
        %v2229 = vadd.f32 %v2197, %v2209
        %v2230 = vadd.f32 %v2198, %v2211
        %v2231 = vadd.f32 %v2199, %v2213
        %v2232 = vadd.f32 %v2200, %v2215
        %v2233 = vadd.f32 %v2201, %v2217
        %vm2234 = vcmp.lt.f32.partialorder %v2226, 0.2025
        %vm2235 = vcmp.lt.f32.partialorder %v2227, 0.2025
        %vm2236 = vcmp.lt.f32.partialorder %v2228, 0.2025
        %vm2237 = vcmp.lt.f32.partialorder %v2229, 0.2025
        %vm2238 = vcmp.lt.f32.partialorder %v2230, 0.2025
        %vm2239 = vcmp.lt.f32.partialorder %v2231, 0.2025
        %vm2240 = vcmp.lt.f32.partialorder %v2232, 0.2025
        %vm2241 = vcmp.lt.f32.partialorder %v2233, 0.2025
        %vm2242 = vmand %vm2234, %vm1942
        %vm2243 = vmand %vm2235, %vm1943
        %vm2244 = vmand %vm2236, %vm1944
        %vm2245 = vmand %vm2237, %vm1945
        %vm2246 = vmand %vm2238, %vm1946
        %vm2247 = vmand %vm2239, %vm1947
        %vm2248 = vmand %vm2240, %vm1948
        %vm2249 = vmand %vm2241, %vm1949
        %v2250 = vsel %vm2242, 1, 0
        %v2251 = vsel %vm2243, 1, 0
        %v2252 = vsel %vm2244, 1, 0
        %v2253 = vsel %vm2245, 1, 0
        %v2254 = vsel %vm2246, 1, 0
        %v2255 = vsel %vm2247, 1, 0
        %v2256 = vsel %vm2248, 1, 0
        %v2257 = vsel %vm2249, 1, 0
        %2258 = vset.pattern.permute.xlu0 0
        %2259 = vperm.xlu0 %2258, %v2250
        %v2260 = vpop.permute.xlu0 %2259
        %2261 = vset.pattern.permute.xlu0 0
        %2262 = vperm.xlu0 %2261, %v2251
        %v2263 = vpop.permute.xlu0 %2262
        %2264 = vset.pattern.permute.xlu0 0
        %2265 = vperm.xlu0 %2264, %v2252
        %v2266 = vpop.permute.xlu0 %2265
        %2267 = vset.pattern.permute.xlu0 0
        %2268 = vperm.xlu0 %2267, %v2253
        %v2269 = vpop.permute.xlu0 %2268
        %2270 = vset.pattern.permute.xlu0 0
        %2271 = vperm.xlu0 %2270, %v2254
        %v2272 = vpop.permute.xlu0 %2271
        %2273 = vset.pattern.permute.xlu0 0
        %2274 = vperm.xlu0 %2273, %v2255
        %v2275 = vpop.permute.xlu0 %2274
        %2276 = vset.pattern.permute.xlu0 0
        %2277 = vperm.xlu0 %2276, %v2256
        %v2278 = vpop.permute.xlu0 %2277
        %2279 = vset.pattern.permute.xlu0 0
        %2280 = vperm.xlu0 %2279, %v2257
        %v2281 = vpop.permute.xlu0 %2280
        %vm2282 = vcmp.eq.s32.totalorder %v2260, 1
        %vm2283 = vcmp.eq.s32.totalorder %v2263, 1
        %vm2284 = vcmp.eq.s32.totalorder %v2266, 1
        %vm2285 = vcmp.eq.s32.totalorder %v2269, 1
        %vm2286 = vcmp.eq.s32.totalorder %v2272, 1
        %vm2287 = vcmp.eq.s32.totalorder %v2275, 1
        %vm2288 = vcmp.eq.s32.totalorder %v2278, 1
        %vm2289 = vcmp.eq.s32.totalorder %v2281, 1
        %v2290 = vsel %vm2282, %v1878, -inf
        %v2291 = vsel %vm2283, %v1879, -inf
        %v2292 = vsel %vm2284, %v1880, -inf
        %v2293 = vsel %vm2285, %v1881, -inf
        %v2294 = vsel %vm2286, %v1882, -inf
        %v2295 = vsel %vm2287, %v1883, -inf
        %v2296 = vsel %vm2288, %v1884, -inf
        %v2297 = vsel %vm2289, %v1885, -inf
        %v2298 = vsel %vm2117, %v2290, -inf
        %v2299 = vsel %vm2117, %v2291, -inf
        %v2300 = vsel %vm2117, %v2292, -inf
        %v2301 = vsel %vm2117, %v2293, -inf
        %v2302 = vsel %vm2117, %v2294, -inf
        %v2303 = vmax.f32 %v2298, %v2302
        %v2304 = vsel %vm2117, %v2295, -inf
        %v2305 = vmax.f32 %v2299, %v2304
        %v2306 = vsel %vm2117, %v2296, -inf
        %v2307 = vmax.f32 %v2300, %v2306
        %v2308 = vsel %vm2117, %v2297, -inf
        %v2309 = vmax.f32 %v2301, %v2308
        %v2310 = vmax.f32 %v2303, %v2305
        %v2311 = vmax.f32 %v2307, %v2309
        %v2312 = vmax.f32 %v2310, %v2311
        %v2313 = vrot.slane %v2312, 4
        %v2314 = vmax.f32 %v2312, %v2313
        %v2315 = vrot.slane %v2314, 2
        %v2316 = vmax.f32 %v2314, %v2315
        %v2317 = vrot.slane %v2316, 1
        %v2318 = vmax.f32 %v2316, %v2317
        %s2319 = sadd.s32 %s1950, 2
        %s2320 = scalar_lea.vmem [#allocation2], %s2319
        %v2321 = vld [vmem:[%s2320] sm:$0x1]
        %v2322 = vlaneseq
        %v2323 = vshrl.u32 %v2322, 7
        %v2324 = vsub.s32 0, %v2323
        %v2325 = vrot.slane %v2321, %v2324
        %v2326 = vsub.f32 %v1953, %v2325
        %v2327 = vsub.f32 %v1954, %v2325
        %v2328 = vsub.f32 %v1955, %v2325
        %v2329 = vsub.f32 %v1956, %v2325
        %v2330 = vsub.f32 %v1957, %v2325
        %v2331 = vsub.f32 %v1958, %v2325
        %v2332 = vsub.f32 %v1959, %v2325
        %v2333 = vsub.f32 %v1960, %v2325
        %v2334 = vmul.f32 %v2326, %v2326
        %v2335 = vmul.f32 %v2327, %v2327
        %v2336 = vmul.f32 %v2328, %v2328
        %v2337 = vmul.f32 %v2329, %v2329
        %v2338 = vmul.f32 %v2330, %v2330
        %v2339 = vmul.f32 %v2331, %v2331
        %v2340 = vmul.f32 %v2332, %v2332
        %v2341 = vmul.f32 %v2333, %v2333
        %2350 = vrot.lane.b32.xlu0 %v2334, 127
        %v2351 = vpop.permute.xlu0 %2350
        %2352 = vrot.lane.b32.xlu0 %v2335, 127
        %v2353 = vpop.permute.xlu0 %2352
        %2354 = vrot.lane.b32.xlu0 %v2336, 127
        %v2355 = vpop.permute.xlu0 %2354
        %2356 = vrot.lane.b32.xlu0 %v2337, 127
        %v2357 = vpop.permute.xlu0 %2356
        %2358 = vrot.lane.b32.xlu0 %v2338, 127
        %v2359 = vpop.permute.xlu0 %2358
        %2360 = vrot.lane.b32.xlu0 %v2339, 127
        %v2361 = vpop.permute.xlu0 %2360
        %2362 = vrot.lane.b32.xlu0 %v2340, 127
        %v2363 = vpop.permute.xlu0 %2362
        %2364 = vrot.lane.b32.xlu0 %v2341, 127
        %v2365 = vpop.permute.xlu0 %2364
        %v2374 = vadd.f32 %v2334, %v2351
        %v2375 = vadd.f32 %v2335, %v2353
        %v2376 = vadd.f32 %v2336, %v2355
        %v2377 = vadd.f32 %v2337, %v2357
        %v2378 = vadd.f32 %v2338, %v2359
        %v2379 = vadd.f32 %v2339, %v2361
        %v2380 = vadd.f32 %v2340, %v2363
        %v2381 = vadd.f32 %v2341, %v2365
        %2382 = vrot.lane.b32.xlu0 %v2334, 126
        %v2383 = vpop.permute.xlu0 %2382
        %2384 = vrot.lane.b32.xlu0 %v2335, 126
        %v2385 = vpop.permute.xlu0 %2384
        %2386 = vrot.lane.b32.xlu0 %v2336, 126
        %v2387 = vpop.permute.xlu0 %2386
        %2388 = vrot.lane.b32.xlu0 %v2337, 126
        %v2389 = vpop.permute.xlu0 %2388
        %2390 = vrot.lane.b32.xlu0 %v2338, 126
        %v2391 = vpop.permute.xlu0 %2390
        %2392 = vrot.lane.b32.xlu0 %v2339, 126
        %v2393 = vpop.permute.xlu0 %2392
        %2394 = vrot.lane.b32.xlu0 %v2340, 126
        %v2395 = vpop.permute.xlu0 %2394
        %2396 = vrot.lane.b32.xlu0 %v2341, 126
        %v2397 = vpop.permute.xlu0 %2396
        %v2406 = vadd.f32 %v2374, %v2383
        %v2407 = vadd.f32 %v2375, %v2385
        %v2408 = vadd.f32 %v2376, %v2387
        %v2409 = vadd.f32 %v2377, %v2389
        %v2410 = vadd.f32 %v2378, %v2391
        %v2411 = vadd.f32 %v2379, %v2393
        %v2412 = vadd.f32 %v2380, %v2395
        %v2413 = vadd.f32 %v2381, %v2397
        %vm2414 = vcmp.lt.f32.partialorder %v2406, 0.2025
        %vm2415 = vcmp.lt.f32.partialorder %v2407, 0.2025
        %vm2416 = vcmp.lt.f32.partialorder %v2408, 0.2025
        %vm2417 = vcmp.lt.f32.partialorder %v2409, 0.2025
        %vm2418 = vcmp.lt.f32.partialorder %v2410, 0.2025
        %vm2419 = vcmp.lt.f32.partialorder %v2411, 0.2025
        %vm2420 = vcmp.lt.f32.partialorder %v2412, 0.2025
        %vm2421 = vcmp.lt.f32.partialorder %v2413, 0.2025
        %vm2422 = vmand %vm2414, %vm1942
        %vm2423 = vmand %vm2415, %vm1943
        %vm2424 = vmand %vm2416, %vm1944
        %vm2425 = vmand %vm2417, %vm1945
        %vm2426 = vmand %vm2418, %vm1946
        %vm2427 = vmand %vm2419, %vm1947
        %vm2428 = vmand %vm2420, %vm1948
        %vm2429 = vmand %vm2421, %vm1949
        %v2430 = vsel %vm2422, 1, 0
        %v2431 = vsel %vm2423, 1, 0
        %v2432 = vsel %vm2424, 1, 0
        %v2433 = vsel %vm2425, 1, 0
        %v2434 = vsel %vm2426, 1, 0
        %v2435 = vsel %vm2427, 1, 0
        %v2436 = vsel %vm2428, 1, 0
        %v2437 = vsel %vm2429, 1, 0
        %2438 = vset.pattern.permute.xlu0 0
        %2439 = vperm.xlu0 %2438, %v2430
        %v2440 = vpop.permute.xlu0 %2439
        %2441 = vset.pattern.permute.xlu0 0
        %2442 = vperm.xlu0 %2441, %v2431
        %v2443 = vpop.permute.xlu0 %2442
        %2444 = vset.pattern.permute.xlu0 0
        %2445 = vperm.xlu0 %2444, %v2432
        %v2446 = vpop.permute.xlu0 %2445
        %2447 = vset.pattern.permute.xlu0 0
        %2448 = vperm.xlu0 %2447, %v2433
        %v2449 = vpop.permute.xlu0 %2448
        %2450 = vset.pattern.permute.xlu0 0
        %2451 = vperm.xlu0 %2450, %v2434
        %v2452 = vpop.permute.xlu0 %2451
        %2453 = vset.pattern.permute.xlu0 0
        %2454 = vperm.xlu0 %2453, %v2435
        %v2455 = vpop.permute.xlu0 %2454
        %2456 = vset.pattern.permute.xlu0 0
        %2457 = vperm.xlu0 %2456, %v2436
        %v2458 = vpop.permute.xlu0 %2457
        %2459 = vset.pattern.permute.xlu0 0
        %2460 = vperm.xlu0 %2459, %v2437
        %v2461 = vpop.permute.xlu0 %2460
        %vm2462 = vcmp.eq.s32.totalorder %v2440, 1
        %vm2463 = vcmp.eq.s32.totalorder %v2443, 1
        %vm2464 = vcmp.eq.s32.totalorder %v2446, 1
        %vm2465 = vcmp.eq.s32.totalorder %v2449, 1
        %vm2466 = vcmp.eq.s32.totalorder %v2452, 1
        %vm2467 = vcmp.eq.s32.totalorder %v2455, 1
        %vm2468 = vcmp.eq.s32.totalorder %v2458, 1
        %vm2469 = vcmp.eq.s32.totalorder %v2461, 1
        %v2470 = vsel %vm2462, %v1886, -inf
        %v2471 = vsel %vm2463, %v1887, -inf
        %v2472 = vsel %vm2464, %v1888, -inf
        %v2473 = vsel %vm2465, %v1889, -inf
        %v2474 = vsel %vm2466, %v1890, -inf
        %v2475 = vsel %vm2467, %v1891, -inf
        %v2476 = vsel %vm2468, %v1892, -inf
        %v2477 = vsel %vm2469, %v1893, -inf
        %v2478 = vsel %vm2117, %v2470, -inf
        %v2479 = vsel %vm2117, %v2471, -inf
        %v2480 = vsel %vm2117, %v2472, -inf
        %v2481 = vsel %vm2117, %v2473, -inf
        %v2482 = vsel %vm2117, %v2474, -inf
        %v2483 = vmax.f32 %v2478, %v2482
        %v2484 = vsel %vm2117, %v2475, -inf
        %v2485 = vmax.f32 %v2479, %v2484
        %v2486 = vsel %vm2117, %v2476, -inf
        %v2487 = vmax.f32 %v2480, %v2486
        %v2488 = vsel %vm2117, %v2477, -inf
        %v2489 = vmax.f32 %v2481, %v2488
        %v2490 = vmax.f32 %v2483, %v2485
        %v2491 = vmax.f32 %v2487, %v2489
        %v2492 = vmax.f32 %v2490, %v2491
        %v2493 = vrot.slane %v2492, 4
        %v2494 = vmax.f32 %v2492, %v2493
        %v2495 = vrot.slane %v2494, 2
        %v2496 = vmax.f32 %v2494, %v2495
        %v2497 = vrot.slane %v2496, 1
        %v2498 = vmax.f32 %v2496, %v2497
        %s2499 = sadd.s32 %s1950, 3
        %s2500 = scalar_lea.vmem [#allocation2], %s2499
        %v2501 = vld [vmem:[%s2500] sm:$0x1]
        %v2502 = vlaneseq
        %v2503 = vshrl.u32 %v2502, 7
        %v2504 = vsub.s32 0, %v2503
        %v2505 = vrot.slane %v2501, %v2504
        %v2506 = vsub.f32 %v1953, %v2505
        %v2507 = vsub.f32 %v1954, %v2505
        %v2508 = vsub.f32 %v1955, %v2505
        %v2509 = vsub.f32 %v1956, %v2505
        %v2510 = vsub.f32 %v1957, %v2505
        %v2511 = vsub.f32 %v1958, %v2505
        %v2512 = vsub.f32 %v1959, %v2505
        %v2513 = vsub.f32 %v1960, %v2505
        %v2514 = vmul.f32 %v2506, %v2506
        %v2515 = vmul.f32 %v2507, %v2507
        %v2516 = vmul.f32 %v2508, %v2508
        %v2517 = vmul.f32 %v2509, %v2509
        %v2518 = vmul.f32 %v2510, %v2510
        %v2519 = vmul.f32 %v2511, %v2511
        %v2520 = vmul.f32 %v2512, %v2512
        %v2521 = vmul.f32 %v2513, %v2513
        %2530 = vrot.lane.b32.xlu0 %v2514, 127
        %v2531 = vpop.permute.xlu0 %2530
        %2532 = vrot.lane.b32.xlu0 %v2515, 127
        %v2533 = vpop.permute.xlu0 %2532
        %2534 = vrot.lane.b32.xlu0 %v2516, 127
        %v2535 = vpop.permute.xlu0 %2534
        %2536 = vrot.lane.b32.xlu0 %v2517, 127
        %v2537 = vpop.permute.xlu0 %2536
        %2538 = vrot.lane.b32.xlu0 %v2518, 127
        %v2539 = vpop.permute.xlu0 %2538
        %2540 = vrot.lane.b32.xlu0 %v2519, 127
        %v2541 = vpop.permute.xlu0 %2540
        %2542 = vrot.lane.b32.xlu0 %v2520, 127
        %v2543 = vpop.permute.xlu0 %2542
        %2544 = vrot.lane.b32.xlu0 %v2521, 127
        %v2545 = vpop.permute.xlu0 %2544
        %v2554 = vadd.f32 %v2514, %v2531
        %v2555 = vadd.f32 %v2515, %v2533
        %v2556 = vadd.f32 %v2516, %v2535
        %v2557 = vadd.f32 %v2517, %v2537
        %v2558 = vadd.f32 %v2518, %v2539
        %v2559 = vadd.f32 %v2519, %v2541
        %v2560 = vadd.f32 %v2520, %v2543
        %v2561 = vadd.f32 %v2521, %v2545
        %2562 = vrot.lane.b32.xlu0 %v2514, 126
        %v2563 = vpop.permute.xlu0 %2562
        %2564 = vrot.lane.b32.xlu0 %v2515, 126
        %v2565 = vpop.permute.xlu0 %2564
        %2566 = vrot.lane.b32.xlu0 %v2516, 126
        %v2567 = vpop.permute.xlu0 %2566
        %2568 = vrot.lane.b32.xlu0 %v2517, 126
        %v2569 = vpop.permute.xlu0 %2568
        %2570 = vrot.lane.b32.xlu0 %v2518, 126
        %v2571 = vpop.permute.xlu0 %2570
        %2572 = vrot.lane.b32.xlu0 %v2519, 126
        %v2573 = vpop.permute.xlu0 %2572
        %2574 = vrot.lane.b32.xlu0 %v2520, 126
        %v2575 = vpop.permute.xlu0 %2574
        %2576 = vrot.lane.b32.xlu0 %v2521, 126
        %v2577 = vpop.permute.xlu0 %2576
        %v2586 = vadd.f32 %v2554, %v2563
        %v2587 = vadd.f32 %v2555, %v2565
        %v2588 = vadd.f32 %v2556, %v2567
        %v2589 = vadd.f32 %v2557, %v2569
        %v2590 = vadd.f32 %v2558, %v2571
        %v2591 = vadd.f32 %v2559, %v2573
        %v2592 = vadd.f32 %v2560, %v2575
        %v2593 = vadd.f32 %v2561, %v2577
        %vm2594 = vcmp.lt.f32.partialorder %v2586, 0.2025
        %vm2595 = vcmp.lt.f32.partialorder %v2587, 0.2025
        %vm2596 = vcmp.lt.f32.partialorder %v2588, 0.2025
        %vm2597 = vcmp.lt.f32.partialorder %v2589, 0.2025
        %vm2598 = vcmp.lt.f32.partialorder %v2590, 0.2025
        %vm2599 = vcmp.lt.f32.partialorder %v2591, 0.2025
        %vm2600 = vcmp.lt.f32.partialorder %v2592, 0.2025
        %vm2601 = vcmp.lt.f32.partialorder %v2593, 0.2025
        %vm2602 = vmand %vm2594, %vm1942
        %vm2603 = vmand %vm2595, %vm1943
        %vm2604 = vmand %vm2596, %vm1944
        %vm2605 = vmand %vm2597, %vm1945
        %vm2606 = vmand %vm2598, %vm1946
        %vm2607 = vmand %vm2599, %vm1947
        %vm2608 = vmand %vm2600, %vm1948
        %vm2609 = vmand %vm2601, %vm1949
        %v2610 = vsel %vm2602, 1, 0
        %v2611 = vsel %vm2603, 1, 0
        %v2612 = vsel %vm2604, 1, 0
        %v2613 = vsel %vm2605, 1, 0
        %v2614 = vsel %vm2606, 1, 0
        %v2615 = vsel %vm2607, 1, 0
        %v2616 = vsel %vm2608, 1, 0
        %v2617 = vsel %vm2609, 1, 0
        %2618 = vset.pattern.permute.xlu0 0
        %2619 = vperm.xlu0 %2618, %v2610
        %v2620 = vpop.permute.xlu0 %2619
        %2621 = vset.pattern.permute.xlu0 0
        %2622 = vperm.xlu0 %2621, %v2611
        %v2623 = vpop.permute.xlu0 %2622
        %2624 = vset.pattern.permute.xlu0 0
        %2625 = vperm.xlu0 %2624, %v2612
        %v2626 = vpop.permute.xlu0 %2625
        %2627 = vset.pattern.permute.xlu0 0
        %2628 = vperm.xlu0 %2627, %v2613
        %v2629 = vpop.permute.xlu0 %2628
        %2630 = vset.pattern.permute.xlu0 0
        %2631 = vperm.xlu0 %2630, %v2614
        %v2632 = vpop.permute.xlu0 %2631
        %2633 = vset.pattern.permute.xlu0 0
        %2634 = vperm.xlu0 %2633, %v2615
        %v2635 = vpop.permute.xlu0 %2634
        %2636 = vset.pattern.permute.xlu0 0
        %2637 = vperm.xlu0 %2636, %v2616
        %v2638 = vpop.permute.xlu0 %2637
        %2639 = vset.pattern.permute.xlu0 0
        %2640 = vperm.xlu0 %2639, %v2617
        %v2641 = vpop.permute.xlu0 %2640
        %vm2642 = vcmp.eq.s32.totalorder %v2620, 1
        %vm2643 = vcmp.eq.s32.totalorder %v2623, 1
        %vm2644 = vcmp.eq.s32.totalorder %v2626, 1
        %vm2645 = vcmp.eq.s32.totalorder %v2629, 1
        %vm2646 = vcmp.eq.s32.totalorder %v2632, 1
        %vm2647 = vcmp.eq.s32.totalorder %v2635, 1
        %vm2648 = vcmp.eq.s32.totalorder %v2638, 1
        %vm2649 = vcmp.eq.s32.totalorder %v2641, 1
        %v2650 = vsel %vm2642, %v1894, -inf
        %v2651 = vsel %vm2643, %v1895, -inf
        %v2652 = vsel %vm2644, %v1896, -inf
        %v2653 = vsel %vm2645, %v1897, -inf
        %v2654 = vsel %vm2646, %v1898, -inf
        %v2655 = vsel %vm2647, %v1899, -inf
        %v2656 = vsel %vm2648, %v1900, -inf
        %v2657 = vsel %vm2649, %v1901, -inf
        %v2658 = vsel %vm2117, %v2650, -inf
        %v2659 = vsel %vm2117, %v2651, -inf
        %v2660 = vsel %vm2117, %v2652, -inf
        %v2661 = vsel %vm2117, %v2653, -inf
        %v2662 = vsel %vm2117, %v2654, -inf
        %v2663 = vmax.f32 %v2658, %v2662
        %v2664 = vsel %vm2117, %v2655, -inf
        %v2665 = vmax.f32 %v2659, %v2664
        %v2666 = vsel %vm2117, %v2656, -inf
        %v2667 = vmax.f32 %v2660, %v2666
        %v2668 = vsel %vm2117, %v2657, -inf
        %v2669 = vmax.f32 %v2661, %v2668
        %v2670 = vmax.f32 %v2663, %v2665
        %v2671 = vmax.f32 %v2667, %v2669
        %v2672 = vmax.f32 %v2670, %v2671
        %v2673 = vrot.slane %v2672, 4
        %v2674 = vmax.f32 %v2672, %v2673
        %v2675 = vrot.slane %v2674, 2
        %v2676 = vmax.f32 %v2674, %v2675
        %v2677 = vrot.slane %v2676, 1
        %v2678 = vmax.f32 %v2676, %v2677
        %s2679 = sadd.s32 %s1950, 4
        %s2680 = scalar_lea.vmem [#allocation2], %s2679
        %v2681 = vld [vmem:[%s2680] sm:$0x1]
        %v2682 = vlaneseq
        %v2683 = vshrl.u32 %v2682, 7
        %v2684 = vsub.s32 0, %v2683
        %v2685 = vrot.slane %v2681, %v2684
        %v2686 = vsub.f32 %v1953, %v2685
        %v2687 = vsub.f32 %v1954, %v2685
        %v2688 = vsub.f32 %v1955, %v2685
        %v2689 = vsub.f32 %v1956, %v2685
        %v2690 = vsub.f32 %v1957, %v2685
        %v2691 = vsub.f32 %v1958, %v2685
        %v2692 = vsub.f32 %v1959, %v2685
        %v2693 = vsub.f32 %v1960, %v2685
        %v2694 = vmul.f32 %v2686, %v2686
        %v2695 = vmul.f32 %v2687, %v2687
        %v2696 = vmul.f32 %v2688, %v2688
        %v2697 = vmul.f32 %v2689, %v2689
        %v2698 = vmul.f32 %v2690, %v2690
        %v2699 = vmul.f32 %v2691, %v2691
        %v2700 = vmul.f32 %v2692, %v2692
        %v2701 = vmul.f32 %v2693, %v2693
        %2710 = vrot.lane.b32.xlu0 %v2694, 127
        %v2711 = vpop.permute.xlu0 %2710
        %2712 = vrot.lane.b32.xlu0 %v2695, 127
        %v2713 = vpop.permute.xlu0 %2712
        %2714 = vrot.lane.b32.xlu0 %v2696, 127
        %v2715 = vpop.permute.xlu0 %2714
        %2716 = vrot.lane.b32.xlu0 %v2697, 127
        %v2717 = vpop.permute.xlu0 %2716
        %2718 = vrot.lane.b32.xlu0 %v2698, 127
        %v2719 = vpop.permute.xlu0 %2718
        %2720 = vrot.lane.b32.xlu0 %v2699, 127
        %v2721 = vpop.permute.xlu0 %2720
        %2722 = vrot.lane.b32.xlu0 %v2700, 127
        %v2723 = vpop.permute.xlu0 %2722
        %2724 = vrot.lane.b32.xlu0 %v2701, 127
        %v2725 = vpop.permute.xlu0 %2724
        %v2734 = vadd.f32 %v2694, %v2711
        %v2735 = vadd.f32 %v2695, %v2713
        %v2736 = vadd.f32 %v2696, %v2715
        %v2737 = vadd.f32 %v2697, %v2717
        %v2738 = vadd.f32 %v2698, %v2719
        %v2739 = vadd.f32 %v2699, %v2721
        %v2740 = vadd.f32 %v2700, %v2723
        %v2741 = vadd.f32 %v2701, %v2725
        %2742 = vrot.lane.b32.xlu0 %v2694, 126
        %v2743 = vpop.permute.xlu0 %2742
        %2744 = vrot.lane.b32.xlu0 %v2695, 126
        %v2745 = vpop.permute.xlu0 %2744
        %2746 = vrot.lane.b32.xlu0 %v2696, 126
        %v2747 = vpop.permute.xlu0 %2746
        %2748 = vrot.lane.b32.xlu0 %v2697, 126
        %v2749 = vpop.permute.xlu0 %2748
        %2750 = vrot.lane.b32.xlu0 %v2698, 126
        %v2751 = vpop.permute.xlu0 %2750
        %2752 = vrot.lane.b32.xlu0 %v2699, 126
        %v2753 = vpop.permute.xlu0 %2752
        %2754 = vrot.lane.b32.xlu0 %v2700, 126
        %v2755 = vpop.permute.xlu0 %2754
        %2756 = vrot.lane.b32.xlu0 %v2701, 126
        %v2757 = vpop.permute.xlu0 %2756
        %v2766 = vadd.f32 %v2734, %v2743
        %v2767 = vadd.f32 %v2735, %v2745
        %v2768 = vadd.f32 %v2736, %v2747
        %v2769 = vadd.f32 %v2737, %v2749
        %v2770 = vadd.f32 %v2738, %v2751
        %v2771 = vadd.f32 %v2739, %v2753
        %v2772 = vadd.f32 %v2740, %v2755
        %v2773 = vadd.f32 %v2741, %v2757
        %vm2774 = vcmp.lt.f32.partialorder %v2766, 0.2025
        %vm2775 = vcmp.lt.f32.partialorder %v2767, 0.2025
        %vm2776 = vcmp.lt.f32.partialorder %v2768, 0.2025
        %vm2777 = vcmp.lt.f32.partialorder %v2769, 0.2025
        %vm2778 = vcmp.lt.f32.partialorder %v2770, 0.2025
        %vm2779 = vcmp.lt.f32.partialorder %v2771, 0.2025
        %vm2780 = vcmp.lt.f32.partialorder %v2772, 0.2025
        %vm2781 = vcmp.lt.f32.partialorder %v2773, 0.2025
        %vm2782 = vmand %vm2774, %vm1942
        %vm2783 = vmand %vm2775, %vm1943
        %vm2784 = vmand %vm2776, %vm1944
        %vm2785 = vmand %vm2777, %vm1945
        %vm2786 = vmand %vm2778, %vm1946
        %vm2787 = vmand %vm2779, %vm1947
        %vm2788 = vmand %vm2780, %vm1948
        %vm2789 = vmand %vm2781, %vm1949
        %v2790 = vsel %vm2782, 1, 0
        %v2791 = vsel %vm2783, 1, 0
        %v2792 = vsel %vm2784, 1, 0
        %v2793 = vsel %vm2785, 1, 0
        %v2794 = vsel %vm2786, 1, 0
        %v2795 = vsel %vm2787, 1, 0
        %v2796 = vsel %vm2788, 1, 0
        %v2797 = vsel %vm2789, 1, 0
        %2798 = vset.pattern.permute.xlu0 0
        %2799 = vperm.xlu0 %2798, %v2790
        %v2800 = vpop.permute.xlu0 %2799
        %2801 = vset.pattern.permute.xlu0 0
        %2802 = vperm.xlu0 %2801, %v2791
        %v2803 = vpop.permute.xlu0 %2802
        %2804 = vset.pattern.permute.xlu0 0
        %2805 = vperm.xlu0 %2804, %v2792
        %v2806 = vpop.permute.xlu0 %2805
        %2807 = vset.pattern.permute.xlu0 0
        %2808 = vperm.xlu0 %2807, %v2793
        %v2809 = vpop.permute.xlu0 %2808
        %2810 = vset.pattern.permute.xlu0 0
        %2811 = vperm.xlu0 %2810, %v2794
        %v2812 = vpop.permute.xlu0 %2811
        %2813 = vset.pattern.permute.xlu0 0
        %2814 = vperm.xlu0 %2813, %v2795
        %v2815 = vpop.permute.xlu0 %2814
        %2816 = vset.pattern.permute.xlu0 0
        %2817 = vperm.xlu0 %2816, %v2796
        %v2818 = vpop.permute.xlu0 %2817
        %2819 = vset.pattern.permute.xlu0 0
        %2820 = vperm.xlu0 %2819, %v2797
        %v2821 = vpop.permute.xlu0 %2820
        %vm2822 = vcmp.eq.s32.totalorder %v2800, 1
        %vm2823 = vcmp.eq.s32.totalorder %v2803, 1
        %vm2824 = vcmp.eq.s32.totalorder %v2806, 1
        %vm2825 = vcmp.eq.s32.totalorder %v2809, 1
        %vm2826 = vcmp.eq.s32.totalorder %v2812, 1
        %vm2827 = vcmp.eq.s32.totalorder %v2815, 1
        %vm2828 = vcmp.eq.s32.totalorder %v2818, 1
        %vm2829 = vcmp.eq.s32.totalorder %v2821, 1
        %v2830 = vsel %vm2822, %v1902, -inf
        %v2831 = vsel %vm2823, %v1903, -inf
        %v2832 = vsel %vm2824, %v1904, -inf
        %v2833 = vsel %vm2825, %v1905, -inf
        %v2834 = vsel %vm2826, %v1906, -inf
        %v2835 = vsel %vm2827, %v1907, -inf
        %v2836 = vsel %vm2828, %v1908, -inf
        %v2837 = vsel %vm2829, %v1909, -inf
        %v2838 = vsel %vm2117, %v2830, -inf
        %v2839 = vsel %vm2117, %v2831, -inf
        %v2840 = vsel %vm2117, %v2832, -inf
        %v2841 = vsel %vm2117, %v2833, -inf
        %v2842 = vsel %vm2117, %v2834, -inf
        %v2843 = vmax.f32 %v2838, %v2842
        %v2844 = vsel %vm2117, %v2835, -inf
        %v2845 = vmax.f32 %v2839, %v2844
        %v2846 = vsel %vm2117, %v2836, -inf
        %v2847 = vmax.f32 %v2840, %v2846
        %v2848 = vsel %vm2117, %v2837, -inf
        %v2849 = vmax.f32 %v2841, %v2848
        %v2850 = vmax.f32 %v2843, %v2845
        %v2851 = vmax.f32 %v2847, %v2849
        %v2852 = vmax.f32 %v2850, %v2851
        %v2853 = vrot.slane %v2852, 4
        %v2854 = vmax.f32 %v2852, %v2853
        %v2855 = vrot.slane %v2854, 2
        %v2856 = vmax.f32 %v2854, %v2855
        %v2857 = vrot.slane %v2856, 1
        %v2858 = vmax.f32 %v2856, %v2857
        %s2859 = sadd.s32 %s1950, 5
        %s2860 = scalar_lea.vmem [#allocation2], %s2859
        %v2861 = vld [vmem:[%s2860] sm:$0x1]
        %v2862 = vlaneseq
        %v2863 = vshrl.u32 %v2862, 7
        %v2864 = vsub.s32 0, %v2863
        %v2865 = vrot.slane %v2861, %v2864
        %v2866 = vsub.f32 %v1953, %v2865
        %v2867 = vsub.f32 %v1954, %v2865
        %v2868 = vsub.f32 %v1955, %v2865
        %v2869 = vsub.f32 %v1956, %v2865
        %v2870 = vsub.f32 %v1957, %v2865
        %v2871 = vsub.f32 %v1958, %v2865
        %v2872 = vsub.f32 %v1959, %v2865
        %v2873 = vsub.f32 %v1960, %v2865
        %v2874 = vmul.f32 %v2866, %v2866
        %v2875 = vmul.f32 %v2867, %v2867
        %v2876 = vmul.f32 %v2868, %v2868
        %v2877 = vmul.f32 %v2869, %v2869
        %v2878 = vmul.f32 %v2870, %v2870
        %v2879 = vmul.f32 %v2871, %v2871
        %v2880 = vmul.f32 %v2872, %v2872
        %v2881 = vmul.f32 %v2873, %v2873
        %2890 = vrot.lane.b32.xlu0 %v2874, 127
        %v2891 = vpop.permute.xlu0 %2890
        %2892 = vrot.lane.b32.xlu0 %v2875, 127
        %v2893 = vpop.permute.xlu0 %2892
        %2894 = vrot.lane.b32.xlu0 %v2876, 127
        %v2895 = vpop.permute.xlu0 %2894
        %2896 = vrot.lane.b32.xlu0 %v2877, 127
        %v2897 = vpop.permute.xlu0 %2896
        %2898 = vrot.lane.b32.xlu0 %v2878, 127
        %v2899 = vpop.permute.xlu0 %2898
        %2900 = vrot.lane.b32.xlu0 %v2879, 127
        %v2901 = vpop.permute.xlu0 %2900
        %2902 = vrot.lane.b32.xlu0 %v2880, 127
        %v2903 = vpop.permute.xlu0 %2902
        %2904 = vrot.lane.b32.xlu0 %v2881, 127
        %v2905 = vpop.permute.xlu0 %2904
        %v2914 = vadd.f32 %v2874, %v2891
        %v2915 = vadd.f32 %v2875, %v2893
        %v2916 = vadd.f32 %v2876, %v2895
        %v2917 = vadd.f32 %v2877, %v2897
        %v2918 = vadd.f32 %v2878, %v2899
        %v2919 = vadd.f32 %v2879, %v2901
        %v2920 = vadd.f32 %v2880, %v2903
        %v2921 = vadd.f32 %v2881, %v2905
        %2922 = vrot.lane.b32.xlu0 %v2874, 126
        %v2923 = vpop.permute.xlu0 %2922
        %2924 = vrot.lane.b32.xlu0 %v2875, 126
        %v2925 = vpop.permute.xlu0 %2924
        %2926 = vrot.lane.b32.xlu0 %v2876, 126
        %v2927 = vpop.permute.xlu0 %2926
        %2928 = vrot.lane.b32.xlu0 %v2877, 126
        %v2929 = vpop.permute.xlu0 %2928
        %2930 = vrot.lane.b32.xlu0 %v2878, 126
        %v2931 = vpop.permute.xlu0 %2930
        %2932 = vrot.lane.b32.xlu0 %v2879, 126
        %v2933 = vpop.permute.xlu0 %2932
        %2934 = vrot.lane.b32.xlu0 %v2880, 126
        %v2935 = vpop.permute.xlu0 %2934
        %2936 = vrot.lane.b32.xlu0 %v2881, 126
        %v2937 = vpop.permute.xlu0 %2936
        %v2946 = vadd.f32 %v2914, %v2923
        %v2947 = vadd.f32 %v2915, %v2925
        %v2948 = vadd.f32 %v2916, %v2927
        %v2949 = vadd.f32 %v2917, %v2929
        %v2950 = vadd.f32 %v2918, %v2931
        %v2951 = vadd.f32 %v2919, %v2933
        %v2952 = vadd.f32 %v2920, %v2935
        %v2953 = vadd.f32 %v2921, %v2937
        %vm2954 = vcmp.lt.f32.partialorder %v2946, 0.2025
        %vm2955 = vcmp.lt.f32.partialorder %v2947, 0.2025
        %vm2956 = vcmp.lt.f32.partialorder %v2948, 0.2025
        %vm2957 = vcmp.lt.f32.partialorder %v2949, 0.2025
        %vm2958 = vcmp.lt.f32.partialorder %v2950, 0.2025
        %vm2959 = vcmp.lt.f32.partialorder %v2951, 0.2025
        %vm2960 = vcmp.lt.f32.partialorder %v2952, 0.2025
        %vm2961 = vcmp.lt.f32.partialorder %v2953, 0.2025
        %vm2962 = vmand %vm2954, %vm1942
        %vm2963 = vmand %vm2955, %vm1943
        %vm2964 = vmand %vm2956, %vm1944
        %vm2965 = vmand %vm2957, %vm1945
        %vm2966 = vmand %vm2958, %vm1946
        %vm2967 = vmand %vm2959, %vm1947
        %vm2968 = vmand %vm2960, %vm1948
        %vm2969 = vmand %vm2961, %vm1949
        %v2970 = vsel %vm2962, 1, 0
        %v2971 = vsel %vm2963, 1, 0
        %v2972 = vsel %vm2964, 1, 0
        %v2973 = vsel %vm2965, 1, 0
        %v2974 = vsel %vm2966, 1, 0
        %v2975 = vsel %vm2967, 1, 0
        %v2976 = vsel %vm2968, 1, 0
        %v2977 = vsel %vm2969, 1, 0
        %2978 = vset.pattern.permute.xlu0 0
        %2979 = vperm.xlu0 %2978, %v2970
        %v2980 = vpop.permute.xlu0 %2979
        %2981 = vset.pattern.permute.xlu0 0
        %2982 = vperm.xlu0 %2981, %v2971
        %v2983 = vpop.permute.xlu0 %2982
        %2984 = vset.pattern.permute.xlu0 0
        %2985 = vperm.xlu0 %2984, %v2972
        %v2986 = vpop.permute.xlu0 %2985
        %2987 = vset.pattern.permute.xlu0 0
        %2988 = vperm.xlu0 %2987, %v2973
        %v2989 = vpop.permute.xlu0 %2988
        %2990 = vset.pattern.permute.xlu0 0
        %2991 = vperm.xlu0 %2990, %v2974
        %v2992 = vpop.permute.xlu0 %2991
        %2993 = vset.pattern.permute.xlu0 0
        %2994 = vperm.xlu0 %2993, %v2975
        %v2995 = vpop.permute.xlu0 %2994
        %2996 = vset.pattern.permute.xlu0 0
        %2997 = vperm.xlu0 %2996, %v2976
        %v2998 = vpop.permute.xlu0 %2997
        %2999 = vset.pattern.permute.xlu0 0
        %3000 = vperm.xlu0 %2999, %v2977
        %v3001 = vpop.permute.xlu0 %3000
        %vm3002 = vcmp.eq.s32.totalorder %v2980, 1
        %vm3003 = vcmp.eq.s32.totalorder %v2983, 1
        %vm3004 = vcmp.eq.s32.totalorder %v2986, 1
        %vm3005 = vcmp.eq.s32.totalorder %v2989, 1
        %vm3006 = vcmp.eq.s32.totalorder %v2992, 1
        %vm3007 = vcmp.eq.s32.totalorder %v2995, 1
        %vm3008 = vcmp.eq.s32.totalorder %v2998, 1
        %vm3009 = vcmp.eq.s32.totalorder %v3001, 1
        %v3010 = vsel %vm3002, %v1910, -inf
        %v3011 = vsel %vm3003, %v1911, -inf
        %v3012 = vsel %vm3004, %v1912, -inf
        %v3013 = vsel %vm3005, %v1913, -inf
        %v3014 = vsel %vm3006, %v1914, -inf
        %v3015 = vsel %vm3007, %v1915, -inf
        %v3016 = vsel %vm3008, %v1916, -inf
        %v3017 = vsel %vm3009, %v1917, -inf
        %v3018 = vsel %vm2117, %v3010, -inf
        %v3019 = vsel %vm2117, %v3011, -inf
        %v3020 = vsel %vm2117, %v3012, -inf
        %v3021 = vsel %vm2117, %v3013, -inf
        %v3022 = vsel %vm2117, %v3014, -inf
        %v3023 = vmax.f32 %v3018, %v3022
        %v3024 = vsel %vm2117, %v3015, -inf
        %v3025 = vmax.f32 %v3019, %v3024
        %v3026 = vsel %vm2117, %v3016, -inf
        %v3027 = vmax.f32 %v3020, %v3026
        %v3028 = vsel %vm2117, %v3017, -inf
        %v3029 = vmax.f32 %v3021, %v3028
        %v3030 = vmax.f32 %v3023, %v3025
        %v3031 = vmax.f32 %v3027, %v3029
        %v3032 = vmax.f32 %v3030, %v3031
        %v3033 = vrot.slane %v3032, 4
        %v3034 = vmax.f32 %v3032, %v3033
        %v3035 = vrot.slane %v3034, 2
        %v3036 = vmax.f32 %v3034, %v3035
        %v3037 = vrot.slane %v3036, 1
        %v3038 = vmax.f32 %v3036, %v3037
        %s3039 = sadd.s32 %s1950, 6
        %s3040 = scalar_lea.vmem [#allocation2], %s3039
        %v3041 = vld [vmem:[%s3040] sm:$0x1]
        %v3042 = vlaneseq
        %v3043 = vshrl.u32 %v3042, 7
        %v3044 = vsub.s32 0, %v3043
        %v3045 = vrot.slane %v3041, %v3044
        %v3046 = vsub.f32 %v1953, %v3045
        %v3047 = vsub.f32 %v1954, %v3045
        %v3048 = vsub.f32 %v1955, %v3045
        %v3049 = vsub.f32 %v1956, %v3045
        %v3050 = vsub.f32 %v1957, %v3045
        %v3051 = vsub.f32 %v1958, %v3045
        %v3052 = vsub.f32 %v1959, %v3045
        %v3053 = vsub.f32 %v1960, %v3045
        %v3054 = vmul.f32 %v3046, %v3046
        %v3055 = vmul.f32 %v3047, %v3047
        %v3056 = vmul.f32 %v3048, %v3048
        %v3057 = vmul.f32 %v3049, %v3049
        %v3058 = vmul.f32 %v3050, %v3050
        %v3059 = vmul.f32 %v3051, %v3051
        %v3060 = vmul.f32 %v3052, %v3052
        %v3061 = vmul.f32 %v3053, %v3053
        %3070 = vrot.lane.b32.xlu0 %v3054, 127
        %v3071 = vpop.permute.xlu0 %3070
        %3072 = vrot.lane.b32.xlu0 %v3055, 127
        %v3073 = vpop.permute.xlu0 %3072
        %3074 = vrot.lane.b32.xlu0 %v3056, 127
        %v3075 = vpop.permute.xlu0 %3074
        %3076 = vrot.lane.b32.xlu0 %v3057, 127
        %v3077 = vpop.permute.xlu0 %3076
        %3078 = vrot.lane.b32.xlu0 %v3058, 127
        %v3079 = vpop.permute.xlu0 %3078
        %3080 = vrot.lane.b32.xlu0 %v3059, 127
        %v3081 = vpop.permute.xlu0 %3080
        %3082 = vrot.lane.b32.xlu0 %v3060, 127
        %v3083 = vpop.permute.xlu0 %3082
        %3084 = vrot.lane.b32.xlu0 %v3061, 127
        %v3085 = vpop.permute.xlu0 %3084
        %v3094 = vadd.f32 %v3054, %v3071
        %v3095 = vadd.f32 %v3055, %v3073
        %v3096 = vadd.f32 %v3056, %v3075
        %v3097 = vadd.f32 %v3057, %v3077
        %v3098 = vadd.f32 %v3058, %v3079
        %v3099 = vadd.f32 %v3059, %v3081
        %v3100 = vadd.f32 %v3060, %v3083
        %v3101 = vadd.f32 %v3061, %v3085
        %3102 = vrot.lane.b32.xlu0 %v3054, 126
        %v3103 = vpop.permute.xlu0 %3102
        %3104 = vrot.lane.b32.xlu0 %v3055, 126
        %v3105 = vpop.permute.xlu0 %3104
        %3106 = vrot.lane.b32.xlu0 %v3056, 126
        %v3107 = vpop.permute.xlu0 %3106
        %3108 = vrot.lane.b32.xlu0 %v3057, 126
        %v3109 = vpop.permute.xlu0 %3108
        %3110 = vrot.lane.b32.xlu0 %v3058, 126
        %v3111 = vpop.permute.xlu0 %3110
        %3112 = vrot.lane.b32.xlu0 %v3059, 126
        %v3113 = vpop.permute.xlu0 %3112
        %3114 = vrot.lane.b32.xlu0 %v3060, 126
        %v3115 = vpop.permute.xlu0 %3114
        %3116 = vrot.lane.b32.xlu0 %v3061, 126
        %v3117 = vpop.permute.xlu0 %3116
        %v3126 = vadd.f32 %v3094, %v3103
        %v3127 = vadd.f32 %v3095, %v3105
        %v3128 = vadd.f32 %v3096, %v3107
        %v3129 = vadd.f32 %v3097, %v3109
        %v3130 = vadd.f32 %v3098, %v3111
        %v3131 = vadd.f32 %v3099, %v3113
        %v3132 = vadd.f32 %v3100, %v3115
        %v3133 = vadd.f32 %v3101, %v3117
        %vm3134 = vcmp.lt.f32.partialorder %v3126, 0.2025
        %vm3135 = vcmp.lt.f32.partialorder %v3127, 0.2025
        %vm3136 = vcmp.lt.f32.partialorder %v3128, 0.2025
        %vm3137 = vcmp.lt.f32.partialorder %v3129, 0.2025
        %vm3138 = vcmp.lt.f32.partialorder %v3130, 0.2025
        %vm3139 = vcmp.lt.f32.partialorder %v3131, 0.2025
        %vm3140 = vcmp.lt.f32.partialorder %v3132, 0.2025
        %vm3141 = vcmp.lt.f32.partialorder %v3133, 0.2025
        %vm3142 = vmand %vm3134, %vm1942
        %vm3143 = vmand %vm3135, %vm1943
        %vm3144 = vmand %vm3136, %vm1944
        %vm3145 = vmand %vm3137, %vm1945
        %vm3146 = vmand %vm3138, %vm1946
        %vm3147 = vmand %vm3139, %vm1947
        %vm3148 = vmand %vm3140, %vm1948
        %vm3149 = vmand %vm3141, %vm1949
        %v3150 = vsel %vm3142, 1, 0
        %v3151 = vsel %vm3143, 1, 0
        %v3152 = vsel %vm3144, 1, 0
        %v3153 = vsel %vm3145, 1, 0
        %v3154 = vsel %vm3146, 1, 0
        %v3155 = vsel %vm3147, 1, 0
        %v3156 = vsel %vm3148, 1, 0
        %v3157 = vsel %vm3149, 1, 0
        %3158 = vset.pattern.permute.xlu0 0
        %3159 = vperm.xlu0 %3158, %v3150
        %v3160 = vpop.permute.xlu0 %3159
        %3161 = vset.pattern.permute.xlu0 0
        %3162 = vperm.xlu0 %3161, %v3151
        %v3163 = vpop.permute.xlu0 %3162
        %3164 = vset.pattern.permute.xlu0 0
        %3165 = vperm.xlu0 %3164, %v3152
        %v3166 = vpop.permute.xlu0 %3165
        %3167 = vset.pattern.permute.xlu0 0
        %3168 = vperm.xlu0 %3167, %v3153
        %v3169 = vpop.permute.xlu0 %3168
        %3170 = vset.pattern.permute.xlu0 0
        %3171 = vperm.xlu0 %3170, %v3154
        %v3172 = vpop.permute.xlu0 %3171
        %3173 = vset.pattern.permute.xlu0 0
        %3174 = vperm.xlu0 %3173, %v3155
        %v3175 = vpop.permute.xlu0 %3174
        %3176 = vset.pattern.permute.xlu0 0
        %3177 = vperm.xlu0 %3176, %v3156
        %v3178 = vpop.permute.xlu0 %3177
        %3179 = vset.pattern.permute.xlu0 0
        %3180 = vperm.xlu0 %3179, %v3157
        %v3181 = vpop.permute.xlu0 %3180
        %vm3182 = vcmp.eq.s32.totalorder %v3160, 1
        %vm3183 = vcmp.eq.s32.totalorder %v3163, 1
        %vm3184 = vcmp.eq.s32.totalorder %v3166, 1
        %vm3185 = vcmp.eq.s32.totalorder %v3169, 1
        %vm3186 = vcmp.eq.s32.totalorder %v3172, 1
        %vm3187 = vcmp.eq.s32.totalorder %v3175, 1
        %vm3188 = vcmp.eq.s32.totalorder %v3178, 1
        %vm3189 = vcmp.eq.s32.totalorder %v3181, 1
        %v3190 = vsel %vm3182, %v1918, -inf
        %v3191 = vsel %vm3183, %v1919, -inf
        %v3192 = vsel %vm3184, %v1920, -inf
        %v3193 = vsel %vm3185, %v1921, -inf
        %v3194 = vsel %vm3186, %v1922, -inf
        %v3195 = vsel %vm3187, %v1923, -inf
        %v3196 = vsel %vm3188, %v1924, -inf
        %v3197 = vsel %vm3189, %v1925, -inf
        %v3198 = vsel %vm2117, %v3190, -inf
        %v3199 = vsel %vm2117, %v3191, -inf
        %v3200 = vsel %vm2117, %v3192, -inf
        %v3201 = vsel %vm2117, %v3193, -inf
        %v3202 = vsel %vm2117, %v3194, -inf
        %v3203 = vmax.f32 %v3198, %v3202
        %v3204 = vsel %vm2117, %v3195, -inf
        %v3205 = vmax.f32 %v3199, %v3204
        %v3206 = vsel %vm2117, %v3196, -inf
        %v3207 = vmax.f32 %v3200, %v3206
        %v3208 = vsel %vm2117, %v3197, -inf
        %v3209 = vmax.f32 %v3201, %v3208
        %v3210 = vmax.f32 %v3203, %v3205
        %v3211 = vmax.f32 %v3207, %v3209
        %v3212 = vmax.f32 %v3210, %v3211
        %v3213 = vrot.slane %v3212, 4
        %v3214 = vmax.f32 %v3212, %v3213
        %v3215 = vrot.slane %v3214, 2
        %v3216 = vmax.f32 %v3214, %v3215
        %v3217 = vrot.slane %v3216, 1
        %v3218 = vmax.f32 %v3216, %v3217
        %s3219 = sadd.s32 %s1950, 7
        %s3220 = scalar_lea.vmem [#allocation2], %s3219
        %v3221 = vld [vmem:[%s3220] sm:$0x1]
        %v3222 = vlaneseq
        %v3223 = vshrl.u32 %v3222, 7
        %v3224 = vsub.s32 0, %v3223
        %v3225 = vrot.slane %v3221, %v3224
        %v3226 = vsub.f32 %v1953, %v3225
        %v3227 = vsub.f32 %v1954, %v3225
        %v3228 = vsub.f32 %v1955, %v3225
        %v3229 = vsub.f32 %v1956, %v3225
        %v3230 = vsub.f32 %v1957, %v3225
        %v3231 = vsub.f32 %v1958, %v3225
        %v3232 = vsub.f32 %v1959, %v3225
        %v3233 = vsub.f32 %v1960, %v3225
        %v3234 = vmul.f32 %v3226, %v3226
        %v3235 = vmul.f32 %v3227, %v3227
        %v3236 = vmul.f32 %v3228, %v3228
        %v3237 = vmul.f32 %v3229, %v3229
        %v3238 = vmul.f32 %v3230, %v3230
        %v3239 = vmul.f32 %v3231, %v3231
        %v3240 = vmul.f32 %v3232, %v3232
        %v3241 = vmul.f32 %v3233, %v3233
        %3250 = vrot.lane.b32.xlu0 %v3234, 127
        %v3251 = vpop.permute.xlu0 %3250
        %3252 = vrot.lane.b32.xlu0 %v3235, 127
        %v3253 = vpop.permute.xlu0 %3252
        %3254 = vrot.lane.b32.xlu0 %v3236, 127
        %v3255 = vpop.permute.xlu0 %3254
        %3256 = vrot.lane.b32.xlu0 %v3237, 127
        %v3257 = vpop.permute.xlu0 %3256
        %3258 = vrot.lane.b32.xlu0 %v3238, 127
        %v3259 = vpop.permute.xlu0 %3258
        %3260 = vrot.lane.b32.xlu0 %v3239, 127
        %v3261 = vpop.permute.xlu0 %3260
        %3262 = vrot.lane.b32.xlu0 %v3240, 127
        %v3263 = vpop.permute.xlu0 %3262
        %3264 = vrot.lane.b32.xlu0 %v3241, 127
        %v3265 = vpop.permute.xlu0 %3264
        %v3274 = vadd.f32 %v3234, %v3251
        %v3275 = vadd.f32 %v3235, %v3253
        %v3276 = vadd.f32 %v3236, %v3255
        %v3277 = vadd.f32 %v3237, %v3257
        %v3278 = vadd.f32 %v3238, %v3259
        %v3279 = vadd.f32 %v3239, %v3261
        %v3280 = vadd.f32 %v3240, %v3263
        %v3281 = vadd.f32 %v3241, %v3265
        %3282 = vrot.lane.b32.xlu0 %v3234, 126
        %v3283 = vpop.permute.xlu0 %3282
        %3284 = vrot.lane.b32.xlu0 %v3235, 126
        %v3285 = vpop.permute.xlu0 %3284
        %3286 = vrot.lane.b32.xlu0 %v3236, 126
        %v3287 = vpop.permute.xlu0 %3286
        %3288 = vrot.lane.b32.xlu0 %v3237, 126
        %v3289 = vpop.permute.xlu0 %3288
        %3290 = vrot.lane.b32.xlu0 %v3238, 126
        %v3291 = vpop.permute.xlu0 %3290
        %3292 = vrot.lane.b32.xlu0 %v3239, 126
        %v3293 = vpop.permute.xlu0 %3292
        %3294 = vrot.lane.b32.xlu0 %v3240, 126
        %v3295 = vpop.permute.xlu0 %3294
        %3296 = vrot.lane.b32.xlu0 %v3241, 126
        %v3297 = vpop.permute.xlu0 %3296
        %v3306 = vadd.f32 %v3274, %v3283
        %v3307 = vadd.f32 %v3275, %v3285
        %v3308 = vadd.f32 %v3276, %v3287
        %v3309 = vadd.f32 %v3277, %v3289
        %v3310 = vadd.f32 %v3278, %v3291
        %v3311 = vadd.f32 %v3279, %v3293
        %v3312 = vadd.f32 %v3280, %v3295
        %v3313 = vadd.f32 %v3281, %v3297
        %vm3314 = vcmp.lt.f32.partialorder %v3306, 0.2025
        %vm3315 = vcmp.lt.f32.partialorder %v3307, 0.2025
        %vm3316 = vcmp.lt.f32.partialorder %v3308, 0.2025
        %vm3317 = vcmp.lt.f32.partialorder %v3309, 0.2025
        %vm3318 = vcmp.lt.f32.partialorder %v3310, 0.2025
        %vm3319 = vcmp.lt.f32.partialorder %v3311, 0.2025
        %vm3320 = vcmp.lt.f32.partialorder %v3312, 0.2025
        %vm3321 = vcmp.lt.f32.partialorder %v3313, 0.2025
        %vm3322 = vmand %vm3314, %vm1942
        %vm3323 = vmand %vm3315, %vm1943
        %vm3324 = vmand %vm3316, %vm1944
        %vm3325 = vmand %vm3317, %vm1945
        %vm3326 = vmand %vm3318, %vm1946
        %vm3327 = vmand %vm3319, %vm1947
        %vm3328 = vmand %vm3320, %vm1948
        %vm3329 = vmand %vm3321, %vm1949
        %v3330 = vsel %vm3322, 1, 0
        %v3331 = vsel %vm3323, 1, 0
        %v3332 = vsel %vm3324, 1, 0
        %v3333 = vsel %vm3325, 1, 0
        %v3334 = vsel %vm3326, 1, 0
        %v3335 = vsel %vm3327, 1, 0
        %v3336 = vsel %vm3328, 1, 0
        %v3337 = vsel %vm3329, 1, 0
        %3338 = vset.pattern.permute.xlu0 0
        %3339 = vperm.xlu0 %3338, %v3330
        %v3340 = vpop.permute.xlu0 %3339
        %3341 = vset.pattern.permute.xlu0 0
        %3342 = vperm.xlu0 %3341, %v3331
        %v3343 = vpop.permute.xlu0 %3342
        %3344 = vset.pattern.permute.xlu0 0
        %3345 = vperm.xlu0 %3344, %v3332
        %v3346 = vpop.permute.xlu0 %3345
        %3347 = vset.pattern.permute.xlu0 0
        %3348 = vperm.xlu0 %3347, %v3333
        %v3349 = vpop.permute.xlu0 %3348
        %3350 = vset.pattern.permute.xlu0 0
        %3351 = vperm.xlu0 %3350, %v3334
        %v3352 = vpop.permute.xlu0 %3351
        %3353 = vset.pattern.permute.xlu0 0
        %3354 = vperm.xlu0 %3353, %v3335
        %v3355 = vpop.permute.xlu0 %3354
        %3356 = vset.pattern.permute.xlu0 0
        %3357 = vperm.xlu0 %3356, %v3336
        %v3358 = vpop.permute.xlu0 %3357
        %3359 = vset.pattern.permute.xlu0 0
        %3360 = vperm.xlu0 %3359, %v3337
        %v3361 = vpop.permute.xlu0 %3360
        %vm3362 = vcmp.eq.s32.totalorder %v3340, 1
        %vm3363 = vcmp.eq.s32.totalorder %v3343, 1
        %vm3364 = vcmp.eq.s32.totalorder %v3346, 1
        %vm3365 = vcmp.eq.s32.totalorder %v3349, 1
        %vm3366 = vcmp.eq.s32.totalorder %v3352, 1
        %vm3367 = vcmp.eq.s32.totalorder %v3355, 1
        %vm3368 = vcmp.eq.s32.totalorder %v3358, 1
        %vm3369 = vcmp.eq.s32.totalorder %v3361, 1
        %v3370 = vsel %vm3362, %v1926, -inf
        %v3371 = vsel %vm3363, %v1927, -inf
        %v3372 = vsel %vm3364, %v1928, -inf
        %v3373 = vsel %vm3365, %v1929, -inf
        %v3374 = vsel %vm3366, %v1930, -inf
        %v3375 = vsel %vm3367, %v1931, -inf
        %v3376 = vsel %vm3368, %v1932, -inf
        %v3377 = vsel %vm3369, %v1933, -inf
        %v3378 = vsel %vm2117, %v3370, -inf
        %v3379 = vsel %vm2117, %v3371, -inf
        %v3380 = vsel %vm2117, %v3372, -inf
        %v3381 = vsel %vm2117, %v3373, -inf
        %v3382 = vsel %vm2117, %v3374, -inf
        %v3383 = vmax.f32 %v3378, %v3382
        %v3384 = vsel %vm2117, %v3375, -inf
        %v3385 = vmax.f32 %v3379, %v3384
        %v3386 = vsel %vm2117, %v3376, -inf
        %v3387 = vmax.f32 %v3380, %v3386
        %v3388 = vsel %vm2117, %v3377, -inf
        %v3389 = vmax.f32 %v3381, %v3388
        %v3390 = vmax.f32 %v3383, %v3385
        %v3391 = vmax.f32 %v3387, %v3389
        %v3392 = vmax.f32 %v3390, %v3391
        %v3393 = vrot.slane %v3392, 4
        %v3394 = vmax.f32 %v3392, %v3393
        %v3395 = vrot.slane %v3394, 2
        %v3396 = vmax.f32 %v3394, %v3395
        %v3397 = vrot.slane %v3396, 1
        %v3398 = vmax.f32 %v3396, %v3397
        %vm3399 = vcmask 1040384
        %v3400 = vsel %vm3399, %v2138, %v2318
        %vm3401 = vcmask 1041408
        %v3402 = vsel %vm3401, %v3400, %v2498
        %vm3403 = vcmask 1042432
        %v3404 = vsel %vm3403, %v3402, %v2678
        %vm3405 = vcmask 1043456
        %v3406 = vsel %vm3405, %v3404, %v2858
        %vm3407 = vcmask 1044480
        %v3408 = vsel %vm3407, %v3406, %v3038
        %vm3409 = vcmask 1045504
        %v3410 = vsel %vm3409, %v3408, %v3218
        %vm3411 = vcmask 1046528
        %v3412 = vsel %vm3411, %v3410, %v3398
        %3413 = vst.msk [vmem:[%s456] sm:$0xff] %vm2117, %v3412
        %s3414 = sand.u32 %s229, 1
        %s3415 = scalar_lea.sflag [#allocation4], %s3414
        %s3416 = sand.u32 %s229, 1
        %s3417 = smul.addr %s3416, 8
        %s3418 = scalar_lea.vmem [#allocation16], %s3417
        // Predicated region
        $region93: #{_lambda_.6} parent=55 // pred_check
          %p3419 = pneg %p239
        $region94: #{_lambda_.6} parent=55 // pred_check_branch
          %3421 = sbr.rel (%p3419) target = $region96
        $region95: #{_lambda_.6} parent=55 // pred_region
          %s3423 = ssub.s32 128, 128
          %3424 = vsyncadd %s3415, %s3423
          %s3425 = smul.addr %s27, 128
          %s3426 = scalar_lea.hbm %s9, %s3425
          %s3428 = sshll.u32 %s3418, 4
          %s3429 = int_to_ptr.vmem [resolvable:$true] %s3428
          %3431 = dma.vmem_to_hbm [thread:$0]  %s3429, 128, %s3426, %s3415
        $region96: #{_lambda_.6} parent=55 // pred_fallthru
          _
      $region56: #{_lambda_.6} parent=5 // pred_fallthru
        _
      %p3432 = scmp.le.s32.totalorder 2, %s22
      // Predicated region
      $region97: #{_lambda_.6} parent=5 // pred_check
        %p3433 = pneg %p3432
      $region98: #{_lambda_.6} parent=5 // pred_check_branch
        %3435 = sbr.rel (%p3433) target = $region100
      $region99: #{_lambda_.6} parent=5 // pred_region
        %s3436 = ssub.s32 %s22, 2
        // Predicated region
        $region101: #{_lambda_.6} parent=99 // pred_check
          %p3437 = pneg %p245
        $region102: #{_lambda_.6} parent=99 // pred_check_branch
          %3439 = sbr.rel (%p3437) target = $region104
        $region103: #{_lambda_.6} parent=99 // pred_region
          %s3440 = sand.u32 %s230, 1
          %s3441 = scalar_lea.sflag [#allocation4], %s3440
          %s3442 = sand.u32 %s230, 1
          %s3443 = smul.addr %s3442, 8
          %s3444 = scalar_lea.vmem [#allocation16], %s3443
          %3445 = dma.done %s3441, 128
        $region104: #{_lambda_.6} parent=99 // pred_fallthru
          _
      $region100: #{_lambda_.6} parent=5 // pred_fallthru
        _
    $region6: #{_lambda_.6} parent=1 // loop_footer
      %s26 = sadd.s32 1, %s22
    $region7: #{_lambda_.6} parent=1 // loop_footer_branch
      %21 = sbr.rel target = $region3
    $region8: #{_lambda_.6} parent=1 // loop_exit
      _
    %3446 = vsyncpa [#allocation3], 1
    %s3447 = scalar_lea.sflag [#allocation3], 1
    %3448 = vsyncpa %s3447, 1
    %3449 = vsyncpa [#allocation6], 1
    %3450 = vsyncpa [#allocation9], 1
    %3451 = vsyncpa [#allocation14], 1
    %3452 = vsyncpa [#allocation4], 1
    %s3453 = scalar_lea.sflag [#allocation4], 1
    %3454 = vsyncpa %s3453, 1

// kernel: _lambda_.9
$region0: #{_lambda_.9}
  #allocation0 [shape = 'u32[]', space=smem, size = 0x4, offset = 0x4, fixed_abs, tag = 'smem constant byte address 0x4 - core index']
  #allocation1 [shape = 'u32[144,128]{1,0:T(1,128)}', space=vmem, size = 0x12000, scoped, tag = 'internal scratch']
  %s0 = inlined_call_operand.hbm [shape: f32[8,64], index: 0, kind: input, shape index: {}]
  %s1 = inlined_call_operand.hbm [shape: f32[8,1], index: 1, kind: input, shape index: {}]
  %s2 = inlined_call_operand.hbm [shape: f32[1,64], index: 2, kind: input, shape index: {}]
  %s3 = inlined_call_operand.hbm [shape: f32[64,64], index: 3, kind: input, shape index: {}]
  %s4 = inlined_call_operand.hbm [shape: f32[64,64], index: 4, kind: input, shape index: {}]
  %s5 = inlined_call_operand.hbm [shape: f32[1,64], index: 5, kind: input, shape index: {}]
  %s6 = inlined_call_operand.hbm [shape: f32[64,32], index: 6, kind: input, shape index: {}]
  %s7 = inlined_call_operand.hbm [shape: f32[1,32], index: 7, kind: input, shape index: {}]
  %s8 = inlined_call_operand.hbm [shape: f32[8,32], index: 8, kind: output, shape index: {}]
  %s9 = sld [smem:[#allocation0]]
  $region74: #{_lambda_.9} parent=0
    _
  %s11 = ssub.s32 1, %s9
  %s12 = scalar_select 0, %s11, %s9
  $region1: #{_lambda_.9} parent=0
    #allocation2 [shape = 'u8[4096]{0}', space=vmem, size = 0x1000, scoped, tag = 'input window, operand 0, single buffered']
    #allocation3 [shape = 's32[1]{0}', space=sflag, size = 0x4, scoped, tag = 'scoped memory for _lambda_.9']
    #allocation4 [shape = 's32[1]{0}', space=sflag, size = 0x4, scoped, tag = 'scoped memory for _lambda_.9']
    #allocation5 [shape = 'u8[4096]{0}', space=vmem, size = 0x1000, scoped, tag = 'input window, operand 1, single buffered']
    #allocation6 [shape = 's32[1]{0}', space=sflag, size = 0x4, scoped, tag = 'scoped memory for _lambda_.9']
    #allocation7 [shape = 'u8[512]{0}', space=vmem, size = 0x400, scoped, tag = 'input window, operand 2, single buffered']
    #allocation8 [shape = 'u8[32768]{0}', space=vmem, size = 0x8000, scoped, tag = 'input window, operand 3, single buffered']
    #allocation9 [shape = 's32[1]{0}', space=sflag, size = 0x4, scoped, tag = 'scoped memory for _lambda_.9']
    #allocation10 [shape = 'u8[32768]{0}', space=vmem, size = 0x8000, scoped, tag = 'input window, operand 4, single buffered']
    #allocation11 [shape = 'u8[512]{0}', space=vmem, size = 0x400, scoped, tag = 'input window, operand 5, single buffered']
    #allocation12 [shape = 's32[1]{0}', space=sflag, size = 0x4, scoped, tag = 'scoped memory for _lambda_.9']
    #allocation13 [shape = 'u8[32768]{0}', space=vmem, size = 0x8000, scoped, tag = 'input window, operand 6, single buffered']
    #allocation14 [shape = 'u8[512]{0}', space=vmem, size = 0x400, scoped, tag = 'input window, operand 7, single buffered']
    #allocation15 [shape = 's32[1]{0}', space=sflag, size = 0x4, scoped, tag = 'scoped memory for _lambda_.9']
    #allocation16 [shape = 'u8[4096]{0}', space=vmem, size = 0x1000, scoped, tag = 'output window, operand 0, single buffered']
    %13 = vsyncpa [#allocation3], 0
    %14 = vsyncpa [#allocation6], 0
    %15 = vsyncpa [#allocation9], 0
    %16 = vsyncpa [#allocation12], 0
    %17 = vsyncpa [#allocation15], 0
    %18 = vsyncpa [#allocation4], 0
    // Predicated region
    $region2: #{_lambda_.9} parent=1 // pred_check
      _
    $region3: #{_lambda_.9} parent=1 // pred_check_branch
      %20 = sbr.rel (0) target = $region5
    $region4: #{_lambda_.9} parent=1 // pred_region
      %s22 = ssub.s32 128, 128
      %23 = vsyncadd [#allocation3], %s22
      %s25 = sshll.u32 [#allocation2], 4
      %s26 = int_to_ptr.vmem [resolvable:$true] %s25
      %28 = dma.hbm_to_vmem [thread:$0]  %s0, 128, %s26, [#allocation3]
    $region5: #{_lambda_.9} parent=1 // pred_fallthru
      _
    // Predicated region
    $region6: #{_lambda_.9} parent=1 // pred_check
      _
    $region7: #{_lambda_.9} parent=1 // pred_check_branch
      %30 = sbr.rel (0) target = $region9
    $region8: #{_lambda_.9} parent=1 // pred_region
      %s32 = ssub.s32 128, 128
      %33 = vsyncadd [#allocation6], %s32
      %s35 = sshll.u32 [#allocation5], 4
      %s36 = int_to_ptr.vmem [resolvable:$true] %s35
      %38 = dma.hbm_to_vmem [thread:$0]  %s1, 128, %s36, [#allocation6]
    $region9: #{_lambda_.9} parent=1 // pred_fallthru
      _
    // Predicated region
    $region10: #{_lambda_.9} parent=1 // pred_check
      _
    $region11: #{_lambda_.9} parent=1 // pred_check_branch
      %40 = sbr.rel (0) target = $region13
    $region12: #{_lambda_.9} parent=1 // pred_region
      %s42 = ssub.s32 16, 16
      %43 = vsyncadd [#allocation6], %s42
      %s45 = sshll.u32 [#allocation7], 4
      %s46 = int_to_ptr.vmem [resolvable:$true] %s45
      %48 = dma.hbm_to_vmem [thread:$0]  %s2, 16, %s46, [#allocation6]
    $region13: #{_lambda_.9} parent=1 // pred_fallthru
      _
    // Predicated region
    $region14: #{_lambda_.9} parent=1 // pred_check
      _
    $region15: #{_lambda_.9} parent=1 // pred_check_branch
      %50 = sbr.rel (0) target = $region17
    $region16: #{_lambda_.9} parent=1 // pred_region
      %s52 = ssub.s32 1024, 1024
      %53 = vsyncadd [#allocation9], %s52
      %s54 = sshll.u32 [#allocation8], 4
      %s55 = int_to_ptr.vmem [resolvable:$true] %s54
      %60 = dma.hbm_to_vmem [thread:$0]  %s3, 1024, %s55, [#allocation9], 128, 128, 8
    $region17: #{_lambda_.9} parent=1 // pred_fallthru
      _
    // Predicated region
    $region18: #{_lambda_.9} parent=1 // pred_check
      _
    $region19: #{_lambda_.9} parent=1 // pred_check_branch
      %62 = sbr.rel (0) target = $region21
    $region20: #{_lambda_.9} parent=1 // pred_region
      %s64 = ssub.s32 1024, 1024
      %65 = vsyncadd [#allocation9], %s64
      %s66 = sshll.u32 [#allocation10], 4
      %s67 = int_to_ptr.vmem [resolvable:$true] %s66
      %72 = dma.hbm_to_vmem [thread:$0]  %s4, 1024, %s67, [#allocation9], 128, 128, 8
    $region21: #{_lambda_.9} parent=1 // pred_fallthru
      _
    // Predicated region
    $region22: #{_lambda_.9} parent=1 // pred_check
      _
    $region23: #{_lambda_.9} parent=1 // pred_check_branch
      %74 = sbr.rel (0) target = $region25
    $region24: #{_lambda_.9} parent=1 // pred_region
      %s76 = ssub.s32 16, 16
      %77 = vsyncadd [#allocation12], %s76
      %s79 = sshll.u32 [#allocation11], 4
      %s80 = int_to_ptr.vmem [resolvable:$true] %s79
      %82 = dma.hbm_to_vmem [thread:$0]  %s5, 16, %s80, [#allocation12]
    $region25: #{_lambda_.9} parent=1 // pred_fallthru
      _
    // Predicated region
    $region26: #{_lambda_.9} parent=1 // pred_check
      _
    $region27: #{_lambda_.9} parent=1 // pred_check_branch
      %84 = sbr.rel (0) target = $region29
    $region28: #{_lambda_.9} parent=1 // pred_region
      %s86 = ssub.s32 1024, 1024
      %87 = vsyncadd [#allocation12], %s86
      %s88 = sshll.u32 [#allocation13], 4
      %s89 = int_to_ptr.vmem [resolvable:$true] %s88
      %94 = dma.hbm_to_vmem [thread:$0]  %s6, 1024, %s89, [#allocation12], 128, 128, 8
    $region29: #{_lambda_.9} parent=1 // pred_fallthru
      _
    // Predicated region
    $region30: #{_lambda_.9} parent=1 // pred_check
      _
    $region31: #{_lambda_.9} parent=1 // pred_check_branch
      %96 = sbr.rel (0) target = $region33
    $region32: #{_lambda_.9} parent=1 // pred_region
      %s98 = ssub.s32 16, 16
      %99 = vsyncadd [#allocation15], %s98
      %s101 = sshll.u32 [#allocation14], 4
      %s102 = int_to_ptr.vmem [resolvable:$true] %s101
      %104 = dma.hbm_to_vmem [thread:$0]  %s7, 16, %s102, [#allocation15]
    $region33: #{_lambda_.9} parent=1 // pred_fallthru
      _
    // Predicated region
    $region34: #{_lambda_.9} parent=1 // pred_check
      _
    $region35: #{_lambda_.9} parent=1 // pred_check_branch
      %106 = sbr.rel (0) target = $region37
    $region36: #{_lambda_.9} parent=1 // pred_region
      %107 = dma.done [#allocation3], 128
    $region37: #{_lambda_.9} parent=1 // pred_fallthru
      _
    // Predicated region
    $region38: #{_lambda_.9} parent=1 // pred_check
      _
    $region39: #{_lambda_.9} parent=1 // pred_check_branch
      %109 = sbr.rel (0) target = $region41
    $region40: #{_lambda_.9} parent=1 // pred_region
      %110 = dma.done [#allocation6], 128
    $region41: #{_lambda_.9} parent=1 // pred_fallthru
      _
    // Predicated region
    $region42: #{_lambda_.9} parent=1 // pred_check
      _
    $region43: #{_lambda_.9} parent=1 // pred_check_branch
      %112 = sbr.rel (0) target = $region45
    $region44: #{_lambda_.9} parent=1 // pred_region
      %113 = dma.done [#allocation6], 16
    $region45: #{_lambda_.9} parent=1 // pred_fallthru
      _
    // Predicated region
    $region46: #{_lambda_.9} parent=1 // pred_check
      _
    $region47: #{_lambda_.9} parent=1 // pred_check_branch
      %115 = sbr.rel (0) target = $region49
    $region48: #{_lambda_.9} parent=1 // pred_region
      %116 = dma.done [#allocation9], 1024
    $region49: #{_lambda_.9} parent=1 // pred_fallthru
      _
    // Predicated region
    $region50: #{_lambda_.9} parent=1 // pred_check
      _
    $region51: #{_lambda_.9} parent=1 // pred_check_branch
      %118 = sbr.rel (0) target = $region53
    $region52: #{_lambda_.9} parent=1 // pred_region
      %119 = dma.done [#allocation9], 1024
    $region53: #{_lambda_.9} parent=1 // pred_fallthru
      _
    // Predicated region
    $region54: #{_lambda_.9} parent=1 // pred_check
      _
    $region55: #{_lambda_.9} parent=1 // pred_check_branch
      %121 = sbr.rel (0) target = $region57
    $region56: #{_lambda_.9} parent=1 // pred_region
      %122 = dma.done [#allocation12], 16
    $region57: #{_lambda_.9} parent=1 // pred_fallthru
      _
    // Predicated region
    $region58: #{_lambda_.9} parent=1 // pred_check
      _
    $region59: #{_lambda_.9} parent=1 // pred_check_branch
      %124 = sbr.rel (0) target = $region61
    $region60: #{_lambda_.9} parent=1 // pred_region
      %125 = dma.done [#allocation12], 1024
    $region61: #{_lambda_.9} parent=1 // pred_fallthru
      _
    // Predicated region
    $region62: #{_lambda_.9} parent=1 // pred_check
      _
    $region63: #{_lambda_.9} parent=1 // pred_check_branch
      %127 = sbr.rel (0) target = $region65
    $region64: #{_lambda_.9} parent=1 // pred_region
      %128 = dma.done [#allocation15], 16
    $region65: #{_lambda_.9} parent=1 // pred_fallthru
      _
    %v129 = vld [vmem:[#allocation5] sm:$0xff]
    %v130 = vld [vmem:[#allocation7] sm:$0x1]
    %vm131 = vcmask 7168
    %v133 = vsel %vm131, %v129, 0
    %vm135 = vcmask 1040384
    %v137 = vsel %vm135, %v130, 0
    %139 = vmatprep.subr.mxu0 0.0
    %140 = vmatpush1.msra.mxu0 %v137
    %141 = vmatprep.subr.mxu0 0.0
    %142 = vmatpush1.msra.mxu0 0.0
    %143 = vmatprep.subr.mxu0 0.0
    %144 = vmatpush1.msra.mxu0 0.0
    %145 = vmatprep.subr.mxu0 0.0
    %146 = vmatpush1.msra.mxu0 0.0
    %147 = vmatprep.subr.mxu0 0.0
    %148 = vmatpush1.msra.mxu0 0.0
    %149 = vmatprep.subr.mxu0 0.0
    %150 = vmatpush1.msra.mxu0 0.0
    %151 = vmatprep.subr.mxu0 0.0
    %152 = vmatpush1.msra.mxu0 0.0
    %153 = vmatprep.subr.mxu0 0.0
    %154 = vmatpush1.msra.mxu0 0.0
    %155 = vmatprep.subr.mxu0 0.0
    %156 = vmatpush1.msra.mxu0 0.0
    %157 = vmatprep.subr.mxu0 0.0
    %158 = vmatpush1.msra.mxu0 0.0
    %159 = vmatprep.subr.mxu0 0.0
    %160 = vmatpush1.msra.mxu0 0.0
    %161 = vmatprep.subr.mxu0 0.0
    %162 = vmatpush1.msra.mxu0 0.0
    %163 = vmatprep.subr.mxu0 0.0
    %164 = vmatpush1.msra.mxu0 0.0
    %165 = vmatprep.subr.mxu0 0.0
    %166 = vmatpush1.msra.mxu0 0.0
    %167 = vmatprep.subr.mxu0 0.0
    %168 = vmatpush1.msra.mxu0 0.0
    %169 = vmatprep.subr.mxu0 0.0
    %170 = vmatpush1.msra.mxu0 0.0
    %171 = vmatprep.subr.mxu0 0.0
    %172 = vmatpush1.msra.mxu0 0.0
    %173 = vmatprep.subr.mxu0 0.0
    %174 = vmatpush1.msra.mxu0 0.0
    %175 = vmatprep.subr.mxu0 0.0
    %176 = vmatpush1.msra.mxu0 0.0
    %177 = vmatprep.subr.mxu0 0.0
    %178 = vmatpush1.msra.mxu0 0.0
    %179 = vmatprep.subr.mxu0 0.0
    %180 = vmatpush1.msra.mxu0 0.0
    %181 = vmatprep.subr.mxu0 0.0
    %182 = vmatpush1.msra.mxu0 0.0
    %183 = vmatprep.subr.mxu0 0.0
    %184 = vmatpush1.msra.mxu0 0.0
    %185 = vmatprep.subr.mxu0 0.0
    %186 = vmatpush1.msra.mxu0 0.0
    %187 = vmatprep.subr.mxu0 0.0
    %188 = vmatpush1.msra.mxu0 0.0
    %189 = vmatprep.subr.mxu0 0.0
    %190 = vmatpush1.msra.mxu0 0.0
    %191 = vmatprep.subr.mxu0 0.0
    %192 = vmatpush1.msra.mxu0 0.0
    %193 = vmatprep.subr.mxu0 0.0
    %194 = vmatpush1.msra.mxu0 0.0
    %195 = vmatprep.subr.mxu0 0.0
    %196 = vmatpush1.msra.mxu0 0.0
    %197 = vmatprep.subr.mxu0 0.0
    %198 = vmatpush1.msra.mxu0 0.0
    %199 = vmatprep.subr.mxu0 0.0
    %200 = vmatpush1.msra.mxu0 0.0
    %201 = vmatprep.subr.mxu0 0.0
    %202 = vmatpush1.msra.mxu0 0.0
    %203 = vmatprep.mubr.f32.mxu0 0.0
    %204 = vmatmul.mubr.f32.gmra.mrb[0].mxu0 %v133
    %v205 = vpop.f32.mrb[0].mxu0
    %v206 = vadd.f32 0.0, %v205
    %v207 = vpop.f32.mrb[0].mxu0
    %208 = vdwg.mxu0
    %v209 = vld [vmem:[#allocation2] sm:$0xff]
    %v210 = vld [vmem:[#allocation8] sm:$0xff]
    %v211 = vld [vmem:[#allocation8 + $0x8] sm:$0xff]
    %v212 = vld [vmem:[#allocation8 + $0x10] sm:$0xff]
    %v213 = vld [vmem:[#allocation8 + $0x18] sm:$0xff]
    %v214 = vld [vmem:[#allocation8 + $0x20] sm:$0xff]
    %v215 = vld [vmem:[#allocation8 + $0x28] sm:$0xff]
    %v216 = vld [vmem:[#allocation8 + $0x30] sm:$0xff]
    %v217 = vld [vmem:[#allocation8 + $0x38] sm:$0xff]
    %v218 = vld [vmem:[#allocation10] sm:$0xff]
    %v219 = vld [vmem:[#allocation10 + $0x8] sm:$0xff]
    %v220 = vld [vmem:[#allocation10 + $0x10] sm:$0xff]
    %v221 = vld [vmem:[#allocation10 + $0x18] sm:$0xff]
    %v222 = vld [vmem:[#allocation10 + $0x20] sm:$0xff]
    %v223 = vld [vmem:[#allocation10 + $0x28] sm:$0xff]
    %v224 = vld [vmem:[#allocation10 + $0x30] sm:$0xff]
    %v225 = vld [vmem:[#allocation10 + $0x38] sm:$0xff]
    %vm226 = vcmask 523264
    %v228 = vsel %vm226, %v206, 0
    %230 = vmatprep.subr.mxu0 0.0
    %231 = vmatpush1.msra.mxu0 %v218
    %232 = vmatprep.subr.mxu0 0.0
    %233 = vmatpush1.msra.mxu0 %v219
    %234 = vmatprep.subr.mxu0 0.0
    %235 = vmatpush1.msra.mxu0 %v220
    %236 = vmatprep.subr.mxu0 0.0
    %237 = vmatpush1.msra.mxu0 %v221
    %238 = vmatprep.subr.mxu0 0.0
    %239 = vmatpush1.msra.mxu0 %v222
    %240 = vmatprep.subr.mxu0 0.0
    %241 = vmatpush1.msra.mxu0 %v223
    %242 = vmatprep.subr.mxu0 0.0
    %243 = vmatpush1.msra.mxu0 %v224
    %244 = vmatprep.subr.mxu0 0.0
    %245 = vmatpush1.msra.mxu0 %v225
    %246 = vmatprep.subr.mxu0 0.0
    %247 = vmatpush1.msra.mxu0 0.0
    %248 = vmatprep.subr.mxu0 0.0
    %249 = vmatpush1.msra.mxu0 0.0
    %250 = vmatprep.subr.mxu0 0.0
    %251 = vmatpush1.msra.mxu0 0.0
    %252 = vmatprep.subr.mxu0 0.0
    %253 = vmatpush1.msra.mxu0 0.0
    %254 = vmatprep.subr.mxu0 0.0
    %255 = vmatpush1.msra.mxu0 0.0
    %256 = vmatprep.subr.mxu0 0.0
    %257 = vmatpush1.msra.mxu0 0.0
    %258 = vmatprep.subr.mxu0 0.0
    %259 = vmatpush1.msra.mxu0 0.0
    %260 = vmatprep.subr.mxu0 0.0
    %261 = vmatpush1.msra.mxu0 0.0
    %262 = vmatprep.subr.mxu0 0.0
    %263 = vmatpush1.msra.mxu0 0.0
    %264 = vmatprep.subr.mxu0 0.0
    %265 = vmatpush1.msra.mxu0 0.0
    %266 = vmatprep.subr.mxu0 0.0
    %267 = vmatpush1.msra.mxu0 0.0
    %268 = vmatprep.subr.mxu0 0.0
    %269 = vmatpush1.msra.mxu0 0.0
    %270 = vmatprep.subr.mxu0 0.0
    %271 = vmatpush1.msra.mxu0 0.0
    %272 = vmatprep.subr.mxu0 0.0
    %273 = vmatpush1.msra.mxu0 0.0
    %274 = vmatprep.subr.mxu0 0.0
    %275 = vmatpush1.msra.mxu0 0.0
    %276 = vmatprep.subr.mxu0 0.0
    %277 = vmatpush1.msra.mxu0 0.0
    %278 = vmatprep.subr.mxu0 0.0
    %279 = vmatpush1.msra.mxu0 0.0
    %280 = vmatprep.subr.mxu0 0.0
    %281 = vmatpush1.msra.mxu0 0.0
    %282 = vmatprep.subr.mxu0 0.0
    %283 = vmatpush1.msra.mxu0 0.0
    %284 = vmatprep.subr.mxu0 0.0
    %285 = vmatpush1.msra.mxu0 0.0
    %286 = vmatprep.subr.mxu0 0.0
    %287 = vmatpush1.msra.mxu0 0.0
    %288 = vmatprep.subr.mxu0 0.0
    %289 = vmatpush1.msra.mxu0 0.0
    %290 = vmatprep.subr.mxu0 0.0
    %291 = vmatpush1.msra.mxu0 0.0
    %292 = vmatprep.subr.mxu0 0.0
    %293 = vmatpush1.msra.mxu0 0.0
    %294 = vmatprep.mubr.f32.mxu0 0.0
    %295 = vmatmul.mubr.f32.gmra.mrb[0].mxu0 %v228
    %v296 = vpop.f32.mrb[0].mxu0
    %v297 = vadd.f32 0.0, %v296
    %v298 = vpop.f32.mrb[0].mxu0
    %299 = vdwg.mxu0
    %v301 = vsel %vm226, %v209, 0
    %303 = vmatprep.subr.mxu0 0.0
    %304 = vmatpush1.msra.mxu0 %v210
    %305 = vmatprep.subr.mxu0 0.0
    %306 = vmatpush1.msra.mxu0 %v211
    %307 = vmatprep.subr.mxu0 0.0
    %308 = vmatpush1.msra.mxu0 %v212
    %309 = vmatprep.subr.mxu0 0.0
    %310 = vmatpush1.msra.mxu0 %v213
    %311 = vmatprep.subr.mxu0 0.0
    %312 = vmatpush1.msra.mxu0 %v214
    %313 = vmatprep.subr.mxu0 0.0
    %314 = vmatpush1.msra.mxu0 %v215
    %315 = vmatprep.subr.mxu0 0.0
    %316 = vmatpush1.msra.mxu0 %v216
    %317 = vmatprep.subr.mxu0 0.0
    %318 = vmatpush1.msra.mxu0 %v217
    %319 = vmatprep.subr.mxu0 0.0
    %320 = vmatpush1.msra.mxu0 0.0
    %321 = vmatprep.subr.mxu0 0.0
    %322 = vmatpush1.msra.mxu0 0.0
    %323 = vmatprep.subr.mxu0 0.0
    %324 = vmatpush1.msra.mxu0 0.0
    %325 = vmatprep.subr.mxu0 0.0
    %326 = vmatpush1.msra.mxu0 0.0
    %327 = vmatprep.subr.mxu0 0.0
    %328 = vmatpush1.msra.mxu0 0.0
    %329 = vmatprep.subr.mxu0 0.0
    %330 = vmatpush1.msra.mxu0 0.0
    %331 = vmatprep.subr.mxu0 0.0
    %332 = vmatpush1.msra.mxu0 0.0
    %333 = vmatprep.subr.mxu0 0.0
    %334 = vmatpush1.msra.mxu0 0.0
    %335 = vmatprep.subr.mxu0 0.0
    %336 = vmatpush1.msra.mxu0 0.0
    %337 = vmatprep.subr.mxu0 0.0
    %338 = vmatpush1.msra.mxu0 0.0
    %339 = vmatprep.subr.mxu0 0.0
    %340 = vmatpush1.msra.mxu0 0.0
    %341 = vmatprep.subr.mxu0 0.0
    %342 = vmatpush1.msra.mxu0 0.0
    %343 = vmatprep.subr.mxu0 0.0
    %344 = vmatpush1.msra.mxu0 0.0
    %345 = vmatprep.subr.mxu0 0.0
    %346 = vmatpush1.msra.mxu0 0.0
    %347 = vmatprep.subr.mxu0 0.0
    %348 = vmatpush1.msra.mxu0 0.0
    %349 = vmatprep.subr.mxu0 0.0
    %350 = vmatpush1.msra.mxu0 0.0
    %351 = vmatprep.subr.mxu0 0.0
    %352 = vmatpush1.msra.mxu0 0.0
    %353 = vmatprep.subr.mxu0 0.0
    %354 = vmatpush1.msra.mxu0 0.0
    %355 = vmatprep.subr.mxu0 0.0
    %356 = vmatpush1.msra.mxu0 0.0
    %357 = vmatprep.subr.mxu0 0.0
    %358 = vmatpush1.msra.mxu0 0.0
    %359 = vmatprep.subr.mxu0 0.0
    %360 = vmatpush1.msra.mxu0 0.0
    %361 = vmatprep.subr.mxu0 0.0
    %362 = vmatpush1.msra.mxu0 0.0
    %363 = vmatprep.subr.mxu0 0.0
    %364 = vmatpush1.msra.mxu0 0.0
    %365 = vmatprep.subr.mxu0 0.0
    %366 = vmatpush1.msra.mxu0 0.0
    %367 = vmatprep.mubr.f32.mxu0 0.0
    %368 = vmatmul.mubr.f32.gmra.mrb[0].mxu0 %v301
    %v369 = vpop.f32.mrb[0].mxu0
    %v370 = vadd.f32 %v297, %v369
    %v371 = vpop.f32.mrb[0].mxu0
    %372 = vdwg.mxu0
    %v373 = vld [vmem:[#allocation11] sm:$0x1]
    %v375 = vlaneseq
    %v376 = vshrl.u32 %v375, 7
    %v377 = vsub.s32 0, %v376
    %v378 = vrot.slane %v373, %v377
    %v380 = vadd.f32 %v370, %v378
    %v381 = vmax.f32 %v380, 0.0
    %v382 = vld [vmem:[#allocation13] sm:$0xff]
    %v383 = vld [vmem:[#allocation13 + $0x8] sm:$0xff]
    %v384 = vld [vmem:[#allocation13 + $0x10] sm:$0xff]
    %v385 = vld [vmem:[#allocation13 + $0x18] sm:$0xff]
    %v386 = vld [vmem:[#allocation13 + $0x20] sm:$0xff]
    %v387 = vld [vmem:[#allocation13 + $0x28] sm:$0xff]
    %v388 = vld [vmem:[#allocation13 + $0x30] sm:$0xff]
    %v389 = vld [vmem:[#allocation13 + $0x38] sm:$0xff]
    %v390 = vld [vmem:[#allocation14] sm:$0x1]
    %v392 = vlaneseq
    %v393 = vshrl.u32 %v392, 7
    %v394 = vsub.s32 0, %v393
    %v395 = vrot.slane %v390, %v394
    %v398 = vsel %vm226, %v381, 0
    %400 = vmatprep.subr.mxu0 0.0
    %401 = vmatpush1.msra.mxu0 %v382
    %402 = vmatprep.subr.mxu0 0.0
    %403 = vmatpush1.msra.mxu0 %v383
    %404 = vmatprep.subr.mxu0 0.0
    %405 = vmatpush1.msra.mxu0 %v384
    %406 = vmatprep.subr.mxu0 0.0
    %407 = vmatpush1.msra.mxu0 %v385
    %408 = vmatprep.subr.mxu0 0.0
    %409 = vmatpush1.msra.mxu0 %v386
    %410 = vmatprep.subr.mxu0 0.0
    %411 = vmatpush1.msra.mxu0 %v387
    %412 = vmatprep.subr.mxu0 0.0
    %413 = vmatpush1.msra.mxu0 %v388
    %414 = vmatprep.subr.mxu0 0.0
    %415 = vmatpush1.msra.mxu0 %v389
    %416 = vmatprep.subr.mxu0 0.0
    %417 = vmatpush1.msra.mxu0 0.0
    %418 = vmatprep.subr.mxu0 0.0
    %419 = vmatpush1.msra.mxu0 0.0
    %420 = vmatprep.subr.mxu0 0.0
    %421 = vmatpush1.msra.mxu0 0.0
    %422 = vmatprep.subr.mxu0 0.0
    %423 = vmatpush1.msra.mxu0 0.0
    %424 = vmatprep.subr.mxu0 0.0
    %425 = vmatpush1.msra.mxu0 0.0
    %426 = vmatprep.subr.mxu0 0.0
    %427 = vmatpush1.msra.mxu0 0.0
    %428 = vmatprep.subr.mxu0 0.0
    %429 = vmatpush1.msra.mxu0 0.0
    %430 = vmatprep.subr.mxu0 0.0
    %431 = vmatpush1.msra.mxu0 0.0
    %432 = vmatprep.subr.mxu0 0.0
    %433 = vmatpush1.msra.mxu0 0.0
    %434 = vmatprep.subr.mxu0 0.0
    %435 = vmatpush1.msra.mxu0 0.0
    %436 = vmatprep.subr.mxu0 0.0
    %437 = vmatpush1.msra.mxu0 0.0
    %438 = vmatprep.subr.mxu0 0.0
    %439 = vmatpush1.msra.mxu0 0.0
    %440 = vmatprep.subr.mxu0 0.0
    %441 = vmatpush1.msra.mxu0 0.0
    %442 = vmatprep.subr.mxu0 0.0
    %443 = vmatpush1.msra.mxu0 0.0
    %444 = vmatprep.subr.mxu0 0.0
    %445 = vmatpush1.msra.mxu0 0.0
    %446 = vmatprep.subr.mxu0 0.0
    %447 = vmatpush1.msra.mxu0 0.0
    %448 = vmatprep.subr.mxu0 0.0
    %449 = vmatpush1.msra.mxu0 0.0
    %450 = vmatprep.subr.mxu0 0.0
    %451 = vmatpush1.msra.mxu0 0.0
    %452 = vmatprep.subr.mxu0 0.0
    %453 = vmatpush1.msra.mxu0 0.0
    %454 = vmatprep.subr.mxu0 0.0
    %455 = vmatpush1.msra.mxu0 0.0
    %456 = vmatprep.subr.mxu0 0.0
    %457 = vmatpush1.msra.mxu0 0.0
    %458 = vmatprep.subr.mxu0 0.0
    %459 = vmatpush1.msra.mxu0 0.0
    %460 = vmatprep.subr.mxu0 0.0
    %461 = vmatpush1.msra.mxu0 0.0
    %462 = vmatprep.subr.mxu0 0.0
    %463 = vmatpush1.msra.mxu0 0.0
    %464 = vmatprep.mubr.f32.mxu0 0.0
    %465 = vmatmul.mubr.f32.gmra.mrb[0].mxu0 %v398
    %v466 = vpop.f32.mrb[0].mxu0
    %v467 = vadd.f32 %v395, %v466
    %v468 = vpop.f32.mrb[0].mxu0
    %469 = vdwg.mxu0
    %v470 = vmax.f32 %v467, 0.0
    %vm471 = vcmask 261120
    %472 = vst.msk [vmem:[#allocation16] sm:$0xff] %vm471, %v470
    // Predicated region
    $region66: #{_lambda_.9} parent=1 // pred_check
      _
    $region67: #{_lambda_.9} parent=1 // pred_check_branch
      %474 = sbr.rel (0) target = $region69
    $region68: #{_lambda_.9} parent=1 // pred_region
      %s476 = ssub.s32 128, 128
      %477 = vsyncadd [#allocation4], %s476
      %s479 = sshll.u32 [#allocation16], 4
      %s480 = int_to_ptr.vmem [resolvable:$true] %s479
      %482 = dma.vmem_to_hbm [thread:$0]  %s480, 128, %s8, [#allocation4]
    $region69: #{_lambda_.9} parent=1 // pred_fallthru
      _
    // Predicated region
    $region70: #{_lambda_.9} parent=1 // pred_check
      _
    $region71: #{_lambda_.9} parent=1 // pred_check_branch
      %484 = sbr.rel (0) target = $region73
    $region72: #{_lambda_.9} parent=1 // pred_region
      %485 = dma.done [#allocation4], 128
    $region73: #{_lambda_.9} parent=1 // pred_fallthru
      _
    %486 = vsyncpa [#allocation3], 1
    %487 = vsyncpa [#allocation6], 1
    %488 = vsyncpa [#allocation9], 1
    %489 = vsyncpa [#allocation12], 1
    %490 = vsyncpa [#allocation15], 1
    %491 = vsyncpa [#allocation4], 1

// kernel: _lambda_.10
$region0: #{_lambda_.10}
  #allocation0 [shape = 'u32[]', space=smem, size = 0x4, offset = 0x4, fixed_abs, tag = 'smem constant byte address 0x4 - core index']
  #allocation1 [shape = 'u32[144,128]{1,0:T(1,128)}', space=vmem, size = 0x12000, scoped, tag = 'internal scratch']
  %s0 = inlined_call_operand.hbm [shape: f32[16,32], index: 0, kind: input, shape index: {}]
  %s1 = inlined_call_operand.hbm [shape: f32[16,8], index: 1, kind: input, shape index: {}]
  %s2 = inlined_call_operand.hbm [shape: f32[8,32], index: 2, kind: input, shape index: {}]
  %s3 = inlined_call_operand.hbm [shape: f32[32,32], index: 3, kind: input, shape index: {}]
  %s4 = inlined_call_operand.hbm [shape: f32[32,32], index: 4, kind: input, shape index: {}]
  %s5 = inlined_call_operand.hbm [shape: f32[1,32], index: 5, kind: input, shape index: {}]
  %s6 = inlined_call_operand.hbm [shape: f32[32,32], index: 6, kind: input, shape index: {}]
  %s7 = inlined_call_operand.hbm [shape: f32[1,32], index: 7, kind: input, shape index: {}]
  %s8 = inlined_call_operand.hbm [shape: f32[16,32], index: 8, kind: output, shape index: {}]
  %s9 = sld [smem:[#allocation0]]
  $region74: #{_lambda_.10} parent=0
    _
  %s11 = ssub.s32 1, %s9
  %s12 = scalar_select 0, %s11, %s9
  $region1: #{_lambda_.10} parent=0
    #allocation2 [shape = 'u8[8192]{0}', space=vmem, size = 0x2000, scoped, tag = 'input window, operand 0, single buffered']
    #allocation3 [shape = 's32[1]{0}', space=sflag, size = 0x4, scoped, tag = 'scoped memory for _lambda_.10']
    #allocation4 [shape = 's32[1]{0}', space=sflag, size = 0x4, scoped, tag = 'scoped memory for _lambda_.10']
    #allocation5 [shape = 'u8[8192]{0}', space=vmem, size = 0x2000, scoped, tag = 'input window, operand 1, single buffered']
    #allocation6 [shape = 's32[1]{0}', space=sflag, size = 0x4, scoped, tag = 'scoped memory for _lambda_.10']
    #allocation7 [shape = 'u8[4096]{0}', space=vmem, size = 0x1000, scoped, tag = 'input window, operand 2, single buffered']
    #allocation8 [shape = 'u8[16384]{0}', space=vmem, size = 0x4000, scoped, tag = 'input window, operand 3, single buffered']
    #allocation9 [shape = 's32[1]{0}', space=sflag, size = 0x4, scoped, tag = 'scoped memory for _lambda_.10']
    #allocation10 [shape = 'u8[16384]{0}', space=vmem, size = 0x4000, scoped, tag = 'input window, operand 4, single buffered']
    #allocation11 [shape = 'u8[512]{0}', space=vmem, size = 0x400, scoped, tag = 'input window, operand 5, single buffered']
    #allocation12 [shape = 's32[1]{0}', space=sflag, size = 0x4, scoped, tag = 'scoped memory for _lambda_.10']
    #allocation13 [shape = 'u8[16384]{0}', space=vmem, size = 0x4000, scoped, tag = 'input window, operand 6, single buffered']
    #allocation14 [shape = 'u8[512]{0}', space=vmem, size = 0x400, scoped, tag = 'input window, operand 7, single buffered']
    #allocation15 [shape = 's32[1]{0}', space=sflag, size = 0x4, scoped, tag = 'scoped memory for _lambda_.10']
    #allocation16 [shape = 'u8[8192]{0}', space=vmem, size = 0x2000, scoped, tag = 'output window, operand 0, single buffered']
    %13 = vsyncpa [#allocation3], 0
    %14 = vsyncpa [#allocation6], 0
    %15 = vsyncpa [#allocation9], 0
    %16 = vsyncpa [#allocation12], 0
    %17 = vsyncpa [#allocation15], 0
    %18 = vsyncpa [#allocation4], 0
    // Predicated region
    $region2: #{_lambda_.10} parent=1 // pred_check
      _
    $region3: #{_lambda_.10} parent=1 // pred_check_branch
      %20 = sbr.rel (0) target = $region5
    $region4: #{_lambda_.10} parent=1 // pred_region
      %s22 = ssub.s32 256, 256
      %23 = vsyncadd [#allocation3], %s22
      %s24 = sshll.u32 [#allocation2], 4
      %s25 = int_to_ptr.vmem [resolvable:$true] %s24
      %30 = dma.hbm_to_vmem [thread:$0]  %s0, 256, %s25, [#allocation3], 128, 128, 8
    $region5: #{_lambda_.10} parent=1 // pred_fallthru
      _
    // Predicated region
    $region6: #{_lambda_.10} parent=1 // pred_check
      _
    $region7: #{_lambda_.10} parent=1 // pred_check_branch
      %32 = sbr.rel (0) target = $region9
    $region8: #{_lambda_.10} parent=1 // pred_region
      %s34 = ssub.s32 256, 256
      %35 = vsyncadd [#allocation6], %s34
      %s36 = sshll.u32 [#allocation5], 4
      %s37 = int_to_ptr.vmem [resolvable:$true] %s36
      %42 = dma.hbm_to_vmem [thread:$0]  %s1, 256, %s37, [#allocation6], 128, 128, 8
    $region9: #{_lambda_.10} parent=1 // pred_fallthru
      _
    // Predicated region
    $region10: #{_lambda_.10} parent=1 // pred_check
      _
    $region11: #{_lambda_.10} parent=1 // pred_check_branch
      %44 = sbr.rel (0) target = $region13
    $region12: #{_lambda_.10} parent=1 // pred_region
      %s46 = ssub.s32 128, 128
      %47 = vsyncadd [#allocation6], %s46
      %s49 = sshll.u32 [#allocation7], 4
      %s50 = int_to_ptr.vmem [resolvable:$true] %s49
      %52 = dma.hbm_to_vmem [thread:$0]  %s2, 128, %s50, [#allocation6]
    $region13: #{_lambda_.10} parent=1 // pred_fallthru
      _
    // Predicated region
    $region14: #{_lambda_.10} parent=1 // pred_check
      _
    $region15: #{_lambda_.10} parent=1 // pred_check_branch
      %54 = sbr.rel (0) target = $region17
    $region16: #{_lambda_.10} parent=1 // pred_region
      %s56 = ssub.s32 512, 512
      %57 = vsyncadd [#allocation9], %s56
      %s58 = sshll.u32 [#allocation8], 4
      %s59 = int_to_ptr.vmem [resolvable:$true] %s58
      %64 = dma.hbm_to_vmem [thread:$0]  %s3, 512, %s59, [#allocation9], 128, 128, 8
    $region17: #{_lambda_.10} parent=1 // pred_fallthru
      _
    // Predicated region
    $region18: #{_lambda_.10} parent=1 // pred_check
      _
    $region19: #{_lambda_.10} parent=1 // pred_check_branch
      %66 = sbr.rel (0) target = $region21
    $region20: #{_lambda_.10} parent=1 // pred_region
      %s68 = ssub.s32 512, 512
      %69 = vsyncadd [#allocation9], %s68
      %s70 = sshll.u32 [#allocation10], 4
      %s71 = int_to_ptr.vmem [resolvable:$true] %s70
      %76 = dma.hbm_to_vmem [thread:$0]  %s4, 512, %s71, [#allocation9], 128, 128, 8
    $region21: #{_lambda_.10} parent=1 // pred_fallthru
      _
    // Predicated region
    $region22: #{_lambda_.10} parent=1 // pred_check
      _
    $region23: #{_lambda_.10} parent=1 // pred_check_branch
      %78 = sbr.rel (0) target = $region25
    $region24: #{_lambda_.10} parent=1 // pred_region
      %s80 = ssub.s32 16, 16
      %81 = vsyncadd [#allocation12], %s80
      %s83 = sshll.u32 [#allocation11], 4
      %s84 = int_to_ptr.vmem [resolvable:$true] %s83
      %86 = dma.hbm_to_vmem [thread:$0]  %s5, 16, %s84, [#allocation12]
    $region25: #{_lambda_.10} parent=1 // pred_fallthru
      _
    // Predicated region
    $region26: #{_lambda_.10} parent=1 // pred_check
      _
    $region27: #{_lambda_.10} parent=1 // pred_check_branch
      %88 = sbr.rel (0) target = $region29
    $region28: #{_lambda_.10} parent=1 // pred_region
      %s90 = ssub.s32 512, 512
      %91 = vsyncadd [#allocation12], %s90
      %s92 = sshll.u32 [#allocation13], 4
      %s93 = int_to_ptr.vmem [resolvable:$true] %s92
      %98 = dma.hbm_to_vmem [thread:$0]  %s6, 512, %s93, [#allocation12], 128, 128, 8
    $region29: #{_lambda_.10} parent=1 // pred_fallthru
      _
    // Predicated region
    $region30: #{_lambda_.10} parent=1 // pred_check
      _
    $region31: #{_lambda_.10} parent=1 // pred_check_branch
      %100 = sbr.rel (0) target = $region33
    $region32: #{_lambda_.10} parent=1 // pred_region
      %s102 = ssub.s32 16, 16
      %103 = vsyncadd [#allocation15], %s102
      %s105 = sshll.u32 [#allocation14], 4
      %s106 = int_to_ptr.vmem [resolvable:$true] %s105
      %108 = dma.hbm_to_vmem [thread:$0]  %s7, 16, %s106, [#allocation15]
    $region33: #{_lambda_.10} parent=1 // pred_fallthru
      _
    // Predicated region
    $region34: #{_lambda_.10} parent=1 // pred_check
      _
    $region35: #{_lambda_.10} parent=1 // pred_check_branch
      %110 = sbr.rel (0) target = $region37
    $region36: #{_lambda_.10} parent=1 // pred_region
      %111 = dma.done [#allocation3], 256
    $region37: #{_lambda_.10} parent=1 // pred_fallthru
      _
    // Predicated region
    $region38: #{_lambda_.10} parent=1 // pred_check
      _
    $region39: #{_lambda_.10} parent=1 // pred_check_branch
      %113 = sbr.rel (0) target = $region41
    $region40: #{_lambda_.10} parent=1 // pred_region
      %114 = dma.done [#allocation6], 256
    $region41: #{_lambda_.10} parent=1 // pred_fallthru
      _
    // Predicated region
    $region42: #{_lambda_.10} parent=1 // pred_check
      _
    $region43: #{_lambda_.10} parent=1 // pred_check_branch
      %116 = sbr.rel (0) target = $region45
    $region44: #{_lambda_.10} parent=1 // pred_region
      %117 = dma.done [#allocation6], 128
    $region45: #{_lambda_.10} parent=1 // pred_fallthru
      _
    // Predicated region
    $region46: #{_lambda_.10} parent=1 // pred_check
      _
    $region47: #{_lambda_.10} parent=1 // pred_check_branch
      %119 = sbr.rel (0) target = $region49
    $region48: #{_lambda_.10} parent=1 // pred_region
      %120 = dma.done [#allocation9], 512
    $region49: #{_lambda_.10} parent=1 // pred_fallthru
      _
    // Predicated region
    $region50: #{_lambda_.10} parent=1 // pred_check
      _
    $region51: #{_lambda_.10} parent=1 // pred_check_branch
      %122 = sbr.rel (0) target = $region53
    $region52: #{_lambda_.10} parent=1 // pred_region
      %123 = dma.done [#allocation9], 512
    $region53: #{_lambda_.10} parent=1 // pred_fallthru
      _
    // Predicated region
    $region54: #{_lambda_.10} parent=1 // pred_check
      _
    $region55: #{_lambda_.10} parent=1 // pred_check_branch
      %125 = sbr.rel (0) target = $region57
    $region56: #{_lambda_.10} parent=1 // pred_region
      %126 = dma.done [#allocation12], 16
    $region57: #{_lambda_.10} parent=1 // pred_fallthru
      _
    // Predicated region
    $region58: #{_lambda_.10} parent=1 // pred_check
      _
    $region59: #{_lambda_.10} parent=1 // pred_check_branch
      %128 = sbr.rel (0) target = $region61
    $region60: #{_lambda_.10} parent=1 // pred_region
      %129 = dma.done [#allocation12], 512
    $region61: #{_lambda_.10} parent=1 // pred_fallthru
      _
    // Predicated region
    $region62: #{_lambda_.10} parent=1 // pred_check
      _
    $region63: #{_lambda_.10} parent=1 // pred_check_branch
      %131 = sbr.rel (0) target = $region65
    $region64: #{_lambda_.10} parent=1 // pred_region
      %132 = dma.done [#allocation15], 16
    $region65: #{_lambda_.10} parent=1 // pred_fallthru
      _
    %v133 = vld [vmem:[#allocation5] sm:$0xff]
    %v134 = vld [vmem:[#allocation5 + $0x8] sm:$0xff]
    %v135 = vld [vmem:[#allocation7] sm:$0xff]
    %vm136 = vcmask 64512
    %v138 = vsel %vm136, %v133, 0
    %v141 = vsel %vm136, %v134, 0
    %143 = vmatprep.subr.mxu0 0.0
    %144 = vmatpush1.msra.mxu0 %v135
    %145 = vmatprep.subr.mxu0 0.0
    %146 = vmatpush1.msra.mxu0 0.0
    %147 = vmatprep.subr.mxu0 0.0
    %148 = vmatpush1.msra.mxu0 0.0
    %149 = vmatprep.subr.mxu0 0.0
    %150 = vmatpush1.msra.mxu0 0.0
    %151 = vmatprep.subr.mxu0 0.0
    %152 = vmatpush1.msra.mxu0 0.0
    %153 = vmatprep.subr.mxu0 0.0
    %154 = vmatpush1.msra.mxu0 0.0
    %155 = vmatprep.subr.mxu0 0.0
    %156 = vmatpush1.msra.mxu0 0.0
    %157 = vmatprep.subr.mxu0 0.0
    %158 = vmatpush1.msra.mxu0 0.0
    %159 = vmatprep.subr.mxu0 0.0
    %160 = vmatpush1.msra.mxu0 0.0
    %161 = vmatprep.subr.mxu0 0.0
    %162 = vmatpush1.msra.mxu0 0.0
    %163 = vmatprep.subr.mxu0 0.0
    %164 = vmatpush1.msra.mxu0 0.0
    %165 = vmatprep.subr.mxu0 0.0
    %166 = vmatpush1.msra.mxu0 0.0
    %167 = vmatprep.subr.mxu0 0.0
    %168 = vmatpush1.msra.mxu0 0.0
    %169 = vmatprep.subr.mxu0 0.0
    %170 = vmatpush1.msra.mxu0 0.0
    %171 = vmatprep.subr.mxu0 0.0
    %172 = vmatpush1.msra.mxu0 0.0
    %173 = vmatprep.subr.mxu0 0.0
    %174 = vmatpush1.msra.mxu0 0.0
    %175 = vmatprep.subr.mxu0 0.0
    %176 = vmatpush1.msra.mxu0 0.0
    %177 = vmatprep.subr.mxu0 0.0
    %178 = vmatpush1.msra.mxu0 0.0
    %179 = vmatprep.subr.mxu0 0.0
    %180 = vmatpush1.msra.mxu0 0.0
    %181 = vmatprep.subr.mxu0 0.0
    %182 = vmatpush1.msra.mxu0 0.0
    %183 = vmatprep.subr.mxu0 0.0
    %184 = vmatpush1.msra.mxu0 0.0
    %185 = vmatprep.subr.mxu0 0.0
    %186 = vmatpush1.msra.mxu0 0.0
    %187 = vmatprep.subr.mxu0 0.0
    %188 = vmatpush1.msra.mxu0 0.0
    %189 = vmatprep.subr.mxu0 0.0
    %190 = vmatpush1.msra.mxu0 0.0
    %191 = vmatprep.subr.mxu0 0.0
    %192 = vmatpush1.msra.mxu0 0.0
    %193 = vmatprep.subr.mxu0 0.0
    %194 = vmatpush1.msra.mxu0 0.0
    %195 = vmatprep.subr.mxu0 0.0
    %196 = vmatpush1.msra.mxu0 0.0
    %197 = vmatprep.subr.mxu0 0.0
    %198 = vmatpush1.msra.mxu0 0.0
    %199 = vmatprep.subr.mxu0 0.0
    %200 = vmatpush1.msra.mxu0 0.0
    %201 = vmatprep.subr.mxu0 0.0
    %202 = vmatpush1.msra.mxu0 0.0
    %203 = vmatprep.subr.mxu0 0.0
    %204 = vmatpush1.msra.mxu0 0.0
    %205 = vmatprep.subr.mxu0 0.0
    %206 = vmatpush1.msra.mxu0 0.0
    %207 = vmatprep.mubr.f32.mxu0 0.0
    %208 = vmatmul.mubr.f32.gmra.mrb[0].mxu0 %v138
    %v209 = vpop.f32.mrb[0].mxu0
    %v210 = vadd.f32 0.0, %v209
    %v211 = vpop.f32.mrb[0].mxu0
    %212 = vmatprep.mubr.f32.mxu0 0.0
    %213 = vmatmul.mubr.f32.gmra.mrb[0].mxu0 %v141
    %v214 = vpop.f32.mrb[0].mxu0
    %v215 = vadd.f32 0.0, %v214
    %v216 = vpop.f32.mrb[0].mxu0
    %217 = vdwg.mxu0
    %v218 = vld [vmem:[#allocation2] sm:$0xff]
    %v219 = vld [vmem:[#allocation2 + $0x8] sm:$0xff]
    %v220 = vld [vmem:[#allocation8] sm:$0xff]
    %v221 = vld [vmem:[#allocation8 + $0x8] sm:$0xff]
    %v222 = vld [vmem:[#allocation8 + $0x10] sm:$0xff]
    %v223 = vld [vmem:[#allocation8 + $0x18] sm:$0xff]
    %v224 = vld [vmem:[#allocation10] sm:$0xff]
    %v225 = vld [vmem:[#allocation10 + $0x8] sm:$0xff]
    %v226 = vld [vmem:[#allocation10 + $0x10] sm:$0xff]
    %v227 = vld [vmem:[#allocation10 + $0x18] sm:$0xff]
    %vm228 = vcmask 261120
    %v230 = vsel %vm228, %v210, 0
    %v233 = vsel %vm228, %v215, 0
    %235 = vmatprep.subr.mxu0 0.0
    %236 = vmatpush1.msra.mxu0 %v224
    %237 = vmatprep.subr.mxu0 0.0
    %238 = vmatpush1.msra.mxu0 %v225
    %239 = vmatprep.subr.mxu0 0.0
    %240 = vmatpush1.msra.mxu0 %v226
    %241 = vmatprep.subr.mxu0 0.0
    %242 = vmatpush1.msra.mxu0 %v227
    %243 = vmatprep.subr.mxu0 0.0
    %244 = vmatpush1.msra.mxu0 0.0
    %245 = vmatprep.subr.mxu0 0.0
    %246 = vmatpush1.msra.mxu0 0.0
    %247 = vmatprep.subr.mxu0 0.0
    %248 = vmatpush1.msra.mxu0 0.0
    %249 = vmatprep.subr.mxu0 0.0
    %250 = vmatpush1.msra.mxu0 0.0
    %251 = vmatprep.subr.mxu0 0.0
    %252 = vmatpush1.msra.mxu0 0.0
    %253 = vmatprep.subr.mxu0 0.0
    %254 = vmatpush1.msra.mxu0 0.0
    %255 = vmatprep.subr.mxu0 0.0
    %256 = vmatpush1.msra.mxu0 0.0
    %257 = vmatprep.subr.mxu0 0.0
    %258 = vmatpush1.msra.mxu0 0.0
    %259 = vmatprep.subr.mxu0 0.0
    %260 = vmatpush1.msra.mxu0 0.0
    %261 = vmatprep.subr.mxu0 0.0
    %262 = vmatpush1.msra.mxu0 0.0
    %263 = vmatprep.subr.mxu0 0.0
    %264 = vmatpush1.msra.mxu0 0.0
    %265 = vmatprep.subr.mxu0 0.0
    %266 = vmatpush1.msra.mxu0 0.0
    %267 = vmatprep.subr.mxu0 0.0
    %268 = vmatpush1.msra.mxu0 0.0
    %269 = vmatprep.subr.mxu0 0.0
    %270 = vmatpush1.msra.mxu0 0.0
    %271 = vmatprep.subr.mxu0 0.0
    %272 = vmatpush1.msra.mxu0 0.0
    %273 = vmatprep.subr.mxu0 0.0
    %274 = vmatpush1.msra.mxu0 0.0
    %275 = vmatprep.subr.mxu0 0.0
    %276 = vmatpush1.msra.mxu0 0.0
    %277 = vmatprep.subr.mxu0 0.0
    %278 = vmatpush1.msra.mxu0 0.0
    %279 = vmatprep.subr.mxu0 0.0
    %280 = vmatpush1.msra.mxu0 0.0
    %281 = vmatprep.subr.mxu0 0.0
    %282 = vmatpush1.msra.mxu0 0.0
    %283 = vmatprep.subr.mxu0 0.0
    %284 = vmatpush1.msra.mxu0 0.0
    %285 = vmatprep.subr.mxu0 0.0
    %286 = vmatpush1.msra.mxu0 0.0
    %287 = vmatprep.subr.mxu0 0.0
    %288 = vmatpush1.msra.mxu0 0.0
    %289 = vmatprep.subr.mxu0 0.0
    %290 = vmatpush1.msra.mxu0 0.0
    %291 = vmatprep.subr.mxu0 0.0
    %292 = vmatpush1.msra.mxu0 0.0
    %293 = vmatprep.subr.mxu0 0.0
    %294 = vmatpush1.msra.mxu0 0.0
    %295 = vmatprep.subr.mxu0 0.0
    %296 = vmatpush1.msra.mxu0 0.0
    %297 = vmatprep.subr.mxu0 0.0
    %298 = vmatpush1.msra.mxu0 0.0
    %299 = vmatprep.mubr.f32.mxu0 0.0
    %300 = vmatmul.mubr.f32.gmra.mrb[0].mxu0 %v230
    %v301 = vpop.f32.mrb[0].mxu0
    %v302 = vadd.f32 0.0, %v301
    %v303 = vpop.f32.mrb[0].mxu0
    %304 = vmatprep.mubr.f32.mxu0 0.0
    %305 = vmatmul.mubr.f32.gmra.mrb[0].mxu0 %v233
    %v306 = vpop.f32.mrb[0].mxu0
    %v307 = vadd.f32 0.0, %v306
    %v308 = vpop.f32.mrb[0].mxu0
    %309 = vdwg.mxu0
    %v311 = vsel %vm228, %v218, 0
    %v314 = vsel %vm228, %v219, 0
    %316 = vmatprep.subr.mxu0 0.0
    %317 = vmatpush1.msra.mxu0 %v220
    %318 = vmatprep.subr.mxu0 0.0
    %319 = vmatpush1.msra.mxu0 %v221
    %320 = vmatprep.subr.mxu0 0.0
    %321 = vmatpush1.msra.mxu0 %v222
    %322 = vmatprep.subr.mxu0 0.0
    %323 = vmatpush1.msra.mxu0 %v223
    %324 = vmatprep.subr.mxu0 0.0
    %325 = vmatpush1.msra.mxu0 0.0
    %326 = vmatprep.subr.mxu0 0.0
    %327 = vmatpush1.msra.mxu0 0.0
    %328 = vmatprep.subr.mxu0 0.0
    %329 = vmatpush1.msra.mxu0 0.0
    %330 = vmatprep.subr.mxu0 0.0
    %331 = vmatpush1.msra.mxu0 0.0
    %332 = vmatprep.subr.mxu0 0.0
    %333 = vmatpush1.msra.mxu0 0.0
    %334 = vmatprep.subr.mxu0 0.0
    %335 = vmatpush1.msra.mxu0 0.0
    %336 = vmatprep.subr.mxu0 0.0
    %337 = vmatpush1.msra.mxu0 0.0
    %338 = vmatprep.subr.mxu0 0.0
    %339 = vmatpush1.msra.mxu0 0.0
    %340 = vmatprep.subr.mxu0 0.0
    %341 = vmatpush1.msra.mxu0 0.0
    %342 = vmatprep.subr.mxu0 0.0
    %343 = vmatpush1.msra.mxu0 0.0
    %344 = vmatprep.subr.mxu0 0.0
    %345 = vmatpush1.msra.mxu0 0.0
    %346 = vmatprep.subr.mxu0 0.0
    %347 = vmatpush1.msra.mxu0 0.0
    %348 = vmatprep.subr.mxu0 0.0
    %349 = vmatpush1.msra.mxu0 0.0
    %350 = vmatprep.subr.mxu0 0.0
    %351 = vmatpush1.msra.mxu0 0.0
    %352 = vmatprep.subr.mxu0 0.0
    %353 = vmatpush1.msra.mxu0 0.0
    %354 = vmatprep.subr.mxu0 0.0
    %355 = vmatpush1.msra.mxu0 0.0
    %356 = vmatprep.subr.mxu0 0.0
    %357 = vmatpush1.msra.mxu0 0.0
    %358 = vmatprep.subr.mxu0 0.0
    %359 = vmatpush1.msra.mxu0 0.0
    %360 = vmatprep.subr.mxu0 0.0
    %361 = vmatpush1.msra.mxu0 0.0
    %362 = vmatprep.subr.mxu0 0.0
    %363 = vmatpush1.msra.mxu0 0.0
    %364 = vmatprep.subr.mxu0 0.0
    %365 = vmatpush1.msra.mxu0 0.0
    %366 = vmatprep.subr.mxu0 0.0
    %367 = vmatpush1.msra.mxu0 0.0
    %368 = vmatprep.subr.mxu0 0.0
    %369 = vmatpush1.msra.mxu0 0.0
    %370 = vmatprep.subr.mxu0 0.0
    %371 = vmatpush1.msra.mxu0 0.0
    %372 = vmatprep.subr.mxu0 0.0
    %373 = vmatpush1.msra.mxu0 0.0
    %374 = vmatprep.subr.mxu0 0.0
    %375 = vmatpush1.msra.mxu0 0.0
    %376 = vmatprep.subr.mxu0 0.0
    %377 = vmatpush1.msra.mxu0 0.0
    %378 = vmatprep.subr.mxu0 0.0
    %379 = vmatpush1.msra.mxu0 0.0
    %380 = vmatprep.mubr.f32.mxu0 0.0
    %381 = vmatmul.mubr.f32.gmra.mrb[0].mxu0 %v311
    %v382 = vpop.f32.mrb[0].mxu0
    %v383 = vadd.f32 %v302, %v382
    %v384 = vpop.f32.mrb[0].mxu0
    %385 = vmatprep.mubr.f32.mxu0 0.0
    %386 = vmatmul.mubr.f32.gmra.mrb[0].mxu0 %v314
    %v387 = vpop.f32.mrb[0].mxu0
    %v388 = vadd.f32 %v307, %v387
    %v389 = vpop.f32.mrb[0].mxu0
    %390 = vdwg.mxu0
    %v391 = vld [vmem:[#allocation11] sm:$0x1]
    %v393 = vlaneseq
    %v394 = vshrl.u32 %v393, 7
    %v395 = vsub.s32 0, %v394
    %v396 = vrot.slane %v391, %v395
    %v398 = vadd.f32 %v383, %v396
    %v399 = vadd.f32 %v388, %v396
    %v400 = vmax.f32 %v398, 0.0
    %v401 = vmax.f32 %v399, 0.0
    %v402 = vld [vmem:[#allocation13] sm:$0xff]
    %v403 = vld [vmem:[#allocation13 + $0x8] sm:$0xff]
    %v404 = vld [vmem:[#allocation13 + $0x10] sm:$0xff]
    %v405 = vld [vmem:[#allocation13 + $0x18] sm:$0xff]
    %v406 = vld [vmem:[#allocation14] sm:$0x1]
    %v408 = vlaneseq
    %v409 = vshrl.u32 %v408, 7
    %v410 = vsub.s32 0, %v409
    %v411 = vrot.slane %v406, %v410
    %v414 = vsel %vm228, %v400, 0
    %v417 = vsel %vm228, %v401, 0
    %419 = vmatprep.subr.mxu0 0.0
    %420 = vmatpush1.msra.mxu0 %v402
    %421 = vmatprep.subr.mxu0 0.0
    %422 = vmatpush1.msra.mxu0 %v403
    %423 = vmatprep.subr.mxu0 0.0
    %424 = vmatpush1.msra.mxu0 %v404
    %425 = vmatprep.subr.mxu0 0.0
    %426 = vmatpush1.msra.mxu0 %v405
    %427 = vmatprep.subr.mxu0 0.0
    %428 = vmatpush1.msra.mxu0 0.0
    %429 = vmatprep.subr.mxu0 0.0
    %430 = vmatpush1.msra.mxu0 0.0
    %431 = vmatprep.subr.mxu0 0.0
    %432 = vmatpush1.msra.mxu0 0.0
    %433 = vmatprep.subr.mxu0 0.0
    %434 = vmatpush1.msra.mxu0 0.0
    %435 = vmatprep.subr.mxu0 0.0
    %436 = vmatpush1.msra.mxu0 0.0
    %437 = vmatprep.subr.mxu0 0.0
    %438 = vmatpush1.msra.mxu0 0.0
    %439 = vmatprep.subr.mxu0 0.0
    %440 = vmatpush1.msra.mxu0 0.0
    %441 = vmatprep.subr.mxu0 0.0
    %442 = vmatpush1.msra.mxu0 0.0
    %443 = vmatprep.subr.mxu0 0.0
    %444 = vmatpush1.msra.mxu0 0.0
    %445 = vmatprep.subr.mxu0 0.0
    %446 = vmatpush1.msra.mxu0 0.0
    %447 = vmatprep.subr.mxu0 0.0
    %448 = vmatpush1.msra.mxu0 0.0
    %449 = vmatprep.subr.mxu0 0.0
    %450 = vmatpush1.msra.mxu0 0.0
    %451 = vmatprep.subr.mxu0 0.0
    %452 = vmatpush1.msra.mxu0 0.0
    %453 = vmatprep.subr.mxu0 0.0
    %454 = vmatpush1.msra.mxu0 0.0
    %455 = vmatprep.subr.mxu0 0.0
    %456 = vmatpush1.msra.mxu0 0.0
    %457 = vmatprep.subr.mxu0 0.0
    %458 = vmatpush1.msra.mxu0 0.0
    %459 = vmatprep.subr.mxu0 0.0
    %460 = vmatpush1.msra.mxu0 0.0
    %461 = vmatprep.subr.mxu0 0.0
    %462 = vmatpush1.msra.mxu0 0.0
    %463 = vmatprep.subr.mxu0 0.0
    %464 = vmatpush1.msra.mxu0 0.0
    %465 = vmatprep.subr.mxu0 0.0
    %466 = vmatpush1.msra.mxu0 0.0
    %467 = vmatprep.subr.mxu0 0.0
    %468 = vmatpush1.msra.mxu0 0.0
    %469 = vmatprep.subr.mxu0 0.0
    %470 = vmatpush1.msra.mxu0 0.0
    %471 = vmatprep.subr.mxu0 0.0
    %472 = vmatpush1.msra.mxu0 0.0
    %473 = vmatprep.subr.mxu0 0.0
    %474 = vmatpush1.msra.mxu0 0.0
    %475 = vmatprep.subr.mxu0 0.0
    %476 = vmatpush1.msra.mxu0 0.0
    %477 = vmatprep.subr.mxu0 0.0
    %478 = vmatpush1.msra.mxu0 0.0
    %479 = vmatprep.subr.mxu0 0.0
    %480 = vmatpush1.msra.mxu0 0.0
    %481 = vmatprep.subr.mxu0 0.0
    %482 = vmatpush1.msra.mxu0 0.0
    %483 = vmatprep.mubr.f32.mxu0 0.0
    %484 = vmatmul.mubr.f32.gmra.mrb[0].mxu0 %v414
    %v485 = vpop.f32.mrb[0].mxu0
    %v486 = vadd.f32 %v411, %v485
    %v487 = vpop.f32.mrb[0].mxu0
    %488 = vmatprep.mubr.f32.mxu0 0.0
    %489 = vmatmul.mubr.f32.gmra.mrb[0].mxu0 %v417
    %v490 = vpop.f32.mrb[0].mxu0
    %v491 = vadd.f32 %v411, %v490
    %v492 = vpop.f32.mrb[0].mxu0
    %493 = vdwg.mxu0
    %v494 = vmax.f32 %v486, 0.0
    %v495 = vmax.f32 %v491, 0.0
    %496 = vst.msk [vmem:[#allocation16] sm:$0xff] %vm228, %v494
    %497 = vst.msk [vmem:[#allocation16 + $0x8] sm:$0xff] %vm228, %v495
    // Predicated region
    $region66: #{_lambda_.10} parent=1 // pred_check
      _
    $region67: #{_lambda_.10} parent=1 // pred_check_branch
      %499 = sbr.rel (0) target = $region69
    $region68: #{_lambda_.10} parent=1 // pred_region
      %s501 = ssub.s32 256, 256
      %502 = vsyncadd [#allocation4], %s501
      %s503 = sshll.u32 [#allocation16], 4
      %s504 = int_to_ptr.vmem [resolvable:$true] %s503
      %509 = dma.vmem_to_hbm [thread:$0]  %s504, 256, %s8, [#allocation4], 128, 128, 8
    $region69: #{_lambda_.10} parent=1 // pred_fallthru
      _
    // Predicated region
    $region70: #{_lambda_.10} parent=1 // pred_check
      _
    $region71: #{_lambda_.10} parent=1 // pred_check_branch
      %511 = sbr.rel (0) target = $region73
    $region72: #{_lambda_.10} parent=1 // pred_region
      %512 = dma.done [#allocation4], 256
    $region73: #{_lambda_.10} parent=1 // pred_fallthru
      _
    %513 = vsyncpa [#allocation3], 1
    %514 = vsyncpa [#allocation6], 1
    %515 = vsyncpa [#allocation9], 1
    %516 = vsyncpa [#allocation12], 1
    %517 = vsyncpa [#allocation15], 1
    %518 = vsyncpa [#allocation4], 1

// kernel: _lambda_.11
$region0: #{_lambda_.11}
  #allocation0 [shape = 'u32[]', space=smem, size = 0x4, offset = 0x4, fixed_abs, tag = 'smem constant byte address 0x4 - core index']
  #allocation1 [shape = 'u32[144,128]{1,0:T(1,128)}', space=vmem, size = 0x12000, scoped, tag = 'internal scratch']
  %s0 = inlined_call_operand.hbm [shape: f32[64,4], index: 0, kind: input, shape index: {}]
  %s1 = inlined_call_operand.hbm [shape: f32[64,16], index: 1, kind: input, shape index: {}]
  %s2 = inlined_call_operand.hbm [shape: f32[16,32], index: 2, kind: input, shape index: {}]
  %s3 = inlined_call_operand.hbm [shape: f32[4,32], index: 3, kind: input, shape index: {}]
  %s4 = inlined_call_operand.hbm [shape: f32[32,32], index: 4, kind: input, shape index: {}]
  %s5 = inlined_call_operand.hbm [shape: f32[1,32], index: 5, kind: input, shape index: {}]
  %s6 = inlined_call_operand.hbm [shape: f32[32,8], index: 6, kind: input, shape index: {}]
  %s7 = inlined_call_operand.hbm [shape: f32[1,8], index: 7, kind: input, shape index: {}]
  %s8 = inlined_call_operand.hbm [shape: f32[64,8], index: 8, kind: output, shape index: {}]
  %s9 = sld [smem:[#allocation0]]
  $region74: #{_lambda_.11} parent=0
    _
  %s11 = ssub.s32 1, %s9
  %s12 = scalar_select 0, %s11, %s9
  $region1: #{_lambda_.11} parent=0
    #allocation2 [shape = 'u8[32768]{0}', space=vmem, size = 0x8000, scoped, tag = 'input window, operand 0, single buffered']
    #allocation3 [shape = 's32[1]{0}', space=sflag, size = 0x4, scoped, tag = 'scoped memory for _lambda_.11']
    #allocation4 [shape = 's32[1]{0}', space=sflag, size = 0x4, scoped, tag = 'scoped memory for _lambda_.11']
    #allocation5 [shape = 'u8[32768]{0}', space=vmem, size = 0x8000, scoped, tag = 'input window, operand 1, single buffered']
    #allocation6 [shape = 's32[1]{0}', space=sflag, size = 0x4, scoped, tag = 'scoped memory for _lambda_.11']
    #allocation7 [shape = 'u8[8192]{0}', space=vmem, size = 0x2000, scoped, tag = 'input window, operand 2, single buffered']
    #allocation8 [shape = 'u8[2048]{0}', space=vmem, size = 0x800, scoped, tag = 'input window, operand 3, single buffered']
    #allocation9 [shape = 's32[1]{0}', space=sflag, size = 0x4, scoped, tag = 'scoped memory for _lambda_.11']
    #allocation10 [shape = 'u8[16384]{0}', space=vmem, size = 0x4000, scoped, tag = 'input window, operand 4, single buffered']
    #allocation11 [shape = 'u8[512]{0}', space=vmem, size = 0x400, scoped, tag = 'input window, operand 5, single buffered']
    #allocation12 [shape = 's32[1]{0}', space=sflag, size = 0x4, scoped, tag = 'scoped memory for _lambda_.11']
    #allocation13 [shape = 'u8[16384]{0}', space=vmem, size = 0x4000, scoped, tag = 'input window, operand 6, single buffered']
    #allocation14 [shape = 'u8[512]{0}', space=vmem, size = 0x400, scoped, tag = 'input window, operand 7, single buffered']
    #allocation15 [shape = 's32[1]{0}', space=sflag, size = 0x4, scoped, tag = 'scoped memory for _lambda_.11']
    #allocation16 [shape = 'u8[32768]{0}', space=vmem, size = 0x8000, scoped, tag = 'output window, operand 0, single buffered']
    %13 = vsyncpa [#allocation3], 0
    %14 = vsyncpa [#allocation6], 0
    %15 = vsyncpa [#allocation9], 0
    %16 = vsyncpa [#allocation12], 0
    %17 = vsyncpa [#allocation15], 0
    %18 = vsyncpa [#allocation4], 0
    // Predicated region
    $region2: #{_lambda_.11} parent=1 // pred_check
      _
    $region3: #{_lambda_.11} parent=1 // pred_check_branch
      %20 = sbr.rel (0) target = $region5
    $region4: #{_lambda_.11} parent=1 // pred_region
      %s22 = ssub.s32 1024, 1024
      %23 = vsyncadd [#allocation3], %s22
      %s24 = sshll.u32 [#allocation2], 4
      %s25 = int_to_ptr.vmem [resolvable:$true] %s24
      %30 = dma.hbm_to_vmem [thread:$0]  %s0, 1024, %s25, [#allocation3], 128, 128, 8
    $region5: #{_lambda_.11} parent=1 // pred_fallthru
      _
    // Predicated region
    $region6: #{_lambda_.11} parent=1 // pred_check
      _
    $region7: #{_lambda_.11} parent=1 // pred_check_branch
      %32 = sbr.rel (0) target = $region9
    $region8: #{_lambda_.11} parent=1 // pred_region
      %s34 = ssub.s32 1024, 1024
      %35 = vsyncadd [#allocation6], %s34
      %s36 = sshll.u32 [#allocation5], 4
      %s37 = int_to_ptr.vmem [resolvable:$true] %s36
      %42 = dma.hbm_to_vmem [thread:$0]  %s1, 1024, %s37, [#allocation6], 128, 128, 8
    $region9: #{_lambda_.11} parent=1 // pred_fallthru
      _
    // Predicated region
    $region10: #{_lambda_.11} parent=1 // pred_check
      _
    $region11: #{_lambda_.11} parent=1 // pred_check_branch
      %44 = sbr.rel (0) target = $region13
    $region12: #{_lambda_.11} parent=1 // pred_region
      %s46 = ssub.s32 256, 256
      %47 = vsyncadd [#allocation6], %s46
      %s48 = sshll.u32 [#allocation7], 4
      %s49 = int_to_ptr.vmem [resolvable:$true] %s48
      %54 = dma.hbm_to_vmem [thread:$0]  %s2, 256, %s49, [#allocation6], 128, 128, 8
    $region13: #{_lambda_.11} parent=1 // pred_fallthru
      _
    // Predicated region
    $region14: #{_lambda_.11} parent=1 // pred_check
      _
    $region15: #{_lambda_.11} parent=1 // pred_check_branch
      %56 = sbr.rel (0) target = $region17
    $region16: #{_lambda_.11} parent=1 // pred_region
      %s58 = ssub.s32 64, 64
      %59 = vsyncadd [#allocation9], %s58
      %s61 = sshll.u32 [#allocation8], 4
      %s62 = int_to_ptr.vmem [resolvable:$true] %s61
      %64 = dma.hbm_to_vmem [thread:$0]  %s3, 64, %s62, [#allocation9]
    $region17: #{_lambda_.11} parent=1 // pred_fallthru
      _
    // Predicated region
    $region18: #{_lambda_.11} parent=1 // pred_check
      _
    $region19: #{_lambda_.11} parent=1 // pred_check_branch
      %66 = sbr.rel (0) target = $region21
    $region20: #{_lambda_.11} parent=1 // pred_region
      %s68 = ssub.s32 512, 512
      %69 = vsyncadd [#allocation9], %s68
      %s70 = sshll.u32 [#allocation10], 4
      %s71 = int_to_ptr.vmem [resolvable:$true] %s70
      %76 = dma.hbm_to_vmem [thread:$0]  %s4, 512, %s71, [#allocation9], 128, 128, 8
    $region21: #{_lambda_.11} parent=1 // pred_fallthru
      _
    // Predicated region
    $region22: #{_lambda_.11} parent=1 // pred_check
      _
    $region23: #{_lambda_.11} parent=1 // pred_check_branch
      %78 = sbr.rel (0) target = $region25
    $region24: #{_lambda_.11} parent=1 // pred_region
      %s80 = ssub.s32 16, 16
      %81 = vsyncadd [#allocation12], %s80
      %s83 = sshll.u32 [#allocation11], 4
      %s84 = int_to_ptr.vmem [resolvable:$true] %s83
      %86 = dma.hbm_to_vmem [thread:$0]  %s5, 16, %s84, [#allocation12]
    $region25: #{_lambda_.11} parent=1 // pred_fallthru
      _
    // Predicated region
    $region26: #{_lambda_.11} parent=1 // pred_check
      _
    $region27: #{_lambda_.11} parent=1 // pred_check_branch
      %88 = sbr.rel (0) target = $region29
    $region28: #{_lambda_.11} parent=1 // pred_region
      %s90 = ssub.s32 512, 512
      %91 = vsyncadd [#allocation12], %s90
      %s92 = sshll.u32 [#allocation13], 4
      %s93 = int_to_ptr.vmem [resolvable:$true] %s92
      %98 = dma.hbm_to_vmem [thread:$0]  %s6, 512, %s93, [#allocation12], 128, 128, 8
    $region29: #{_lambda_.11} parent=1 // pred_fallthru
      _
    // Predicated region
    $region30: #{_lambda_.11} parent=1 // pred_check
      _
    $region31: #{_lambda_.11} parent=1 // pred_check_branch
      %100 = sbr.rel (0) target = $region33
    $region32: #{_lambda_.11} parent=1 // pred_region
      %s102 = ssub.s32 16, 16
      %103 = vsyncadd [#allocation15], %s102
      %s105 = sshll.u32 [#allocation14], 4
      %s106 = int_to_ptr.vmem [resolvable:$true] %s105
      %108 = dma.hbm_to_vmem [thread:$0]  %s7, 16, %s106, [#allocation15]
    $region33: #{_lambda_.11} parent=1 // pred_fallthru
      _
    // Predicated region
    $region34: #{_lambda_.11} parent=1 // pred_check
      _
    $region35: #{_lambda_.11} parent=1 // pred_check_branch
      %110 = sbr.rel (0) target = $region37
    $region36: #{_lambda_.11} parent=1 // pred_region
      %111 = dma.done [#allocation3], 1024
    $region37: #{_lambda_.11} parent=1 // pred_fallthru
      _
    // Predicated region
    $region38: #{_lambda_.11} parent=1 // pred_check
      _
    $region39: #{_lambda_.11} parent=1 // pred_check_branch
      %113 = sbr.rel (0) target = $region41
    $region40: #{_lambda_.11} parent=1 // pred_region
      %114 = dma.done [#allocation6], 1024
    $region41: #{_lambda_.11} parent=1 // pred_fallthru
      _
    // Predicated region
    $region42: #{_lambda_.11} parent=1 // pred_check
      _
    $region43: #{_lambda_.11} parent=1 // pred_check_branch
      %116 = sbr.rel (0) target = $region45
    $region44: #{_lambda_.11} parent=1 // pred_region
      %117 = dma.done [#allocation6], 256
    $region45: #{_lambda_.11} parent=1 // pred_fallthru
      _
    // Predicated region
    $region46: #{_lambda_.11} parent=1 // pred_check
      _
    $region47: #{_lambda_.11} parent=1 // pred_check_branch
      %119 = sbr.rel (0) target = $region49
    $region48: #{_lambda_.11} parent=1 // pred_region
      %120 = dma.done [#allocation9], 64
    $region49: #{_lambda_.11} parent=1 // pred_fallthru
      _
    // Predicated region
    $region50: #{_lambda_.11} parent=1 // pred_check
      _
    $region51: #{_lambda_.11} parent=1 // pred_check_branch
      %122 = sbr.rel (0) target = $region53
    $region52: #{_lambda_.11} parent=1 // pred_region
      %123 = dma.done [#allocation9], 512
    $region53: #{_lambda_.11} parent=1 // pred_fallthru
      _
    // Predicated region
    $region54: #{_lambda_.11} parent=1 // pred_check
      _
    $region55: #{_lambda_.11} parent=1 // pred_check_branch
      %125 = sbr.rel (0) target = $region57
    $region56: #{_lambda_.11} parent=1 // pred_region
      %126 = dma.done [#allocation12], 16
    $region57: #{_lambda_.11} parent=1 // pred_fallthru
      _
    // Predicated region
    $region58: #{_lambda_.11} parent=1 // pred_check
      _
    $region59: #{_lambda_.11} parent=1 // pred_check_branch
      %128 = sbr.rel (0) target = $region61
    $region60: #{_lambda_.11} parent=1 // pred_region
      %129 = dma.done [#allocation12], 512
    $region61: #{_lambda_.11} parent=1 // pred_fallthru
      _
    // Predicated region
    $region62: #{_lambda_.11} parent=1 // pred_check
      _
    $region63: #{_lambda_.11} parent=1 // pred_check_branch
      %131 = sbr.rel (0) target = $region65
    $region64: #{_lambda_.11} parent=1 // pred_region
      %132 = dma.done [#allocation15], 16
    $region65: #{_lambda_.11} parent=1 // pred_fallthru
      _
    %v133 = vld [vmem:[#allocation5] sm:$0xff]
    %v134 = vld [vmem:[#allocation5 + $0x8] sm:$0xff]
    %v135 = vld [vmem:[#allocation5 + $0x10] sm:$0xff]
    %v136 = vld [vmem:[#allocation5 + $0x18] sm:$0xff]
    %v137 = vld [vmem:[#allocation5 + $0x20] sm:$0xff]
    %v138 = vld [vmem:[#allocation5 + $0x28] sm:$0xff]
    %v139 = vld [vmem:[#allocation5 + $0x30] sm:$0xff]
    %v140 = vld [vmem:[#allocation5 + $0x38] sm:$0xff]
    %v141 = vld [vmem:[#allocation7] sm:$0xff]
    %v142 = vld [vmem:[#allocation7 + $0x8] sm:$0xff]
    %vm143 = vcmask 130048
    %v145 = vsel %vm143, %v133, 0
    %v148 = vsel %vm143, %v134, 0
    %v151 = vsel %vm143, %v135, 0
    %v154 = vsel %vm143, %v136, 0
    %v157 = vsel %vm143, %v137, 0
    %v160 = vsel %vm143, %v138, 0
    %v163 = vsel %vm143, %v139, 0
    %v166 = vsel %vm143, %v140, 0
    %168 = vmatprep.subr.mxu0 0.0
    %169 = vmatpush1.msra.mxu0 %v141
    %170 = vmatprep.subr.mxu0 0.0
    %171 = vmatpush1.msra.mxu0 %v142
    %172 = vmatprep.subr.mxu0 0.0
    %173 = vmatpush1.msra.mxu0 0.0
    %174 = vmatprep.subr.mxu0 0.0
    %175 = vmatpush1.msra.mxu0 0.0
    %176 = vmatprep.subr.mxu0 0.0
    %177 = vmatpush1.msra.mxu0 0.0
    %178 = vmatprep.subr.mxu0 0.0
    %179 = vmatpush1.msra.mxu0 0.0
    %180 = vmatprep.subr.mxu0 0.0
    %181 = vmatpush1.msra.mxu0 0.0
    %182 = vmatprep.subr.mxu0 0.0
    %183 = vmatpush1.msra.mxu0 0.0
    %184 = vmatprep.subr.mxu0 0.0
    %185 = vmatpush1.msra.mxu0 0.0
    %186 = vmatprep.subr.mxu0 0.0
    %187 = vmatpush1.msra.mxu0 0.0
    %188 = vmatprep.subr.mxu0 0.0
    %189 = vmatpush1.msra.mxu0 0.0
    %190 = vmatprep.subr.mxu0 0.0
    %191 = vmatpush1.msra.mxu0 0.0
    %192 = vmatprep.subr.mxu0 0.0
    %193 = vmatpush1.msra.mxu0 0.0
    %194 = vmatprep.subr.mxu0 0.0
    %195 = vmatpush1.msra.mxu0 0.0
    %196 = vmatprep.subr.mxu0 0.0
    %197 = vmatpush1.msra.mxu0 0.0
    %198 = vmatprep.subr.mxu0 0.0
    %199 = vmatpush1.msra.mxu0 0.0
    %200 = vmatprep.subr.mxu0 0.0
    %201 = vmatpush1.msra.mxu0 0.0
    %202 = vmatprep.subr.mxu0 0.0
    %203 = vmatpush1.msra.mxu0 0.0
    %204 = vmatprep.subr.mxu0 0.0
    %205 = vmatpush1.msra.mxu0 0.0
    %206 = vmatprep.subr.mxu0 0.0
    %207 = vmatpush1.msra.mxu0 0.0
    %208 = vmatprep.subr.mxu0 0.0
    %209 = vmatpush1.msra.mxu0 0.0
    %210 = vmatprep.subr.mxu0 0.0
    %211 = vmatpush1.msra.mxu0 0.0
    %212 = vmatprep.subr.mxu0 0.0
    %213 = vmatpush1.msra.mxu0 0.0
    %214 = vmatprep.subr.mxu0 0.0
    %215 = vmatpush1.msra.mxu0 0.0
    %216 = vmatprep.subr.mxu0 0.0
    %217 = vmatpush1.msra.mxu0 0.0
    %218 = vmatprep.subr.mxu0 0.0
    %219 = vmatpush1.msra.mxu0 0.0
    %220 = vmatprep.subr.mxu0 0.0
    %221 = vmatpush1.msra.mxu0 0.0
    %222 = vmatprep.subr.mxu0 0.0
    %223 = vmatpush1.msra.mxu0 0.0
    %224 = vmatprep.subr.mxu0 0.0
    %225 = vmatpush1.msra.mxu0 0.0
    %226 = vmatprep.subr.mxu0 0.0
    %227 = vmatpush1.msra.mxu0 0.0
    %228 = vmatprep.subr.mxu0 0.0
    %229 = vmatpush1.msra.mxu0 0.0
    %230 = vmatprep.subr.mxu0 0.0
    %231 = vmatpush1.msra.mxu0 0.0
    %232 = vmatprep.mubr.f32.mxu0 0.0
    %233 = vmatmul.mubr.f32.gmra.mrb[0].mxu0 %v145
    %v234 = vpop.f32.mrb[0].mxu0
    %v235 = vadd.f32 0.0, %v234
    %v236 = vpop.f32.mrb[0].mxu0
    %237 = vmatprep.mubr.f32.mxu0 0.0
    %238 = vmatmul.mubr.f32.gmra.mrb[0].mxu0 %v148
    %v239 = vpop.f32.mrb[0].mxu0
    %v240 = vadd.f32 0.0, %v239
    %v241 = vpop.f32.mrb[0].mxu0
    %242 = vmatprep.mubr.f32.mxu0 0.0
    %243 = vmatmul.mubr.f32.gmra.mrb[0].mxu0 %v151
    %v244 = vpop.f32.mrb[0].mxu0
    %v245 = vadd.f32 0.0, %v244
    %v246 = vpop.f32.mrb[0].mxu0
    %247 = vmatprep.mubr.f32.mxu0 0.0
    %248 = vmatmul.mubr.f32.gmra.mrb[0].mxu0 %v154
    %v249 = vpop.f32.mrb[0].mxu0
    %v250 = vadd.f32 0.0, %v249
    %v251 = vpop.f32.mrb[0].mxu0
    %252 = vmatprep.mubr.f32.mxu0 0.0
    %253 = vmatmul.mubr.f32.gmra.mrb[0].mxu0 %v157
    %v254 = vpop.f32.mrb[0].mxu0
    %v255 = vadd.f32 0.0, %v254
    %v256 = vpop.f32.mrb[0].mxu0
    %257 = vmatprep.mubr.f32.mxu0 0.0
    %258 = vmatmul.mubr.f32.gmra.mrb[0].mxu0 %v160
    %v259 = vpop.f32.mrb[0].mxu0
    %v260 = vadd.f32 0.0, %v259
    %v261 = vpop.f32.mrb[0].mxu0
    %262 = vmatprep.mubr.f32.mxu0 0.0
    %263 = vmatmul.mubr.f32.gmra.mrb[0].mxu0 %v163
    %v264 = vpop.f32.mrb[0].mxu0
    %v265 = vadd.f32 0.0, %v264
    %v266 = vpop.f32.mrb[0].mxu0
    %267 = vmatprep.mubr.f32.mxu0 0.0
    %268 = vmatmul.mubr.f32.gmra.mrb[0].mxu0 %v166
    %v269 = vpop.f32.mrb[0].mxu0
    %v270 = vadd.f32 0.0, %v269
    %v271 = vpop.f32.mrb[0].mxu0
    %272 = vdwg.mxu0
    %v273 = vld [vmem:[#allocation2] sm:$0xff]
    %v274 = vld [vmem:[#allocation2 + $0x8] sm:$0xff]
    %v275 = vld [vmem:[#allocation2 + $0x10] sm:$0xff]
    %v276 = vld [vmem:[#allocation2 + $0x18] sm:$0xff]
    %v277 = vld [vmem:[#allocation2 + $0x20] sm:$0xff]
    %v278 = vld [vmem:[#allocation2 + $0x28] sm:$0xff]
    %v279 = vld [vmem:[#allocation2 + $0x30] sm:$0xff]
    %v280 = vld [vmem:[#allocation2 + $0x38] sm:$0xff]
    %v281 = vld [vmem:[#allocation8] sm:$0xf]
    %v282 = vld [vmem:[#allocation10] sm:$0xff]
    %v283 = vld [vmem:[#allocation10 + $0x8] sm:$0xff]
    %v284 = vld [vmem:[#allocation10 + $0x10] sm:$0xff]
    %v285 = vld [vmem:[#allocation10 + $0x18] sm:$0xff]
    %vm286 = vcmask 261120
    %v288 = vsel %vm286, %v235, 0
    %v291 = vsel %vm286, %v240, 0
    %v294 = vsel %vm286, %v245, 0
    %v297 = vsel %vm286, %v250, 0
    %v300 = vsel %vm286, %v255, 0
    %v303 = vsel %vm286, %v260, 0
    %v306 = vsel %vm286, %v265, 0
    %v309 = vsel %vm286, %v270, 0
    %311 = vmatprep.subr.mxu0 0.0
    %312 = vmatpush1.msra.mxu0 %v282
    %313 = vmatprep.subr.mxu0 0.0
    %314 = vmatpush1.msra.mxu0 %v283
    %315 = vmatprep.subr.mxu0 0.0
    %316 = vmatpush1.msra.mxu0 %v284
    %317 = vmatprep.subr.mxu0 0.0
    %318 = vmatpush1.msra.mxu0 %v285
    %319 = vmatprep.subr.mxu0 0.0
    %320 = vmatpush1.msra.mxu0 0.0
    %321 = vmatprep.subr.mxu0 0.0
    %322 = vmatpush1.msra.mxu0 0.0
    %323 = vmatprep.subr.mxu0 0.0
    %324 = vmatpush1.msra.mxu0 0.0
    %325 = vmatprep.subr.mxu0 0.0
    %326 = vmatpush1.msra.mxu0 0.0
    %327 = vmatprep.subr.mxu0 0.0
    %328 = vmatpush1.msra.mxu0 0.0
    %329 = vmatprep.subr.mxu0 0.0
    %330 = vmatpush1.msra.mxu0 0.0
    %331 = vmatprep.subr.mxu0 0.0
    %332 = vmatpush1.msra.mxu0 0.0
    %333 = vmatprep.subr.mxu0 0.0
    %334 = vmatpush1.msra.mxu0 0.0
    %335 = vmatprep.subr.mxu0 0.0
    %336 = vmatpush1.msra.mxu0 0.0
    %337 = vmatprep.subr.mxu0 0.0
    %338 = vmatpush1.msra.mxu0 0.0
    %339 = vmatprep.subr.mxu0 0.0
    %340 = vmatpush1.msra.mxu0 0.0
    %341 = vmatprep.subr.mxu0 0.0
    %342 = vmatpush1.msra.mxu0 0.0
    %343 = vmatprep.subr.mxu0 0.0
    %344 = vmatpush1.msra.mxu0 0.0
    %345 = vmatprep.subr.mxu0 0.0
    %346 = vmatpush1.msra.mxu0 0.0
    %347 = vmatprep.subr.mxu0 0.0
    %348 = vmatpush1.msra.mxu0 0.0
    %349 = vmatprep.subr.mxu0 0.0
    %350 = vmatpush1.msra.mxu0 0.0
    %351 = vmatprep.subr.mxu0 0.0
    %352 = vmatpush1.msra.mxu0 0.0
    %353 = vmatprep.subr.mxu0 0.0
    %354 = vmatpush1.msra.mxu0 0.0
    %355 = vmatprep.subr.mxu0 0.0
    %356 = vmatpush1.msra.mxu0 0.0
    %357 = vmatprep.subr.mxu0 0.0
    %358 = vmatpush1.msra.mxu0 0.0
    %359 = vmatprep.subr.mxu0 0.0
    %360 = vmatpush1.msra.mxu0 0.0
    %361 = vmatprep.subr.mxu0 0.0
    %362 = vmatpush1.msra.mxu0 0.0
    %363 = vmatprep.subr.mxu0 0.0
    %364 = vmatpush1.msra.mxu0 0.0
    %365 = vmatprep.subr.mxu0 0.0
    %366 = vmatpush1.msra.mxu0 0.0
    %367 = vmatprep.subr.mxu0 0.0
    %368 = vmatpush1.msra.mxu0 0.0
    %369 = vmatprep.subr.mxu0 0.0
    %370 = vmatpush1.msra.mxu0 0.0
    %371 = vmatprep.subr.mxu0 0.0
    %372 = vmatpush1.msra.mxu0 0.0
    %373 = vmatprep.subr.mxu0 0.0
    %374 = vmatpush1.msra.mxu0 0.0
    %375 = vmatprep.mubr.f32.mxu0 0.0
    %376 = vmatmul.mubr.f32.gmra.mrb[0].mxu0 %v288
    %v377 = vpop.f32.mrb[0].mxu0
    %v378 = vadd.f32 0.0, %v377
    %v379 = vpop.f32.mrb[0].mxu0
    %380 = vmatprep.mubr.f32.mxu0 0.0
    %381 = vmatmul.mubr.f32.gmra.mrb[0].mxu0 %v291
    %v382 = vpop.f32.mrb[0].mxu0
    %v383 = vadd.f32 0.0, %v382
    %v384 = vpop.f32.mrb[0].mxu0
    %385 = vmatprep.mubr.f32.mxu0 0.0
    %386 = vmatmul.mubr.f32.gmra.mrb[0].mxu0 %v294
    %v387 = vpop.f32.mrb[0].mxu0
    %v388 = vadd.f32 0.0, %v387
    %v389 = vpop.f32.mrb[0].mxu0
    %390 = vmatprep.mubr.f32.mxu0 0.0
    %391 = vmatmul.mubr.f32.gmra.mrb[0].mxu0 %v297
    %v392 = vpop.f32.mrb[0].mxu0
    %v393 = vadd.f32 0.0, %v392
    %v394 = vpop.f32.mrb[0].mxu0
    %395 = vmatprep.mubr.f32.mxu0 0.0
    %396 = vmatmul.mubr.f32.gmra.mrb[0].mxu0 %v300
    %v397 = vpop.f32.mrb[0].mxu0
    %v398 = vadd.f32 0.0, %v397
    %v399 = vpop.f32.mrb[0].mxu0
    %400 = vmatprep.mubr.f32.mxu0 0.0
    %401 = vmatmul.mubr.f32.gmra.mrb[0].mxu0 %v303
    %v402 = vpop.f32.mrb[0].mxu0
    %v403 = vadd.f32 0.0, %v402
    %v404 = vpop.f32.mrb[0].mxu0
    %405 = vmatprep.mubr.f32.mxu0 0.0
    %406 = vmatmul.mubr.f32.gmra.mrb[0].mxu0 %v306
    %v407 = vpop.f32.mrb[0].mxu0
    %v408 = vadd.f32 0.0, %v407
    %v409 = vpop.f32.mrb[0].mxu0
    %410 = vmatprep.mubr.f32.mxu0 0.0
    %411 = vmatmul.mubr.f32.gmra.mrb[0].mxu0 %v309
    %v412 = vpop.f32.mrb[0].mxu0
    %v413 = vadd.f32 0.0, %v412
    %v414 = vpop.f32.mrb[0].mxu0
    %415 = vdwg.mxu0
    %vm416 = vcmask 31744
    %v418 = vsel %vm416, %v273, 0
    %v421 = vsel %vm416, %v274, 0
    %v424 = vsel %vm416, %v275, 0
    %v427 = vsel %vm416, %v276, 0
    %v430 = vsel %vm416, %v277, 0
    %v433 = vsel %vm416, %v278, 0
    %v436 = vsel %vm416, %v279, 0
    %v439 = vsel %vm416, %v280, 0
    %vm441 = vcmask 1043456
    %v443 = vsel %vm441, %v281, 0
    %445 = vmatprep.subr.mxu0 0.0
    %446 = vmatpush1.msra.mxu0 %v443
    %447 = vmatprep.subr.mxu0 0.0
    %448 = vmatpush1.msra.mxu0 0.0
    %449 = vmatprep.subr.mxu0 0.0
    %450 = vmatpush1.msra.mxu0 0.0
    %451 = vmatprep.subr.mxu0 0.0
    %452 = vmatpush1.msra.mxu0 0.0
    %453 = vmatprep.subr.mxu0 0.0
    %454 = vmatpush1.msra.mxu0 0.0
    %455 = vmatprep.subr.mxu0 0.0
    %456 = vmatpush1.msra.mxu0 0.0
    %457 = vmatprep.subr.mxu0 0.0
    %458 = vmatpush1.msra.mxu0 0.0
    %459 = vmatprep.subr.mxu0 0.0
    %460 = vmatpush1.msra.mxu0 0.0
    %461 = vmatprep.subr.mxu0 0.0
    %462 = vmatpush1.msra.mxu0 0.0
    %463 = vmatprep.subr.mxu0 0.0
    %464 = vmatpush1.msra.mxu0 0.0
    %465 = vmatprep.subr.mxu0 0.0
    %466 = vmatpush1.msra.mxu0 0.0
    %467 = vmatprep.subr.mxu0 0.0
    %468 = vmatpush1.msra.mxu0 0.0
    %469 = vmatprep.subr.mxu0 0.0
    %470 = vmatpush1.msra.mxu0 0.0
    %471 = vmatprep.subr.mxu0 0.0
    %472 = vmatpush1.msra.mxu0 0.0
    %473 = vmatprep.subr.mxu0 0.0
    %474 = vmatpush1.msra.mxu0 0.0
    %475 = vmatprep.subr.mxu0 0.0
    %476 = vmatpush1.msra.mxu0 0.0
    %477 = vmatprep.subr.mxu0 0.0
    %478 = vmatpush1.msra.mxu0 0.0
    %479 = vmatprep.subr.mxu0 0.0
    %480 = vmatpush1.msra.mxu0 0.0
    %481 = vmatprep.subr.mxu0 0.0
    %482 = vmatpush1.msra.mxu0 0.0
    %483 = vmatprep.subr.mxu0 0.0
    %484 = vmatpush1.msra.mxu0 0.0
    %485 = vmatprep.subr.mxu0 0.0
    %486 = vmatpush1.msra.mxu0 0.0
    %487 = vmatprep.subr.mxu0 0.0
    %488 = vmatpush1.msra.mxu0 0.0
    %489 = vmatprep.subr.mxu0 0.0
    %490 = vmatpush1.msra.mxu0 0.0
    %491 = vmatprep.subr.mxu0 0.0
    %492 = vmatpush1.msra.mxu0 0.0
    %493 = vmatprep.subr.mxu0 0.0
    %494 = vmatpush1.msra.mxu0 0.0
    %495 = vmatprep.subr.mxu0 0.0
    %496 = vmatpush1.msra.mxu0 0.0
    %497 = vmatprep.subr.mxu0 0.0
    %498 = vmatpush1.msra.mxu0 0.0
    %499 = vmatprep.subr.mxu0 0.0
    %500 = vmatpush1.msra.mxu0 0.0
    %501 = vmatprep.subr.mxu0 0.0
    %502 = vmatpush1.msra.mxu0 0.0
    %503 = vmatprep.subr.mxu0 0.0
    %504 = vmatpush1.msra.mxu0 0.0
    %505 = vmatprep.subr.mxu0 0.0
    %506 = vmatpush1.msra.mxu0 0.0
    %507 = vmatprep.subr.mxu0 0.0
    %508 = vmatpush1.msra.mxu0 0.0
    %509 = vmatprep.mubr.f32.mxu0 0.0
    %510 = vmatmul.mubr.f32.gmra.mrb[0].mxu0 %v418
    %v511 = vpop.f32.mrb[0].mxu0
    %v512 = vadd.f32 %v378, %v511
    %v513 = vpop.f32.mrb[0].mxu0
    %514 = vmatprep.mubr.f32.mxu0 0.0
    %515 = vmatmul.mubr.f32.gmra.mrb[0].mxu0 %v421
    %v516 = vpop.f32.mrb[0].mxu0
    %v517 = vadd.f32 %v383, %v516
    %v518 = vpop.f32.mrb[0].mxu0
    %519 = vmatprep.mubr.f32.mxu0 0.0
    %520 = vmatmul.mubr.f32.gmra.mrb[0].mxu0 %v424
    %v521 = vpop.f32.mrb[0].mxu0
    %v522 = vadd.f32 %v388, %v521
    %v523 = vpop.f32.mrb[0].mxu0
    %524 = vmatprep.mubr.f32.mxu0 0.0
    %525 = vmatmul.mubr.f32.gmra.mrb[0].mxu0 %v427
    %v526 = vpop.f32.mrb[0].mxu0
    %v527 = vadd.f32 %v393, %v526
    %v528 = vpop.f32.mrb[0].mxu0
    %529 = vmatprep.mubr.f32.mxu0 0.0
    %530 = vmatmul.mubr.f32.gmra.mrb[0].mxu0 %v430
    %v531 = vpop.f32.mrb[0].mxu0
    %v532 = vadd.f32 %v398, %v531
    %v533 = vpop.f32.mrb[0].mxu0
    %534 = vmatprep.mubr.f32.mxu0 0.0
    %535 = vmatmul.mubr.f32.gmra.mrb[0].mxu0 %v433
    %v536 = vpop.f32.mrb[0].mxu0
    %v537 = vadd.f32 %v403, %v536
    %v538 = vpop.f32.mrb[0].mxu0
    %539 = vmatprep.mubr.f32.mxu0 0.0
    %540 = vmatmul.mubr.f32.gmra.mrb[0].mxu0 %v436
    %v541 = vpop.f32.mrb[0].mxu0
    %v542 = vadd.f32 %v408, %v541
    %v543 = vpop.f32.mrb[0].mxu0
    %544 = vmatprep.mubr.f32.mxu0 0.0
    %545 = vmatmul.mubr.f32.gmra.mrb[0].mxu0 %v439
    %v546 = vpop.f32.mrb[0].mxu0
    %v547 = vadd.f32 %v413, %v546
    %v548 = vpop.f32.mrb[0].mxu0
    %549 = vdwg.mxu0
    %v550 = vld [vmem:[#allocation11] sm:$0x1]
    %v552 = vlaneseq
    %v553 = vshrl.u32 %v552, 7
    %v554 = vsub.s32 0, %v553
    %v555 = vrot.slane %v550, %v554
    %v557 = vadd.f32 %v512, %v555
    %v558 = vadd.f32 %v517, %v555
    %v559 = vadd.f32 %v522, %v555
    %v560 = vadd.f32 %v527, %v555
    %v561 = vadd.f32 %v532, %v555
    %v562 = vadd.f32 %v537, %v555
    %v563 = vadd.f32 %v542, %v555
    %v564 = vadd.f32 %v547, %v555
    %v565 = vmax.f32 %v557, 0.0
    %v566 = vmax.f32 %v558, 0.0
    %v567 = vmax.f32 %v559, 0.0
    %v568 = vmax.f32 %v560, 0.0
    %v569 = vmax.f32 %v561, 0.0
    %v570 = vmax.f32 %v562, 0.0
    %v571 = vmax.f32 %v563, 0.0
    %v572 = vmax.f32 %v564, 0.0
    %v573 = vld [vmem:[#allocation13] sm:$0xff]
    %v574 = vld [vmem:[#allocation13 + $0x8] sm:$0xff]
    %v575 = vld [vmem:[#allocation13 + $0x10] sm:$0xff]
    %v576 = vld [vmem:[#allocation13 + $0x18] sm:$0xff]
    %v577 = vld [vmem:[#allocation14] sm:$0x1]
    %v579 = vlaneseq
    %v580 = vshrl.u32 %v579, 7
    %v581 = vsub.s32 0, %v580
    %v582 = vrot.slane %v577, %v581
    %v585 = vsel %vm286, %v565, 0
    %v588 = vsel %vm286, %v566, 0
    %v591 = vsel %vm286, %v567, 0
    %v594 = vsel %vm286, %v568, 0
    %v597 = vsel %vm286, %v569, 0
    %v600 = vsel %vm286, %v570, 0
    %v603 = vsel %vm286, %v571, 0
    %v606 = vsel %vm286, %v572, 0
    %608 = vmatprep.subr.mxu0 0.0
    %609 = vmatpush1.msra.mxu0 %v573
    %610 = vmatprep.subr.mxu0 0.0
    %611 = vmatpush1.msra.mxu0 %v574
    %612 = vmatprep.subr.mxu0 0.0
    %613 = vmatpush1.msra.mxu0 %v575
    %614 = vmatprep.subr.mxu0 0.0
    %615 = vmatpush1.msra.mxu0 %v576
    %616 = vmatprep.subr.mxu0 0.0
    %617 = vmatpush1.msra.mxu0 0.0
    %618 = vmatprep.subr.mxu0 0.0
    %619 = vmatpush1.msra.mxu0 0.0
    %620 = vmatprep.subr.mxu0 0.0
    %621 = vmatpush1.msra.mxu0 0.0
    %622 = vmatprep.subr.mxu0 0.0
    %623 = vmatpush1.msra.mxu0 0.0
    %624 = vmatprep.subr.mxu0 0.0
    %625 = vmatpush1.msra.mxu0 0.0
    %626 = vmatprep.subr.mxu0 0.0
    %627 = vmatpush1.msra.mxu0 0.0
    %628 = vmatprep.subr.mxu0 0.0
    %629 = vmatpush1.msra.mxu0 0.0
    %630 = vmatprep.subr.mxu0 0.0
    %631 = vmatpush1.msra.mxu0 0.0
    %632 = vmatprep.subr.mxu0 0.0
    %633 = vmatpush1.msra.mxu0 0.0
    %634 = vmatprep.subr.mxu0 0.0
    %635 = vmatpush1.msra.mxu0 0.0
    %636 = vmatprep.subr.mxu0 0.0
    %637 = vmatpush1.msra.mxu0 0.0
    %638 = vmatprep.subr.mxu0 0.0
    %639 = vmatpush1.msra.mxu0 0.0
    %640 = vmatprep.subr.mxu0 0.0
    %641 = vmatpush1.msra.mxu0 0.0
    %642 = vmatprep.subr.mxu0 0.0
    %643 = vmatpush1.msra.mxu0 0.0
    %644 = vmatprep.subr.mxu0 0.0
    %645 = vmatpush1.msra.mxu0 0.0
    %646 = vmatprep.subr.mxu0 0.0
    %647 = vmatpush1.msra.mxu0 0.0
    %648 = vmatprep.subr.mxu0 0.0
    %649 = vmatpush1.msra.mxu0 0.0
    %650 = vmatprep.subr.mxu0 0.0
    %651 = vmatpush1.msra.mxu0 0.0
    %652 = vmatprep.subr.mxu0 0.0
    %653 = vmatpush1.msra.mxu0 0.0
    %654 = vmatprep.subr.mxu0 0.0
    %655 = vmatpush1.msra.mxu0 0.0
    %656 = vmatprep.subr.mxu0 0.0
    %657 = vmatpush1.msra.mxu0 0.0
    %658 = vmatprep.subr.mxu0 0.0
    %659 = vmatpush1.msra.mxu0 0.0
    %660 = vmatprep.subr.mxu0 0.0
    %661 = vmatpush1.msra.mxu0 0.0
    %662 = vmatprep.subr.mxu0 0.0
    %663 = vmatpush1.msra.mxu0 0.0
    %664 = vmatprep.subr.mxu0 0.0
    %665 = vmatpush1.msra.mxu0 0.0
    %666 = vmatprep.subr.mxu0 0.0
    %667 = vmatpush1.msra.mxu0 0.0
    %668 = vmatprep.subr.mxu0 0.0
    %669 = vmatpush1.msra.mxu0 0.0
    %670 = vmatprep.subr.mxu0 0.0
    %671 = vmatpush1.msra.mxu0 0.0
    %672 = vmatprep.mubr.f32.mxu0 0.0
    %673 = vmatmul.mubr.f32.gmra.mrb[0].mxu0 %v585
    %v674 = vpop.f32.mrb[0].mxu0
    %v675 = vadd.f32 %v582, %v674
    %v676 = vpop.f32.mrb[0].mxu0
    %677 = vmatprep.mubr.f32.mxu0 0.0
    %678 = vmatmul.mubr.f32.gmra.mrb[0].mxu0 %v588
    %v679 = vpop.f32.mrb[0].mxu0
    %v680 = vadd.f32 %v582, %v679
    %v681 = vpop.f32.mrb[0].mxu0
    %682 = vmatprep.mubr.f32.mxu0 0.0
    %683 = vmatmul.mubr.f32.gmra.mrb[0].mxu0 %v591
    %v684 = vpop.f32.mrb[0].mxu0
    %v685 = vadd.f32 %v582, %v684
    %v686 = vpop.f32.mrb[0].mxu0
    %687 = vmatprep.mubr.f32.mxu0 0.0
    %688 = vmatmul.mubr.f32.gmra.mrb[0].mxu0 %v594
    %v689 = vpop.f32.mrb[0].mxu0
    %v690 = vadd.f32 %v582, %v689
    %v691 = vpop.f32.mrb[0].mxu0
    %692 = vmatprep.mubr.f32.mxu0 0.0
    %693 = vmatmul.mubr.f32.gmra.mrb[0].mxu0 %v597
    %v694 = vpop.f32.mrb[0].mxu0
    %v695 = vadd.f32 %v582, %v694
    %v696 = vpop.f32.mrb[0].mxu0
    %697 = vmatprep.mubr.f32.mxu0 0.0
    %698 = vmatmul.mubr.f32.gmra.mrb[0].mxu0 %v600
    %v699 = vpop.f32.mrb[0].mxu0
    %v700 = vadd.f32 %v582, %v699
    %v701 = vpop.f32.mrb[0].mxu0
    %702 = vmatprep.mubr.f32.mxu0 0.0
    %703 = vmatmul.mubr.f32.gmra.mrb[0].mxu0 %v603
    %v704 = vpop.f32.mrb[0].mxu0
    %v705 = vadd.f32 %v582, %v704
    %v706 = vpop.f32.mrb[0].mxu0
    %707 = vmatprep.mubr.f32.mxu0 0.0
    %708 = vmatmul.mubr.f32.gmra.mrb[0].mxu0 %v606
    %v709 = vpop.f32.mrb[0].mxu0
    %v710 = vadd.f32 %v582, %v709
    %v711 = vpop.f32.mrb[0].mxu0
    %712 = vdwg.mxu0
    %vm713 = vcmask 64512
    %714 = vst.msk [vmem:[#allocation16] sm:$0xff] %vm713, %v675
    %715 = vst.msk [vmem:[#allocation16 + $0x8] sm:$0xff] %vm713, %v680
    %716 = vst.msk [vmem:[#allocation16 + $0x10] sm:$0xff] %vm713, %v685
    %717 = vst.msk [vmem:[#allocation16 + $0x18] sm:$0xff] %vm713, %v690
    %718 = vst.msk [vmem:[#allocation16 + $0x20] sm:$0xff] %vm713, %v695
    %719 = vst.msk [vmem:[#allocation16 + $0x28] sm:$0xff] %vm713, %v700
    %720 = vst.msk [vmem:[#allocation16 + $0x30] sm:$0xff] %vm713, %v705
    %721 = vst.msk [vmem:[#allocation16 + $0x38] sm:$0xff] %vm713, %v710
    // Predicated region
    $region66: #{_lambda_.11} parent=1 // pred_check
      _
    $region67: #{_lambda_.11} parent=1 // pred_check_branch
      %723 = sbr.rel (0) target = $region69
    $region68: #{_lambda_.11} parent=1 // pred_region
      %s725 = ssub.s32 1024, 1024
      %726 = vsyncadd [#allocation4], %s725
      %s727 = sshll.u32 [#allocation16], 4
      %s728 = int_to_ptr.vmem [resolvable:$true] %s727
      %733 = dma.vmem_to_hbm [thread:$0]  %s728, 1024, %s8, [#allocation4], 128, 128, 8
    $region69: #{_lambda_.11} parent=1 // pred_fallthru
      _
    // Predicated region
    $region70: #{_lambda_.11} parent=1 // pred_check
      _
    $region71: #{_lambda_.11} parent=1 // pred_check_branch
      %735 = sbr.rel (0) target = $region73
    $region72: #{_lambda_.11} parent=1 // pred_region
      %736 = dma.done [#allocation4], 1024
    $region73: #{_lambda_.11} parent=1 // pred_fallthru
      _
    %737 = vsyncpa [#allocation3], 1
    %738 = vsyncpa [#allocation6], 1
    %739 = vsyncpa [#allocation9], 1
    %740 = vsyncpa [#allocation12], 1
    %741 = vsyncpa [#allocation15], 1
    %742 = vsyncpa [#allocation4], 1

</llo_original>
